<compile_context>
chip_gen: v6e
topology: v6e:2x2x1
jax: 0.10.0
libtpu: 0.0.40
codegen_flags: <defaults>
</compile_context>

<pallas_src>
import functools

import jax
import jax.numpy as jnp
from jax.experimental import pallas as pl
from jax.experimental.pallas import tpu as pltpu

HEADS = 8
DIM_HEAD = 32
LN_EPS = 1e-5                   # torch.nn.LayerNorm default
TM = 256                        # max row tile for the row-tiled matmul grids


def _vmem_limit_bytes():
    # Generation-aware scoped-VMEM cap (~3/4 of physical, clamped); falls back
    # to a universally-safe 32 MiB if the query is unavailable.
    try:
        cap = int(pltpu.get_tpu_info().vmem_capacity_bytes)
        return int(min(max(cap * 3 // 4, 16 * 2**20), 100 * 2**20))
    except Exception:
        return 32 * 2**20


VMEM_LIMIT = _vmem_limit_bytes()


def _row_tile(m):
    """Row tile: multiple of 8 sublanes, capped at TM, and chosen so the grid
    has >= 2 parallel steps whenever possible (both v7x TensorCores get work;
    no effect on single-TC v5e/v6e)."""
    if m <= 8:
        return m
    tm = min(TM, pl.cdiv(m, 2))
    tm = ((tm + 7) // 8) * 8
    return min(tm, m)


def _gelu_f32(x):
    # tanh-approx GELU (EUP-friendly, hides under the MXU-bound matmul).
    # TODO(synk): PyTorch nn.GELU defaults to exact erf; tanh approx differs ~1e-3.
    c = 0.7978845608028654  # sqrt(2/pi)
    return 0.5 * x * (1.0 + jnp.tanh(c * (x + 0.044715 * x * x * x)))


# ----------------------- fused (LayerNorm ->) matmul -------------------------

def _mm_ln_kernel(*refs, has_ln):
    if has_ln:
        a_ref, g_ref, b_ref, w_ref, o_ref = refs
    else:
        a_ref, w_ref, o_ref = refs
    x = a_ref[...].astype(jnp.float32)
    if has_ln:
        mu = jnp.mean(x, axis=-1, keepdims=True)
        var = jnp.mean((x - mu) ** 2, axis=-1, keepdims=True)
        x = (x - mu) * jax.lax.rsqrt(var + LN_EPS) * g_ref[...] + b_ref[...]
    y = jnp.dot(x.astype(jnp.bfloat16), w_ref[...],
                preferred_element_type=jnp.float32)
    o_ref[...] = y.astype(o_ref.dtype)


def mm_ln(a, w_bf16, *, ln=None, out_dtype=jnp.float32):
    """o = LayerNorm?(a) @ w — row-tiled grid, bf16 MXU operands, f32 acc."""
    m, k = a.shape
    kw, n = w_bf16.shape
    assert k == kw
    tm = _row_tile(m)
    grid = (pl.cdiv(m, tm),)

    operands = [a]
    in_specs = [pl.BlockSpec((tm, k), lambda i: (i, 0))]
    if ln is not None:
        g, b = ln
        operands += [g, b]
        in_specs += [pl.BlockSpec((1, k), lambda i: (0, 0)),
                     pl.BlockSpec((1, k), lambda i: (0, 0))]
    operands.append(w_bf16)
    in_specs.append(pl.BlockSpec((k, n), lambda i: (0, 0)))

    return pl.pallas_call(
        functools.partial(_mm_ln_kernel, has_ln=ln is not None),
        out_shape=jax.ShapeDtypeStruct((m, n), out_dtype),
        grid=grid,
        in_specs=in_specs,
        out_specs=pl.BlockSpec((tm, n), lambda i: (i, 0)),
        compiler_params=pltpu.CompilerParams(
            dimension_semantics=("parallel",),
            vmem_limit_bytes=VMEM_LIMIT),
    )(*operands)


# --------------------------- fused attention branch --------------------------

def _attn_kernel(qkv_ref, bias_ref, wo_ref, bo_ref, res_ref, o_ref, *, scale):
    inner = HEADS * DIM_HEAD
    outs = []
    for h in range(HEADS):           # unrolled per-head loop, all heads per step
        # Static bf16 (N, D) slices of the fused qkv tile; scale folded into q.
        q = qkv_ref[0, :, h * DIM_HEAD:(h + 1) * DIM_HEAD] * scale
        k = qkv_ref[0, :, inner + h * DIM_HEAD: inner + (h + 1) * DIM_HEAD]
        v = qkv_ref[0, :, 2 * inner + h * DIM_HEAD: 2 * inner + (h + 1) * DIM_HEAD]
        s = jax.lax.dot_general(q, k, (((1,), (1,)), ((), ())),
                                preferred_element_type=jnp.float32)
        s = s + bias_ref[h]
        m = jnp.max(s, axis=-1, keepdims=True)
        p = jnp.exp(s - m)
        l = jnp.sum(p, axis=-1, keepdims=True)
        o_h = jnp.dot(p.astype(jnp.bfloat16), v,
                      preferred_element_type=jnp.float32)
        # EUP approx reciprocal for the softmax denominator (free under the MXU).
        outs.append(o_h * pl.reciprocal(l, approx=True))
    o = jnp.concatenate(outs, axis=-1)                  # (N, H*D) stays in VMEM
    # to_out projection + bias + residual fused in the same kernel epilogue.
    y = jnp.dot(o.astype(jnp.bfloat16), wo_ref[...],
                preferred_element_type=jnp.float32)
    o_ref[0] = y + bo_ref[...] + res_ref[0].astype(jnp.float32)


def attention_fused(qkv, rel_bias, wo_bf16, bo, residual, *, scale):
    """qkv: (B, N, 3*H*D) bf16; rel_bias: (H, N, N) f32; residual: (B, N, oup).

    One grid step per batch image: all heads, softmax, to_out and the residual
    add fused; output written directly in (B, N, oup) order (lane-dense)."""
    B, N, three_inner = qkv.shape
    inner = HEADS * DIM_HEAD
    oup = wo_bf16.shape[1]
    return pl.pallas_call(
        functools.partial(_attn_kernel, scale=scale),
        out_shape=jax.ShapeDtypeStruct((B, N, oup), jnp.float32),
        grid=(B,),
        in_specs=[pl.BlockSpec((1, N, three_inner), lambda b: (b, 0, 0)),
                  pl.BlockSpec((HEADS, N, N), lambda b: (0, 0, 0)),
                  pl.BlockSpec((inner, oup), lambda b: (0, 0)),
                  pl.BlockSpec((1, oup), lambda b: (0, 0)),
                  pl.BlockSpec((1, N, oup), lambda b: (b, 0, 0))],
        out_specs=pl.BlockSpec((1, N, oup), lambda b: (b, 0, 0)),
        compiler_params=pltpu.CompilerParams(
            dimension_semantics=("parallel",),
            vmem_limit_bytes=VMEM_LIMIT),
    )(qkv, rel_bias, wo_bf16, bo, residual)


# --------------------------- fused FeedForward branch ------------------------

def _ff_kernel(x_ref, g_ref, b_ref, w1_ref, b1_ref, w2_ref, b2_ref, o_ref):
    x = x_ref[...].astype(jnp.float32)
    mu = jnp.mean(x, axis=-1, keepdims=True)
    var = jnp.mean((x - mu) ** 2, axis=-1, keepdims=True)
    xn = (x - mu) * jax.lax.rsqrt(var + LN_EPS) * g_ref[...] + b_ref[...]
    h = jnp.dot(xn.astype(jnp.bfloat16), w1_ref[...],
                preferred_element_type=jnp.float32) + b1_ref[...]
    h = _gelu_f32(h)                        # (tm, hidden) never leaves VMEM
    y = jnp.dot(h.astype(jnp.bfloat16), w2_ref[...],
                preferred_element_type=jnp.float32) + b2_ref[...]
    o_ref[...] = y + x                      # x + ff(LN(x))


def ff_fused(x, p):
    m, d = x.shape
    hidden = p["ff_w1"].shape[1]
    tm = _row_tile(m)
    return pl.pallas_call(
        _ff_kernel,
        out_shape=jax.ShapeDtypeStruct((m, d), jnp.float32),
        grid=(pl.cdiv(m, tm),),
        in_specs=[pl.BlockSpec((tm, d), lambda i: (i, 0)),
                  pl.BlockSpec((1, d), lambda i: (0, 0)),
                  pl.BlockSpec((1, d), lambda i: (0, 0)),
                  pl.BlockSpec((d, hidden), lambda i: (0, 0)),
                  pl.BlockSpec((1, hidden), lambda i: (0, 0)),
                  pl.BlockSpec((hidden, d), lambda i: (0, 0)),
                  pl.BlockSpec((1, d), lambda i: (0, 0))],
        out_specs=pl.BlockSpec((tm, d), lambda i: (i, 0)),
        compiler_params=pltpu.CompilerParams(
            dimension_semantics=("parallel",),
            vmem_limit_bytes=VMEM_LIMIT),
    )(x, p["ln2_g"], p["ln2_b"], p["ff_w1"], p["ff_b1"], p["ff_w2"], p["ff_b2"])


# ------------------------------ module glue ---------------------------------

def maxpool3x3s2_nhwc(x):
    # TODO(synk): pooling kept as plain-JAX reduce_window glue (tiny cost);
    # computed once and shared by both branches of the downsample path.
    return jax.lax.reduce_window(
        x, -jnp.inf, jax.lax.max,
        window_dimensions=(1, 3, 3, 1),
        window_strides=(1, 2, 2, 1),
        padding=((0, 0), (1, 1), (1, 1), (0, 0)))


def transformer_block(x_nchw, p, downsample):
    B = x_nchw.shape[0]
    x = jnp.transpose(x_nchw, (0, 2, 3, 1))       # NCHW -> NHWC once per block
    if downsample:
        x = maxpool3x3s2_nhwc(x)                  # pool1 == pool2: one pool
    ih, iw, cin = x.shape[1], x.shape[2], x.shape[3]
    N = ih * iw
    slab = x.reshape(B * N, cin)                  # 'b ih iw c -> (b ih iw) c'
    if downsample:
        residual = mm_ln(slab, p["proj_w"])       # 1x1 conv (bias-free) = matmul
    else:
        residual = slab                           # kept f32: skip-path precision
    oup = residual.shape[-1]

    # PreNorm(LayerNorm) + to_qkv; bf16 output feeds the attention kernel.
    qkv = mm_ln(slab, p["wqkv"], ln=(p["ln1_g"], p["ln1_b"]),
                out_dtype=jnp.bfloat16)
    y = attention_fused(qkv.reshape(B, N, -1), p["rel_bias"], p["wo"], p["bo"],
                        residual.reshape(B, N, oup), scale=DIM_HEAD ** -0.5)

    # Fully fused FeedForward (LN -> W1 -> GELU -> W2 -> +residual).
    y = ff_fused(y.reshape(B * N, oup), p)
    return jnp.transpose(y.reshape(B, ih, iw, oup), (0, 3, 1, 2))


# ------------------------------ parameters ----------------------------------

def make_relative_bias(bias_table, ih, iw):
    """Precompute the (H, N, N) relative-position bias once at param time
    (removes a gather + transpose from every forward)."""
    ys, xs = jnp.meshgrid(jnp.arange(ih), jnp.arange(iw), indexing="ij")
    coords = jnp.stack([ys.reshape(-1), xs.reshape(-1)])       # (2, N)
    rel = coords[:, :, None] - coords[:, None, :]              # (2, N, N)
    rel = rel.at[0].add(ih - 1)
    rel = rel.at[1].add(iw - 1)
    rel = rel.at[0].multiply(2 * iw - 1)
    rel_index = jnp.transpose(rel, (1, 2, 0)).sum(-1).reshape(-1)   # (N*N,)
    n = ih * iw
    rb = jnp.take(bias_table, rel_index, axis=0)               # (N*N, H)
    return jnp.transpose(rb.reshape(n, n, HEADS), (2, 0, 1)).astype(jnp.float32)


def init_transformer_params(key, inp, oup, image_size, downsample):
    ih, iw = image_size
    inner = HEADS * DIM_HEAD
    hidden = int(inp * 4)
    keys = iter(jax.random.split(key, 16))

    def nrm(shape, s=0.05):
        return s * jax.random.normal(next(keys), shape, dtype=jnp.float32)

    p = {}
    if downsample:
        p["proj_w"] = nrm((inp, oup)).astype(jnp.bfloat16)
    p["ln1_g"] = (1.0 + nrm((inp,))).reshape(1, inp)
    p["ln1_b"] = nrm((inp,)).reshape(1, inp)
    p["wqkv"] = nrm((inp, 3 * inner)).astype(jnp.bfloat16)   # to_qkv, bias=False
    p["wo"] = nrm((inner, oup)).astype(jnp.bfloat16)         # to_out Linear
    p["bo"] = nrm((oup,)).reshape(1, oup)
    bias_table = nrm(((2 * ih - 1) * (2 * iw - 1), HEADS))
    p["rel_bias"] = make_relative_bias(bias_table, ih, iw)
    p["ln2_g"] = (1.0 + nrm((oup,))).reshape(1, oup)
    p["ln2_b"] = nrm((oup,)).reshape(1, oup)
    p["ff_w1"] = nrm((oup, hidden)).astype(jnp.bfloat16)
    p["ff_b1"] = nrm((hidden,)).reshape(1, hidden)
    p["ff_w2"] = nrm((hidden, oup)).astype(jnp.bfloat16)
    p["ff_b2"] = nrm((oup,)).reshape(1, oup)
    return p


if __name__ == "__main__":
    B, inp, H, W = 2, 32, 16, 16
    oup = 64

    root = jax.random.PRNGKey(0)
    k1, k2, kx = jax.random.split(root, 3)
    # Block 1: downsampling Transformer (inp -> oup, 16x16 -> 8x8).
    p1 = init_transformer_params(k1, inp, oup, (H // 2, W // 2), downsample=True)
    # Block 2: non-downsampling Transformer (oup -> oup, 8x8).
    p2 = init_transformer_params(k2, oup, oup, (H // 2, W // 2), downsample=False)

    x = jax.random.normal(kx, (B, inp, H, W), dtype=jnp.float32)

    @jax.jit
    def forward(x, p1, p2):
        y = transformer_block(x, p1, downsample=True)
        return transformer_block(y, p2, downsample=False)

    out = forward(x, p1, p2)
    jax.block_until_ready(out)
    assert out.shape == (B, oup, H // 2, W // 2) and out.dtype == jnp.float32
    assert bool(jnp.all(jnp.isfinite(out)))
    print("KERNEL_OK")
</pallas_src>

<mosaic_0001>
module attributes {stable_mosaic.version = 11 : i64} {
  func.func @_mm_ln_kernel(%arg0: i32, %arg1: memref<64x32xf32, #tpu.memory_space<vmem>>, %arg2: memref<32x64xbf16, #tpu.memory_space<vmem>>, %arg3: memref<64x64xf32, #tpu.memory_space<vmem>>) attributes {dimension_semantics = [#tpu.dimension_semantics<parallel>], iteration_bounds = array<i64: 2>, scalar_prefetch = 0 : i64, scratch_operands = 0 : i64, tpu.core_type = #tpu.core_type<tc>, window_params = [{transform_indices = @transform_0, window_bounds = array<i64: 64, 32>}, {pipeline_mode = #tpu.pipeline_mode<synchronous>, transform_indices = @transform_1, window_bounds = array<i64: 32, 64>}, {transform_indices = @transform_2, window_bounds = array<i64: 64, 64>}]} {
    %c0 = arith.constant 0 : index
    %c0_0 = arith.constant 0 : index
    %0 = vector.load %arg1[%c0, %c0_0] : memref<64x32xf32, #tpu.memory_space<vmem>>, vector<64x32xf32>
    %1 = arith.truncf %0 : vector<64x32xf32> to vector<64x32xbf16>
    %c0_1 = arith.constant 0 : index
    %c0_2 = arith.constant 0 : index
    %2 = vector.load %arg2[%c0_1, %c0_2] : memref<32x64xbf16, #tpu.memory_space<vmem>>, vector<32x64xbf16>
    %cst = arith.constant dense<0.000000e+00> : vector<64x64xf32>
    %3 = tpu.matmul %1, %2, %cst {dimension_numbers = #tpu.dot_dimension_numbers<[1], [0], [0], [1], [0, 0, 1, 1], [], []>} : vector<64x32xbf16>, vector<32x64xbf16>, vector<64x64xf32> -> vector<64x64xf32>
    %c0_3 = arith.constant 0 : index
    %c0_4 = arith.constant 0 : index
    %4 = vector.load %arg3[%c0_3, %c0_4] : memref<64x64xf32, #tpu.memory_space<vmem>>, vector<64x64xf32>
    tpu.vector_store %arg3[%c0_3, %c0_4], %3 {strides = array<i32>} : memref<64x64xf32, #tpu.memory_space<vmem>>, vector<64x64xf32>,
    return
  }
  func.func @transform_0(%arg0: i32) -> (i32, i32) {
    %c0_i32 = arith.constant 0 : i32
    %c0_i32_0 = arith.constant 0 : i32
    return %arg0, %c0_i32 : i32, i32
  }
  func.func @transform_1(%arg0: i32) -> (i32, i32) {
    %c0_i32 = arith.constant 0 : i32
    %c0_i32_0 = arith.constant 0 : i32
    %c0_i32_1 = arith.constant 0 : i32
    return %c0_i32, %c0_i32_0 : i32, i32
  }
  func.func @transform_2(%arg0: i32) -> (i32, i32) {
    %c0_i32 = arith.constant 0 : i32
    %c0_i32_0 = arith.constant 0 : i32
    return %arg0, %c0_i32 : i32, i32
  }
}

module attributes {stable_mosaic.version = 11 : i64} {
  func.func @_mm_ln_kernel(%arg0: i32, %arg1: memref<64x32xf32, #tpu.memory_space<vmem>>, %arg2: memref<1x32xf32, #tpu.memory_space<vmem>>, %arg3: memref<1x32xf32, #tpu.memory_space<vmem>>, %arg4: memref<32x768xbf16, #tpu.memory_space<vmem>>, %arg5: memref<64x768xbf16, #tpu.memory_space<vmem>>) attributes {dimension_semantics = [#tpu.dimension_semantics<parallel>], iteration_bounds = array<i64: 2>, scalar_prefetch = 0 : i64, scratch_operands = 0 : i64, tpu.core_type = #tpu.core_type<tc>, window_params = [{transform_indices = @transform_0, window_bounds = array<i64: 64, 32>}, {pipeline_mode = #tpu.pipeline_mode<synchronous>, transform_indices = @transform_1, window_bounds = array<i64: 1, 32>}, {pipeline_mode = #tpu.pipeline_mode<synchronous>, transform_indices = @transform_2, window_bounds = array<i64: 1, 32>}, {pipeline_mode = #tpu.pipeline_mode<synchronous>, transform_indices = @transform_3, window_bounds = array<i64: 32, 768>}, {transform_indices = @transform_4, window_bounds = array<i64: 64, 768>}]} {
    %c0 = arith.constant 0 : index
    %c0_0 = arith.constant 0 : index
    %0 = vector.load %arg1[%c0, %c0_0] : memref<64x32xf32, #tpu.memory_space<vmem>>, vector<64x32xf32>
    %cst = arith.constant dense<0.000000e+00> : vector<64xf32>
    %1 = vector.multi_reduction <add>, %0, %cst [1] : vector<64x32xf32> to vector<64xf32>
    %2 = vector.shape_cast %1 : vector<64xf32> to vector<64x1xf32>
    %cst_1 = arith.constant 3.200000e+01 : f32
    %3 = vector.broadcast %cst_1 : f32 to vector<64x1xf32>
    %4 = arith.divf %2, %3 : vector<64x1xf32>
    %5 = vector.broadcast %4 : vector<64x1xf32> to vector<64x32xf32>
    %6 = arith.subf %0, %5 : vector<64x32xf32>
    %7 = arith.mulf %6, %6 : vector<64x32xf32>
    %cst_2 = arith.constant dense<0.000000e+00> : vector<64xf32>
    %8 = vector.multi_reduction <add>, %7, %cst_2 [1] : vector<64x32xf32> to vector<64xf32>
    %9 = vector.shape_cast %8 : vector<64xf32> to vector<64x1xf32>
    %cst_3 = arith.constant 3.200000e+01 : f32
    %10 = vector.broadcast %cst_3 : f32 to vector<64x1xf32>
    %11 = arith.divf %9, %10 : vector<64x1xf32>
    %12 = vector.broadcast %4 : vector<64x1xf32> to vector<64x32xf32>
    %13 = arith.subf %0, %12 : vector<64x32xf32>
    %cst_4 = arith.constant 9.99999974E-6 : f32
    %14 = vector.broadcast %cst_4 : f32 to vector<64x1xf32>
    %15 = arith.addf %11, %14 : vector<64x1xf32>
    %16 = math.rsqrt %15 : vector<64x1xf32>
    %17 = vector.broadcast %16 : vector<64x1xf32> to vector<64x32xf32>
    %18 = arith.mulf %13, %17 : vector<64x32xf32>
    %c0_5 = arith.constant 0 : index
    %c0_6 = arith.constant 0 : index
    %19 = vector.load %arg2[%c0_5, %c0_6] : memref<1x32xf32, #tpu.memory_space<vmem>>, vector<1x32xf32>
    %20 = vector.broadcast %19 : vector<1x32xf32> to vector<64x32xf32>
    %21 = arith.mulf %18, %20 : vector<64x32xf32>
    %c0_7 = arith.constant 0 : index
    %c0_8 = arith.constant 0 : index
    %22 = vector.load %arg3[%c0_7, %c0_8] : memref<1x32xf32, #tpu.memory_space<vmem>>, vector<1x32xf32>
    %23 = vector.broadcast %22 : vector<1x32xf32> to vector<64x32xf32>
    %24 = arith.addf %21, %23 : vector<64x32xf32>
    %25 = arith.truncf %24 : vector<64x32xf32> to vector<64x32xbf16>
    %c0_9 = arith.constant 0 : index
    %c0_10 = arith.constant 0 : index
    %26 = vector.load %arg4[%c0_9, %c0_10] : memref<32x768xbf16, #tpu.memory_space<vmem>>, vector<32x768xbf16>
    %cst_11 = arith.constant dense<0.000000e+00> : vector<64x768xf32>
    %27 = tpu.matmul %25, %26, %cst_11 {dimension_numbers = #tpu.dot_dimension_numbers<[1], [0], [0], [1], [0, 0, 1, 1], [], []>} : vector<64x32xbf16>, vector<32x768xbf16>, vector<64x768xf32> -> vector<64x768xf32>
    %28 = arith.truncf %27 : vector<64x768xf32> to vector<64x768xbf16>
    %c0_12 = arith.constant 0 : index
    %c0_13 = arith.constant 0 : index
    %29 = vector.load %arg5[%c0_12, %c0_13] : memref<64x768xbf16, #tpu.memory_space<vmem>>, vector<64x768xbf16>
    tpu.vector_store %arg5[%c0_12, %c0_13], %28 {strides = array<i32>} : memref<64x768xbf16, #tpu.memory_space<vmem>>, vector<64x768xbf16>,
    return
  }
  func.func @transform_0(%arg0: i32) -> (i32, i32) {
    %c0_i32 = arith.constant 0 : i32
    %c0_i32_0 = arith.constant 0 : i32
    return %arg0, %c0_i32 : i32, i32
  }
  func.func @transform_1(%arg0: i32) -> (i32, i32) {
    %c0_i32 = arith.constant 0 : i32
    %c0_i32_0 = arith.constant 0 : i32
    %c0_i32_1 = arith.constant 0 : i32
    return %c0_i32, %c0_i32_0 : i32, i32
  }
  func.func @transform_2(%arg0: i32) -> (i32, i32) {
    %c0_i32 = arith.constant 0 : i32
    %c0_i32_0 = arith.constant 0 : i32
    %c0_i32_1 = arith.constant 0 : i32
    return %c0_i32, %c0_i32_0 : i32, i32
  }
  func.func @transform_3(%arg0: i32) -> (i32, i32) {
    %c0_i32 = arith.constant 0 : i32
    %c0_i32_0 = arith.constant 0 : i32
    %c0_i32_1 = arith.constant 0 : i32
    return %c0_i32, %c0_i32_0 : i32, i32
  }
  func.func @transform_4(%arg0: i32) -> (i32, i32) {
    %c0_i32 = arith.constant 0 : i32
    %c0_i32_0 = arith.constant 0 : i32
    return %arg0, %c0_i32 : i32, i32
  }
}

module attributes {stable_mosaic.version = 11 : i64} {
  func.func @_attn_kernel(%arg0: i32, %arg1: memref<1x64x768xbf16, #tpu.memory_space<vmem>>, %arg2: memref<8x64x64xf32, #tpu.memory_space<vmem>>, %arg3: memref<256x64xbf16, #tpu.memory_space<vmem>>, %arg4: memref<1x64xf32, #tpu.memory_space<vmem>>, %arg5: memref<1x64x64xf32, #tpu.memory_space<vmem>>, %arg6: memref<1x64x64xf32, #tpu.memory_space<vmem>>) attributes {dimension_semantics = [#tpu.dimension_semantics<parallel>], iteration_bounds = array<i64: 2>, scalar_prefetch = 0 : i64, scratch_operands = 0 : i64, tpu.core_type = #tpu.core_type<tc>, window_params = [{transform_indices = @transform_0, window_bounds = array<i64: 1, 64, 768>}, {pipeline_mode = #tpu.pipeline_mode<synchronous>, transform_indices = @transform_1, window_bounds = array<i64: 8, 64, 64>}, {pipeline_mode = #tpu.pipeline_mode<synchronous>, transform_indices = @transform_2, window_bounds = array<i64: 256, 64>}, {pipeline_mode = #tpu.pipeline_mode<synchronous>, transform_indices = @transform_3, window_bounds = array<i64: 1, 64>}, {transform_indices = @transform_4, window_bounds = array<i64: 1, 64, 64>}, {transform_indices = @transform_5, window_bounds = array<i64: 1, 64, 64>}]} {
    %c0 = arith.constant 0 : index
    %c0_0 = arith.constant 0 : index
    %c0_1 = arith.constant 0 : index
    %0 = vector.load %arg1[%c0, %c0_0, %c0_1] : memref<1x64x768xbf16, #tpu.memory_space<vmem>>, vector<1x64x32xbf16>
    %1 = vector.shape_cast %0 : vector<1x64x32xbf16> to vector<64x32xbf16>
    %cst = arith.constant 1.767580e-01 : bf16
    %2 = vector.broadcast %cst : bf16 to vector<64x32xbf16>
    %3 = arith.mulf %1, %2 : vector<64x32xbf16>
    %c0_2 = arith.constant 0 : index
    %c0_3 = arith.constant 0 : index
    %c256 = arith.constant 256 : index
    %4 = vector.load %arg1[%c0_2, %c0_3, %c256] : memref<1x64x768xbf16, #tpu.memory_space<vmem>>, vector<1x64x32xbf16>
    %5 = vector.shape_cast %4 : vector<1x64x32xbf16> to vector<64x32xbf16>
    %c0_4 = arith.constant 0 : index
    %c0_5 = arith.constant 0 : index
    %c512 = arith.constant 512 : index
    %6 = vector.load %arg1[%c0_4, %c0_5, %c512] : memref<1x64x768xbf16, #tpu.memory_space<vmem>>, vector<1x64x32xbf16>
    %7 = vector.shape_cast %6 : vector<1x64x32xbf16> to vector<64x32xbf16>
    %cst_6 = arith.constant dense<0.000000e+00> : vector<64x64xf32>
    %8 = tpu.matmul %3, %5, %cst_6 {dimension_numbers = #tpu.dot_dimension_numbers<[1], [1], [0], [0], [0, 0, 1, 0], [], []>} : vector<64x32xbf16>, vector<64x32xbf16>, vector<64x64xf32> -> vector<64x64xf32>
    %c0_7 = arith.constant 0 : index
    %c0_8 = arith.constant 0 : index
    %c0_9 = arith.constant 0 : index
    %9 = vector.load %arg2[%c0_7, %c0_8, %c0_9] : memref<8x64x64xf32, #tpu.memory_space<vmem>>, vector<1x64x64xf32>
    %10 = vector.shape_cast %9 : vector<1x64x64xf32> to vector<64x64xf32>
    %11 = arith.addf %8, %10 : vector<64x64xf32>
    %cst_10 = arith.constant dense<0xFF800000> : vector<64xf32>
    %12 = vector.multi_reduction <maximumf>, %11, %cst_10 [1] : vector<64x64xf32> to vector<64xf32>
    %13 = vector.shape_cast %12 : vector<64xf32> to vector<64x1xf32>
    %14 = vector.broadcast %13 : vector<64x1xf32> to vector<64x64xf32>
    %15 = arith.subf %11, %14 : vector<64x64xf32>
    %16 = math.exp %15 : vector<64x64xf32>
    %cst_11 = arith.constant dense<0.000000e+00> : vector<64xf32>
    %17 = vector.multi_reduction <add>, %16, %cst_11 [1] : vector<64x64xf32> to vector<64xf32>
    %18 = vector.shape_cast %17 : vector<64xf32> to vector<64x1xf32>
    %19 = arith.truncf %16 : vector<64x64xf32> to vector<64x64xbf16>
    %cst_12 = arith.constant dense<0.000000e+00> : vector<64x32xf32>
    %20 = tpu.matmul %19, %7, %cst_12 {dimension_numbers = #tpu.dot_dimension_numbers<[1], [0], [0], [1], [0, 0, 1, 1], [], []>} : vector<64x64xbf16>, vector<64x32xbf16>, vector<64x32xf32> -> vector<64x32xf32>
    %21 = tpu.reciprocal %18 {approx = true} : vector<64x1xf32> -> vector<64x1xf32>
    %22 = vector.broadcast %21 : vector<64x1xf32> to vector<64x32xf32>
    %23 = arith.mulf %20, %22 : vector<64x32xf32>
    %c0_13 = arith.constant 0 : index
    %c0_14 = arith.constant 0 : index
    %c32 = arith.constant 32 : index
    %24 = vector.load %arg1[%c0_13, %c0_14, %c32] : memref<1x64x768xbf16, #tpu.memory_space<vmem>>, vector<1x64x32xbf16>
    %25 = vector.shape_cast %24 : vector<1x64x32xbf16> to vector<64x32xbf16>
    %cst_15 = arith.constant 1.767580e-01 : bf16
    %26 = vector.broadcast %cst_15 : bf16 to vector<64x32xbf16>
    %27 = arith.mulf %25, %26 : vector<64x32xbf16>
    %c0_16 = arith.constant 0 : index
    %c0_17 = arith.constant 0 : index
    %c288 = arith.constant 288 : index
    %28 = vector.load %arg1[%c0_16, %c0_17, %c288] : memref<1x64x768xbf16, #tpu.memory_space<vmem>>, vector<1x64x32xbf16>
    %29 = vector.shape_cast %28 : vector<1x64x32xbf16> to vector<64x32xbf16>
    %c0_18 = arith.constant 0 : index
    %c0_19 = arith.constant 0 : index
    %c544 = arith.constant 544 : index
    %30 = vector.load %arg1[%c0_18, %c0_19, %c544] : memref<1x64x768xbf16, #tpu.memory_space<vmem>>, vector<1x64x32xbf16>
    %31 = vector.shape_cast %30 : vector<1x64x32xbf16> to vector<64x32xbf16>
    %cst_20 = arith.constant dense<0.000000e+00> : vector<64x64xf32>
    %32 = tpu.matmul %27, %29, %cst_20 {dimension_numbers = #tpu.dot_dimension_numbers<[1], [1], [0], [0], [0, 0, 1, 0], [], []>} : vector<64x32xbf16>, vector<64x32xbf16>, vector<64x64xf32> -> vector<64x64xf32>
    %c1 = arith.constant 1 : index
    %c0_21 = arith.constant 0 : index
    %c0_22 = arith.constant 0 : index
    %33 = vector.load %arg2[%c1, %c0_21, %c0_22] : memref<8x64x64xf32, #tpu.memory_space<vmem>>, vector<1x64x64xf32>
    %34 = vector.shape_cast %33 : vector<1x64x64xf32> to vector<64x64xf32>
    %35 = arith.addf %32, %34 : vector<64x64xf32>
    %cst_23 = arith.constant dense<0xFF800000> : vector<64xf32>
    %36 = vector.multi_reduction <maximumf>, %35, %cst_23 [1] : vector<64x64xf32> to vector<64xf32>
    %37 = vector.shape_cast %36 : vector<64xf32> to vector<64x1xf32>
    %38 = vector.broadcast %37 : vector<64x1xf32> to vector<64x64xf32>
    %39 = arith.subf %35, %38 : vector<64x64xf32>
    %40 = math.exp %39 : vector<64x64xf32>
    %cst_24 = arith.constant dense<0.000000e+00> : vector<64xf32>
    %41 = vector.multi_reduction <add>, %40, %cst_24 [1] : vector<64x64xf32> to vector<64xf32>
    %42 = vector.shape_cast %41 : vector<64xf32> to vector<64x1xf32>
    %43 = arith.truncf %40 : vector<64x64xf32> to vector<64x64xbf16>
    %cst_25 = arith.constant dense<0.000000e+00> : vector<64x32xf32>
    %44 = tpu.matmul %43, %31, %cst_25 {dimension_numbers = #tpu.dot_dimension_numbers<[1], [0], [0], [1], [0, 0, 1, 1], [], []>} : vector<64x64xbf16>, vector<64x32xbf16>, vector<64x32xf32> -> vector<64x32xf32>
    %45 = tpu.reciprocal %42 {approx = true} : vector<64x1xf32> -> vector<64x1xf32>
    %46 = vector.broadcast %45 : vector<64x1xf32> to vector<64x32xf32>
    %47 = arith.mulf %44, %46 : vector<64x32xf32>
    %c0_26 = arith.constant 0 : index
    %c0_27 = arith.constant 0 : index
    %c64 = arith.constant 64 : index
    %48 = vector.load %arg1[%c0_26, %c0_27, %c64] : memref<1x64x768xbf16, #tpu.memory_space<vmem>>, vector<1x64x32xbf16>
    %49 = vector.shape_cast %48 : vector<1x64x32xbf16> to vector<64x32xbf16>
    %cst_28 = arith.constant 1.767580e-01 : bf16
    %50 = vector.broadcast %cst_28 : bf16 to vector<64x32xbf16>
    %51 = arith.mulf %49, %50 : vector<64x32xbf16>
    %c0_29 = arith.constant 0 : index
    %c0_30 = arith.constant 0 : index
    %c320 = arith.constant 320 : index
    %52 = vector.load %arg1[%c0_29, %c0_30, %c320] : memref<1x64x768xbf16, #tpu.memory_space<vmem>>, vector<1x64x32xbf16>
    %53 = vector.shape_cast %52 : vector<1x64x32xbf16> to vector<64x32xbf16>
    %c0_31 = arith.constant 0 : index
    %c0_32 = arith.constant 0 : index
    %c576 = arith.constant 576 : index
    %54 = vector.load %arg1[%c0_31, %c0_32, %c576] : memref<1x64x768xbf16, #tpu.memory_space<vmem>>, vector<1x64x32xbf16>
    %55 = vector.shape_cast %54 : vector<1x64x32xbf16> to vector<64x32xbf16>
    %cst_33 = arith.constant dense<0.000000e+00> : vector<64x64xf32>
    %56 = tpu.matmul %51, %53, %cst_33 {dimension_numbers = #tpu.dot_dimension_numbers<[1], [1], [0], [0], [0, 0, 1, 0], [], []>} : vector<64x32xbf16>, vector<64x32xbf16>, vector<64x64xf32> -> vector<64x64xf32>
    %c2 = arith.constant 2 : index
    %c0_34 = arith.constant 0 : index
    %c0_35 = arith.constant 0 : index
    %57 = vector.load %arg2[%c2, %c0_34, %c0_35] : memref<8x64x64xf32, #tpu.memory_space<vmem>>, vector<1x64x64xf32>
    %58 = vector.shape_cast %57 : vector<1x64x64xf32> to vector<64x64xf32>
    %59 = arith.addf %56, %58 : vector<64x64xf32>
    %cst_36 = arith.constant dense<0xFF800000> : vector<64xf32>
    %60 = vector.multi_reduction <maximumf>, %59, %cst_36 [1] : vector<64x64xf32> to vector<64xf32>
    %61 = vector.shape_cast %60 : vector<64xf32> to vector<64x1xf32>
    %62 = vector.broadcast %61 : vector<64x1xf32> to vector<64x64xf32>
    %63 = arith.subf %59, %62 : vector<64x64xf32>
    %64 = math.exp %63 : vector<64x64xf32>
    %cst_37 = arith.constant dense<0.000000e+00> : vector<64xf32>
    %65 = vector.multi_reduction <add>, %64, %cst_37 [1] : vector<64x64xf32> to vector<64xf32>
    %66 = vector.shape_cast %65 : vector<64xf32> to vector<64x1xf32>
    %67 = arith.truncf %64 : vector<64x64xf32> to vector<64x64xbf16>
    %cst_38 = arith.constant dense<0.000000e+00> : vector<64x32xf32>
    %68 = tpu.matmul %67, %55, %cst_38 {dimension_numbers = #tpu.dot_dimension_numbers<[1], [0], [0], [1], [0, 0, 1, 1], [], []>} : vector<64x64xbf16>, vector<64x32xbf16>, vector<64x32xf32> -> vector<64x32xf32>
    %69 = tpu.reciprocal %66 {approx = true} : vector<64x1xf32> -> vector<64x1xf32>
    %70 = vector.broadcast %69 : vector<64x1xf32> to vector<64x32xf32>
    %71 = arith.mulf %68, %70 : vector<64x32xf32>
    %c0_39 = arith.constant 0 : index
    %c0_40 = arith.constant 0 : index
    %c96 = arith.constant 96 : index
    %72 = vector.load %arg1[%c0_39, %c0_40, %c96] : memref<1x64x768xbf16, #tpu.memory_space<vmem>>, vector<1x64x32xbf16>
    %73 = vector.shape_cast %72 : vector<1x64x32xbf16> to vector<64x32xbf16>
    %cst_41 = arith.constant 1.767580e-01 : bf16
    %74 = vector.broadcast %cst_41 : bf16 to vector<64x32xbf16>
    %75 = arith.mulf %73, %74 : vector<64x32xbf16>
    %c0_42 = arith.constant 0 : index
    %c0_43 = arith.constant 0 : index
    %c352 = arith.constant 352 : index
    %76 = vector.load %arg1[%c0_42, %c0_43, %c352] : memref<1x64x768xbf16, #tpu.memory_space<vmem>>, vector<1x64x32xbf16>
    %77 = vector.shape_cast %76 : vector<1x64x32xbf16> to vector<64x32xbf16>
    %c0_44 = arith.constant 0 : index
    %c0_45 = arith.constant 0 : index
    %c608 = arith.constant 608 : index
    %78 = vector.load %arg1[%c0_44, %c0_45, %c608] : memref<1x64x768xbf16, #tpu.memory_space<vmem>>, vector<1x64x32xbf16>
    %79 = vector.shape_cast %78 : vector<1x64x32xbf16> to vector<64x32xbf16>
    %cst_46 = arith.constant dense<0.000000e+00> : vector<64x64xf32>
    %80 = tpu.matmul %75, %77, %cst_46 {dimension_numbers = #tpu.dot_dimension_numbers<[1], [1], [0], [0], [0, 0, 1, 0], [], []>} : vector<64x32xbf16>, vector<64x32xbf16>, vector<64x64xf32> -> vector<64x64xf32>
    %c3 = arith.constant 3 : index
    %c0_47 = arith.constant 0 : index
    %c0_48 = arith.constant 0 : index
    %81 = vector.load %arg2[%c3, %c0_47, %c0_48] : memref<8x64x64xf32, #tpu.memory_space<vmem>>, vector<1x64x64xf32>
    %82 = vector.shape_cast %81 : vector<1x64x64xf32> to vector<64x64xf32>
    %83 = arith.addf %80, %82 : vector<64x64xf32>
    %cst_49 = arith.constant dense<0xFF800000> : vector<64xf32>
    %84 = vector.multi_reduction <maximumf>, %83, %cst_49 [1] : vector<64x64xf32> to vector<64xf32>
    %85 = vector.shape_cast %84 : vector<64xf32> to vector<64x1xf32>
    %86 = vector.broadcast %85 : vector<64x1xf32> to vector<64x64xf32>
    %87 = arith.subf %83, %86 : vector<64x64xf32>
    %88 = math.exp %87 : vector<64x64xf32>
    %cst_50 = arith.constant dense<0.000000e+00> : vector<64xf32>
    %89 = vector.multi_reduction <add>, %88, %cst_50 [1] : vector<64x64xf32> to vector<64xf32>
    %90 = vector.shape_cast %89 : vector<64xf32> to vector<64x1xf32>
    %91 = arith.truncf %88 : vector<64x64xf32> to vector<64x64xbf16>
    %cst_51 = arith.constant dense<0.000000e+00> : vector<64x32xf32>
    %92 = tpu.matmul %91, %79, %cst_51 {dimension_numbers = #tpu.dot_dimension_numbers<[1], [0], [0], [1], [0, 0, 1, 1], [], []>} : vector<64x64xbf16>, vector<64x32xbf16>, vector<64x32xf32> -> vector<64x32xf32>
    %93 = tpu.reciprocal %90 {approx = true} : vector<64x1xf32> -> vector<64x1xf32>
    %94 = vector.broadcast %93 : vector<64x1xf32> to vector<64x32xf32>
    %95 = arith.mulf %92, %94 : vector<64x32xf32>
    %c0_52 = arith.constant 0 : index
    %c0_53 = arith.constant 0 : index
    %c128 = arith.constant 128 : index
    %96 = vector.load %arg1[%c0_52, %c0_53, %c128] : memref<1x64x768xbf16, #tpu.memory_space<vmem>>, vector<1x64x32xbf16>
    %97 = vector.shape_cast %96 : vector<1x64x32xbf16> to vector<64x32xbf16>
    %cst_54 = arith.constant 1.767580e-01 : bf16
    %98 = vector.broadcast %cst_54 : bf16 to vector<64x32xbf16>
    %99 = arith.mulf %97, %98 : vector<64x32xbf16>
    %c0_55 = arith.constant 0 : index
    %c0_56 = arith.constant 0 : index
    %c384 = arith.constant 384 : index
    %100 = vector.load %arg1[%c0_55, %c0_56, %c384] : memref<1x64x768xbf16, #tpu.memory_space<vmem>>, vector<1x64x32xbf16>
    %101 = vector.shape_cast %100 : vector<1x64x32xbf16> to vector<64x32xbf16>
    %c0_57 = arith.constant 0 : index
    %c0_58 = arith.constant 0 : index
    %c640 = arith.constant 640 : index
    %102 = vector.load %arg1[%c0_57, %c0_58, %c640] : memref<1x64x768xbf16, #tpu.memory_space<vmem>>, vector<1x64x32xbf16>
    %103 = vector.shape_cast %102 : vector<1x64x32xbf16> to vector<64x32xbf16>
    %cst_59 = arith.constant dense<0.000000e+00> : vector<64x64xf32>
    %104 = tpu.matmul %99, %101, %cst_59 {dimension_numbers = #tpu.dot_dimension_numbers<[1], [1], [0], [0], [0, 0, 1, 0], [], []>} : vector<64x32xbf16>, vector<64x32xbf16>, vector<64x64xf32> -> vector<64x64xf32>
    %c4 = arith.constant 4 : index
    %c0_60 = arith.constant 0 : index
    %c0_61 = arith.constant 0 : index
    %105 = vector.load %arg2[%c4, %c0_60, %c0_61] : memref<8x64x64xf32, #tpu.memory_space<vmem>>, vector<1x64x64xf32>
    %106 = vector.shape_cast %105 : vector<1x64x64xf32> to vector<64x64xf32>
    %107 = arith.addf %104, %106 : vector<64x64xf32>
    %cst_62 = arith.constant dense<0xFF800000> : vector<64xf32>
    %108 = vector.multi_reduction <maximumf>, %107, %cst_62 [1] : vector<64x64xf32> to vector<64xf32>
    %109 = vector.shape_cast %108 : vector<64xf32> to vector<64x1xf32>
    %110 = vector.broadcast %109 : vector<64x1xf32> to vector<64x64xf32>
    %111 = arith.subf %107, %110 : vector<64x64xf32>
    %112 = math.exp %111 : vector<64x64xf32>
    %cst_63 = arith.constant dense<0.000000e+00> : vector<64xf32>
    %113 = vector.multi_reduction <add>, %112, %cst_63 [1] : vector<64x64xf32> to vector<64xf32>
    %114 = vector.shape_cast %113 : vector<64xf32> to vector<64x1xf32>
    %115 = arith.truncf %112 : vector<64x64xf32> to vector<64x64xbf16>
    %cst_64 = arith.constant dense<0.000000e+00> : vector<64x32xf32>
    %116 = tpu.matmul %115, %103, %cst_64 {dimension_numbers = #tpu.dot_dimension_numbers<[1], [0], [0], [1], [0, 0, 1, 1], [], []>} : vector<64x64xbf16>, vector<64x32xbf16>, vector<64x32xf32> -> vector<64x32xf32>
    %117 = tpu.reciprocal %114 {approx = true} : vector<64x1xf32> -> vector<64x1xf32>
    %118 = vector.broadcast %117 : vector<64x1xf32> to vector<64x32xf32>
    %119 = arith.mulf %116, %118 : vector<64x32xf32>
    %c0_65 = arith.constant 0 : index
    %c0_66 = arith.constant 0 : index
    %c160 = arith.constant 160 : index
    %120 = vector.load %arg1[%c0_65, %c0_66, %c160] : memref<1x64x768xbf16, #tpu.memory_space<vmem>>, vector<1x64x32xbf16>
    %121 = vector.shape_cast %120 : vector<1x64x32xbf16> to vector<64x32xbf16>
    %cst_67 = arith.constant 1.767580e-01 : bf16
    %122 = vector.broadcast %cst_67 : bf16 to vector<64x32xbf16>
    %123 = arith.mulf %121, %122 : vector<64x32xbf16>
    %c0_68 = arith.constant 0 : index
    %c0_69 = arith.constant 0 : index
    %c416 = arith.constant 416 : index
    %124 = vector.load %arg1[%c0_68, %c0_69, %c416] : memref<1x64x768xbf16, #tpu.memory_space<vmem>>, vector<1x64x32xbf16>
    %125 = vector.shape_cast %124 : vector<1x64x32xbf16> to vector<64x32xbf16>
    %c0_70 = arith.constant 0 : index
    %c0_71 = arith.constant 0 : index
    %c672 = arith.constant 672 : index
    %126 = vector.load %arg1[%c0_70, %c0_71, %c672] : memref<1x64x768xbf16, #tpu.memory_space<vmem>>, vector<1x64x32xbf16>
    %127 = vector.shape_cast %126 : vector<1x64x32xbf16> to vector<64x32xbf16>
    %cst_72 = arith.constant dense<0.000000e+00> : vector<64x64xf32>
    %128 = tpu.matmul %123, %125, %cst_72 {dimension_numbers = #tpu.dot_dimension_numbers<[1], [1], [0], [0], [0, 0, 1, 0], [], []>} : vector<64x32xbf16>, vector<64x32xbf16>, vector<64x64xf32> -> vector<64x64xf32>
    %c5 = arith.constant 5 : index
    %c0_73 = arith.constant 0 : index
    %c0_74 = arith.constant 0 : index
    %129 = vector.load %arg2[%c5, %c0_73, %c0_74] : memref<8x64x64xf32, #tpu.memory_space<vmem>>, vector<1x64x64xf32>
    %130 = vector.shape_cast %129 : vector<1x64x64xf32> to vector<64x64xf32>
    %131 = arith.addf %128, %130 : vector<64x64xf32>
    %cst_75 = arith.constant dense<0xFF800000> : vector<64xf32>
    %132 = vector.multi_reduction <maximumf>, %131, %cst_75 [1] : vector<64x64xf32> to vector<64xf32>
    %133 = vector.shape_cast %132 : vector<64xf32> to vector<64x1xf32>
    %134 = vector.broadcast %133 : vector<64x1xf32> to vector<64x64xf32>
    %135 = arith.subf %131, %134 : vector<64x64xf32>
    %136 = math.exp %135 : vector<64x64xf32>
    %cst_76 = arith.constant dense<0.000000e+00> : vector<64xf32>
    %137 = vector.multi_reduction <add>, %136, %cst_76 [1] : vector<64x64xf32> to vector<64xf32>
    %138 = vector.shape_cast %137 : vector<64xf32> to vector<64x1xf32>
    %139 = arith.truncf %136 : vector<64x64xf32> to vector<64x64xbf16>
    %cst_77 = arith.constant dense<0.000000e+00> : vector<64x32xf32>
    %140 = tpu.matmul %139, %127, %cst_77 {dimension_numbers = #tpu.dot_dimension_numbers<[1], [0], [0], [1], [0, 0, 1, 1], [], []>} : vector<64x64xbf16>, vector<64x32xbf16>, vector<64x32xf32> -> vector<64x32xf32>
    %141 = tpu.reciprocal %138 {approx = true} : vector<64x1xf32> -> vector<64x1xf32>
    %142 = vector.broadcast %141 : vector<64x1xf32> to vector<64x32xf32>
    %143 = arith.mulf %140, %142 : vector<64x32xf32>
    %c0_78 = arith.constant 0 : index
    %c0_79 = arith.constant 0 : index
    %c192 = arith.constant 192 : index
    %144 = vector.load %arg1[%c0_78, %c0_79, %c192] : memref<1x64x768xbf16, #tpu.memory_space<vmem>>, vector<1x64x32xbf16>
    %145 = vector.shape_cast %144 : vector<1x64x32xbf16> to vector<64x32xbf16>
    %cst_80 = arith.constant 1.767580e-01 : bf16
    %146 = vector.broadcast %cst_80 : bf16 to vector<64x32xbf16>
    %147 = arith.mulf %145, %146 : vector<64x32xbf16>
    %c0_81 = arith.constant 0 : index
    %c0_82 = arith.constant 0 : index
    %c448 = arith.constant 448 : index
    %148 = vector.load %arg1[%c0_81, %c0_82, %c448] : memref<1x64x768xbf16, #tpu.memory_space<vmem>>, vector<1x64x32xbf16>
    %149 = vector.shape_cast %148 : vector<1x64x32xbf16> to vector<64x32xbf16>
    %c0_83 = arith.constant 0 : index
    %c0_84 = arith.constant 0 : index
    %c704 = arith.constant 704 : index
    %150 = vector.load %arg1[%c0_83, %c0_84, %c704] : memref<1x64x768xbf16, #tpu.memory_space<vmem>>, vector<1x64x32xbf16>
    %151 = vector.shape_cast %150 : vector<1x64x32xbf16> to vector<64x32xbf16>
    %cst_85 = arith.constant dense<0.000000e+00> : vector<64x64xf32>
    %152 = tpu.matmul %147, %149, %cst_85 {dimension_numbers = #tpu.dot_dimension_numbers<[1], [1], [0], [0], [0, 0, 1, 0], [], []>} : vector<64x32xbf16>, vector<64x32xbf16>, vector<64x64xf32> -> vector<64x64xf32>
    %c6 = arith.constant 6 : index
    %c0_86 = arith.constant 0 : index
    %c0_87 = arith.constant 0 : index
    %153 = vector.load %arg2[%c6, %c0_86, %c0_87] : memref<8x64x64xf32, #tpu.memory_space<vmem>>, vector<1x64x64xf32>
    %154 = vector.shape_cast %153 : vector<1x64x64xf32> to vector<64x64xf32>
    %155 = arith.addf %152, %154 : vector<64x64xf32>
    %cst_88 = arith.constant dense<0xFF800000> : vector<64xf32>
    %156 = vector.multi_reduction <maximumf>, %155, %cst_88 [1] : vector<64x64xf32> to vector<64xf32>
    %157 = vector.shape_cast %156 : vector<64xf32> to vector<64x1xf32>
    %158 = vector.broadcast %157 : vector<64x1xf32> to vector<64x64xf32>
    %159 = arith.subf %155, %158 : vector<64x64xf32>
    %160 = math.exp %159 : vector<64x64xf32>
    %cst_89 = arith.constant dense<0.000000e+00> : vector<64xf32>
    %161 = vector.multi_reduction <add>, %160, %cst_89 [1] : vector<64x64xf32> to vector<64xf32>
    %162 = vector.shape_cast %161 : vector<64xf32> to vector<64x1xf32>
    %163 = arith.truncf %160 : vector<64x64xf32> to vector<64x64xbf16>
    %cst_90 = arith.constant dense<0.000000e+00> : vector<64x32xf32>
    %164 = tpu.matmul %163, %151, %cst_90 {dimension_numbers = #tpu.dot_dimension_numbers<[1], [0], [0], [1], [0, 0, 1, 1], [], []>} : vector<64x64xbf16>, vector<64x32xbf16>, vector<64x32xf32> -> vector<64x32xf32>
    %165 = tpu.reciprocal %162 {approx = true} : vector<64x1xf32> -> vector<64x1xf32>
    %166 = vector.broadcast %165 : vector<64x1xf32> to vector<64x32xf32>
    %167 = arith.mulf %164, %166 : vector<64x32xf32>
    %c0_91 = arith.constant 0 : index
    %c0_92 = arith.constant 0 : index
    %c224 = arith.constant 224 : index
    %168 = vector.load %arg1[%c0_91, %c0_92, %c224] : memref<1x64x768xbf16, #tpu.memory_space<vmem>>, vector<1x64x32xbf16>
    %169 = vector.shape_cast %168 : vector<1x64x32xbf16> to vector<64x32xbf16>
    %cst_93 = arith.constant 1.767580e-01 : bf16
    %170 = vector.broadcast %cst_93 : bf16 to vector<64x32xbf16>
    %171 = arith.mulf %169, %170 : vector<64x32xbf16>
    %c0_94 = arith.constant 0 : index
    %c0_95 = arith.constant 0 : index
    %c480 = arith.constant 480 : index
    %172 = vector.load %arg1[%c0_94, %c0_95, %c480] : memref<1x64x768xbf16, #tpu.memory_space<vmem>>, vector<1x64x32xbf16>
    %173 = vector.shape_cast %172 : vector<1x64x32xbf16> to vector<64x32xbf16>
    %c0_96 = arith.constant 0 : index
    %c0_97 = arith.constant 0 : index
    %c736 = arith.constant 736 : index
    %174 = vector.load %arg1[%c0_96, %c0_97, %c736] : memref<1x64x768xbf16, #tpu.memory_space<vmem>>, vector<1x64x32xbf16>
    %175 = vector.shape_cast %174 : vector<1x64x32xbf16> to vector<64x32xbf16>
    %cst_98 = arith.constant dense<0.000000e+00> : vector<64x64xf32>
    %176 = tpu.matmul %171, %173, %cst_98 {dimension_numbers = #tpu.dot_dimension_numbers<[1], [1], [0], [0], [0, 0, 1, 0], [], []>} : vector<64x32xbf16>, vector<64x32xbf16>, vector<64x64xf32> -> vector<64x64xf32>
    %c7 = arith.constant 7 : index
    %c0_99 = arith.constant 0 : index
    %c0_100 = arith.constant 0 : index
    %177 = vector.load %arg2[%c7, %c0_99, %c0_100] : memref<8x64x64xf32, #tpu.memory_space<vmem>>, vector<1x64x64xf32>
    %178 = vector.shape_cast %177 : vector<1x64x64xf32> to vector<64x64xf32>
    %179 = arith.addf %176, %178 : vector<64x64xf32>
    %cst_101 = arith.constant dense<0xFF800000> : vector<64xf32>
    %180 = vector.multi_reduction <maximumf>, %179, %cst_101 [1] : vector<64x64xf32> to vector<64xf32>
    %181 = vector.shape_cast %180 : vector<64xf32> to vector<64x1xf32>
    %182 = vector.broadcast %181 : vector<64x1xf32> to vector<64x64xf32>
    %183 = arith.subf %179, %182 : vector<64x64xf32>
    %184 = math.exp %183 : vector<64x64xf32>
    %cst_102 = arith.constant dense<0.000000e+00> : vector<64xf32>
    %185 = vector.multi_reduction <add>, %184, %cst_102 [1] : vector<64x64xf32> to vector<64xf32>
    %186 = vector.shape_cast %185 : vector<64xf32> to vector<64x1xf32>
    %187 = arith.truncf %184 : vector<64x64xf32> to vector<64x64xbf16>
    %cst_103 = arith.constant dense<0.000000e+00> : vector<64x32xf32>
    %188 = tpu.matmul %187, %175, %cst_103 {dimension_numbers = #tpu.dot_dimension_numbers<[1], [0], [0], [1], [0, 0, 1, 1], [], []>} : vector<64x64xbf16>, vector<64x32xbf16>, vector<64x32xf32> -> vector<64x32xf32>
    %189 = tpu.reciprocal %186 {approx = true} : vector<64x1xf32> -> vector<64x1xf32>
    %190 = vector.broadcast %189 : vector<64x1xf32> to vector<64x32xf32>
    %191 = arith.mulf %188, %190 : vector<64x32xf32>
    %192 = tpu.concatenate %23, %47, %71, %95, %119, %143, %167, %191 in 1 : vector<64x32xf32>, vector<64x32xf32>, vector<64x32xf32>, vector<64x32xf32>, vector<64x32xf32>, vector<64x32xf32>, vector<64x32xf32>, vector<64x32xf32> -> vector<64x256xf32>
    %193 = arith.truncf %192 : vector<64x256xf32> to vector<64x256xbf16>
    %c0_104 = arith.constant 0 : index
    %c0_105 = arith.constant 0 : index
    %194 = vector.load %arg3[%c0_104, %c0_105] : memref<256x64xbf16, #tpu.memory_space<vmem>>, vector<256x64xbf16>
    %cst_106 = arith.constant dense<0.000000e+00> : vector<64x64xf32>
    %195 = tpu.matmul %193, %194, %cst_106 {dimension_numbers = #tpu.dot_dimension_numbers<[1], [0], [0], [1], [0, 0, 1, 1], [], []>} : vector<64x256xbf16>, vector<256x64xbf16>, vector<64x64xf32> -> vector<64x64xf32>
    %c0_107 = arith.constant 0 : index
    %c0_108 = arith.constant 0 : index
    %196 = vector.load %arg4[%c0_107, %c0_108] : memref<1x64xf32, #tpu.memory_space<vmem>>, vector<1x64xf32>
    %197 = vector.broadcast %196 : vector<1x64xf32> to vector<64x64xf32>
    %198 = arith.addf %195, %197 : vector<64x64xf32>
    %c0_109 = arith.constant 0 : index
    %c0_110 = arith.constant 0 : index
    %c0_111 = arith.constant 0 : index
    %199 = vector.load %arg5[%c0_109, %c0_110, %c0_111] : memref<1x64x64xf32, #tpu.memory_space<vmem>>, vector<1x64x64xf32>
    %200 = vector.shape_cast %199 : vector<1x64x64xf32> to vector<64x64xf32>
    %201 = arith.addf %198, %200 : vector<64x64xf32>
    %c0_112 = arith.constant 0 : index
    %c0_113 = arith.constant 0 : index
    %c0_114 = arith.constant 0 : index
    %202 = vector.load %arg6[%c0_112, %c0_113, %c0_114] : memref<1x64x64xf32, #tpu.memory_space<vmem>>, vector<1x64x64xf32>
    %203 = vector.shape_cast %202 : vector<1x64x64xf32> to vector<64x64xf32>
    %204 = vector.shape_cast %201 : vector<64x64xf32> to vector<1x64x64xf32>
    tpu.vector_store %arg6[%c0_112, %c0_113, %c0_114], %204 {strides = array<i32>} : memref<1x64x64xf32, #tpu.memory_space<vmem>>, vector<1x64x64xf32>,
    return
  }
  func.func @transform_0(%arg0: i32) -> (i32, i32, i32) {
    %c0_i32 = arith.constant 0 : i32
    %c0_i32_0 = arith.constant 0 : i32
    %c0_i32_1 = arith.constant 0 : i32
    return %arg0, %c0_i32, %c0_i32_0 : i32, i32, i32
  }
  func.func @transform_1(%arg0: i32) -> (i32, i32, i32) {
    %c0_i32 = arith.constant 0 : i32
    %c0_i32_0 = arith.constant 0 : i32
    %c0_i32_1 = arith.constant 0 : i32
    %c0_i32_2 = arith.constant 0 : i32
    return %c0_i32, %c0_i32_0, %c0_i32_1 : i32, i32, i32
  }
  func.func @transform_2(%arg0: i32) -> (i32, i32) {
    %c0_i32 = arith.constant 0 : i32
    %c0_i32_0 = arith.constant 0 : i32
    %c0_i32_1 = arith.constant 0 : i32
    return %c0_i32, %c0_i32_0 : i32, i32
  }
  func.func @transform_3(%arg0: i32) -> (i32, i32) {
    %c0_i32 = arith.constant 0 : i32
    %c0_i32_0 = arith.constant 0 : i32
    %c0_i32_1 = arith.constant 0 : i32
    return %c0_i32, %c0_i32_0 : i32, i32
  }
  func.func @transform_4(%arg0: i32) -> (i32, i32, i32) {
    %c0_i32 = arith.constant 0 : i32
    %c0_i32_0 = arith.constant 0 : i32
    %c0_i32_1 = arith.constant 0 : i32
    return %arg0, %c0_i32, %c0_i32_0 : i32, i32, i32
  }
  func.func @transform_5(%arg0: i32) -> (i32, i32, i32) {
    %c0_i32 = arith.constant 0 : i32
    %c0_i32_0 = arith.constant 0 : i32
    %c0_i32_1 = arith.constant 0 : i32
    return %arg0, %c0_i32, %c0_i32_0 : i32, i32, i32
  }
}

module attributes {stable_mosaic.version = 11 : i64} {
  func.func @_mm_ln_kernel(%arg0: i32, %arg1: memref<64x64xf32, #tpu.memory_space<vmem>>, %arg2: memref<1x64xf32, #tpu.memory_space<vmem>>, %arg3: memref<1x64xf32, #tpu.memory_space<vmem>>, %arg4: memref<64x768xbf16, #tpu.memory_space<vmem>>, %arg5: memref<64x768xbf16, #tpu.memory_space<vmem>>) attributes {dimension_semantics = [#tpu.dimension_semantics<parallel>], iteration_bounds = array<i64: 2>, scalar_prefetch = 0 : i64, scratch_operands = 0 : i64, tpu.core_type = #tpu.core_type<tc>, window_params = [{transform_indices = @transform_0, window_bounds = array<i64: 64, 64>}, {pipeline_mode = #tpu.pipeline_mode<synchronous>, transform_indices = @transform_1, window_bounds = array<i64: 1, 64>}, {pipeline_mode = #tpu.pipeline_mode<synchronous>, transform_indices = @transform_2, window_bounds = array<i64: 1, 64>}, {pipeline_mode = #tpu.pipeline_mode<synchronous>, transform_indices = @transform_3, window_bounds = array<i64: 64, 768>}, {transform_indices = @transform_4, window_bounds = array<i64: 64, 768>}]} {
    %c0 = arith.constant 0 : index
    %c0_0 = arith.constant 0 : index
    %0 = vector.load %arg1[%c0, %c0_0] : memref<64x64xf32, #tpu.memory_space<vmem>>, vector<64x64xf32>
    %cst = arith.constant dense<0.000000e+00> : vector<64xf32>
    %1 = vector.multi_reduction <add>, %0, %cst [1] : vector<64x64xf32> to vector<64xf32>
    %2 = vector.shape_cast %1 : vector<64xf32> to vector<64x1xf32>
    %cst_1 = arith.constant 6.400000e+01 : f32
    %3 = vector.broadcast %cst_1 : f32 to vector<64x1xf32>
    %4 = arith.divf %2, %3 : vector<64x1xf32>
    %5 = vector.broadcast %4 : vector<64x1xf32> to vector<64x64xf32>
    %6 = arith.subf %0, %5 : vector<64x64xf32>
    %7 = arith.mulf %6, %6 : vector<64x64xf32>
    %cst_2 = arith.constant dense<0.000000e+00> : vector<64xf32>
    %8 = vector.multi_reduction <add>, %7, %cst_2 [1] : vector<64x64xf32> to vector<64xf32>
    %9 = vector.shape_cast %8 : vector<64xf32> to vector<64x1xf32>
    %cst_3 = arith.constant 6.400000e+01 : f32
    %10 = vector.broadcast %cst_3 : f32 to vector<64x1xf32>
    %11 = arith.divf %9, %10 : vector<64x1xf32>
    %12 = vector.broadcast %4 : vector<64x1xf32> to vector<64x64xf32>
    %13 = arith.subf %0, %12 : vector<64x64xf32>
    %cst_4 = arith.constant 9.99999974E-6 : f32
    %14 = vector.broadcast %cst_4 : f32 to vector<64x1xf32>
    %15 = arith.addf %11, %14 : vector<64x1xf32>
    %16 = math.rsqrt %15 : vector<64x1xf32>
    %17 = vector.broadcast %16 : vector<64x1xf32> to vector<64x64xf32>
    %18 = arith.mulf %13, %17 : vector<64x64xf32>
    %c0_5 = arith.constant 0 : index
    %c0_6 = arith.constant 0 : index
    %19 = vector.load %arg2[%c0_5, %c0_6] : memref<1x64xf32, #tpu.memory_space<vmem>>, vector<1x64xf32>
    %20 = vector.broadcast %19 : vector<1x64xf32> to vector<64x64xf32>
    %21 = arith.mulf %18, %20 : vector<64x64xf32>
    %c0_7 = arith.constant 0 : index
    %c0_8 = arith.constant 0 : index
    %22 = vector.load %arg3[%c0_7, %c0_8] : memref<1x64xf32, #tpu.memory_space<vmem>>, vector<1x64xf32>
    %23 = vector.broadcast %22 : vector<1x64xf32> to vector<64x64xf32>
    %24 = arith.addf %21, %23 : vector<64x64xf32>
    %25 = arith.truncf %24 : vector<64x64xf32> to vector<64x64xbf16>
    %c0_9 = arith.constant 0 : index
    %c0_10 = arith.constant 0 : index
    %26 = vector.load %arg4[%c0_9, %c0_10] : memref<64x768xbf16, #tpu.memory_space<vmem>>, vector<64x768xbf16>
    %cst_11 = arith.constant dense<0.000000e+00> : vector<64x768xf32>
    %27 = tpu.matmul %25, %26, %cst_11 {dimension_numbers = #tpu.dot_dimension_numbers<[1], [0], [0], [1], [0, 0, 1, 1], [], []>} : vector<64x64xbf16>, vector<64x768xbf16>, vector<64x768xf32> -> vector<64x768xf32>
    %28 = arith.truncf %27 : vector<64x768xf32> to vector<64x768xbf16>
    %c0_12 = arith.constant 0 : index
    %c0_13 = arith.constant 0 : index
    %29 = vector.load %arg5[%c0_12, %c0_13] : memref<64x768xbf16, #tpu.memory_space<vmem>>, vector<64x768xbf16>
    tpu.vector_store %arg5[%c0_12, %c0_13], %28 {strides = array<i32>} : memref<64x768xbf16, #tpu.memory_space<vmem>>, vector<64x768xbf16>,
    return
  }
  func.func @transform_0(%arg0: i32) -> (i32, i32) {
    %c0_i32 = arith.constant 0 : i32
    %c0_i32_0 = arith.constant 0 : i32
    return %arg0, %c0_i32 : i32, i32
  }
  func.func @transform_1(%arg0: i32) -> (i32, i32) {
    %c0_i32 = arith.constant 0 : i32
    %c0_i32_0 = arith.constant 0 : i32
    %c0_i32_1 = arith.constant 0 : i32
    return %c0_i32, %c0_i32_0 : i32, i32
  }
  func.func @transform_2(%arg0: i32) -> (i32, i32) {
    %c0_i32 = arith.constant 0 : i32
    %c0_i32_0 = arith.constant 0 : i32
    %c0_i32_1 = arith.constant 0 : i32
    return %c0_i32, %c0_i32_0 : i32, i32
  }
  func.func @transform_3(%arg0: i32) -> (i32, i32) {
    %c0_i32 = arith.constant 0 : i32
    %c0_i32_0 = arith.constant 0 : i32
    %c0_i32_1 = arith.constant 0 : i32
    return %c0_i32, %c0_i32_0 : i32, i32
  }
  func.func @transform_4(%arg0: i32) -> (i32, i32) {
    %c0_i32 = arith.constant 0 : i32
    %c0_i32_0 = arith.constant 0 : i32
    return %arg0, %c0_i32 : i32, i32
  }
}

module attributes {stable_mosaic.version = 11 : i64} {
  func.func @_ff_kernel(%arg0: i32, %arg1: memref<64x64xf32, #tpu.memory_space<vmem>>, %arg2: memref<1x64xf32, #tpu.memory_space<vmem>>, %arg3: memref<1x64xf32, #tpu.memory_space<vmem>>, %arg4: memref<64x128xbf16, #tpu.memory_space<vmem>>, %arg5: memref<1x128xf32, #tpu.memory_space<vmem>>, %arg6: memref<128x64xbf16, #tpu.memory_space<vmem>>, %arg7: memref<1x64xf32, #tpu.memory_space<vmem>>, %arg8: memref<64x64xf32, #tpu.memory_space<vmem>>) attributes {dimension_semantics = [#tpu.dimension_semantics<parallel>], iteration_bounds = array<i64: 2>, scalar_prefetch = 0 : i64, scratch_operands = 0 : i64, tpu.core_type = #tpu.core_type<tc>, window_params = [{transform_indices = @transform_0, window_bounds = array<i64: 64, 64>}, {pipeline_mode = #tpu.pipeline_mode<synchronous>, transform_indices = @transform_1, window_bounds = array<i64: 1, 64>}, {pipeline_mode = #tpu.pipeline_mode<synchronous>, transform_indices = @transform_2, window_bounds = array<i64: 1, 64>}, {pipeline_mode = #tpu.pipeline_mode<synchronous>, transform_indices = @transform_3, window_bounds = array<i64: 64, 128>}, {pipeline_mode = #tpu.pipeline_mode<synchronous>, transform_indices = @transform_4, window_bounds = array<i64: 1, 128>}, {pipeline_mode = #tpu.pipeline_mode<synchronous>, transform_indices = @transform_5, window_bounds = array<i64: 128, 64>}, {pipeline_mode = #tpu.pipeline_mode<synchronous>, transform_indices = @transform_6, window_bounds = array<i64: 1, 64>}, {transform_indices = @transform_7, window_bounds = array<i64: 64, 64>}]} {
    %c0 = arith.constant 0 : index
    %c0_0 = arith.constant 0 : index
    %0 = vector.load %arg1[%c0, %c0_0] : memref<64x64xf32, #tpu.memory_space<vmem>>, vector<64x64xf32>
    %cst = arith.constant dense<0.000000e+00> : vector<64xf32>
    %1 = vector.multi_reduction <add>, %0, %cst [1] : vector<64x64xf32> to vector<64xf32>
    %2 = vector.shape_cast %1 : vector<64xf32> to vector<64x1xf32>
    %cst_1 = arith.constant 6.400000e+01 : f32
    %3 = vector.broadcast %cst_1 : f32 to vector<64x1xf32>
    %4 = arith.divf %2, %3 : vector<64x1xf32>
    %5 = vector.broadcast %4 : vector<64x1xf32> to vector<64x64xf32>
    %6 = arith.subf %0, %5 : vector<64x64xf32>
    %7 = arith.mulf %6, %6 : vector<64x64xf32>
    %cst_2 = arith.constant dense<0.000000e+00> : vector<64xf32>
    %8 = vector.multi_reduction <add>, %7, %cst_2 [1] : vector<64x64xf32> to vector<64xf32>
    %9 = vector.shape_cast %8 : vector<64xf32> to vector<64x1xf32>
    %cst_3 = arith.constant 6.400000e+01 : f32
    %10 = vector.broadcast %cst_3 : f32 to vector<64x1xf32>
    %11 = arith.divf %9, %10 : vector<64x1xf32>
    %12 = vector.broadcast %4 : vector<64x1xf32> to vector<64x64xf32>
    %13 = arith.subf %0, %12 : vector<64x64xf32>
    %cst_4 = arith.constant 9.99999974E-6 : f32
    %14 = vector.broadcast %cst_4 : f32 to vector<64x1xf32>
    %15 = arith.addf %11, %14 : vector<64x1xf32>
    %16 = math.rsqrt %15 : vector<64x1xf32>
    %17 = vector.broadcast %16 : vector<64x1xf32> to vector<64x64xf32>
    %18 = arith.mulf %13, %17 : vector<64x64xf32>
    %c0_5 = arith.constant 0 : index
    %c0_6 = arith.constant 0 : index
    %19 = vector.load %arg2[%c0_5, %c0_6] : memref<1x64xf32, #tpu.memory_space<vmem>>, vector<1x64xf32>
    %20 = vector.broadcast %19 : vector<1x64xf32> to vector<64x64xf32>
    %21 = arith.mulf %18, %20 : vector<64x64xf32>
    %c0_7 = arith.constant 0 : index
    %c0_8 = arith.constant 0 : index
    %22 = vector.load %arg3[%c0_7, %c0_8] : memref<1x64xf32, #tpu.memory_space<vmem>>, vector<1x64xf32>
    %23 = vector.broadcast %22 : vector<1x64xf32> to vector<64x64xf32>
    %24 = arith.addf %21, %23 : vector<64x64xf32>
    %25 = arith.truncf %24 : vector<64x64xf32> to vector<64x64xbf16>
    %c0_9 = arith.constant 0 : index
    %c0_10 = arith.constant 0 : index
    %26 = vector.load %arg4[%c0_9, %c0_10] : memref<64x128xbf16, #tpu.memory_space<vmem>>, vector<64x128xbf16>
    %cst_11 = arith.constant dense<0.000000e+00> : vector<64x128xf32>
    %27 = tpu.matmul %25, %26, %cst_11 {dimension_numbers = #tpu.dot_dimension_numbers<[1], [0], [0], [1], [0, 0, 1, 1], [], []>} : vector<64x64xbf16>, vector<64x128xbf16>, vector<64x128xf32> -> vector<64x128xf32>
    %c0_12 = arith.constant 0 : index
    %c0_13 = arith.constant 0 : index
    %28 = vector.load %arg5[%c0_12, %c0_13] : memref<1x128xf32, #tpu.memory_space<vmem>>, vector<1x128xf32>
    %29 = vector.broadcast %28 : vector<1x128xf32> to vector<64x128xf32>
    %30 = arith.addf %27, %29 : vector<64x128xf32>
    %cst_14 = arith.constant 5.000000e-01 : f32
    %31 = vector.broadcast %cst_14 : f32 to vector<64x128xf32>
    %32 = arith.mulf %31, %30 : vector<64x128xf32>
    %cst_15 = arith.constant 4.471500e-02 : f32
    %33 = vector.broadcast %cst_15 : f32 to vector<64x128xf32>
    %34 = arith.mulf %33, %30 : vector<64x128xf32>
    %35 = arith.mulf %34, %30 : vector<64x128xf32>
    %36 = arith.mulf %35, %30 : vector<64x128xf32>
    %37 = arith.addf %30, %36 : vector<64x128xf32>
    %cst_16 = arith.constant 0.797884583 : f32
    %38 = vector.broadcast %cst_16 : f32 to vector<64x128xf32>
    %39 = arith.mulf %38, %37 : vector<64x128xf32>
    %40 = math.tanh %39 : vector<64x128xf32>
    %cst_17 = arith.constant 1.000000e+00 : f32
    %41 = vector.broadcast %cst_17 : f32 to vector<64x128xf32>
    %42 = arith.addf %41, %40 : vector<64x128xf32>
    %43 = arith.mulf %32, %42 : vector<64x128xf32>
    %44 = arith.truncf %43 : vector<64x128xf32> to vector<64x128xbf16>
    %c0_18 = arith.constant 0 : index
    %c0_19 = arith.constant 0 : index
    %45 = vector.load %arg6[%c0_18, %c0_19] : memref<128x64xbf16, #tpu.memory_space<vmem>>, vector<128x64xbf16>
    %cst_20 = arith.constant dense<0.000000e+00> : vector<64x64xf32>
    %46 = tpu.matmul %44, %45, %cst_20 {dimension_numbers = #tpu.dot_dimension_numbers<[1], [0], [0], [1], [0, 0, 1, 1], [], []>} : vector<64x128xbf16>, vector<128x64xbf16>, vector<64x64xf32> -> vector<64x64xf32>
    %c0_21 = arith.constant 0 : index
    %c0_22 = arith.constant 0 : index
    %47 = vector.load %arg7[%c0_21, %c0_22] : memref<1x64xf32, #tpu.memory_space<vmem>>, vector<1x64xf32>
    %48 = vector.broadcast %47 : vector<1x64xf32> to vector<64x64xf32>
    %49 = arith.addf %46, %48 : vector<64x64xf32>
    %50 = arith.addf %49, %0 : vector<64x64xf32>
    %c0_23 = arith.constant 0 : index
    %c0_24 = arith.constant 0 : index
    %51 = vector.load %arg8[%c0_23, %c0_24] : memref<64x64xf32, #tpu.memory_space<vmem>>, vector<64x64xf32>
    tpu.vector_store %arg8[%c0_23, %c0_24], %50 {strides = array<i32>} : memref<64x64xf32, #tpu.memory_space<vmem>>, vector<64x64xf32>,
    return
  }
  func.func @transform_0(%arg0: i32) -> (i32, i32) {
    %c0_i32 = arith.constant 0 : i32
    %c0_i32_0 = arith.constant 0 : i32
    return %arg0, %c0_i32 : i32, i32
  }
  func.func @transform_1(%arg0: i32) -> (i32, i32) {
    %c0_i32 = arith.constant 0 : i32
    %c0_i32_0 = arith.constant 0 : i32
    %c0_i32_1 = arith.constant 0 : i32
    return %c0_i32, %c0_i32_0 : i32, i32
  }
  func.func @transform_2(%arg0: i32) -> (i32, i32) {
    %c0_i32 = arith.constant 0 : i32
    %c0_i32_0 = arith.constant 0 : i32
    %c0_i32_1 = arith.constant 0 : i32
    return %c0_i32, %c0_i32_0 : i32, i32
  }
  func.func @transform_3(%arg0: i32) -> (i32, i32) {
    %c0_i32 = arith.constant 0 : i32
    %c0_i32_0 = arith.constant 0 : i32
    %c0_i32_1 = arith.constant 0 : i32
    return %c0_i32, %c0_i32_0 : i32, i32
  }
  func.func @transform_4(%arg0: i32) -> (i32, i32) {
    %c0_i32 = arith.constant 0 : i32
    %c0_i32_0 = arith.constant 0 : i32
    %c0_i32_1 = arith.constant 0 : i32
    return %c0_i32, %c0_i32_0 : i32, i32
  }
  func.func @transform_5(%arg0: i32) -> (i32, i32) {
    %c0_i32 = arith.constant 0 : i32
    %c0_i32_0 = arith.constant 0 : i32
    %c0_i32_1 = arith.constant 0 : i32
    return %c0_i32, %c0_i32_0 : i32, i32
  }
  func.func @transform_6(%arg0: i32) -> (i32, i32) {
    %c0_i32 = arith.constant 0 : i32
    %c0_i32_0 = arith.constant 0 : i32
    %c0_i32_1 = arith.constant 0 : i32
    return %c0_i32, %c0_i32_0 : i32, i32
  }
  func.func @transform_7(%arg0: i32) -> (i32, i32) {
    %c0_i32 = arith.constant 0 : i32
    %c0_i32_0 = arith.constant 0 : i32
    return %arg0, %c0_i32 : i32, i32
  }
}

module attributes {stable_mosaic.version = 11 : i64} {
  func.func @_ff_kernel(%arg0: i32, %arg1: memref<64x64xf32, #tpu.memory_space<vmem>>, %arg2: memref<1x64xf32, #tpu.memory_space<vmem>>, %arg3: memref<1x64xf32, #tpu.memory_space<vmem>>, %arg4: memref<64x256xbf16, #tpu.memory_space<vmem>>, %arg5: memref<1x256xf32, #tpu.memory_space<vmem>>, %arg6: memref<256x64xbf16, #tpu.memory_space<vmem>>, %arg7: memref<1x64xf32, #tpu.memory_space<vmem>>, %arg8: memref<64x64xf32, #tpu.memory_space<vmem>>) attributes {dimension_semantics = [#tpu.dimension_semantics<parallel>], iteration_bounds = array<i64: 2>, scalar_prefetch = 0 : i64, scratch_operands = 0 : i64, tpu.core_type = #tpu.core_type<tc>, window_params = [{transform_indices = @transform_0, window_bounds = array<i64: 64, 64>}, {pipeline_mode = #tpu.pipeline_mode<synchronous>, transform_indices = @transform_1, window_bounds = array<i64: 1, 64>}, {pipeline_mode = #tpu.pipeline_mode<synchronous>, transform_indices = @transform_2, window_bounds = array<i64: 1, 64>}, {pipeline_mode = #tpu.pipeline_mode<synchronous>, transform_indices = @transform_3, window_bounds = array<i64: 64, 256>}, {pipeline_mode = #tpu.pipeline_mode<synchronous>, transform_indices = @transform_4, window_bounds = array<i64: 1, 256>}, {pipeline_mode = #tpu.pipeline_mode<synchronous>, transform_indices = @transform_5, window_bounds = array<i64: 256, 64>}, {pipeline_mode = #tpu.pipeline_mode<synchronous>, transform_indices = @transform_6, window_bounds = array<i64: 1, 64>}, {transform_indices = @transform_7, window_bounds = array<i64: 64, 64>}]} {
    %c0 = arith.constant 0 : index
    %c0_0 = arith.constant 0 : index
    %0 = vector.load %arg1[%c0, %c0_0] : memref<64x64xf32, #tpu.memory_space<vmem>>, vector<64x64xf32>
    %cst = arith.constant dense<0.000000e+00> : vector<64xf32>
    %1 = vector.multi_reduction <add>, %0, %cst [1] : vector<64x64xf32> to vector<64xf32>
    %2 = vector.shape_cast %1 : vector<64xf32> to vector<64x1xf32>
    %cst_1 = arith.constant 6.400000e+01 : f32
    %3 = vector.broadcast %cst_1 : f32 to vector<64x1xf32>
    %4 = arith.divf %2, %3 : vector<64x1xf32>
    %5 = vector.broadcast %4 : vector<64x1xf32> to vector<64x64xf32>
    %6 = arith.subf %0, %5 : vector<64x64xf32>
    %7 = arith.mulf %6, %6 : vector<64x64xf32>
    %cst_2 = arith.constant dense<0.000000e+00> : vector<64xf32>
    %8 = vector.multi_reduction <add>, %7, %cst_2 [1] : vector<64x64xf32> to vector<64xf32>
    %9 = vector.shape_cast %8 : vector<64xf32> to vector<64x1xf32>
    %cst_3 = arith.constant 6.400000e+01 : f32
    %10 = vector.broadcast %cst_3 : f32 to vector<64x1xf32>
    %11 = arith.divf %9, %10 : vector<64x1xf32>
    %12 = vector.broadcast %4 : vector<64x1xf32> to vector<64x64xf32>
    %13 = arith.subf %0, %12 : vector<64x64xf32>
    %cst_4 = arith.constant 9.99999974E-6 : f32
    %14 = vector.broadcast %cst_4 : f32 to vector<64x1xf32>
    %15 = arith.addf %11, %14 : vector<64x1xf32>
    %16 = math.rsqrt %15 : vector<64x1xf32>
    %17 = vector.broadcast %16 : vector<64x1xf32> to vector<64x64xf32>
    %18 = arith.mulf %13, %17 : vector<64x64xf32>
    %c0_5 = arith.constant 0 : index
    %c0_6 = arith.constant 0 : index
    %19 = vector.load %arg2[%c0_5, %c0_6] : memref<1x64xf32, #tpu.memory_space<vmem>>, vector<1x64xf32>
    %20 = vector.broadcast %19 : vector<1x64xf32> to vector<64x64xf32>
    %21 = arith.mulf %18, %20 : vector<64x64xf32>
    %c0_7 = arith.constant 0 : index
    %c0_8 = arith.constant 0 : index
    %22 = vector.load %arg3[%c0_7, %c0_8] : memref<1x64xf32, #tpu.memory_space<vmem>>, vector<1x64xf32>
    %23 = vector.broadcast %22 : vector<1x64xf32> to vector<64x64xf32>
    %24 = arith.addf %21, %23 : vector<64x64xf32>
    %25 = arith.truncf %24 : vector<64x64xf32> to vector<64x64xbf16>
    %c0_9 = arith.constant 0 : index
    %c0_10 = arith.constant 0 : index
    %26 = vector.load %arg4[%c0_9, %c0_10] : memref<64x256xbf16, #tpu.memory_space<vmem>>, vector<64x256xbf16>
    %cst_11 = arith.constant dense<0.000000e+00> : vector<64x256xf32>
    %27 = tpu.matmul %25, %26, %cst_11 {dimension_numbers = #tpu.dot_dimension_numbers<[1], [0], [0], [1], [0, 0, 1, 1], [], []>} : vector<64x64xbf16>, vector<64x256xbf16>, vector<64x256xf32> -> vector<64x256xf32>
    %c0_12 = arith.constant 0 : index
    %c0_13 = arith.constant 0 : index
    %28 = vector.load %arg5[%c0_12, %c0_13] : memref<1x256xf32, #tpu.memory_space<vmem>>, vector<1x256xf32>
    %29 = vector.broadcast %28 : vector<1x256xf32> to vector<64x256xf32>
    %30 = arith.addf %27, %29 : vector<64x256xf32>
    %cst_14 = arith.constant 5.000000e-01 : f32
    %31 = vector.broadcast %cst_14 : f32 to vector<64x256xf32>
    %32 = arith.mulf %31, %30 : vector<64x256xf32>
    %cst_15 = arith.constant 4.471500e-02 : f32
    %33 = vector.broadcast %cst_15 : f32 to vector<64x256xf32>
    %34 = arith.mulf %33, %30 : vector<64x256xf32>
    %35 = arith.mulf %34, %30 : vector<64x256xf32>
    %36 = arith.mulf %35, %30 : vector<64x256xf32>
    %37 = arith.addf %30, %36 : vector<64x256xf32>
    %cst_16 = arith.constant 0.797884583 : f32
    %38 = vector.broadcast %cst_16 : f32 to vector<64x256xf32>
    %39 = arith.mulf %38, %37 : vector<64x256xf32>
    %40 = math.tanh %39 : vector<64x256xf32>
    %cst_17 = arith.constant 1.000000e+00 : f32
    %41 = vector.broadcast %cst_17 : f32 to vector<64x256xf32>
    %42 = arith.addf %41, %40 : vector<64x256xf32>
    %43 = arith.mulf %32, %42 : vector<64x256xf32>
    %44 = arith.truncf %43 : vector<64x256xf32> to vector<64x256xbf16>
    %c0_18 = arith.constant 0 : index
    %c0_19 = arith.constant 0 : index
    %45 = vector.load %arg6[%c0_18, %c0_19] : memref<256x64xbf16, #tpu.memory_space<vmem>>, vector<256x64xbf16>
    %cst_20 = arith.constant dense<0.000000e+00> : vector<64x64xf32>
    %46 = tpu.matmul %44, %45, %cst_20 {dimension_numbers = #tpu.dot_dimension_numbers<[1], [0], [0], [1], [0, 0, 1, 1], [], []>} : vector<64x256xbf16>, vector<256x64xbf16>, vector<64x64xf32> -> vector<64x64xf32>
    %c0_21 = arith.constant 0 : index
    %c0_22 = arith.constant 0 : index
    %47 = vector.load %arg7[%c0_21, %c0_22] : memref<1x64xf32, #tpu.memory_space<vmem>>, vector<1x64xf32>
    %48 = vector.broadcast %47 : vector<1x64xf32> to vector<64x64xf32>
    %49 = arith.addf %46, %48 : vector<64x64xf32>
    %50 = arith.addf %49, %0 : vector<64x64xf32>
    %c0_23 = arith.constant 0 : index
    %c0_24 = arith.constant 0 : index
    %51 = vector.load %arg8[%c0_23, %c0_24] : memref<64x64xf32, #tpu.memory_space<vmem>>, vector<64x64xf32>
    tpu.vector_store %arg8[%c0_23, %c0_24], %50 {strides = array<i32>} : memref<64x64xf32, #tpu.memory_space<vmem>>, vector<64x64xf32>,
    return
  }
  func.func @transform_0(%arg0: i32) -> (i32, i32) {
    %c0_i32 = arith.constant 0 : i32
    %c0_i32_0 = arith.constant 0 : i32
    return %arg0, %c0_i32 : i32, i32
  }
  func.func @transform_1(%arg0: i32) -> (i32, i32) {
    %c0_i32 = arith.constant 0 : i32
    %c0_i32_0 = arith.constant 0 : i32
    %c0_i32_1 = arith.constant 0 : i32
    return %c0_i32, %c0_i32_0 : i32, i32
  }
  func.func @transform_2(%arg0: i32) -> (i32, i32) {
    %c0_i32 = arith.constant 0 : i32
    %c0_i32_0 = arith.constant 0 : i32
    %c0_i32_1 = arith.constant 0 : i32
    return %c0_i32, %c0_i32_0 : i32, i32
  }
  func.func @transform_3(%arg0: i32) -> (i32, i32) {
    %c0_i32 = arith.constant 0 : i32
    %c0_i32_0 = arith.constant 0 : i32
    %c0_i32_1 = arith.constant 0 : i32
    return %c0_i32, %c0_i32_0 : i32, i32
  }
  func.func @transform_4(%arg0: i32) -> (i32, i32) {
    %c0_i32 = arith.constant 0 : i32
    %c0_i32_0 = arith.constant 0 : i32
    %c0_i32_1 = arith.constant 0 : i32
    return %c0_i32, %c0_i32_0 : i32, i32
  }
  func.func @transform_5(%arg0: i32) -> (i32, i32) {
    %c0_i32 = arith.constant 0 : i32
    %c0_i32_0 = arith.constant 0 : i32
    %c0_i32_1 = arith.constant 0 : i32
    return %c0_i32, %c0_i32_0 : i32, i32
  }
  func.func @transform_6(%arg0: i32) -> (i32, i32) {
    %c0_i32 = arith.constant 0 : i32
    %c0_i32_0 = arith.constant 0 : i32
    %c0_i32_1 = arith.constant 0 : i32
    return %c0_i32, %c0_i32_0 : i32, i32
  }
  func.func @transform_7(%arg0: i32) -> (i32, i32) {
    %c0_i32 = arith.constant 0 : i32
    %c0_i32_0 = arith.constant 0 : i32
    return %arg0, %c0_i32 : i32, i32
  }
}

</mosaic_0001>

<llo_original>
// kernel: forward.7
$region0: #{forward.7}
  #allocation0 [shape = 'u32[]', space=smem, size = 0x4, offset = 0x4, fixed_abs, tag = 'smem constant byte address 0x4 - core index']
  #allocation1 [shape = 'u32[144,128]{1,0:T(1,128)}', space=vmem, size = 0x12000, scoped, tag = 'internal scratch']
  %s0 = inlined_call_operand.vmem [shape: f32[128,32], index: 0, kind: input, shape index: {}]
  %s1 = inlined_call_operand.vmem [shape: bf16[32,64], index: 1, kind: input, shape index: {}]
  %s2 = inlined_call_operand.vmem [shape: f32[128,64], index: 2, kind: output, shape index: {}]
  %s3 = sld [smem:[#allocation0]]
  $region41: #{forward.7} parent=0
    _
  %s5 = ssub.s32 1, %s3
  %s6 = scalar_select 0, %s5, %s3
  loop: start=0, step=1, limit=4
  $region2: #{forward.7} parent=0 // loop_pre_header
    _
  $region3: #{forward.7} parent=0 // loop_header
    %s8 = sphi 0, %s12
    %p9 = scmp.ge.s32.totalorder %s8, 4
    %s18 = sphi 0, %s20
    %s21 = sphi 0, %s18
    %s22 = sphi 0, %s21
    %s38 = sphi 0, %s22
    %s42 = sphi 0, %s42
    %s44 = sphi 0, %s42
    %s45 = sphi 0, %s44
    %s59 = sphi 0, %s45
    %s65 = sphi 0, %s67
    %s68 = sphi 0, %s65
    %s69 = sphi 0, %s68
    %s85 = sphi 0, %s69
  $region4: #{forward.7} parent=0 // loop_header_branch
    %11 = sbr.rel (%p9) target = $region8
  $region5: #{forward.7} parent=0 // loop_body
    %s13 = ssub.s32 %s8, 1
    %s14 = ssub.s32 %s8, 2
    %s15 = sadd.s32 %s8, 1
    %s16 = ssub.s32 %s8, %s15
    %p17 = scmp.eq.s32.totalorder %s16, 0
    %s19 = sadd.s32 %s18, 1
    %s20 = scalar_select %p17, %s18, %s19
    %p23 = pneg %p17
    %p24 = scmp.eq.s32.totalorder %s8, 1
    %p25 = por %p23, %p24
    %p26 = scmp.ne.s32.totalorder %s18, %s21
    %p27 = scmp.eq.s32.totalorder %s8, 0
    %p28 = por %p26, %p27
    %p29 = scmp.ne.s32.totalorder %s18, %s21
    %p30 = scmp.eq.s32.totalorder %s13, 1
    %p31 = por %p29, %p30
    %p32 = scmp.ne.s32.totalorder %s21, %s22
    %p33 = scmp.eq.s32.totalorder %s13, 0
    %p34 = por %p32, %p33
    %p35 = scmp.ne.s32.totalorder %s21, %s22
    %p36 = scmp.eq.s32.totalorder %s14, 1
    %p37 = por %p35, %p36
    %p39 = scmp.ne.s32.totalorder %s22, %s38
    %p40 = scmp.eq.s32.totalorder %s14, 0
    %p41 = por %p39, %p40
    %s43 = sadd.s32 %s42, 1
    %p46 = scmp.eq.s32.totalorder %s8, 1
    %p47 = scmp.ne.s32.totalorder %s42, %s44
    %p48 = scmp.eq.s32.totalorder %s8, 0
    %p49 = por %p47, %p48
    %p50 = scmp.ne.s32.totalorder %s42, %s44
    %p51 = scmp.eq.s32.totalorder %s13, 1
    %p52 = por %p50, %p51
    %p53 = scmp.ne.s32.totalorder %s44, %s45
    %p54 = scmp.eq.s32.totalorder %s13, 0
    %p55 = por %p53, %p54
    %p56 = scmp.ne.s32.totalorder %s44, %s45
    %p57 = scmp.eq.s32.totalorder %s14, 1
    %p58 = por %p56, %p57
    %p60 = scmp.ne.s32.totalorder %s45, %s59
    %p61 = scmp.eq.s32.totalorder %s14, 0
    %p62 = por %p60, %p61
    %s63 = ssub.s32 %s8, %s15
    %p64 = scmp.eq.s32.totalorder %s63, 0
    %s66 = sadd.s32 %s65, 1
    %s67 = scalar_select %p64, %s65, %s66
    %p70 = pneg %p64
    %p71 = scmp.eq.s32.totalorder %s8, 1
    %p72 = por %p70, %p71
    %p73 = scmp.ne.s32.totalorder %s65, %s68
    %p74 = scmp.eq.s32.totalorder %s8, 0
    %p75 = por %p73, %p74
    %p76 = scmp.ne.s32.totalorder %s65, %s68
    %p77 = scmp.eq.s32.totalorder %s13, 1
    %p78 = por %p76, %p77
    %p79 = scmp.ne.s32.totalorder %s68, %s69
    %p80 = scmp.eq.s32.totalorder %s13, 0
    %p81 = por %p79, %p80
    %p82 = scmp.ne.s32.totalorder %s68, %s69
    %p83 = scmp.eq.s32.totalorder %s14, 1
    %p84 = por %p82, %p83
    %p86 = scmp.ne.s32.totalorder %s69, %s85
    %p87 = scmp.eq.s32.totalorder %s14, 0
    %p88 = por %p86, %p87
    %p89 = scmp.le.s32.totalorder 1, %s8
    %p90 = scmp.lt.s32.totalorder %s8, 3
    %p91 = pnand %p89, %p90
    %p92 = pneg %p91
    // Predicated region
    $region9: #{forward.7} parent=5 // pred_check
      _
    $region10: #{forward.7} parent=5 // pred_check_branch
      %94 = sbr.rel (%p91) target = $region12
    $region11: #{forward.7} parent=5 // pred_region
      %s95 = ssub.s32 %s8, 1
      // Predicated region
      $region13: #{forward.7} parent=11 // pred_check
        %p96 = pneg %p55
      $region14: #{forward.7} parent=11 // pred_check_branch
        %98 = sbr.rel (%p96) target = $region16
      $region15: #{forward.7} parent=11 // pred_region
        _
      $region16: #{forward.7} parent=11 // pred_fallthru
        _
    $region12: #{forward.7} parent=5 // pred_fallthru
      _
    %p99 = scmp.lt.s32.totalorder %s8, 2
    // Predicated region
    $region17: #{forward.7} parent=5 // pred_check
      %p100 = pneg %p99
    $region18: #{forward.7} parent=5 // pred_check_branch
      %102 = sbr.rel (%p100) target = $region20
    $region19: #{forward.7} parent=5 // pred_region
      // Predicated region
      $region21: #{forward.7} parent=19 // pred_check
        %p103 = pneg %p28
      $region22: #{forward.7} parent=19 // pred_check_branch
        %105 = sbr.rel (%p103) target = $region24
      $region23: #{forward.7} parent=19 // pred_region
        %s106 = smul.u32 8, %s8
        %p107 = scmp.lt.s32.totalorder %s106, 15
        %s108 = scalar_select %p107, %s106, 15
        %s109 = smul.addr %s108, 8
        %s110 = scalar_lea.vmem %s0, %s109
        %s111 = smul.u32 8, %s8
      $region24: #{forward.7} parent=19 // pred_fallthru
        _
    $region20: #{forward.7} parent=5 // pred_fallthru
      _
    %p112 = scmp.le.s32.totalorder 1, %s8
    %p113 = scmp.lt.s32.totalorder %s8, 3
    %p114 = pnand %p112, %p113
    %p115 = pneg %p114
    // Predicated region
    $region25: #{forward.7} parent=5 // pred_check
      _
    $region26: #{forward.7} parent=5 // pred_check_branch
      %117 = sbr.rel (%p114) target = $region28
    $region27: #{forward.7} parent=5 // pred_region
      %s118 = ssub.s32 %s8, 1
      %s119 = smul.u32 8, %s13
      %p120 = scmp.lt.s32.totalorder %s119, 15
      %s121 = scalar_select %p120, %s119, 15
      %s122 = smul.addr %s121, 8
      %s123 = scalar_lea.vmem %s0, %s122
      %p124 = pneg %p34
      %p125 = pneg %p31
      %p126 = pneg %p55
      %p127 = pneg %p52
      %p128 = pneg %p81
      %p129 = pneg %p78
      %s130 = smul.u32 8, %s13
      %p131 = scmp.lt.s32.totalorder %s130, 15
      %s132 = scalar_select %p131, %s130, 15
      %s133 = smul.addr %s132, 8
      %s134 = scalar_lea.vmem %s2, %s133
      %s135 = smul.u32 8, %s13
      %p136 = scmp.lt.s32.totalorder %s135, 15
      %s137 = scalar_select %p136, %s135, 15
      %s138 = smul.addr %s137, 8
      %s139 = scalar_lea.vmem %s0, %s138
      %s140 = smul.u32 8, %s13
      %s141 = smul.u32 8, %s13
      %p142 = scmp.lt.s32.totalorder %s141, 15
      %s143 = scalar_select %p142, %s141, 15
      %s144 = smul.addr %s143, 8
      %s145 = scalar_lea.vmem %s2, %s144
      %s146 = smul.u32 8, %s13
      %v148 = vld [vmem:[%s139] sm:$0xff]
      %v149 = vld [vmem:[%s139 + $0x8] sm:$0xff]
      %v150 = vld [vmem:[%s139 + $0x10] sm:$0xff]
      %v151 = vld [vmem:[%s139 + $0x18] sm:$0xff]
      %v152 = vld [vmem:[%s139 + $0x20] sm:$0xff]
      %v153 = vld [vmem:[%s139 + $0x28] sm:$0xff]
      %v154 = vld [vmem:[%s139 + $0x30] sm:$0xff]
      %v155 = vld [vmem:[%s139 + $0x38] sm:$0xff]
      %v156 = vpack.c.bf16 %v149, %v148
      %v157 = vpack.c.bf16 %v151, %v150
      %v158 = vpack.c.bf16 %v153, %v152
      %v159 = vpack.c.bf16 %v155, %v154
      %v160 = vld [vmem:[%s1] sm:$0xf]
      %v161 = vld [vmem:[%s1 + $0x4] sm:$0xf]
      %v162 = vld [vmem:[%s1 + $0x8] sm:$0xf]
      %v163 = vld [vmem:[%s1 + $0xc] sm:$0xf]
      %v168 = vunpack.c.l.b16 %v160
      %v169 = vunpack.c.l.b16 %v161
      %v170 = vunpack.c.l.b16 %v162
      %v171 = vunpack.c.l.b16 %v163
      %v172 = vpack.c.b16 %v169, %v168
      %v173 = vpack.c.b16 %v171, %v170
      %vm176 = vcmask 261120
      %v178 = vsel %vm176, %v156, 0
      %v181 = vsel %vm176, %v157, 0
      %v184 = vsel %vm176, %v158, 0
      %v187 = vsel %vm176, %v159, 0
      %189 = vmatprep.subr.bf16.mxu0 0
      %190 = vmatpush1.bf16.msra.mxu0 0
      %191 = vmatprep.subr.bf16.mxu0 0
      %192 = vmatpush1.bf16.msra.mxu0 0
      %193 = vmatprep.subr.bf16.mxu0 0
      %194 = vmatpush1.bf16.msra.mxu0 0
      %195 = vmatprep.subr.bf16.mxu0 0
      %196 = vmatpush1.bf16.msra.mxu0 0
      %197 = vmatprep.subr.bf16.mxu0 0
      %198 = vmatpush1.bf16.msra.mxu0 0
      %199 = vmatprep.subr.bf16.mxu0 0
      %200 = vmatpush1.bf16.msra.mxu0 0
      %201 = vmatprep.subr.bf16.mxu0 0
      %202 = vmatpush1.bf16.msra.mxu0 %v173
      %203 = vmatprep.subr.bf16.mxu0 0
      %204 = vmatpush1.bf16.msra.mxu0 %v172
      %205 = vmatprep.subr.bf16.mxu0 0
      %206 = vmatpush2.bf16.msra.mxu0 0
      %207 = vmatprep.subr.bf16.mxu0 0
      %208 = vmatpush2.bf16.msra.mxu0 0
      %209 = vmatprep.subr.bf16.mxu0 0
      %210 = vmatpush2.bf16.msra.mxu0 0
      %211 = vmatprep.subr.bf16.mxu0 0
      %212 = vmatpush2.bf16.msra.mxu0 0
      %213 = vmatprep.subr.bf16.mxu0 0
      %214 = vmatpush2.bf16.msra.mxu0 0
      %215 = vmatprep.subr.bf16.mxu0 0
      %216 = vmatpush2.bf16.msra.mxu0 0
      %217 = vmatprep.subr.bf16.mxu0 0
      %218 = vmatpush2.bf16.msra.mxu0 0
      %219 = vmatprep.subr.bf16.mxu0 0
      %220 = vmatpush2.bf16.msra.mxu0 0
      %221 = vmatprep.mubr.bf16.mxu0 0
      %222 = vmatmul.mubr.bf16.gmra.mxu0 %v178
      %v223 = vpop.f32.mrf.mxu0
      %v224 = vadd.f32 0.0, %v223
      %v225 = vpop.f32.mrf.mxu0
      %v226 = vpop.f32.mrf.mxu0
      %v227 = vadd.f32 0.0, %v226
      %v228 = vpop.f32.mrf.mxu0
      %229 = vmatprep.mubr.bf16.mxu0 0
      %230 = vmatmul.mubr.bf16.gmra.mxu0 %v181
      %v231 = vpop.f32.mrf.mxu0
      %v232 = vadd.f32 0.0, %v231
      %v233 = vpop.f32.mrf.mxu0
      %v234 = vpop.f32.mrf.mxu0
      %v235 = vadd.f32 0.0, %v234
      %v236 = vpop.f32.mrf.mxu0
      %237 = vmatprep.mubr.bf16.mxu0 0
      %238 = vmatmul.mubr.bf16.gmra.mxu0 %v184
      %v239 = vpop.f32.mrf.mxu0
      %v240 = vadd.f32 0.0, %v239
      %v241 = vpop.f32.mrf.mxu0
      %v242 = vpop.f32.mrf.mxu0
      %v243 = vadd.f32 0.0, %v242
      %v244 = vpop.f32.mrf.mxu0
      %245 = vmatprep.mubr.bf16.mxu0 0
      %246 = vmatmul.mubr.bf16.gmra.mxu0 %v187
      %v247 = vpop.f32.mrf.mxu0
      %v248 = vadd.f32 0.0, %v247
      %v249 = vpop.f32.mrf.mxu0
      %v250 = vpop.f32.mrf.mxu0
      %v251 = vadd.f32 0.0, %v250
      %v252 = vpop.f32.mrf.mxu0
      %253 = vdwg.mxu0
      %vm254 = vcmask 523264
      %255 = vst.msk [vmem:[%s145] sm:$0xff] %vm254, %v224
      %256 = vst.msk [vmem:[%s145 + $0x8] sm:$0xff] %vm254, %v227
      %257 = vst.msk [vmem:[%s145 + $0x10] sm:$0xff] %vm254, %v232
      %258 = vst.msk [vmem:[%s145 + $0x18] sm:$0xff] %vm254, %v235
      %259 = vst.msk [vmem:[%s145 + $0x20] sm:$0xff] %vm254, %v240
      %260 = vst.msk [vmem:[%s145 + $0x28] sm:$0xff] %vm254, %v243
      %261 = vst.msk [vmem:[%s145 + $0x30] sm:$0xff] %vm254, %v248
      %262 = vst.msk [vmem:[%s145 + $0x38] sm:$0xff] %vm254, %v251
      %s263 = smul.u32 8, %s13
      %p264 = scmp.lt.s32.totalorder %s263, 15
      %s265 = scalar_select %p264, %s263, 15
      %s266 = smul.addr %s265, 8
      %s267 = scalar_lea.vmem %s2, %s266
      // Predicated region
      $region29: #{forward.7} parent=27 // pred_check
        %p268 = pneg %p78
      $region30: #{forward.7} parent=27 // pred_check_branch
        %270 = sbr.rel (%p268) target = $region32
      $region31: #{forward.7} parent=27 // pred_region
        %s271 = smul.u32 8, %s13
      $region32: #{forward.7} parent=27 // pred_fallthru
        _
    $region28: #{forward.7} parent=5 // pred_fallthru
      _
    %p272 = scmp.le.s32.totalorder 2, %s8
    // Predicated region
    $region33: #{forward.7} parent=5 // pred_check
      %p273 = pneg %p272
    $region34: #{forward.7} parent=5 // pred_check_branch
      %275 = sbr.rel (%p273) target = $region36
    $region35: #{forward.7} parent=5 // pred_region
      %s276 = ssub.s32 %s8, 2
      // Predicated region
      $region37: #{forward.7} parent=35 // pred_check
        %p277 = pneg %p84
      $region38: #{forward.7} parent=35 // pred_check_branch
        %279 = sbr.rel (%p277) target = $region40
      $region39: #{forward.7} parent=35 // pred_region
        %s280 = smul.u32 8, %s14
        %p281 = scmp.lt.s32.totalorder %s280, 15
        %s282 = scalar_select %p281, %s280, 15
        %s283 = smul.addr %s282, 8
        %s284 = scalar_lea.vmem %s2, %s283
      $region40: #{forward.7} parent=35 // pred_fallthru
        _
    $region36: #{forward.7} parent=5 // pred_fallthru
      _
  $region6: #{forward.7} parent=0 // loop_footer
    %s12 = sadd.s32 1, %s8
  $region7: #{forward.7} parent=0 // loop_footer_branch
    %7 = sbr.rel target = $region3
  $region8: #{forward.7} parent=0 // loop_exit
    _

// kernel: forward.8
$region0: #{forward.8}
  #allocation0 [shape = 'u32[]', space=smem, size = 0x4, offset = 0x4, fixed_abs, tag = 'smem constant byte address 0x4 - core index']
  #allocation1 [shape = 'u32[144,128]{1,0:T(1,128)}', space=vmem, size = 0x12000, scoped, tag = 'internal scratch']
  %s0 = inlined_call_operand.vmem [shape: f32[128,32], index: 0, kind: input, shape index: {}]
  %s1 = inlined_call_operand.vmem [shape: f32[1,32], index: 1, kind: input, shape index: {}]
  %s2 = inlined_call_operand.vmem [shape: f32[1,32], index: 2, kind: input, shape index: {}]
  %s3 = inlined_call_operand.vmem [shape: bf16[32,768], index: 3, kind: input, shape index: {}]
  %s4 = inlined_call_operand.vmem [shape: bf16[128,768], index: 4, kind: output, shape index: {}]
  %s5 = sld [smem:[#allocation0]]
  $region49: #{forward.8} parent=0
    _
  %s7 = ssub.s32 1, %s5
  %s8 = scalar_select 0, %s7, %s5
  loop: start=0, step=1, limit=4
  $region2: #{forward.8} parent=0 // loop_pre_header
    _
  $region3: #{forward.8} parent=0 // loop_header
    %s10 = sphi 0, %s14
    %p11 = scmp.ge.s32.totalorder %s10, 4
    %s20 = sphi 0, %s22
    %s23 = sphi 0, %s20
    %s24 = sphi 0, %s23
    %s40 = sphi 0, %s24
    %s44 = sphi 0, %s44
    %s46 = sphi 0, %s44
    %s47 = sphi 0, %s46
    %s61 = sphi 0, %s47
    %s65 = sphi 0, %s65
    %s67 = sphi 0, %s65
    %s68 = sphi 0, %s67
    %s82 = sphi 0, %s68
    %s86 = sphi 0, %s86
    %s88 = sphi 0, %s86
    %s89 = sphi 0, %s88
    %s103 = sphi 0, %s89
    %s109 = sphi 0, %s111
    %s112 = sphi 0, %s109
    %s113 = sphi 0, %s112
    %s129 = sphi 0, %s113
  $region4: #{forward.8} parent=0 // loop_header_branch
    %13 = sbr.rel (%p11) target = $region8
  $region5: #{forward.8} parent=0 // loop_body
    %s15 = ssub.s32 %s10, 1
    %s16 = ssub.s32 %s10, 2
    %s17 = sadd.s32 %s10, 1
    %s18 = ssub.s32 %s10, %s17
    %p19 = scmp.eq.s32.totalorder %s18, 0
    %s21 = sadd.s32 %s20, 1
    %s22 = scalar_select %p19, %s20, %s21
    %p25 = pneg %p19
    %p26 = scmp.eq.s32.totalorder %s10, 1
    %p27 = por %p25, %p26
    %p28 = scmp.ne.s32.totalorder %s20, %s23
    %p29 = scmp.eq.s32.totalorder %s10, 0
    %p30 = por %p28, %p29
    %p31 = scmp.ne.s32.totalorder %s20, %s23
    %p32 = scmp.eq.s32.totalorder %s15, 1
    %p33 = por %p31, %p32
    %p34 = scmp.ne.s32.totalorder %s23, %s24
    %p35 = scmp.eq.s32.totalorder %s15, 0
    %p36 = por %p34, %p35
    %p37 = scmp.ne.s32.totalorder %s23, %s24
    %p38 = scmp.eq.s32.totalorder %s16, 1
    %p39 = por %p37, %p38
    %p41 = scmp.ne.s32.totalorder %s24, %s40
    %p42 = scmp.eq.s32.totalorder %s16, 0
    %p43 = por %p41, %p42
    %s45 = sadd.s32 %s44, 1
    %p48 = scmp.eq.s32.totalorder %s10, 1
    %p49 = scmp.ne.s32.totalorder %s44, %s46
    %p50 = scmp.eq.s32.totalorder %s10, 0
    %p51 = por %p49, %p50
    %p52 = scmp.ne.s32.totalorder %s44, %s46
    %p53 = scmp.eq.s32.totalorder %s15, 1
    %p54 = por %p52, %p53
    %p55 = scmp.ne.s32.totalorder %s46, %s47
    %p56 = scmp.eq.s32.totalorder %s15, 0
    %p57 = por %p55, %p56
    %p58 = scmp.ne.s32.totalorder %s46, %s47
    %p59 = scmp.eq.s32.totalorder %s16, 1
    %p60 = por %p58, %p59
    %p62 = scmp.ne.s32.totalorder %s47, %s61
    %p63 = scmp.eq.s32.totalorder %s16, 0
    %p64 = por %p62, %p63
    %s66 = sadd.s32 %s65, 1
    %p69 = scmp.eq.s32.totalorder %s10, 1
    %p70 = scmp.ne.s32.totalorder %s65, %s67
    %p71 = scmp.eq.s32.totalorder %s10, 0
    %p72 = por %p70, %p71
    %p73 = scmp.ne.s32.totalorder %s65, %s67
    %p74 = scmp.eq.s32.totalorder %s15, 1
    %p75 = por %p73, %p74
    %p76 = scmp.ne.s32.totalorder %s67, %s68
    %p77 = scmp.eq.s32.totalorder %s15, 0
    %p78 = por %p76, %p77
    %p79 = scmp.ne.s32.totalorder %s67, %s68
    %p80 = scmp.eq.s32.totalorder %s16, 1
    %p81 = por %p79, %p80
    %p83 = scmp.ne.s32.totalorder %s68, %s82
    %p84 = scmp.eq.s32.totalorder %s16, 0
    %p85 = por %p83, %p84
    %s87 = sadd.s32 %s86, 1
    %p90 = scmp.eq.s32.totalorder %s10, 1
    %p91 = scmp.ne.s32.totalorder %s86, %s88
    %p92 = scmp.eq.s32.totalorder %s10, 0
    %p93 = por %p91, %p92
    %p94 = scmp.ne.s32.totalorder %s86, %s88
    %p95 = scmp.eq.s32.totalorder %s15, 1
    %p96 = por %p94, %p95
    %p97 = scmp.ne.s32.totalorder %s88, %s89
    %p98 = scmp.eq.s32.totalorder %s15, 0
    %p99 = por %p97, %p98
    %p100 = scmp.ne.s32.totalorder %s88, %s89
    %p101 = scmp.eq.s32.totalorder %s16, 1
    %p102 = por %p100, %p101
    %p104 = scmp.ne.s32.totalorder %s89, %s103
    %p105 = scmp.eq.s32.totalorder %s16, 0
    %p106 = por %p104, %p105
    %s107 = ssub.s32 %s10, %s17
    %p108 = scmp.eq.s32.totalorder %s107, 0
    %s110 = sadd.s32 %s109, 1
    %s111 = scalar_select %p108, %s109, %s110
    %p114 = pneg %p108
    %p115 = scmp.eq.s32.totalorder %s10, 1
    %p116 = por %p114, %p115
    %p117 = scmp.ne.s32.totalorder %s109, %s112
    %p118 = scmp.eq.s32.totalorder %s10, 0
    %p119 = por %p117, %p118
    %p120 = scmp.ne.s32.totalorder %s109, %s112
    %p121 = scmp.eq.s32.totalorder %s15, 1
    %p122 = por %p120, %p121
    %p123 = scmp.ne.s32.totalorder %s112, %s113
    %p124 = scmp.eq.s32.totalorder %s15, 0
    %p125 = por %p123, %p124
    %p126 = scmp.ne.s32.totalorder %s112, %s113
    %p127 = scmp.eq.s32.totalorder %s16, 1
    %p128 = por %p126, %p127
    %p130 = scmp.ne.s32.totalorder %s113, %s129
    %p131 = scmp.eq.s32.totalorder %s16, 0
    %p132 = por %p130, %p131
    %p133 = scmp.le.s32.totalorder 1, %s10
    %p134 = scmp.lt.s32.totalorder %s10, 3
    %p135 = pnand %p133, %p134
    %p136 = pneg %p135
    // Predicated region
    $region9: #{forward.8} parent=5 // pred_check
      _
    $region10: #{forward.8} parent=5 // pred_check_branch
      %138 = sbr.rel (%p135) target = $region12
    $region11: #{forward.8} parent=5 // pred_region
      %s139 = ssub.s32 %s10, 1
      // Predicated region
      $region13: #{forward.8} parent=11 // pred_check
        %p140 = pneg %p57
      $region14: #{forward.8} parent=11 // pred_check_branch
        %142 = sbr.rel (%p140) target = $region16
      $region15: #{forward.8} parent=11 // pred_region
        _
      $region16: #{forward.8} parent=11 // pred_fallthru
        _
      // Predicated region
      $region17: #{forward.8} parent=11 // pred_check
        %p143 = pneg %p78
      $region18: #{forward.8} parent=11 // pred_check_branch
        %145 = sbr.rel (%p143) target = $region20
      $region19: #{forward.8} parent=11 // pred_region
        _
      $region20: #{forward.8} parent=11 // pred_fallthru
        _
      // Predicated region
      $region21: #{forward.8} parent=11 // pred_check
        %p146 = pneg %p99
      $region22: #{forward.8} parent=11 // pred_check_branch
        %148 = sbr.rel (%p146) target = $region24
      $region23: #{forward.8} parent=11 // pred_region
        _
      $region24: #{forward.8} parent=11 // pred_fallthru
        _
    $region12: #{forward.8} parent=5 // pred_fallthru
      _
    %p149 = scmp.lt.s32.totalorder %s10, 2
    // Predicated region
    $region25: #{forward.8} parent=5 // pred_check
      %p150 = pneg %p149
    $region26: #{forward.8} parent=5 // pred_check_branch
      %152 = sbr.rel (%p150) target = $region28
    $region27: #{forward.8} parent=5 // pred_region
      // Predicated region
      $region29: #{forward.8} parent=27 // pred_check
        %p153 = pneg %p30
      $region30: #{forward.8} parent=27 // pred_check_branch
        %155 = sbr.rel (%p153) target = $region32
      $region31: #{forward.8} parent=27 // pred_region
        %s156 = smul.u32 8, %s10
        %p157 = scmp.lt.s32.totalorder %s156, 15
        %s158 = scalar_select %p157, %s156, 15
        %s159 = smul.addr %s158, 8
        %s160 = scalar_lea.vmem %s0, %s159
        %s161 = smul.u32 8, %s10
      $region32: #{forward.8} parent=27 // pred_fallthru
        _
    $region28: #{forward.8} parent=5 // pred_fallthru
      _
    %p162 = scmp.le.s32.totalorder 1, %s10
    %p163 = scmp.lt.s32.totalorder %s10, 3
    %p164 = pnand %p162, %p163
    %p165 = pneg %p164
    // Predicated region
    $region33: #{forward.8} parent=5 // pred_check
      _
    $region34: #{forward.8} parent=5 // pred_check_branch
      %167 = sbr.rel (%p164) target = $region36
    $region35: #{forward.8} parent=5 // pred_region
      %s168 = ssub.s32 %s10, 1
      %s169 = smul.u32 8, %s15
      %p170 = scmp.lt.s32.totalorder %s169, 15
      %s171 = scalar_select %p170, %s169, 15
      %s172 = smul.addr %s171, 8
      %s173 = scalar_lea.vmem %s0, %s172
      %p174 = pneg %p36
      %p175 = pneg %p33
      %p176 = pneg %p57
      %p177 = pneg %p54
      %p178 = pneg %p78
      %p179 = pneg %p75
      %p180 = pneg %p99
      %p181 = pneg %p96
      %p182 = pneg %p125
      %p183 = pneg %p122
      %s184 = smul.u32 8, %s15
      %p185 = scmp.lt.s32.totalorder %s184, 15
      %s186 = scalar_select %p185, %s184, 15
      %s187 = smul.addr %s186, 6
      %s188 = smul.addr %s187, 4
      %s189 = scalar_lea.vmem %s4, %s188
      %s190 = smul.u32 8, %s15
      %p191 = scmp.lt.s32.totalorder %s190, 15
      %s192 = scalar_select %p191, %s190, 15
      %s193 = smul.addr %s192, 8
      %s194 = scalar_lea.vmem %s0, %s193
      %s195 = smul.u32 8, %s15
      %s196 = smul.u32 8, %s15
      %p197 = scmp.lt.s32.totalorder %s196, 15
      %s198 = scalar_select %p197, %s196, 15
      %s199 = smul.addr %s198, 6
      %s200 = smul.addr %s199, 4
      %s201 = scalar_lea.vmem %s4, %s200
      %s202 = smul.u32 8, %s15
      %v204 = vld [vmem:[%s194] sm:$0xff]
      %v205 = vld [vmem:[%s194 + $0x8] sm:$0xff]
      %v206 = vld [vmem:[%s194 + $0x10] sm:$0xff]
      %v207 = vld [vmem:[%s194 + $0x18] sm:$0xff]
      %v208 = vld [vmem:[%s194 + $0x20] sm:$0xff]
      %v209 = vld [vmem:[%s194 + $0x28] sm:$0xff]
      %v210 = vld [vmem:[%s194 + $0x30] sm:$0xff]
      %v211 = vld [vmem:[%s194 + $0x38] sm:$0xff]
      %vm212 = vcmask 261120
      %v213 = vsel %vm212, %v204, 0.0
      %214 = vadd.xlane.f32.xlu0 %v213
      %v215 = vpop.xlane.xlu0 %214
      %v216 = vsel %vm212, %v205, 0.0
      %217 = vadd.xlane.f32.xlu0 %v216
      %v218 = vpop.xlane.xlu0 %217
      %v219 = vsel %vm212, %v206, 0.0
      %220 = vadd.xlane.f32.xlu0 %v219
      %v221 = vpop.xlane.xlu0 %220
      %v222 = vsel %vm212, %v207, 0.0
      %223 = vadd.xlane.f32.xlu0 %v222
      %v224 = vpop.xlane.xlu0 %223
      %v225 = vsel %vm212, %v208, 0.0
      %226 = vadd.xlane.f32.xlu0 %v225
      %v227 = vpop.xlane.xlu0 %226
      %v228 = vsel %vm212, %v209, 0.0
      %229 = vadd.xlane.f32.xlu0 %v228
      %v230 = vpop.xlane.xlu0 %229
      %v231 = vsel %vm212, %v210, 0.0
      %232 = vadd.xlane.f32.xlu0 %v231
      %v233 = vpop.xlane.xlu0 %232
      %v234 = vsel %vm212, %v211, 0.0
      %235 = vadd.xlane.f32.xlu0 %v234
      %v236 = vpop.xlane.xlu0 %235
      %v237 = vrcp.pop 32.0
      %v238 = vmul.f32 %v215, %v237
      %v239 = vmul.f32 %v218, %v237
      %v240 = vmul.f32 %v221, %v237
      %v241 = vmul.f32 %v224, %v237
      %v242 = vmul.f32 %v227, %v237
      %v243 = vmul.f32 %v230, %v237
      %v244 = vmul.f32 %v233, %v237
      %v245 = vmul.f32 %v236, %v237
      %v246 = vsub.f32 %v204, %v238
      %v247 = vsub.f32 %v205, %v239
      %v248 = vsub.f32 %v206, %v240
      %v249 = vsub.f32 %v207, %v241
      %v250 = vsub.f32 %v208, %v242
      %v251 = vsub.f32 %v209, %v243
      %v252 = vsub.f32 %v210, %v244
      %v253 = vsub.f32 %v211, %v245
      %v254 = vmul.f32 %v246, %v246
      %v255 = vmul.f32 %v247, %v247
      %v256 = vmul.f32 %v248, %v248
      %v257 = vmul.f32 %v249, %v249
      %v258 = vmul.f32 %v250, %v250
      %v259 = vmul.f32 %v251, %v251
      %v260 = vmul.f32 %v252, %v252
      %v261 = vmul.f32 %v253, %v253
      %v262 = vsel %vm212, %v254, 0.0
      %263 = vadd.xlane.f32.xlu0 %v262
      %v264 = vpop.xlane.xlu0 %263
      %v265 = vsel %vm212, %v255, 0.0
      %266 = vadd.xlane.f32.xlu0 %v265
      %v267 = vpop.xlane.xlu0 %266
      %v268 = vsel %vm212, %v256, 0.0
      %269 = vadd.xlane.f32.xlu0 %v268
      %v270 = vpop.xlane.xlu0 %269
      %v271 = vsel %vm212, %v257, 0.0
      %272 = vadd.xlane.f32.xlu0 %v271
      %v273 = vpop.xlane.xlu0 %272
      %v274 = vsel %vm212, %v258, 0.0
      %275 = vadd.xlane.f32.xlu0 %v274
      %v276 = vpop.xlane.xlu0 %275
      %v277 = vsel %vm212, %v259, 0.0
      %278 = vadd.xlane.f32.xlu0 %v277
      %v279 = vpop.xlane.xlu0 %278
      %v280 = vsel %vm212, %v260, 0.0
      %281 = vadd.xlane.f32.xlu0 %v280
      %v282 = vpop.xlane.xlu0 %281
      %v283 = vsel %vm212, %v261, 0.0
      %284 = vadd.xlane.f32.xlu0 %v283
      %v285 = vpop.xlane.xlu0 %284
      %v286 = vmul.f32 %v264, %v237
      %v287 = vmul.f32 %v267, %v237
      %v288 = vmul.f32 %v270, %v237
      %v289 = vmul.f32 %v273, %v237
      %v290 = vmul.f32 %v276, %v237
      %v291 = vmul.f32 %v279, %v237
      %v292 = vmul.f32 %v282, %v237
      %v293 = vmul.f32 %v285, %v237
      %v294 = vadd.f32 %v286, 1e-05
      %v295 = vadd.f32 %v287, 1e-05
      %v296 = vadd.f32 %v288, 1e-05
      %v297 = vadd.f32 %v289, 1e-05
      %v298 = vadd.f32 %v290, 1e-05
      %v299 = vadd.f32 %v291, 1e-05
      %v300 = vadd.f32 %v292, 1e-05
      %v301 = vadd.f32 %v293, 1e-05
      %v302 = vrsqrt.pop %v294
      %v303 = vrsqrt.pop %v295
      %v304 = vrsqrt.pop %v296
      %v305 = vrsqrt.pop %v297
      %v306 = vrsqrt.pop %v298
      %v307 = vrsqrt.pop %v299
      %v308 = vrsqrt.pop %v300
      %v309 = vrsqrt.pop %v301
      %v310 = vmul.f32 %v246, %v302
      %v311 = vmul.f32 %v247, %v303
      %v312 = vmul.f32 %v248, %v304
      %v313 = vmul.f32 %v249, %v305
      %v314 = vmul.f32 %v250, %v306
      %v315 = vmul.f32 %v251, %v307
      %v316 = vmul.f32 %v252, %v308
      %v317 = vmul.f32 %v253, %v309
      %v318 = vld [vmem:[%s1] sm:$0x1]
      %v320 = vlaneseq
      %v321 = vshrl.u32 %v320, 7
      %v322 = vsub.s32 0, %v321
      %v323 = vrot.slane %v318, %v322
      %v325 = vmul.f32 %v310, %v323
      %v326 = vmul.f32 %v311, %v323
      %v327 = vmul.f32 %v312, %v323
      %v328 = vmul.f32 %v313, %v323
      %v329 = vmul.f32 %v314, %v323
      %v330 = vmul.f32 %v315, %v323
      %v331 = vmul.f32 %v316, %v323
      %v332 = vmul.f32 %v317, %v323
      %v333 = vld [vmem:[%s2] sm:$0x1]
      %v335 = vlaneseq
      %v336 = vshrl.u32 %v335, 7
      %v337 = vsub.s32 0, %v336
      %v338 = vrot.slane %v333, %v337
      %v340 = vadd.f32 %v325, %v338
      %v341 = vadd.f32 %v326, %v338
      %v342 = vadd.f32 %v327, %v338
      %v343 = vadd.f32 %v328, %v338
      %v344 = vadd.f32 %v329, %v338
      %v345 = vadd.f32 %v330, %v338
      %v346 = vadd.f32 %v331, %v338
      %v347 = vadd.f32 %v332, %v338
      %v348 = vpack.c.bf16 %v341, %v340
      %v349 = vpack.c.bf16 %v343, %v342
      %v350 = vpack.c.bf16 %v345, %v344
      %v351 = vpack.c.bf16 %v347, %v346
      %v352 = vld [vmem:[%s3] sm:$0xff]
      %v353 = vld [vmem:[%s3 + $0x8] sm:$0xff]
      %v354 = vld [vmem:[%s3 + $0x10] sm:$0xff]
      %v355 = vld [vmem:[%s3 + $0x18] sm:$0xff]
      %v356 = vld [vmem:[%s3 + $0x20] sm:$0xff]
      %v357 = vld [vmem:[%s3 + $0x28] sm:$0xff]
      %v358 = vld [vmem:[%s3 + $0x30] sm:$0xff]
      %v359 = vld [vmem:[%s3 + $0x38] sm:$0xff]
      %v360 = vld [vmem:[%s3 + $0x40] sm:$0xff]
      %v361 = vld [vmem:[%s3 + $0x48] sm:$0xff]
      %v362 = vld [vmem:[%s3 + $0x50] sm:$0xff]
      %v363 = vld [vmem:[%s3 + $0x58] sm:$0xff]
      %v376 = vunpack.c.l.b16 %v352
      %v377 = vunpack.c.h.b16 %v352
      %v378 = vunpack.c.l.b16 %v353
      %v379 = vunpack.c.h.b16 %v353
      %v380 = vunpack.c.l.b16 %v354
      %v381 = vunpack.c.h.b16 %v354
      %v382 = vunpack.c.l.b16 %v355
      %v383 = vunpack.c.h.b16 %v355
      %v384 = vunpack.c.l.b16 %v356
      %v385 = vunpack.c.h.b16 %v356
      %v386 = vunpack.c.l.b16 %v357
      %v387 = vunpack.c.h.b16 %v357
      %v388 = vunpack.c.l.b16 %v358
      %v389 = vunpack.c.h.b16 %v358
      %v390 = vunpack.c.l.b16 %v359
      %v391 = vunpack.c.h.b16 %v359
      %v392 = vunpack.c.l.b16 %v360
      %v393 = vunpack.c.h.b16 %v360
      %v394 = vunpack.c.l.b16 %v361
      %v395 = vunpack.c.h.b16 %v361
      %v396 = vunpack.c.l.b16 %v362
      %v397 = vunpack.c.h.b16 %v362
      %v398 = vunpack.c.l.b16 %v363
      %v399 = vunpack.c.h.b16 %v363
      %v400 = vpack.c.b16 %v382, %v376
      %v401 = vpack.c.b16 %v383, %v377
      %v402 = vpack.c.b16 %v384, %v378
      %v403 = vpack.c.b16 %v385, %v379
      %v404 = vpack.c.b16 %v386, %v380
      %v405 = vpack.c.b16 %v387, %v381
      %v406 = vpack.c.b16 %v394, %v388
      %v407 = vpack.c.b16 %v395, %v389
      %v408 = vpack.c.b16 %v396, %v390
      %v409 = vpack.c.b16 %v397, %v391
      %v410 = vpack.c.b16 %v398, %v392
      %v411 = vpack.c.b16 %v399, %v393
      %v425 = vsel %vm212, %v348, 0
      %v428 = vsel %vm212, %v349, 0
      %v431 = vsel %vm212, %v350, 0
      %v434 = vsel %vm212, %v351, 0
      %436 = vmatprep.subr.bf16.mxu0 0
      %437 = vmatpush1.bf16.msra.mxu0 0
      %438 = vmatprep.subr.bf16.mxu0 0
      %439 = vmatpush1.bf16.msra.mxu0 0
      %440 = vmatprep.subr.bf16.mxu0 0
      %441 = vmatpush1.bf16.msra.mxu0 0
      %442 = vmatprep.subr.bf16.mxu0 0
      %443 = vmatpush1.bf16.msra.mxu0 0
      %444 = vmatprep.subr.bf16.mxu0 0
      %445 = vmatpush1.bf16.msra.mxu0 0
      %446 = vmatprep.subr.bf16.mxu0 0
      %447 = vmatpush1.bf16.msra.mxu0 0
      %448 = vmatprep.subr.bf16.mxu0 %v407
      %449 = vmatpush1.bf16.msra.mxu0 %v406
      %450 = vmatprep.subr.bf16.mxu0 %v401
      %451 = vmatpush1.bf16.msra.mxu0 %v400
      %452 = vmatprep.subr.bf16.mxu0 0
      %453 = vmatpush2.bf16.msra.mxu0 0
      %454 = vmatprep.subr.bf16.mxu0 0
      %455 = vmatpush2.bf16.msra.mxu0 0
      %456 = vmatprep.subr.bf16.mxu0 0
      %457 = vmatpush2.bf16.msra.mxu0 0
      %458 = vmatprep.subr.bf16.mxu0 0
      %459 = vmatpush2.bf16.msra.mxu0 0
      %460 = vmatprep.subr.bf16.mxu0 0
      %461 = vmatpush2.bf16.msra.mxu0 0
      %462 = vmatprep.subr.bf16.mxu0 0
      %463 = vmatpush2.bf16.msra.mxu0 0
      %464 = vmatprep.subr.bf16.mxu0 0
      %465 = vmatpush2.bf16.msra.mxu0 0
      %466 = vmatprep.subr.bf16.mxu0 0
      %467 = vmatpush2.bf16.msra.mxu0 0
      %468 = vmatprep.mubr.bf16.mxu0 0
      %469 = vmatmul.mubr.bf16.gmra.mxu0 %v425
      %v470 = vpop.f32.mrf.mxu0
      %v471 = vadd.f32 0.0, %v470
      %v472 = vpop.f32.mrf.mxu0
      %v473 = vadd.f32 0.0, %v472
      %v474 = vpop.f32.mrf.mxu0
      %v475 = vadd.f32 0.0, %v474
      %v476 = vpop.f32.mrf.mxu0
      %v477 = vadd.f32 0.0, %v476
      %478 = vmatprep.mubr.bf16.mxu0 0
      %479 = vmatmul.mubr.bf16.gmra.mxu0 %v428
      %v480 = vpop.f32.mrf.mxu0
      %v481 = vadd.f32 0.0, %v480
      %v482 = vpop.f32.mrf.mxu0
      %v483 = vadd.f32 0.0, %v482
      %v484 = vpop.f32.mrf.mxu0
      %v485 = vadd.f32 0.0, %v484
      %v486 = vpop.f32.mrf.mxu0
      %v487 = vadd.f32 0.0, %v486
      %488 = vmatprep.mubr.bf16.mxu0 0
      %489 = vmatmul.mubr.bf16.gmra.mxu0 %v431
      %v490 = vpop.f32.mrf.mxu0
      %v491 = vadd.f32 0.0, %v490
      %v492 = vpop.f32.mrf.mxu0
      %v493 = vadd.f32 0.0, %v492
      %v494 = vpop.f32.mrf.mxu0
      %v495 = vadd.f32 0.0, %v494
      %v496 = vpop.f32.mrf.mxu0
      %v497 = vadd.f32 0.0, %v496
      %498 = vmatprep.mubr.bf16.mxu0 0
      %499 = vmatmul.mubr.bf16.gmra.mxu0 %v434
      %v500 = vpop.f32.mrf.mxu0
      %v501 = vadd.f32 0.0, %v500
      %v502 = vpop.f32.mrf.mxu0
      %v503 = vadd.f32 0.0, %v502
      %v504 = vpop.f32.mrf.mxu0
      %v505 = vadd.f32 0.0, %v504
      %v506 = vpop.f32.mrf.mxu0
      %v507 = vadd.f32 0.0, %v506
      %508 = vdwg.mxu0
      %509 = vmatprep.subr.bf16.mxu0 0
      %510 = vmatpush1.bf16.msra.mxu0 0
      %511 = vmatprep.subr.bf16.mxu0 0
      %512 = vmatpush1.bf16.msra.mxu0 0
      %513 = vmatprep.subr.bf16.mxu0 0
      %514 = vmatpush1.bf16.msra.mxu0 0
      %515 = vmatprep.subr.bf16.mxu0 0
      %516 = vmatpush1.bf16.msra.mxu0 0
      %517 = vmatprep.subr.bf16.mxu0 0
      %518 = vmatpush1.bf16.msra.mxu0 0
      %519 = vmatprep.subr.bf16.mxu0 0
      %520 = vmatpush1.bf16.msra.mxu0 0
      %521 = vmatprep.subr.bf16.mxu0 %v409
      %522 = vmatpush1.bf16.msra.mxu0 %v408
      %523 = vmatprep.subr.bf16.mxu0 %v403
      %524 = vmatpush1.bf16.msra.mxu0 %v402
      %525 = vmatprep.subr.bf16.mxu0 0
      %526 = vmatpush2.bf16.msra.mxu0 0
      %527 = vmatprep.subr.bf16.mxu0 0
      %528 = vmatpush2.bf16.msra.mxu0 0
      %529 = vmatprep.subr.bf16.mxu0 0
      %530 = vmatpush2.bf16.msra.mxu0 0
      %531 = vmatprep.subr.bf16.mxu0 0
      %532 = vmatpush2.bf16.msra.mxu0 0
      %533 = vmatprep.subr.bf16.mxu0 0
      %534 = vmatpush2.bf16.msra.mxu0 0
      %535 = vmatprep.subr.bf16.mxu0 0
      %536 = vmatpush2.bf16.msra.mxu0 0
      %537 = vmatprep.subr.bf16.mxu0 0
      %538 = vmatpush2.bf16.msra.mxu0 0
      %539 = vmatprep.subr.bf16.mxu0 0
      %540 = vmatpush2.bf16.msra.mxu0 0
      %541 = vmatprep.mubr.bf16.mxu0 0
      %542 = vmatmul.mubr.bf16.gmra.mxu0 %v425
      %v543 = vpop.f32.mrf.mxu0
      %v544 = vadd.f32 0.0, %v543
      %v545 = vpop.f32.mrf.mxu0
      %v546 = vadd.f32 0.0, %v545
      %v547 = vpop.f32.mrf.mxu0
      %v548 = vadd.f32 0.0, %v547
      %v549 = vpop.f32.mrf.mxu0
      %v550 = vadd.f32 0.0, %v549
      %551 = vmatprep.mubr.bf16.mxu0 0
      %552 = vmatmul.mubr.bf16.gmra.mxu0 %v428
      %v553 = vpop.f32.mrf.mxu0
      %v554 = vadd.f32 0.0, %v553
      %v555 = vpop.f32.mrf.mxu0
      %v556 = vadd.f32 0.0, %v555
      %v557 = vpop.f32.mrf.mxu0
      %v558 = vadd.f32 0.0, %v557
      %v559 = vpop.f32.mrf.mxu0
      %v560 = vadd.f32 0.0, %v559
      %561 = vmatprep.mubr.bf16.mxu0 0
      %562 = vmatmul.mubr.bf16.gmra.mxu0 %v431
      %v563 = vpop.f32.mrf.mxu0
      %v564 = vadd.f32 0.0, %v563
      %v565 = vpop.f32.mrf.mxu0
      %v566 = vadd.f32 0.0, %v565
      %v567 = vpop.f32.mrf.mxu0
      %v568 = vadd.f32 0.0, %v567
      %v569 = vpop.f32.mrf.mxu0
      %v570 = vadd.f32 0.0, %v569
      %571 = vmatprep.mubr.bf16.mxu0 0
      %572 = vmatmul.mubr.bf16.gmra.mxu0 %v434
      %v573 = vpop.f32.mrf.mxu0
      %v574 = vadd.f32 0.0, %v573
      %v575 = vpop.f32.mrf.mxu0
      %v576 = vadd.f32 0.0, %v575
      %v577 = vpop.f32.mrf.mxu0
      %v578 = vadd.f32 0.0, %v577
      %v579 = vpop.f32.mrf.mxu0
      %v580 = vadd.f32 0.0, %v579
      %581 = vdwg.mxu0
      %582 = vmatprep.subr.bf16.mxu0 0
      %583 = vmatpush1.bf16.msra.mxu0 0
      %584 = vmatprep.subr.bf16.mxu0 0
      %585 = vmatpush1.bf16.msra.mxu0 0
      %586 = vmatprep.subr.bf16.mxu0 0
      %587 = vmatpush1.bf16.msra.mxu0 0
      %588 = vmatprep.subr.bf16.mxu0 0
      %589 = vmatpush1.bf16.msra.mxu0 0
      %590 = vmatprep.subr.bf16.mxu0 0
      %591 = vmatpush1.bf16.msra.mxu0 0
      %592 = vmatprep.subr.bf16.mxu0 0
      %593 = vmatpush1.bf16.msra.mxu0 0
      %594 = vmatprep.subr.bf16.mxu0 %v411
      %595 = vmatpush1.bf16.msra.mxu0 %v410
      %596 = vmatprep.subr.bf16.mxu0 %v405
      %597 = vmatpush1.bf16.msra.mxu0 %v404
      %598 = vmatprep.subr.bf16.mxu0 0
      %599 = vmatpush2.bf16.msra.mxu0 0
      %600 = vmatprep.subr.bf16.mxu0 0
      %601 = vmatpush2.bf16.msra.mxu0 0
      %602 = vmatprep.subr.bf16.mxu0 0
      %603 = vmatpush2.bf16.msra.mxu0 0
      %604 = vmatprep.subr.bf16.mxu0 0
      %605 = vmatpush2.bf16.msra.mxu0 0
      %606 = vmatprep.subr.bf16.mxu0 0
      %607 = vmatpush2.bf16.msra.mxu0 0
      %608 = vmatprep.subr.bf16.mxu0 0
      %609 = vmatpush2.bf16.msra.mxu0 0
      %610 = vmatprep.subr.bf16.mxu0 0
      %611 = vmatpush2.bf16.msra.mxu0 0
      %612 = vmatprep.subr.bf16.mxu0 0
      %613 = vmatpush2.bf16.msra.mxu0 0
      %614 = vmatprep.mubr.bf16.mxu0 0
      %615 = vmatmul.mubr.bf16.gmra.mxu0 %v425
      %v616 = vpop.f32.mrf.mxu0
      %v617 = vadd.f32 0.0, %v616
      %v618 = vpop.f32.mrf.mxu0
      %v619 = vadd.f32 0.0, %v618
      %v620 = vpop.f32.mrf.mxu0
      %v621 = vadd.f32 0.0, %v620
      %v622 = vpop.f32.mrf.mxu0
      %v623 = vadd.f32 0.0, %v622
      %624 = vmatprep.mubr.bf16.mxu0 0
      %625 = vmatmul.mubr.bf16.gmra.mxu0 %v428
      %v626 = vpop.f32.mrf.mxu0
      %v627 = vadd.f32 0.0, %v626
      %v628 = vpop.f32.mrf.mxu0
      %v629 = vadd.f32 0.0, %v628
      %v630 = vpop.f32.mrf.mxu0
      %v631 = vadd.f32 0.0, %v630
      %v632 = vpop.f32.mrf.mxu0
      %v633 = vadd.f32 0.0, %v632
      %634 = vmatprep.mubr.bf16.mxu0 0
      %635 = vmatmul.mubr.bf16.gmra.mxu0 %v431
      %v636 = vpop.f32.mrf.mxu0
      %v637 = vadd.f32 0.0, %v636
      %v638 = vpop.f32.mrf.mxu0
      %v639 = vadd.f32 0.0, %v638
      %v640 = vpop.f32.mrf.mxu0
      %v641 = vadd.f32 0.0, %v640
      %v642 = vpop.f32.mrf.mxu0
      %v643 = vadd.f32 0.0, %v642
      %644 = vmatprep.mubr.bf16.mxu0 0
      %645 = vmatmul.mubr.bf16.gmra.mxu0 %v434
      %v646 = vpop.f32.mrf.mxu0
      %v647 = vadd.f32 0.0, %v646
      %v648 = vpop.f32.mrf.mxu0
      %v649 = vadd.f32 0.0, %v648
      %v650 = vpop.f32.mrf.mxu0
      %v651 = vadd.f32 0.0, %v650
      %v652 = vpop.f32.mrf.mxu0
      %v653 = vadd.f32 0.0, %v652
      %654 = vdwg.mxu0
      %v655 = vpack.c.bf16 %v475, %v471
      %v656 = vpack.c.bf16 %v477, %v473
      %v657 = vpack.c.bf16 %v548, %v544
      %v658 = vpack.c.bf16 %v550, %v546
      %v659 = vpack.c.bf16 %v621, %v617
      %v660 = vpack.c.bf16 %v623, %v619
      %v661 = vpack.c.bf16 %v485, %v481
      %v662 = vpack.c.bf16 %v487, %v483
      %v663 = vpack.c.bf16 %v558, %v554
      %v664 = vpack.c.bf16 %v560, %v556
      %v665 = vpack.c.bf16 %v631, %v627
      %v666 = vpack.c.bf16 %v633, %v629
      %v667 = vpack.c.bf16 %v495, %v491
      %v668 = vpack.c.bf16 %v497, %v493
      %v669 = vpack.c.bf16 %v568, %v564
      %v670 = vpack.c.bf16 %v570, %v566
      %v671 = vpack.c.bf16 %v641, %v637
      %v672 = vpack.c.bf16 %v643, %v639
      %v673 = vpack.c.bf16 %v505, %v501
      %v674 = vpack.c.bf16 %v507, %v503
      %v675 = vpack.c.bf16 %v578, %v574
      %v676 = vpack.c.bf16 %v580, %v576
      %v677 = vpack.c.bf16 %v651, %v647
      %v678 = vpack.c.bf16 %v653, %v649
      %v703 = vunpack.c.l.b16 %v655
      %v704 = vunpack.c.l.b16 %v656
      %v705 = vunpack.c.l.b16 %v657
      %v706 = vunpack.c.l.b16 %v658
      %v707 = vunpack.c.l.b16 %v659
      %v708 = vunpack.c.l.b16 %v660
      %v709 = vunpack.c.h.b16 %v655
      %v710 = vunpack.c.h.b16 %v656
      %v711 = vunpack.c.h.b16 %v657
      %v712 = vunpack.c.h.b16 %v658
      %v713 = vunpack.c.h.b16 %v659
      %v714 = vunpack.c.h.b16 %v660
      %v715 = vunpack.c.l.b16 %v661
      %v716 = vunpack.c.l.b16 %v662
      %v717 = vunpack.c.l.b16 %v663
      %v718 = vunpack.c.l.b16 %v664
      %v719 = vunpack.c.l.b16 %v665
      %v720 = vunpack.c.l.b16 %v666
      %v721 = vunpack.c.h.b16 %v661
      %v722 = vunpack.c.h.b16 %v662
      %v723 = vunpack.c.h.b16 %v663
      %v724 = vunpack.c.h.b16 %v664
      %v725 = vunpack.c.h.b16 %v665
      %v726 = vunpack.c.h.b16 %v666
      %v727 = vunpack.c.l.b16 %v667
      %v728 = vunpack.c.l.b16 %v668
      %v729 = vunpack.c.l.b16 %v669
      %v730 = vunpack.c.l.b16 %v670
      %v731 = vunpack.c.l.b16 %v671
      %v732 = vunpack.c.l.b16 %v672
      %v733 = vunpack.c.h.b16 %v667
      %v734 = vunpack.c.h.b16 %v668
      %v735 = vunpack.c.h.b16 %v669
      %v736 = vunpack.c.h.b16 %v670
      %v737 = vunpack.c.h.b16 %v671
      %v738 = vunpack.c.h.b16 %v672
      %v739 = vunpack.c.l.b16 %v673
      %v740 = vunpack.c.l.b16 %v674
      %v741 = vunpack.c.l.b16 %v675
      %v742 = vunpack.c.l.b16 %v676
      %v743 = vunpack.c.l.b16 %v677
      %v744 = vunpack.c.l.b16 %v678
      %v745 = vunpack.c.h.b16 %v673
      %v746 = vunpack.c.h.b16 %v674
      %v747 = vunpack.c.h.b16 %v675
      %v748 = vunpack.c.h.b16 %v676
      %v749 = vunpack.c.h.b16 %v677
      %v750 = vunpack.c.h.b16 %v678
      %v751 = vpack.c.b16 %v704, %v703
      %v752 = vpack.c.b16 %v706, %v705
      %v753 = vpack.c.b16 %v708, %v707
      %v754 = vpack.c.b16 %v710, %v709
      %v755 = vpack.c.b16 %v712, %v711
      %v756 = vpack.c.b16 %v714, %v713
      %v757 = vpack.c.b16 %v716, %v715
      %v758 = vpack.c.b16 %v718, %v717
      %v759 = vpack.c.b16 %v720, %v719
      %v760 = vpack.c.b16 %v722, %v721
      %v761 = vpack.c.b16 %v724, %v723
      %v762 = vpack.c.b16 %v726, %v725
      %v763 = vpack.c.b16 %v728, %v727
      %v764 = vpack.c.b16 %v730, %v729
      %v765 = vpack.c.b16 %v732, %v731
      %v766 = vpack.c.b16 %v734, %v733
      %v767 = vpack.c.b16 %v736, %v735
      %v768 = vpack.c.b16 %v738, %v737
      %v769 = vpack.c.b16 %v740, %v739
      %v770 = vpack.c.b16 %v742, %v741
      %v771 = vpack.c.b16 %v744, %v743
      %v772 = vpack.c.b16 %v746, %v745
      %v773 = vpack.c.b16 %v748, %v747
      %v774 = vpack.c.b16 %v750, %v749
      %799 = vst [vmem:[%s201] sm:$0xff] %v751
      %800 = vst [vmem:[%s201 + $0x8] sm:$0xff] %v752
      %801 = vst [vmem:[%s201 + $0x10] sm:$0xff] %v753
      %802 = vst [vmem:[%s201 + $0x18] sm:$0xff] %v754
      %803 = vst [vmem:[%s201 + $0x20] sm:$0xff] %v755
      %804 = vst [vmem:[%s201 + $0x28] sm:$0xff] %v756
      %805 = vst [vmem:[%s201 + $0x30] sm:$0xff] %v757
      %806 = vst [vmem:[%s201 + $0x38] sm:$0xff] %v758
      %807 = vst [vmem:[%s201 + $0x40] sm:$0xff] %v759
      %808 = vst [vmem:[%s201 + $0x48] sm:$0xff] %v760
      %809 = vst [vmem:[%s201 + $0x50] sm:$0xff] %v761
      %810 = vst [vmem:[%s201 + $0x58] sm:$0xff] %v762
      %811 = vst [vmem:[%s201 + $0x60] sm:$0xff] %v763
      %812 = vst [vmem:[%s201 + $0x68] sm:$0xff] %v764
      %813 = vst [vmem:[%s201 + $0x70] sm:$0xff] %v765
      %814 = vst [vmem:[%s201 + $0x78] sm:$0xff] %v766
      %815 = vst [vmem:[%s201 + $0x80] sm:$0xff] %v767
      %816 = vst [vmem:[%s201 + $0x88] sm:$0xff] %v768
      %817 = vst [vmem:[%s201 + $0x90] sm:$0xff] %v769
      %818 = vst [vmem:[%s201 + $0x98] sm:$0xff] %v770
      %819 = vst [vmem:[%s201 + $0xa0] sm:$0xff] %v771
      %820 = vst [vmem:[%s201 + $0xa8] sm:$0xff] %v772
      %821 = vst [vmem:[%s201 + $0xb0] sm:$0xff] %v773
      %822 = vst [vmem:[%s201 + $0xb8] sm:$0xff] %v774
      %s823 = smul.u32 8, %s15
      %p824 = scmp.lt.s32.totalorder %s823, 15
      %s825 = scalar_select %p824, %s823, 15
      %s826 = smul.addr %s825, 6
      %s827 = smul.addr %s826, 4
      %s828 = scalar_lea.vmem %s4, %s827
      // Predicated region
      $region37: #{forward.8} parent=35 // pred_check
        %p829 = pneg %p122
      $region38: #{forward.8} parent=35 // pred_check_branch
        %831 = sbr.rel (%p829) target = $region40
      $region39: #{forward.8} parent=35 // pred_region
        %s832 = smul.u32 8, %s15
      $region40: #{forward.8} parent=35 // pred_fallthru
        _
    $region36: #{forward.8} parent=5 // pred_fallthru
      _
    %p833 = scmp.le.s32.totalorder 2, %s10
    // Predicated region
    $region41: #{forward.8} parent=5 // pred_check
      %p834 = pneg %p833
    $region42: #{forward.8} parent=5 // pred_check_branch
      %836 = sbr.rel (%p834) target = $region44
    $region43: #{forward.8} parent=5 // pred_region
      %s837 = ssub.s32 %s10, 2
      // Predicated region
      $region45: #{forward.8} parent=43 // pred_check
        %p838 = pneg %p128
      $region46: #{forward.8} parent=43 // pred_check_branch
        %840 = sbr.rel (%p838) target = $region48
      $region47: #{forward.8} parent=43 // pred_region
        %s841 = smul.u32 8, %s16
        %p842 = scmp.lt.s32.totalorder %s841, 15
        %s843 = scalar_select %p842, %s841, 15
        %s844 = smul.addr %s843, 6
        %s845 = smul.addr %s844, 4
        %s846 = scalar_lea.vmem %s4, %s845
      $region48: #{forward.8} parent=43 // pred_fallthru
        _
    $region44: #{forward.8} parent=5 // pred_fallthru
      _
  $region6: #{forward.8} parent=0 // loop_footer
    %s14 = sadd.s32 1, %s10
  $region7: #{forward.8} parent=0 // loop_footer_branch
    %9 = sbr.rel target = $region3
  $region8: #{forward.8} parent=0 // loop_exit
    _

// kernel: forward.11
$region0: #{forward.11}
  #allocation0 [shape = 'u32[]', space=smem, size = 0x4, offset = 0x4, fixed_abs, tag = 'smem constant byte address 0x4 - core index']
  #allocation1 [shape = 'u32[144,128]{1,0:T(1,128)}', space=vmem, size = 0x12000, scoped, tag = 'internal scratch']
  %s0 = inlined_call_operand.vmem [shape: f32[128,64], index: 0, kind: input, shape index: {}]
  %s1 = inlined_call_operand.vmem [shape: f32[1,64], index: 1, kind: input, shape index: {}]
  %s2 = inlined_call_operand.vmem [shape: f32[1,64], index: 2, kind: input, shape index: {}]
  %s3 = inlined_call_operand.vmem [shape: bf16[64,768], index: 3, kind: input, shape index: {}]
  %s4 = inlined_call_operand.vmem [shape: bf16[128,768], index: 4, kind: output, shape index: {}]
  %s5 = sld [smem:[#allocation0]]
  $region49: #{forward.11} parent=0
    _
  %s7 = ssub.s32 1, %s5
  %s8 = scalar_select 0, %s7, %s5
  loop: start=0, step=1, limit=4
  $region2: #{forward.11} parent=0 // loop_pre_header
    _
  $region3: #{forward.11} parent=0 // loop_header
    %s10 = sphi 0, %s14
    %p11 = scmp.ge.s32.totalorder %s10, 4
    %s20 = sphi 0, %s22
    %s23 = sphi 0, %s20
    %s24 = sphi 0, %s23
    %s40 = sphi 0, %s24
    %s44 = sphi 0, %s44
    %s46 = sphi 0, %s44
    %s47 = sphi 0, %s46
    %s61 = sphi 0, %s47
    %s65 = sphi 0, %s65
    %s67 = sphi 0, %s65
    %s68 = sphi 0, %s67
    %s82 = sphi 0, %s68
    %s86 = sphi 0, %s86
    %s88 = sphi 0, %s86
    %s89 = sphi 0, %s88
    %s103 = sphi 0, %s89
    %s109 = sphi 0, %s111
    %s112 = sphi 0, %s109
    %s113 = sphi 0, %s112
    %s129 = sphi 0, %s113
  $region4: #{forward.11} parent=0 // loop_header_branch
    %13 = sbr.rel (%p11) target = $region8
  $region5: #{forward.11} parent=0 // loop_body
    %s15 = ssub.s32 %s10, 1
    %s16 = ssub.s32 %s10, 2
    %s17 = sadd.s32 %s10, 1
    %s18 = ssub.s32 %s10, %s17
    %p19 = scmp.eq.s32.totalorder %s18, 0
    %s21 = sadd.s32 %s20, 1
    %s22 = scalar_select %p19, %s20, %s21
    %p25 = pneg %p19
    %p26 = scmp.eq.s32.totalorder %s10, 1
    %p27 = por %p25, %p26
    %p28 = scmp.ne.s32.totalorder %s20, %s23
    %p29 = scmp.eq.s32.totalorder %s10, 0
    %p30 = por %p28, %p29
    %p31 = scmp.ne.s32.totalorder %s20, %s23
    %p32 = scmp.eq.s32.totalorder %s15, 1
    %p33 = por %p31, %p32
    %p34 = scmp.ne.s32.totalorder %s23, %s24
    %p35 = scmp.eq.s32.totalorder %s15, 0
    %p36 = por %p34, %p35
    %p37 = scmp.ne.s32.totalorder %s23, %s24
    %p38 = scmp.eq.s32.totalorder %s16, 1
    %p39 = por %p37, %p38
    %p41 = scmp.ne.s32.totalorder %s24, %s40
    %p42 = scmp.eq.s32.totalorder %s16, 0
    %p43 = por %p41, %p42
    %s45 = sadd.s32 %s44, 1
    %p48 = scmp.eq.s32.totalorder %s10, 1
    %p49 = scmp.ne.s32.totalorder %s44, %s46
    %p50 = scmp.eq.s32.totalorder %s10, 0
    %p51 = por %p49, %p50
    %p52 = scmp.ne.s32.totalorder %s44, %s46
    %p53 = scmp.eq.s32.totalorder %s15, 1
    %p54 = por %p52, %p53
    %p55 = scmp.ne.s32.totalorder %s46, %s47
    %p56 = scmp.eq.s32.totalorder %s15, 0
    %p57 = por %p55, %p56
    %p58 = scmp.ne.s32.totalorder %s46, %s47
    %p59 = scmp.eq.s32.totalorder %s16, 1
    %p60 = por %p58, %p59
    %p62 = scmp.ne.s32.totalorder %s47, %s61
    %p63 = scmp.eq.s32.totalorder %s16, 0
    %p64 = por %p62, %p63
    %s66 = sadd.s32 %s65, 1
    %p69 = scmp.eq.s32.totalorder %s10, 1
    %p70 = scmp.ne.s32.totalorder %s65, %s67
    %p71 = scmp.eq.s32.totalorder %s10, 0
    %p72 = por %p70, %p71
    %p73 = scmp.ne.s32.totalorder %s65, %s67
    %p74 = scmp.eq.s32.totalorder %s15, 1
    %p75 = por %p73, %p74
    %p76 = scmp.ne.s32.totalorder %s67, %s68
    %p77 = scmp.eq.s32.totalorder %s15, 0
    %p78 = por %p76, %p77
    %p79 = scmp.ne.s32.totalorder %s67, %s68
    %p80 = scmp.eq.s32.totalorder %s16, 1
    %p81 = por %p79, %p80
    %p83 = scmp.ne.s32.totalorder %s68, %s82
    %p84 = scmp.eq.s32.totalorder %s16, 0
    %p85 = por %p83, %p84
    %s87 = sadd.s32 %s86, 1
    %p90 = scmp.eq.s32.totalorder %s10, 1
    %p91 = scmp.ne.s32.totalorder %s86, %s88
    %p92 = scmp.eq.s32.totalorder %s10, 0
    %p93 = por %p91, %p92
    %p94 = scmp.ne.s32.totalorder %s86, %s88
    %p95 = scmp.eq.s32.totalorder %s15, 1
    %p96 = por %p94, %p95
    %p97 = scmp.ne.s32.totalorder %s88, %s89
    %p98 = scmp.eq.s32.totalorder %s15, 0
    %p99 = por %p97, %p98
    %p100 = scmp.ne.s32.totalorder %s88, %s89
    %p101 = scmp.eq.s32.totalorder %s16, 1
    %p102 = por %p100, %p101
    %p104 = scmp.ne.s32.totalorder %s89, %s103
    %p105 = scmp.eq.s32.totalorder %s16, 0
    %p106 = por %p104, %p105
    %s107 = ssub.s32 %s10, %s17
    %p108 = scmp.eq.s32.totalorder %s107, 0
    %s110 = sadd.s32 %s109, 1
    %s111 = scalar_select %p108, %s109, %s110
    %p114 = pneg %p108
    %p115 = scmp.eq.s32.totalorder %s10, 1
    %p116 = por %p114, %p115
    %p117 = scmp.ne.s32.totalorder %s109, %s112
    %p118 = scmp.eq.s32.totalorder %s10, 0
    %p119 = por %p117, %p118
    %p120 = scmp.ne.s32.totalorder %s109, %s112
    %p121 = scmp.eq.s32.totalorder %s15, 1
    %p122 = por %p120, %p121
    %p123 = scmp.ne.s32.totalorder %s112, %s113
    %p124 = scmp.eq.s32.totalorder %s15, 0
    %p125 = por %p123, %p124
    %p126 = scmp.ne.s32.totalorder %s112, %s113
    %p127 = scmp.eq.s32.totalorder %s16, 1
    %p128 = por %p126, %p127
    %p130 = scmp.ne.s32.totalorder %s113, %s129
    %p131 = scmp.eq.s32.totalorder %s16, 0
    %p132 = por %p130, %p131
    %p133 = scmp.le.s32.totalorder 1, %s10
    %p134 = scmp.lt.s32.totalorder %s10, 3
    %p135 = pnand %p133, %p134
    %p136 = pneg %p135
    // Predicated region
    $region9: #{forward.11} parent=5 // pred_check
      _
    $region10: #{forward.11} parent=5 // pred_check_branch
      %138 = sbr.rel (%p135) target = $region12
    $region11: #{forward.11} parent=5 // pred_region
      %s139 = ssub.s32 %s10, 1
      // Predicated region
      $region13: #{forward.11} parent=11 // pred_check
        %p140 = pneg %p57
      $region14: #{forward.11} parent=11 // pred_check_branch
        %142 = sbr.rel (%p140) target = $region16
      $region15: #{forward.11} parent=11 // pred_region
        _
      $region16: #{forward.11} parent=11 // pred_fallthru
        _
      // Predicated region
      $region17: #{forward.11} parent=11 // pred_check
        %p143 = pneg %p78
      $region18: #{forward.11} parent=11 // pred_check_branch
        %145 = sbr.rel (%p143) target = $region20
      $region19: #{forward.11} parent=11 // pred_region
        _
      $region20: #{forward.11} parent=11 // pred_fallthru
        _
      // Predicated region
      $region21: #{forward.11} parent=11 // pred_check
        %p146 = pneg %p99
      $region22: #{forward.11} parent=11 // pred_check_branch
        %148 = sbr.rel (%p146) target = $region24
      $region23: #{forward.11} parent=11 // pred_region
        _
      $region24: #{forward.11} parent=11 // pred_fallthru
        _
    $region12: #{forward.11} parent=5 // pred_fallthru
      _
    %p149 = scmp.lt.s32.totalorder %s10, 2
    // Predicated region
    $region25: #{forward.11} parent=5 // pred_check
      %p150 = pneg %p149
    $region26: #{forward.11} parent=5 // pred_check_branch
      %152 = sbr.rel (%p150) target = $region28
    $region27: #{forward.11} parent=5 // pred_region
      // Predicated region
      $region29: #{forward.11} parent=27 // pred_check
        %p153 = pneg %p30
      $region30: #{forward.11} parent=27 // pred_check_branch
        %155 = sbr.rel (%p153) target = $region32
      $region31: #{forward.11} parent=27 // pred_region
        %s156 = smul.u32 8, %s10
        %p157 = scmp.lt.s32.totalorder %s156, 15
        %s158 = scalar_select %p157, %s156, 15
        %s159 = smul.addr %s158, 8
        %s160 = scalar_lea.vmem %s0, %s159
        %s161 = smul.u32 8, %s10
      $region32: #{forward.11} parent=27 // pred_fallthru
        _
    $region28: #{forward.11} parent=5 // pred_fallthru
      _
    %p162 = scmp.le.s32.totalorder 1, %s10
    %p163 = scmp.lt.s32.totalorder %s10, 3
    %p164 = pnand %p162, %p163
    %p165 = pneg %p164
    // Predicated region
    $region33: #{forward.11} parent=5 // pred_check
      _
    $region34: #{forward.11} parent=5 // pred_check_branch
      %167 = sbr.rel (%p164) target = $region36
    $region35: #{forward.11} parent=5 // pred_region
      %s168 = ssub.s32 %s10, 1
      %s169 = smul.u32 8, %s15
      %p170 = scmp.lt.s32.totalorder %s169, 15
      %s171 = scalar_select %p170, %s169, 15
      %s172 = smul.addr %s171, 8
      %s173 = scalar_lea.vmem %s0, %s172
      %p174 = pneg %p36
      %p175 = pneg %p33
      %p176 = pneg %p57
      %p177 = pneg %p54
      %p178 = pneg %p78
      %p179 = pneg %p75
      %p180 = pneg %p99
      %p181 = pneg %p96
      %p182 = pneg %p125
      %p183 = pneg %p122
      %s184 = smul.u32 8, %s15
      %p185 = scmp.lt.s32.totalorder %s184, 15
      %s186 = scalar_select %p185, %s184, 15
      %s187 = smul.addr %s186, 6
      %s188 = smul.addr %s187, 4
      %s189 = scalar_lea.vmem %s4, %s188
      %s190 = smul.u32 8, %s15
      %p191 = scmp.lt.s32.totalorder %s190, 15
      %s192 = scalar_select %p191, %s190, 15
      %s193 = smul.addr %s192, 8
      %s194 = scalar_lea.vmem %s0, %s193
      %s195 = smul.u32 8, %s15
      %s196 = smul.u32 8, %s15
      %p197 = scmp.lt.s32.totalorder %s196, 15
      %s198 = scalar_select %p197, %s196, 15
      %s199 = smul.addr %s198, 6
      %s200 = smul.addr %s199, 4
      %s201 = scalar_lea.vmem %s4, %s200
      %s202 = smul.u32 8, %s15
      %v204 = vld [vmem:[%s194] sm:$0xff]
      %v205 = vld [vmem:[%s194 + $0x8] sm:$0xff]
      %v206 = vld [vmem:[%s194 + $0x10] sm:$0xff]
      %v207 = vld [vmem:[%s194 + $0x18] sm:$0xff]
      %v208 = vld [vmem:[%s194 + $0x20] sm:$0xff]
      %v209 = vld [vmem:[%s194 + $0x28] sm:$0xff]
      %v210 = vld [vmem:[%s194 + $0x30] sm:$0xff]
      %v211 = vld [vmem:[%s194 + $0x38] sm:$0xff]
      %vm212 = vcmask 523264
      %v213 = vsel %vm212, %v204, 0.0
      %214 = vadd.xlane.f32.xlu0 %v213
      %v215 = vpop.xlane.xlu0 %214
      %v216 = vsel %vm212, %v205, 0.0
      %217 = vadd.xlane.f32.xlu0 %v216
      %v218 = vpop.xlane.xlu0 %217
      %v219 = vsel %vm212, %v206, 0.0
      %220 = vadd.xlane.f32.xlu0 %v219
      %v221 = vpop.xlane.xlu0 %220
      %v222 = vsel %vm212, %v207, 0.0
      %223 = vadd.xlane.f32.xlu0 %v222
      %v224 = vpop.xlane.xlu0 %223
      %v225 = vsel %vm212, %v208, 0.0
      %226 = vadd.xlane.f32.xlu0 %v225
      %v227 = vpop.xlane.xlu0 %226
      %v228 = vsel %vm212, %v209, 0.0
      %229 = vadd.xlane.f32.xlu0 %v228
      %v230 = vpop.xlane.xlu0 %229
      %v231 = vsel %vm212, %v210, 0.0
      %232 = vadd.xlane.f32.xlu0 %v231
      %v233 = vpop.xlane.xlu0 %232
      %v234 = vsel %vm212, %v211, 0.0
      %235 = vadd.xlane.f32.xlu0 %v234
      %v236 = vpop.xlane.xlu0 %235
      %v237 = vrcp.pop 64.0
      %v238 = vmul.f32 %v215, %v237
      %v239 = vmul.f32 %v218, %v237
      %v240 = vmul.f32 %v221, %v237
      %v241 = vmul.f32 %v224, %v237
      %v242 = vmul.f32 %v227, %v237
      %v243 = vmul.f32 %v230, %v237
      %v244 = vmul.f32 %v233, %v237
      %v245 = vmul.f32 %v236, %v237
      %v246 = vsub.f32 %v204, %v238
      %v247 = vsub.f32 %v205, %v239
      %v248 = vsub.f32 %v206, %v240
      %v249 = vsub.f32 %v207, %v241
      %v250 = vsub.f32 %v208, %v242
      %v251 = vsub.f32 %v209, %v243
      %v252 = vsub.f32 %v210, %v244
      %v253 = vsub.f32 %v211, %v245
      %v254 = vmul.f32 %v246, %v246
      %v255 = vmul.f32 %v247, %v247
      %v256 = vmul.f32 %v248, %v248
      %v257 = vmul.f32 %v249, %v249
      %v258 = vmul.f32 %v250, %v250
      %v259 = vmul.f32 %v251, %v251
      %v260 = vmul.f32 %v252, %v252
      %v261 = vmul.f32 %v253, %v253
      %v262 = vsel %vm212, %v254, 0.0
      %263 = vadd.xlane.f32.xlu0 %v262
      %v264 = vpop.xlane.xlu0 %263
      %v265 = vsel %vm212, %v255, 0.0
      %266 = vadd.xlane.f32.xlu0 %v265
      %v267 = vpop.xlane.xlu0 %266
      %v268 = vsel %vm212, %v256, 0.0
      %269 = vadd.xlane.f32.xlu0 %v268
      %v270 = vpop.xlane.xlu0 %269
      %v271 = vsel %vm212, %v257, 0.0
      %272 = vadd.xlane.f32.xlu0 %v271
      %v273 = vpop.xlane.xlu0 %272
      %v274 = vsel %vm212, %v258, 0.0
      %275 = vadd.xlane.f32.xlu0 %v274
      %v276 = vpop.xlane.xlu0 %275
      %v277 = vsel %vm212, %v259, 0.0
      %278 = vadd.xlane.f32.xlu0 %v277
      %v279 = vpop.xlane.xlu0 %278
      %v280 = vsel %vm212, %v260, 0.0
      %281 = vadd.xlane.f32.xlu0 %v280
      %v282 = vpop.xlane.xlu0 %281
      %v283 = vsel %vm212, %v261, 0.0
      %284 = vadd.xlane.f32.xlu0 %v283
      %v285 = vpop.xlane.xlu0 %284
      %v286 = vmul.f32 %v264, %v237
      %v287 = vmul.f32 %v267, %v237
      %v288 = vmul.f32 %v270, %v237
      %v289 = vmul.f32 %v273, %v237
      %v290 = vmul.f32 %v276, %v237
      %v291 = vmul.f32 %v279, %v237
      %v292 = vmul.f32 %v282, %v237
      %v293 = vmul.f32 %v285, %v237
      %v294 = vadd.f32 %v286, 1e-05
      %v295 = vadd.f32 %v287, 1e-05
      %v296 = vadd.f32 %v288, 1e-05
      %v297 = vadd.f32 %v289, 1e-05
      %v298 = vadd.f32 %v290, 1e-05
      %v299 = vadd.f32 %v291, 1e-05
      %v300 = vadd.f32 %v292, 1e-05
      %v301 = vadd.f32 %v293, 1e-05
      %v302 = vrsqrt.pop %v294
      %v303 = vrsqrt.pop %v295
      %v304 = vrsqrt.pop %v296
      %v305 = vrsqrt.pop %v297
      %v306 = vrsqrt.pop %v298
      %v307 = vrsqrt.pop %v299
      %v308 = vrsqrt.pop %v300
      %v309 = vrsqrt.pop %v301
      %v310 = vmul.f32 %v246, %v302
      %v311 = vmul.f32 %v247, %v303
      %v312 = vmul.f32 %v248, %v304
      %v313 = vmul.f32 %v249, %v305
      %v314 = vmul.f32 %v250, %v306
      %v315 = vmul.f32 %v251, %v307
      %v316 = vmul.f32 %v252, %v308
      %v317 = vmul.f32 %v253, %v309
      %v318 = vld [vmem:[%s1] sm:$0x1]
      %v320 = vlaneseq
      %v321 = vshrl.u32 %v320, 7
      %v322 = vsub.s32 0, %v321
      %v323 = vrot.slane %v318, %v322
      %v325 = vmul.f32 %v310, %v323
      %v326 = vmul.f32 %v311, %v323
      %v327 = vmul.f32 %v312, %v323
      %v328 = vmul.f32 %v313, %v323
      %v329 = vmul.f32 %v314, %v323
      %v330 = vmul.f32 %v315, %v323
      %v331 = vmul.f32 %v316, %v323
      %v332 = vmul.f32 %v317, %v323
      %v333 = vld [vmem:[%s2] sm:$0x1]
      %v335 = vlaneseq
      %v336 = vshrl.u32 %v335, 7
      %v337 = vsub.s32 0, %v336
      %v338 = vrot.slane %v333, %v337
      %v340 = vadd.f32 %v325, %v338
      %v341 = vadd.f32 %v326, %v338
      %v342 = vadd.f32 %v327, %v338
      %v343 = vadd.f32 %v328, %v338
      %v344 = vadd.f32 %v329, %v338
      %v345 = vadd.f32 %v330, %v338
      %v346 = vadd.f32 %v331, %v338
      %v347 = vadd.f32 %v332, %v338
      %v348 = vpack.c.bf16 %v341, %v340
      %v349 = vpack.c.bf16 %v343, %v342
      %v350 = vpack.c.bf16 %v345, %v344
      %v351 = vpack.c.bf16 %v347, %v346
      %v352 = vld [vmem:[%s3] sm:$0xff]
      %v353 = vld [vmem:[%s3 + $0x8] sm:$0xff]
      %v354 = vld [vmem:[%s3 + $0x10] sm:$0xff]
      %v355 = vld [vmem:[%s3 + $0x18] sm:$0xff]
      %v356 = vld [vmem:[%s3 + $0x20] sm:$0xff]
      %v357 = vld [vmem:[%s3 + $0x28] sm:$0xff]
      %v358 = vld [vmem:[%s3 + $0x30] sm:$0xff]
      %v359 = vld [vmem:[%s3 + $0x38] sm:$0xff]
      %v360 = vld [vmem:[%s3 + $0x40] sm:$0xff]
      %v361 = vld [vmem:[%s3 + $0x48] sm:$0xff]
      %v362 = vld [vmem:[%s3 + $0x50] sm:$0xff]
      %v363 = vld [vmem:[%s3 + $0x58] sm:$0xff]
      %v364 = vld [vmem:[%s3 + $0x60] sm:$0xff]
      %v365 = vld [vmem:[%s3 + $0x68] sm:$0xff]
      %v366 = vld [vmem:[%s3 + $0x70] sm:$0xff]
      %v367 = vld [vmem:[%s3 + $0x78] sm:$0xff]
      %v368 = vld [vmem:[%s3 + $0x80] sm:$0xff]
      %v369 = vld [vmem:[%s3 + $0x88] sm:$0xff]
      %v370 = vld [vmem:[%s3 + $0x90] sm:$0xff]
      %v371 = vld [vmem:[%s3 + $0x98] sm:$0xff]
      %v372 = vld [vmem:[%s3 + $0xa0] sm:$0xff]
      %v373 = vld [vmem:[%s3 + $0xa8] sm:$0xff]
      %v374 = vld [vmem:[%s3 + $0xb0] sm:$0xff]
      %v375 = vld [vmem:[%s3 + $0xb8] sm:$0xff]
      %v400 = vunpack.c.l.b16 %v352
      %v401 = vunpack.c.h.b16 %v352
      %v402 = vunpack.c.l.b16 %v353
      %v403 = vunpack.c.h.b16 %v353
      %v404 = vunpack.c.l.b16 %v354
      %v405 = vunpack.c.h.b16 %v354
      %v406 = vunpack.c.l.b16 %v355
      %v407 = vunpack.c.h.b16 %v355
      %v408 = vunpack.c.l.b16 %v356
      %v409 = vunpack.c.h.b16 %v356
      %v410 = vunpack.c.l.b16 %v357
      %v411 = vunpack.c.h.b16 %v357
      %v412 = vunpack.c.l.b16 %v358
      %v413 = vunpack.c.h.b16 %v358
      %v414 = vunpack.c.l.b16 %v359
      %v415 = vunpack.c.h.b16 %v359
      %v416 = vunpack.c.l.b16 %v360
      %v417 = vunpack.c.h.b16 %v360
      %v418 = vunpack.c.l.b16 %v361
      %v419 = vunpack.c.h.b16 %v361
      %v420 = vunpack.c.l.b16 %v362
      %v421 = vunpack.c.h.b16 %v362
      %v422 = vunpack.c.l.b16 %v363
      %v423 = vunpack.c.h.b16 %v363
      %v424 = vunpack.c.l.b16 %v364
      %v425 = vunpack.c.h.b16 %v364
      %v426 = vunpack.c.l.b16 %v365
      %v427 = vunpack.c.h.b16 %v365
      %v428 = vunpack.c.l.b16 %v366
      %v429 = vunpack.c.h.b16 %v366
      %v430 = vunpack.c.l.b16 %v367
      %v431 = vunpack.c.h.b16 %v367
      %v432 = vunpack.c.l.b16 %v368
      %v433 = vunpack.c.h.b16 %v368
      %v434 = vunpack.c.l.b16 %v369
      %v435 = vunpack.c.h.b16 %v369
      %v436 = vunpack.c.l.b16 %v370
      %v437 = vunpack.c.h.b16 %v370
      %v438 = vunpack.c.l.b16 %v371
      %v439 = vunpack.c.h.b16 %v371
      %v440 = vunpack.c.l.b16 %v372
      %v441 = vunpack.c.h.b16 %v372
      %v442 = vunpack.c.l.b16 %v373
      %v443 = vunpack.c.h.b16 %v373
      %v444 = vunpack.c.l.b16 %v374
      %v445 = vunpack.c.h.b16 %v374
      %v446 = vunpack.c.l.b16 %v375
      %v447 = vunpack.c.h.b16 %v375
      %v448 = vpack.c.b16 %v406, %v400
      %v449 = vpack.c.b16 %v407, %v401
      %v450 = vpack.c.b16 %v408, %v402
      %v451 = vpack.c.b16 %v409, %v403
      %v452 = vpack.c.b16 %v410, %v404
      %v453 = vpack.c.b16 %v411, %v405
      %v454 = vpack.c.b16 %v418, %v412
      %v455 = vpack.c.b16 %v419, %v413
      %v456 = vpack.c.b16 %v420, %v414
      %v457 = vpack.c.b16 %v421, %v415
      %v458 = vpack.c.b16 %v422, %v416
      %v459 = vpack.c.b16 %v423, %v417
      %v460 = vpack.c.b16 %v430, %v424
      %v461 = vpack.c.b16 %v431, %v425
      %v462 = vpack.c.b16 %v432, %v426
      %v463 = vpack.c.b16 %v433, %v427
      %v464 = vpack.c.b16 %v434, %v428
      %v465 = vpack.c.b16 %v435, %v429
      %v466 = vpack.c.b16 %v442, %v436
      %v467 = vpack.c.b16 %v443, %v437
      %v468 = vpack.c.b16 %v444, %v438
      %v469 = vpack.c.b16 %v445, %v439
      %v470 = vpack.c.b16 %v446, %v440
      %v471 = vpack.c.b16 %v447, %v441
      %v497 = vsel %vm212, %v348, 0
      %v500 = vsel %vm212, %v349, 0
      %v503 = vsel %vm212, %v350, 0
      %v506 = vsel %vm212, %v351, 0
      %508 = vmatprep.subr.bf16.mxu0 0
      %509 = vmatpush1.bf16.msra.mxu0 0
      %510 = vmatprep.subr.bf16.mxu0 0
      %511 = vmatpush1.bf16.msra.mxu0 0
      %512 = vmatprep.subr.bf16.mxu0 0
      %513 = vmatpush1.bf16.msra.mxu0 0
      %514 = vmatprep.subr.bf16.mxu0 0
      %515 = vmatpush1.bf16.msra.mxu0 0
      %516 = vmatprep.subr.bf16.mxu0 %v467
      %517 = vmatpush1.bf16.msra.mxu0 %v466
      %518 = vmatprep.subr.bf16.mxu0 %v461
      %519 = vmatpush1.bf16.msra.mxu0 %v460
      %520 = vmatprep.subr.bf16.mxu0 %v455
      %521 = vmatpush1.bf16.msra.mxu0 %v454
      %522 = vmatprep.subr.bf16.mxu0 %v449
      %523 = vmatpush1.bf16.msra.mxu0 %v448
      %524 = vmatprep.subr.bf16.mxu0 0
      %525 = vmatpush2.bf16.msra.mxu0 0
      %526 = vmatprep.subr.bf16.mxu0 0
      %527 = vmatpush2.bf16.msra.mxu0 0
      %528 = vmatprep.subr.bf16.mxu0 0
      %529 = vmatpush2.bf16.msra.mxu0 0
      %530 = vmatprep.subr.bf16.mxu0 0
      %531 = vmatpush2.bf16.msra.mxu0 0
      %532 = vmatprep.subr.bf16.mxu0 0
      %533 = vmatpush2.bf16.msra.mxu0 0
      %534 = vmatprep.subr.bf16.mxu0 0
      %535 = vmatpush2.bf16.msra.mxu0 0
      %536 = vmatprep.subr.bf16.mxu0 0
      %537 = vmatpush2.bf16.msra.mxu0 0
      %538 = vmatprep.subr.bf16.mxu0 0
      %539 = vmatpush2.bf16.msra.mxu0 0
      %540 = vmatprep.mubr.bf16.mxu0 0
      %541 = vmatmul.mubr.bf16.gmra.mxu0 %v497
      %v542 = vpop.f32.mrf.mxu0
      %v543 = vadd.f32 0.0, %v542
      %v544 = vpop.f32.mrf.mxu0
      %v545 = vadd.f32 0.0, %v544
      %v546 = vpop.f32.mrf.mxu0
      %v547 = vadd.f32 0.0, %v546
      %v548 = vpop.f32.mrf.mxu0
      %v549 = vadd.f32 0.0, %v548
      %550 = vmatprep.mubr.bf16.mxu0 0
      %551 = vmatmul.mubr.bf16.gmra.mxu0 %v500
      %v552 = vpop.f32.mrf.mxu0
      %v553 = vadd.f32 0.0, %v552
      %v554 = vpop.f32.mrf.mxu0
      %v555 = vadd.f32 0.0, %v554
      %v556 = vpop.f32.mrf.mxu0
      %v557 = vadd.f32 0.0, %v556
      %v558 = vpop.f32.mrf.mxu0
      %v559 = vadd.f32 0.0, %v558
      %560 = vmatprep.mubr.bf16.mxu0 0
      %561 = vmatmul.mubr.bf16.gmra.mxu0 %v503
      %v562 = vpop.f32.mrf.mxu0
      %v563 = vadd.f32 0.0, %v562
      %v564 = vpop.f32.mrf.mxu0
      %v565 = vadd.f32 0.0, %v564
      %v566 = vpop.f32.mrf.mxu0
      %v567 = vadd.f32 0.0, %v566
      %v568 = vpop.f32.mrf.mxu0
      %v569 = vadd.f32 0.0, %v568
      %570 = vmatprep.mubr.bf16.mxu0 0
      %571 = vmatmul.mubr.bf16.gmra.mxu0 %v506
      %v572 = vpop.f32.mrf.mxu0
      %v573 = vadd.f32 0.0, %v572
      %v574 = vpop.f32.mrf.mxu0
      %v575 = vadd.f32 0.0, %v574
      %v576 = vpop.f32.mrf.mxu0
      %v577 = vadd.f32 0.0, %v576
      %v578 = vpop.f32.mrf.mxu0
      %v579 = vadd.f32 0.0, %v578
      %580 = vdwg.mxu0
      %581 = vmatprep.subr.bf16.mxu0 0
      %582 = vmatpush1.bf16.msra.mxu0 0
      %583 = vmatprep.subr.bf16.mxu0 0
      %584 = vmatpush1.bf16.msra.mxu0 0
      %585 = vmatprep.subr.bf16.mxu0 0
      %586 = vmatpush1.bf16.msra.mxu0 0
      %587 = vmatprep.subr.bf16.mxu0 0
      %588 = vmatpush1.bf16.msra.mxu0 0
      %589 = vmatprep.subr.bf16.mxu0 %v469
      %590 = vmatpush1.bf16.msra.mxu0 %v468
      %591 = vmatprep.subr.bf16.mxu0 %v463
      %592 = vmatpush1.bf16.msra.mxu0 %v462
      %593 = vmatprep.subr.bf16.mxu0 %v457
      %594 = vmatpush1.bf16.msra.mxu0 %v456
      %595 = vmatprep.subr.bf16.mxu0 %v451
      %596 = vmatpush1.bf16.msra.mxu0 %v450
      %597 = vmatprep.subr.bf16.mxu0 0
      %598 = vmatpush2.bf16.msra.mxu0 0
      %599 = vmatprep.subr.bf16.mxu0 0
      %600 = vmatpush2.bf16.msra.mxu0 0
      %601 = vmatprep.subr.bf16.mxu0 0
      %602 = vmatpush2.bf16.msra.mxu0 0
      %603 = vmatprep.subr.bf16.mxu0 0
      %604 = vmatpush2.bf16.msra.mxu0 0
      %605 = vmatprep.subr.bf16.mxu0 0
      %606 = vmatpush2.bf16.msra.mxu0 0
      %607 = vmatprep.subr.bf16.mxu0 0
      %608 = vmatpush2.bf16.msra.mxu0 0
      %609 = vmatprep.subr.bf16.mxu0 0
      %610 = vmatpush2.bf16.msra.mxu0 0
      %611 = vmatprep.subr.bf16.mxu0 0
      %612 = vmatpush2.bf16.msra.mxu0 0
      %613 = vmatprep.mubr.bf16.mxu0 0
      %614 = vmatmul.mubr.bf16.gmra.mxu0 %v497
      %v615 = vpop.f32.mrf.mxu0
      %v616 = vadd.f32 0.0, %v615
      %v617 = vpop.f32.mrf.mxu0
      %v618 = vadd.f32 0.0, %v617
      %v619 = vpop.f32.mrf.mxu0
      %v620 = vadd.f32 0.0, %v619
      %v621 = vpop.f32.mrf.mxu0
      %v622 = vadd.f32 0.0, %v621
      %623 = vmatprep.mubr.bf16.mxu0 0
      %624 = vmatmul.mubr.bf16.gmra.mxu0 %v500
      %v625 = vpop.f32.mrf.mxu0
      %v626 = vadd.f32 0.0, %v625
      %v627 = vpop.f32.mrf.mxu0
      %v628 = vadd.f32 0.0, %v627
      %v629 = vpop.f32.mrf.mxu0
      %v630 = vadd.f32 0.0, %v629
      %v631 = vpop.f32.mrf.mxu0
      %v632 = vadd.f32 0.0, %v631
      %633 = vmatprep.mubr.bf16.mxu0 0
      %634 = vmatmul.mubr.bf16.gmra.mxu0 %v503
      %v635 = vpop.f32.mrf.mxu0
      %v636 = vadd.f32 0.0, %v635
      %v637 = vpop.f32.mrf.mxu0
      %v638 = vadd.f32 0.0, %v637
      %v639 = vpop.f32.mrf.mxu0
      %v640 = vadd.f32 0.0, %v639
      %v641 = vpop.f32.mrf.mxu0
      %v642 = vadd.f32 0.0, %v641
      %643 = vmatprep.mubr.bf16.mxu0 0
      %644 = vmatmul.mubr.bf16.gmra.mxu0 %v506
      %v645 = vpop.f32.mrf.mxu0
      %v646 = vadd.f32 0.0, %v645
      %v647 = vpop.f32.mrf.mxu0
      %v648 = vadd.f32 0.0, %v647
      %v649 = vpop.f32.mrf.mxu0
      %v650 = vadd.f32 0.0, %v649
      %v651 = vpop.f32.mrf.mxu0
      %v652 = vadd.f32 0.0, %v651
      %653 = vdwg.mxu0
      %654 = vmatprep.subr.bf16.mxu0 0
      %655 = vmatpush1.bf16.msra.mxu0 0
      %656 = vmatprep.subr.bf16.mxu0 0
      %657 = vmatpush1.bf16.msra.mxu0 0
      %658 = vmatprep.subr.bf16.mxu0 0
      %659 = vmatpush1.bf16.msra.mxu0 0
      %660 = vmatprep.subr.bf16.mxu0 0
      %661 = vmatpush1.bf16.msra.mxu0 0
      %662 = vmatprep.subr.bf16.mxu0 %v471
      %663 = vmatpush1.bf16.msra.mxu0 %v470
      %664 = vmatprep.subr.bf16.mxu0 %v465
      %665 = vmatpush1.bf16.msra.mxu0 %v464
      %666 = vmatprep.subr.bf16.mxu0 %v459
      %667 = vmatpush1.bf16.msra.mxu0 %v458
      %668 = vmatprep.subr.bf16.mxu0 %v453
      %669 = vmatpush1.bf16.msra.mxu0 %v452
      %670 = vmatprep.subr.bf16.mxu0 0
      %671 = vmatpush2.bf16.msra.mxu0 0
      %672 = vmatprep.subr.bf16.mxu0 0
      %673 = vmatpush2.bf16.msra.mxu0 0
      %674 = vmatprep.subr.bf16.mxu0 0
      %675 = vmatpush2.bf16.msra.mxu0 0
      %676 = vmatprep.subr.bf16.mxu0 0
      %677 = vmatpush2.bf16.msra.mxu0 0
      %678 = vmatprep.subr.bf16.mxu0 0
      %679 = vmatpush2.bf16.msra.mxu0 0
      %680 = vmatprep.subr.bf16.mxu0 0
      %681 = vmatpush2.bf16.msra.mxu0 0
      %682 = vmatprep.subr.bf16.mxu0 0
      %683 = vmatpush2.bf16.msra.mxu0 0
      %684 = vmatprep.subr.bf16.mxu0 0
      %685 = vmatpush2.bf16.msra.mxu0 0
      %686 = vmatprep.mubr.bf16.mxu0 0
      %687 = vmatmul.mubr.bf16.gmra.mxu0 %v497
      %v688 = vpop.f32.mrf.mxu0
      %v689 = vadd.f32 0.0, %v688
      %v690 = vpop.f32.mrf.mxu0
      %v691 = vadd.f32 0.0, %v690
      %v692 = vpop.f32.mrf.mxu0
      %v693 = vadd.f32 0.0, %v692
      %v694 = vpop.f32.mrf.mxu0
      %v695 = vadd.f32 0.0, %v694
      %696 = vmatprep.mubr.bf16.mxu0 0
      %697 = vmatmul.mubr.bf16.gmra.mxu0 %v500
      %v698 = vpop.f32.mrf.mxu0
      %v699 = vadd.f32 0.0, %v698
      %v700 = vpop.f32.mrf.mxu0
      %v701 = vadd.f32 0.0, %v700
      %v702 = vpop.f32.mrf.mxu0
      %v703 = vadd.f32 0.0, %v702
      %v704 = vpop.f32.mrf.mxu0
      %v705 = vadd.f32 0.0, %v704
      %706 = vmatprep.mubr.bf16.mxu0 0
      %707 = vmatmul.mubr.bf16.gmra.mxu0 %v503
      %v708 = vpop.f32.mrf.mxu0
      %v709 = vadd.f32 0.0, %v708
      %v710 = vpop.f32.mrf.mxu0
      %v711 = vadd.f32 0.0, %v710
      %v712 = vpop.f32.mrf.mxu0
      %v713 = vadd.f32 0.0, %v712
      %v714 = vpop.f32.mrf.mxu0
      %v715 = vadd.f32 0.0, %v714
      %716 = vmatprep.mubr.bf16.mxu0 0
      %717 = vmatmul.mubr.bf16.gmra.mxu0 %v506
      %v718 = vpop.f32.mrf.mxu0
      %v719 = vadd.f32 0.0, %v718
      %v720 = vpop.f32.mrf.mxu0
      %v721 = vadd.f32 0.0, %v720
      %v722 = vpop.f32.mrf.mxu0
      %v723 = vadd.f32 0.0, %v722
      %v724 = vpop.f32.mrf.mxu0
      %v725 = vadd.f32 0.0, %v724
      %726 = vdwg.mxu0
      %v727 = vpack.c.bf16 %v547, %v543
      %v728 = vpack.c.bf16 %v549, %v545
      %v729 = vpack.c.bf16 %v620, %v616
      %v730 = vpack.c.bf16 %v622, %v618
      %v731 = vpack.c.bf16 %v693, %v689
      %v732 = vpack.c.bf16 %v695, %v691
      %v733 = vpack.c.bf16 %v557, %v553
      %v734 = vpack.c.bf16 %v559, %v555
      %v735 = vpack.c.bf16 %v630, %v626
      %v736 = vpack.c.bf16 %v632, %v628
      %v737 = vpack.c.bf16 %v703, %v699
      %v738 = vpack.c.bf16 %v705, %v701
      %v739 = vpack.c.bf16 %v567, %v563
      %v740 = vpack.c.bf16 %v569, %v565
      %v741 = vpack.c.bf16 %v640, %v636
      %v742 = vpack.c.bf16 %v642, %v638
      %v743 = vpack.c.bf16 %v713, %v709
      %v744 = vpack.c.bf16 %v715, %v711
      %v745 = vpack.c.bf16 %v577, %v573
      %v746 = vpack.c.bf16 %v579, %v575
      %v747 = vpack.c.bf16 %v650, %v646
      %v748 = vpack.c.bf16 %v652, %v648
      %v749 = vpack.c.bf16 %v723, %v719
      %v750 = vpack.c.bf16 %v725, %v721
      %v775 = vunpack.c.l.b16 %v727
      %v776 = vunpack.c.l.b16 %v728
      %v777 = vunpack.c.l.b16 %v729
      %v778 = vunpack.c.l.b16 %v730
      %v779 = vunpack.c.l.b16 %v731
      %v780 = vunpack.c.l.b16 %v732
      %v781 = vunpack.c.h.b16 %v727
      %v782 = vunpack.c.h.b16 %v728
      %v783 = vunpack.c.h.b16 %v729
      %v784 = vunpack.c.h.b16 %v730
      %v785 = vunpack.c.h.b16 %v731
      %v786 = vunpack.c.h.b16 %v732
      %v787 = vunpack.c.l.b16 %v733
      %v788 = vunpack.c.l.b16 %v734
      %v789 = vunpack.c.l.b16 %v735
      %v790 = vunpack.c.l.b16 %v736
      %v791 = vunpack.c.l.b16 %v737
      %v792 = vunpack.c.l.b16 %v738
      %v793 = vunpack.c.h.b16 %v733
      %v794 = vunpack.c.h.b16 %v734
      %v795 = vunpack.c.h.b16 %v735
      %v796 = vunpack.c.h.b16 %v736
      %v797 = vunpack.c.h.b16 %v737
      %v798 = vunpack.c.h.b16 %v738
      %v799 = vunpack.c.l.b16 %v739
      %v800 = vunpack.c.l.b16 %v740
      %v801 = vunpack.c.l.b16 %v741
      %v802 = vunpack.c.l.b16 %v742
      %v803 = vunpack.c.l.b16 %v743
      %v804 = vunpack.c.l.b16 %v744
      %v805 = vunpack.c.h.b16 %v739
      %v806 = vunpack.c.h.b16 %v740
      %v807 = vunpack.c.h.b16 %v741
      %v808 = vunpack.c.h.b16 %v742
      %v809 = vunpack.c.h.b16 %v743
      %v810 = vunpack.c.h.b16 %v744
      %v811 = vunpack.c.l.b16 %v745
      %v812 = vunpack.c.l.b16 %v746
      %v813 = vunpack.c.l.b16 %v747
      %v814 = vunpack.c.l.b16 %v748
      %v815 = vunpack.c.l.b16 %v749
      %v816 = vunpack.c.l.b16 %v750
      %v817 = vunpack.c.h.b16 %v745
      %v818 = vunpack.c.h.b16 %v746
      %v819 = vunpack.c.h.b16 %v747
      %v820 = vunpack.c.h.b16 %v748
      %v821 = vunpack.c.h.b16 %v749
      %v822 = vunpack.c.h.b16 %v750
      %v823 = vpack.c.b16 %v776, %v775
      %v824 = vpack.c.b16 %v778, %v777
      %v825 = vpack.c.b16 %v780, %v779
      %v826 = vpack.c.b16 %v782, %v781
      %v827 = vpack.c.b16 %v784, %v783
      %v828 = vpack.c.b16 %v786, %v785
      %v829 = vpack.c.b16 %v788, %v787
      %v830 = vpack.c.b16 %v790, %v789
      %v831 = vpack.c.b16 %v792, %v791
      %v832 = vpack.c.b16 %v794, %v793
      %v833 = vpack.c.b16 %v796, %v795
      %v834 = vpack.c.b16 %v798, %v797
      %v835 = vpack.c.b16 %v800, %v799
      %v836 = vpack.c.b16 %v802, %v801
      %v837 = vpack.c.b16 %v804, %v803
      %v838 = vpack.c.b16 %v806, %v805
      %v839 = vpack.c.b16 %v808, %v807
      %v840 = vpack.c.b16 %v810, %v809
      %v841 = vpack.c.b16 %v812, %v811
      %v842 = vpack.c.b16 %v814, %v813
      %v843 = vpack.c.b16 %v816, %v815
      %v844 = vpack.c.b16 %v818, %v817
      %v845 = vpack.c.b16 %v820, %v819
      %v846 = vpack.c.b16 %v822, %v821
      %871 = vst [vmem:[%s201] sm:$0xff] %v823
      %872 = vst [vmem:[%s201 + $0x8] sm:$0xff] %v824
      %873 = vst [vmem:[%s201 + $0x10] sm:$0xff] %v825
      %874 = vst [vmem:[%s201 + $0x18] sm:$0xff] %v826
      %875 = vst [vmem:[%s201 + $0x20] sm:$0xff] %v827
      %876 = vst [vmem:[%s201 + $0x28] sm:$0xff] %v828
      %877 = vst [vmem:[%s201 + $0x30] sm:$0xff] %v829
      %878 = vst [vmem:[%s201 + $0x38] sm:$0xff] %v830
      %879 = vst [vmem:[%s201 + $0x40] sm:$0xff] %v831
      %880 = vst [vmem:[%s201 + $0x48] sm:$0xff] %v832
      %881 = vst [vmem:[%s201 + $0x50] sm:$0xff] %v833
      %882 = vst [vmem:[%s201 + $0x58] sm:$0xff] %v834
      %883 = vst [vmem:[%s201 + $0x60] sm:$0xff] %v835
      %884 = vst [vmem:[%s201 + $0x68] sm:$0xff] %v836
      %885 = vst [vmem:[%s201 + $0x70] sm:$0xff] %v837
      %886 = vst [vmem:[%s201 + $0x78] sm:$0xff] %v838
      %887 = vst [vmem:[%s201 + $0x80] sm:$0xff] %v839
      %888 = vst [vmem:[%s201 + $0x88] sm:$0xff] %v840
      %889 = vst [vmem:[%s201 + $0x90] sm:$0xff] %v841
      %890 = vst [vmem:[%s201 + $0x98] sm:$0xff] %v842
      %891 = vst [vmem:[%s201 + $0xa0] sm:$0xff] %v843
      %892 = vst [vmem:[%s201 + $0xa8] sm:$0xff] %v844
      %893 = vst [vmem:[%s201 + $0xb0] sm:$0xff] %v845
      %894 = vst [vmem:[%s201 + $0xb8] sm:$0xff] %v846
      %s895 = smul.u32 8, %s15
      %p896 = scmp.lt.s32.totalorder %s895, 15
      %s897 = scalar_select %p896, %s895, 15
      %s898 = smul.addr %s897, 6
      %s899 = smul.addr %s898, 4
      %s900 = scalar_lea.vmem %s4, %s899
      // Predicated region
      $region37: #{forward.11} parent=35 // pred_check
        %p901 = pneg %p122
      $region38: #{forward.11} parent=35 // pred_check_branch
        %903 = sbr.rel (%p901) target = $region40
      $region39: #{forward.11} parent=35 // pred_region
        %s904 = smul.u32 8, %s15
      $region40: #{forward.11} parent=35 // pred_fallthru
        _
    $region36: #{forward.11} parent=5 // pred_fallthru
      _
    %p905 = scmp.le.s32.totalorder 2, %s10
    // Predicated region
    $region41: #{forward.11} parent=5 // pred_check
      %p906 = pneg %p905
    $region42: #{forward.11} parent=5 // pred_check_branch
      %908 = sbr.rel (%p906) target = $region44
    $region43: #{forward.11} parent=5 // pred_region
      %s909 = ssub.s32 %s10, 2
      // Predicated region
      $region45: #{forward.11} parent=43 // pred_check
        %p910 = pneg %p128
      $region46: #{forward.11} parent=43 // pred_check_branch
        %912 = sbr.rel (%p910) target = $region48
      $region47: #{forward.11} parent=43 // pred_region
        %s913 = smul.u32 8, %s16
        %p914 = scmp.lt.s32.totalorder %s913, 15
        %s915 = scalar_select %p914, %s913, 15
        %s916 = smul.addr %s915, 6
        %s917 = smul.addr %s916, 4
        %s918 = scalar_lea.vmem %s4, %s917
      $region48: #{forward.11} parent=43 // pred_fallthru
        _
    $region44: #{forward.11} parent=5 // pred_fallthru
      _
  $region6: #{forward.11} parent=0 // loop_footer
    %s14 = sadd.s32 1, %s10
  $region7: #{forward.11} parent=0 // loop_footer_branch
    %9 = sbr.rel target = $region3
  $region8: #{forward.11} parent=0 // loop_exit
    _

// kernel: forward.10
$region0: #{forward.10}
  #allocation0 [shape = 'u32[]', space=smem, size = 0x4, offset = 0x4, fixed_abs, tag = 'smem constant byte address 0x4 - core index']
  #allocation1 [shape = 'u32[144,128]{1,0:T(1,128)}', space=vmem, size = 0x12000, scoped, tag = 'internal scratch']
  %s0 = inlined_call_operand.vmem [shape: f32[128,64], index: 0, kind: input, shape index: {}]
  %s1 = inlined_call_operand.vmem [shape: f32[1,64], index: 1, kind: input, shape index: {}]
  %s2 = inlined_call_operand.vmem [shape: f32[1,64], index: 2, kind: input, shape index: {}]
  %s3 = inlined_call_operand.vmem [shape: bf16[64,128], index: 3, kind: input, shape index: {}]
  %s4 = inlined_call_operand.vmem [shape: f32[1,128], index: 4, kind: input, shape index: {}]
  %s5 = inlined_call_operand.vmem [shape: bf16[128,64], index: 5, kind: input, shape index: {}]
  %s6 = inlined_call_operand.vmem [shape: f32[1,64], index: 6, kind: input, shape index: {}]
  %s7 = inlined_call_operand.vmem [shape: f32[128,64], index: 7, kind: output, shape index: {}]
  %s8 = sld [smem:[#allocation0]]
  $region61: #{forward.10} parent=0
    _
  %s10 = ssub.s32 1, %s8
  %s11 = scalar_select 0, %s10, %s8
  loop: start=0, step=1, limit=4
  $region2: #{forward.10} parent=0 // loop_pre_header
    _
  $region3: #{forward.10} parent=0 // loop_header
    %s13 = sphi 0, %s17
    %p14 = scmp.ge.s32.totalorder %s13, 4
    %s23 = sphi 0, %s25
    %s26 = sphi 0, %s23
    %s27 = sphi 0, %s26
    %s43 = sphi 0, %s27
    %s47 = sphi 0, %s47
    %s49 = sphi 0, %s47
    %s50 = sphi 0, %s49
    %s64 = sphi 0, %s50
    %s68 = sphi 0, %s68
    %s70 = sphi 0, %s68
    %s71 = sphi 0, %s70
    %s85 = sphi 0, %s71
    %s89 = sphi 0, %s89
    %s91 = sphi 0, %s89
    %s92 = sphi 0, %s91
    %s106 = sphi 0, %s92
    %s110 = sphi 0, %s110
    %s112 = sphi 0, %s110
    %s113 = sphi 0, %s112
    %s127 = sphi 0, %s113
    %s131 = sphi 0, %s131
    %s133 = sphi 0, %s131
    %s134 = sphi 0, %s133
    %s148 = sphi 0, %s134
    %s152 = sphi 0, %s152
    %s154 = sphi 0, %s152
    %s155 = sphi 0, %s154
    %s169 = sphi 0, %s155
    %s175 = sphi 0, %s177
    %s178 = sphi 0, %s175
    %s179 = sphi 0, %s178
    %s195 = sphi 0, %s179
  $region4: #{forward.10} parent=0 // loop_header_branch
    %16 = sbr.rel (%p14) target = $region8
  $region5: #{forward.10} parent=0 // loop_body
    %s18 = ssub.s32 %s13, 1
    %s19 = ssub.s32 %s13, 2
    %s20 = sadd.s32 %s13, 1
    %s21 = ssub.s32 %s13, %s20
    %p22 = scmp.eq.s32.totalorder %s21, 0
    %s24 = sadd.s32 %s23, 1
    %s25 = scalar_select %p22, %s23, %s24
    %p28 = pneg %p22
    %p29 = scmp.eq.s32.totalorder %s13, 1
    %p30 = por %p28, %p29
    %p31 = scmp.ne.s32.totalorder %s23, %s26
    %p32 = scmp.eq.s32.totalorder %s13, 0
    %p33 = por %p31, %p32
    %p34 = scmp.ne.s32.totalorder %s23, %s26
    %p35 = scmp.eq.s32.totalorder %s18, 1
    %p36 = por %p34, %p35
    %p37 = scmp.ne.s32.totalorder %s26, %s27
    %p38 = scmp.eq.s32.totalorder %s18, 0
    %p39 = por %p37, %p38
    %p40 = scmp.ne.s32.totalorder %s26, %s27
    %p41 = scmp.eq.s32.totalorder %s19, 1
    %p42 = por %p40, %p41
    %p44 = scmp.ne.s32.totalorder %s27, %s43
    %p45 = scmp.eq.s32.totalorder %s19, 0
    %p46 = por %p44, %p45
    %s48 = sadd.s32 %s47, 1
    %p51 = scmp.eq.s32.totalorder %s13, 1
    %p52 = scmp.ne.s32.totalorder %s47, %s49
    %p53 = scmp.eq.s32.totalorder %s13, 0
    %p54 = por %p52, %p53
    %p55 = scmp.ne.s32.totalorder %s47, %s49
    %p56 = scmp.eq.s32.totalorder %s18, 1
    %p57 = por %p55, %p56
    %p58 = scmp.ne.s32.totalorder %s49, %s50
    %p59 = scmp.eq.s32.totalorder %s18, 0
    %p60 = por %p58, %p59
    %p61 = scmp.ne.s32.totalorder %s49, %s50
    %p62 = scmp.eq.s32.totalorder %s19, 1
    %p63 = por %p61, %p62
    %p65 = scmp.ne.s32.totalorder %s50, %s64
    %p66 = scmp.eq.s32.totalorder %s19, 0
    %p67 = por %p65, %p66
    %s69 = sadd.s32 %s68, 1
    %p72 = scmp.eq.s32.totalorder %s13, 1
    %p73 = scmp.ne.s32.totalorder %s68, %s70
    %p74 = scmp.eq.s32.totalorder %s13, 0
    %p75 = por %p73, %p74
    %p76 = scmp.ne.s32.totalorder %s68, %s70
    %p77 = scmp.eq.s32.totalorder %s18, 1
    %p78 = por %p76, %p77
    %p79 = scmp.ne.s32.totalorder %s70, %s71
    %p80 = scmp.eq.s32.totalorder %s18, 0
    %p81 = por %p79, %p80
    %p82 = scmp.ne.s32.totalorder %s70, %s71
    %p83 = scmp.eq.s32.totalorder %s19, 1
    %p84 = por %p82, %p83
    %p86 = scmp.ne.s32.totalorder %s71, %s85
    %p87 = scmp.eq.s32.totalorder %s19, 0
    %p88 = por %p86, %p87
    %s90 = sadd.s32 %s89, 1
    %p93 = scmp.eq.s32.totalorder %s13, 1
    %p94 = scmp.ne.s32.totalorder %s89, %s91
    %p95 = scmp.eq.s32.totalorder %s13, 0
    %p96 = por %p94, %p95
    %p97 = scmp.ne.s32.totalorder %s89, %s91
    %p98 = scmp.eq.s32.totalorder %s18, 1
    %p99 = por %p97, %p98
    %p100 = scmp.ne.s32.totalorder %s91, %s92
    %p101 = scmp.eq.s32.totalorder %s18, 0
    %p102 = por %p100, %p101
    %p103 = scmp.ne.s32.totalorder %s91, %s92
    %p104 = scmp.eq.s32.totalorder %s19, 1
    %p105 = por %p103, %p104
    %p107 = scmp.ne.s32.totalorder %s92, %s106
    %p108 = scmp.eq.s32.totalorder %s19, 0
    %p109 = por %p107, %p108
    %s111 = sadd.s32 %s110, 1
    %p114 = scmp.eq.s32.totalorder %s13, 1
    %p115 = scmp.ne.s32.totalorder %s110, %s112
    %p116 = scmp.eq.s32.totalorder %s13, 0
    %p117 = por %p115, %p116
    %p118 = scmp.ne.s32.totalorder %s110, %s112
    %p119 = scmp.eq.s32.totalorder %s18, 1
    %p120 = por %p118, %p119
    %p121 = scmp.ne.s32.totalorder %s112, %s113
    %p122 = scmp.eq.s32.totalorder %s18, 0
    %p123 = por %p121, %p122
    %p124 = scmp.ne.s32.totalorder %s112, %s113
    %p125 = scmp.eq.s32.totalorder %s19, 1
    %p126 = por %p124, %p125
    %p128 = scmp.ne.s32.totalorder %s113, %s127
    %p129 = scmp.eq.s32.totalorder %s19, 0
    %p130 = por %p128, %p129
    %s132 = sadd.s32 %s131, 1
    %p135 = scmp.eq.s32.totalorder %s13, 1
    %p136 = scmp.ne.s32.totalorder %s131, %s133
    %p137 = scmp.eq.s32.totalorder %s13, 0
    %p138 = por %p136, %p137
    %p139 = scmp.ne.s32.totalorder %s131, %s133
    %p140 = scmp.eq.s32.totalorder %s18, 1
    %p141 = por %p139, %p140
    %p142 = scmp.ne.s32.totalorder %s133, %s134
    %p143 = scmp.eq.s32.totalorder %s18, 0
    %p144 = por %p142, %p143
    %p145 = scmp.ne.s32.totalorder %s133, %s134
    %p146 = scmp.eq.s32.totalorder %s19, 1
    %p147 = por %p145, %p146
    %p149 = scmp.ne.s32.totalorder %s134, %s148
    %p150 = scmp.eq.s32.totalorder %s19, 0
    %p151 = por %p149, %p150
    %s153 = sadd.s32 %s152, 1
    %p156 = scmp.eq.s32.totalorder %s13, 1
    %p157 = scmp.ne.s32.totalorder %s152, %s154
    %p158 = scmp.eq.s32.totalorder %s13, 0
    %p159 = por %p157, %p158
    %p160 = scmp.ne.s32.totalorder %s152, %s154
    %p161 = scmp.eq.s32.totalorder %s18, 1
    %p162 = por %p160, %p161
    %p163 = scmp.ne.s32.totalorder %s154, %s155
    %p164 = scmp.eq.s32.totalorder %s18, 0
    %p165 = por %p163, %p164
    %p166 = scmp.ne.s32.totalorder %s154, %s155
    %p167 = scmp.eq.s32.totalorder %s19, 1
    %p168 = por %p166, %p167
    %p170 = scmp.ne.s32.totalorder %s155, %s169
    %p171 = scmp.eq.s32.totalorder %s19, 0
    %p172 = por %p170, %p171
    %s173 = ssub.s32 %s13, %s20
    %p174 = scmp.eq.s32.totalorder %s173, 0
    %s176 = sadd.s32 %s175, 1
    %s177 = scalar_select %p174, %s175, %s176
    %p180 = pneg %p174
    %p181 = scmp.eq.s32.totalorder %s13, 1
    %p182 = por %p180, %p181
    %p183 = scmp.ne.s32.totalorder %s175, %s178
    %p184 = scmp.eq.s32.totalorder %s13, 0
    %p185 = por %p183, %p184
    %p186 = scmp.ne.s32.totalorder %s175, %s178
    %p187 = scmp.eq.s32.totalorder %s18, 1
    %p188 = por %p186, %p187
    %p189 = scmp.ne.s32.totalorder %s178, %s179
    %p190 = scmp.eq.s32.totalorder %s18, 0
    %p191 = por %p189, %p190
    %p192 = scmp.ne.s32.totalorder %s178, %s179
    %p193 = scmp.eq.s32.totalorder %s19, 1
    %p194 = por %p192, %p193
    %p196 = scmp.ne.s32.totalorder %s179, %s195
    %p197 = scmp.eq.s32.totalorder %s19, 0
    %p198 = por %p196, %p197
    %p199 = scmp.le.s32.totalorder 1, %s13
    %p200 = scmp.lt.s32.totalorder %s13, 3
    %p201 = pnand %p199, %p200
    %p202 = pneg %p201
    // Predicated region
    $region9: #{forward.10} parent=5 // pred_check
      _
    $region10: #{forward.10} parent=5 // pred_check_branch
      %204 = sbr.rel (%p201) target = $region12
    $region11: #{forward.10} parent=5 // pred_region
      %s205 = ssub.s32 %s13, 1
      // Predicated region
      $region13: #{forward.10} parent=11 // pred_check
        %p206 = pneg %p60
      $region14: #{forward.10} parent=11 // pred_check_branch
        %208 = sbr.rel (%p206) target = $region16
      $region15: #{forward.10} parent=11 // pred_region
        _
      $region16: #{forward.10} parent=11 // pred_fallthru
        _
      // Predicated region
      $region17: #{forward.10} parent=11 // pred_check
        %p209 = pneg %p81
      $region18: #{forward.10} parent=11 // pred_check_branch
        %211 = sbr.rel (%p209) target = $region20
      $region19: #{forward.10} parent=11 // pred_region
        _
      $region20: #{forward.10} parent=11 // pred_fallthru
        _
      // Predicated region
      $region21: #{forward.10} parent=11 // pred_check
        %p212 = pneg %p102
      $region22: #{forward.10} parent=11 // pred_check_branch
        %214 = sbr.rel (%p212) target = $region24
      $region23: #{forward.10} parent=11 // pred_region
        _
      $region24: #{forward.10} parent=11 // pred_fallthru
        _
      // Predicated region
      $region25: #{forward.10} parent=11 // pred_check
        %p215 = pneg %p123
      $region26: #{forward.10} parent=11 // pred_check_branch
        %217 = sbr.rel (%p215) target = $region28
      $region27: #{forward.10} parent=11 // pred_region
        _
      $region28: #{forward.10} parent=11 // pred_fallthru
        _
      // Predicated region
      $region29: #{forward.10} parent=11 // pred_check
        %p218 = pneg %p144
      $region30: #{forward.10} parent=11 // pred_check_branch
        %220 = sbr.rel (%p218) target = $region32
      $region31: #{forward.10} parent=11 // pred_region
        _
      $region32: #{forward.10} parent=11 // pred_fallthru
        _
      // Predicated region
      $region33: #{forward.10} parent=11 // pred_check
        %p221 = pneg %p165
      $region34: #{forward.10} parent=11 // pred_check_branch
        %223 = sbr.rel (%p221) target = $region36
      $region35: #{forward.10} parent=11 // pred_region
        _
      $region36: #{forward.10} parent=11 // pred_fallthru
        _
    $region12: #{forward.10} parent=5 // pred_fallthru
      _
    %p224 = scmp.lt.s32.totalorder %s13, 2
    // Predicated region
    $region37: #{forward.10} parent=5 // pred_check
      %p225 = pneg %p224
    $region38: #{forward.10} parent=5 // pred_check_branch
      %227 = sbr.rel (%p225) target = $region40
    $region39: #{forward.10} parent=5 // pred_region
      // Predicated region
      $region41: #{forward.10} parent=39 // pred_check
        %p228 = pneg %p33
      $region42: #{forward.10} parent=39 // pred_check_branch
        %230 = sbr.rel (%p228) target = $region44
      $region43: #{forward.10} parent=39 // pred_region
        %s231 = smul.u32 8, %s13
        %p232 = scmp.lt.s32.totalorder %s231, 15
        %s233 = scalar_select %p232, %s231, 15
        %s234 = smul.addr %s233, 8
        %s235 = scalar_lea.vmem %s0, %s234
        %s236 = smul.u32 8, %s13
      $region44: #{forward.10} parent=39 // pred_fallthru
        _
    $region40: #{forward.10} parent=5 // pred_fallthru
      _
    %p237 = scmp.le.s32.totalorder 1, %s13
    %p238 = scmp.lt.s32.totalorder %s13, 3
    %p239 = pnand %p237, %p238
    %p240 = pneg %p239
    // Predicated region
    $region45: #{forward.10} parent=5 // pred_check
      _
    $region46: #{forward.10} parent=5 // pred_check_branch
      %242 = sbr.rel (%p239) target = $region48
    $region47: #{forward.10} parent=5 // pred_region
      %s243 = ssub.s32 %s13, 1
      %s244 = smul.u32 8, %s18
      %p245 = scmp.lt.s32.totalorder %s244, 15
      %s246 = scalar_select %p245, %s244, 15
      %s247 = smul.addr %s246, 8
      %s248 = scalar_lea.vmem %s0, %s247
      %p249 = pneg %p39
      %p250 = pneg %p36
      %p251 = pneg %p60
      %p252 = pneg %p57
      %p253 = pneg %p81
      %p254 = pneg %p78
      %p255 = pneg %p102
      %p256 = pneg %p99
      %p257 = pneg %p123
      %p258 = pneg %p120
      %p259 = pneg %p144
      %p260 = pneg %p141
      %p261 = pneg %p165
      %p262 = pneg %p162
      %p263 = pneg %p191
      %p264 = pneg %p188
      %s265 = smul.u32 8, %s18
      %p266 = scmp.lt.s32.totalorder %s265, 15
      %s267 = scalar_select %p266, %s265, 15
      %s268 = smul.addr %s267, 8
      %s269 = scalar_lea.vmem %s7, %s268
      %s270 = smul.u32 8, %s18
      %p271 = scmp.lt.s32.totalorder %s270, 15
      %s272 = scalar_select %p271, %s270, 15
      %s273 = smul.addr %s272, 8
      %s274 = scalar_lea.vmem %s0, %s273
      %s275 = smul.u32 8, %s18
      %s276 = smul.u32 8, %s18
      %p277 = scmp.lt.s32.totalorder %s276, 15
      %s278 = scalar_select %p277, %s276, 15
      %s279 = smul.addr %s278, 8
      %s280 = scalar_lea.vmem %s7, %s279
      %s281 = smul.u32 8, %s18
      %v283 = vld [vmem:[%s274] sm:$0xff]
      %v284 = vld [vmem:[%s274 + $0x8] sm:$0xff]
      %v285 = vld [vmem:[%s274 + $0x10] sm:$0xff]
      %v286 = vld [vmem:[%s274 + $0x18] sm:$0xff]
      %v287 = vld [vmem:[%s274 + $0x20] sm:$0xff]
      %v288 = vld [vmem:[%s274 + $0x28] sm:$0xff]
      %v289 = vld [vmem:[%s274 + $0x30] sm:$0xff]
      %v290 = vld [vmem:[%s274 + $0x38] sm:$0xff]
      %vm291 = vcmask 523264
      %v292 = vsel %vm291, %v283, 0.0
      %293 = vadd.xlane.f32.xlu0 %v292
      %v294 = vpop.xlane.xlu0 %293
      %v295 = vsel %vm291, %v284, 0.0
      %296 = vadd.xlane.f32.xlu0 %v295
      %v297 = vpop.xlane.xlu0 %296
      %v298 = vsel %vm291, %v285, 0.0
      %299 = vadd.xlane.f32.xlu0 %v298
      %v300 = vpop.xlane.xlu0 %299
      %v301 = vsel %vm291, %v286, 0.0
      %302 = vadd.xlane.f32.xlu0 %v301
      %v303 = vpop.xlane.xlu0 %302
      %v304 = vsel %vm291, %v287, 0.0
      %305 = vadd.xlane.f32.xlu0 %v304
      %v306 = vpop.xlane.xlu0 %305
      %v307 = vsel %vm291, %v288, 0.0
      %308 = vadd.xlane.f32.xlu0 %v307
      %v309 = vpop.xlane.xlu0 %308
      %v310 = vsel %vm291, %v289, 0.0
      %311 = vadd.xlane.f32.xlu0 %v310
      %v312 = vpop.xlane.xlu0 %311
      %v313 = vsel %vm291, %v290, 0.0
      %314 = vadd.xlane.f32.xlu0 %v313
      %v315 = vpop.xlane.xlu0 %314
      %v316 = vrcp.pop 64.0
      %v317 = vmul.f32 %v294, %v316
      %v318 = vmul.f32 %v297, %v316
      %v319 = vmul.f32 %v300, %v316
      %v320 = vmul.f32 %v303, %v316
      %v321 = vmul.f32 %v306, %v316
      %v322 = vmul.f32 %v309, %v316
      %v323 = vmul.f32 %v312, %v316
      %v324 = vmul.f32 %v315, %v316
      %v325 = vsub.f32 %v283, %v317
      %v326 = vsub.f32 %v284, %v318
      %v327 = vsub.f32 %v285, %v319
      %v328 = vsub.f32 %v286, %v320
      %v329 = vsub.f32 %v287, %v321
      %v330 = vsub.f32 %v288, %v322
      %v331 = vsub.f32 %v289, %v323
      %v332 = vsub.f32 %v290, %v324
      %v333 = vmul.f32 %v325, %v325
      %v334 = vmul.f32 %v326, %v326
      %v335 = vmul.f32 %v327, %v327
      %v336 = vmul.f32 %v328, %v328
      %v337 = vmul.f32 %v329, %v329
      %v338 = vmul.f32 %v330, %v330
      %v339 = vmul.f32 %v331, %v331
      %v340 = vmul.f32 %v332, %v332
      %v341 = vsel %vm291, %v333, 0.0
      %342 = vadd.xlane.f32.xlu0 %v341
      %v343 = vpop.xlane.xlu0 %342
      %v344 = vsel %vm291, %v334, 0.0
      %345 = vadd.xlane.f32.xlu0 %v344
      %v346 = vpop.xlane.xlu0 %345
      %v347 = vsel %vm291, %v335, 0.0
      %348 = vadd.xlane.f32.xlu0 %v347
      %v349 = vpop.xlane.xlu0 %348
      %v350 = vsel %vm291, %v336, 0.0
      %351 = vadd.xlane.f32.xlu0 %v350
      %v352 = vpop.xlane.xlu0 %351
      %v353 = vsel %vm291, %v337, 0.0
      %354 = vadd.xlane.f32.xlu0 %v353
      %v355 = vpop.xlane.xlu0 %354
      %v356 = vsel %vm291, %v338, 0.0
      %357 = vadd.xlane.f32.xlu0 %v356
      %v358 = vpop.xlane.xlu0 %357
      %v359 = vsel %vm291, %v339, 0.0
      %360 = vadd.xlane.f32.xlu0 %v359
      %v361 = vpop.xlane.xlu0 %360
      %v362 = vsel %vm291, %v340, 0.0
      %363 = vadd.xlane.f32.xlu0 %v362
      %v364 = vpop.xlane.xlu0 %363
      %v365 = vmul.f32 %v343, %v316
      %v366 = vmul.f32 %v346, %v316
      %v367 = vmul.f32 %v349, %v316
      %v368 = vmul.f32 %v352, %v316
      %v369 = vmul.f32 %v355, %v316
      %v370 = vmul.f32 %v358, %v316
      %v371 = vmul.f32 %v361, %v316
      %v372 = vmul.f32 %v364, %v316
      %v373 = vadd.f32 %v365, 1e-05
      %v374 = vadd.f32 %v366, 1e-05
      %v375 = vadd.f32 %v367, 1e-05
      %v376 = vadd.f32 %v368, 1e-05
      %v377 = vadd.f32 %v369, 1e-05
      %v378 = vadd.f32 %v370, 1e-05
      %v379 = vadd.f32 %v371, 1e-05
      %v380 = vadd.f32 %v372, 1e-05
      %v381 = vrsqrt.pop %v373
      %v382 = vrsqrt.pop %v374
      %v383 = vrsqrt.pop %v375
      %v384 = vrsqrt.pop %v376
      %v385 = vrsqrt.pop %v377
      %v386 = vrsqrt.pop %v378
      %v387 = vrsqrt.pop %v379
      %v388 = vrsqrt.pop %v380
      %v389 = vmul.f32 %v325, %v381
      %v390 = vmul.f32 %v326, %v382
      %v391 = vmul.f32 %v327, %v383
      %v392 = vmul.f32 %v328, %v384
      %v393 = vmul.f32 %v329, %v385
      %v394 = vmul.f32 %v330, %v386
      %v395 = vmul.f32 %v331, %v387
      %v396 = vmul.f32 %v332, %v388
      %v397 = vld [vmem:[%s1] sm:$0x1]
      %v399 = vlaneseq
      %v400 = vshrl.u32 %v399, 7
      %v401 = vsub.s32 0, %v400
      %v402 = vrot.slane %v397, %v401
      %v404 = vmul.f32 %v389, %v402
      %v405 = vmul.f32 %v390, %v402
      %v406 = vmul.f32 %v391, %v402
      %v407 = vmul.f32 %v392, %v402
      %v408 = vmul.f32 %v393, %v402
      %v409 = vmul.f32 %v394, %v402
      %v410 = vmul.f32 %v395, %v402
      %v411 = vmul.f32 %v396, %v402
      %v412 = vld [vmem:[%s2] sm:$0x1]
      %v414 = vlaneseq
      %v415 = vshrl.u32 %v414, 7
      %v416 = vsub.s32 0, %v415
      %v417 = vrot.slane %v412, %v416
      %v419 = vadd.f32 %v404, %v417
      %v420 = vadd.f32 %v405, %v417
      %v421 = vadd.f32 %v406, %v417
      %v422 = vadd.f32 %v407, %v417
      %v423 = vadd.f32 %v408, %v417
      %v424 = vadd.f32 %v409, %v417
      %v425 = vadd.f32 %v410, %v417
      %v426 = vadd.f32 %v411, %v417
      %v427 = vpack.c.bf16 %v420, %v419
      %v428 = vpack.c.bf16 %v422, %v421
      %v429 = vpack.c.bf16 %v424, %v423
      %v430 = vpack.c.bf16 %v426, %v425
      %v431 = vld [vmem:[%s3] sm:$0xf]
      %v432 = vld [vmem:[%s3 + $0x4] sm:$0xf]
      %v433 = vld [vmem:[%s3 + $0x8] sm:$0xf]
      %v434 = vld [vmem:[%s3 + $0xc] sm:$0xf]
      %v435 = vld [vmem:[%s3 + $0x10] sm:$0xf]
      %v436 = vld [vmem:[%s3 + $0x14] sm:$0xf]
      %v437 = vld [vmem:[%s3 + $0x18] sm:$0xf]
      %v438 = vld [vmem:[%s3 + $0x1c] sm:$0xf]
      %v439 = vld [vmem:[%s4] sm:$0x1]
      %v441 = vlaneseq
      %v442 = vshrl.u32 %v441, 7
      %v443 = vsub.s32 0, %v442
      %v444 = vrot.slane %v439, %v443
      %v454 = vunpack.c.l.b16 %v431
      %v455 = vunpack.c.l.b16 %v432
      %v456 = vunpack.c.l.b16 %v433
      %v457 = vunpack.c.l.b16 %v434
      %v458 = vunpack.c.l.b16 %v435
      %v459 = vunpack.c.l.b16 %v436
      %v460 = vunpack.c.l.b16 %v437
      %v461 = vunpack.c.l.b16 %v438
      %v462 = vpack.c.b16 %v455, %v454
      %v463 = vpack.c.b16 %v457, %v456
      %v464 = vpack.c.b16 %v459, %v458
      %v465 = vpack.c.b16 %v461, %v460
      %v471 = vsel %vm291, %v427, 0
      %v474 = vsel %vm291, %v428, 0
      %v477 = vsel %vm291, %v429, 0
      %v480 = vsel %vm291, %v430, 0
      %482 = vmatprep.subr.bf16.mxu0 0
      %483 = vmatpush1.bf16.msra.mxu0 0
      %484 = vmatprep.subr.bf16.mxu0 0
      %485 = vmatpush1.bf16.msra.mxu0 0
      %486 = vmatprep.subr.bf16.mxu0 0
      %487 = vmatpush1.bf16.msra.mxu0 0
      %488 = vmatprep.subr.bf16.mxu0 0
      %489 = vmatpush1.bf16.msra.mxu0 0
      %490 = vmatprep.subr.bf16.mxu0 0
      %491 = vmatpush1.bf16.msra.mxu0 %v465
      %492 = vmatprep.subr.bf16.mxu0 0
      %493 = vmatpush1.bf16.msra.mxu0 %v464
      %494 = vmatprep.subr.bf16.mxu0 0
      %495 = vmatpush1.bf16.msra.mxu0 %v463
      %496 = vmatprep.subr.bf16.mxu0 0
      %497 = vmatpush1.bf16.msra.mxu0 %v462
      %498 = vmatprep.subr.bf16.mxu0 0
      %499 = vmatpush2.bf16.msra.mxu0 0
      %500 = vmatprep.subr.bf16.mxu0 0
      %501 = vmatpush2.bf16.msra.mxu0 0
      %502 = vmatprep.subr.bf16.mxu0 0
      %503 = vmatpush2.bf16.msra.mxu0 0
      %504 = vmatprep.subr.bf16.mxu0 0
      %505 = vmatpush2.bf16.msra.mxu0 0
      %506 = vmatprep.subr.bf16.mxu0 0
      %507 = vmatpush2.bf16.msra.mxu0 0
      %508 = vmatprep.subr.bf16.mxu0 0
      %509 = vmatpush2.bf16.msra.mxu0 0
      %510 = vmatprep.subr.bf16.mxu0 0
      %511 = vmatpush2.bf16.msra.mxu0 0
      %512 = vmatprep.subr.bf16.mxu0 0
      %513 = vmatpush2.bf16.msra.mxu0 0
      %514 = vmatprep.mubr.bf16.mxu0 0
      %515 = vmatmul.mubr.bf16.gmra.mxu0 %v471
      %v516 = vpop.f32.mrf.mxu0
      %v517 = vadd.f32 %v444, %v516
      %v518 = vpop.f32.mrf.mxu0
      %v519 = vpop.f32.mrf.mxu0
      %v520 = vadd.f32 %v444, %v519
      %v521 = vpop.f32.mrf.mxu0
      %522 = vmatprep.mubr.bf16.mxu0 0
      %523 = vmatmul.mubr.bf16.gmra.mxu0 %v474
      %v524 = vpop.f32.mrf.mxu0
      %v525 = vadd.f32 %v444, %v524
      %v526 = vpop.f32.mrf.mxu0
      %v527 = vpop.f32.mrf.mxu0
      %v528 = vadd.f32 %v444, %v527
      %v529 = vpop.f32.mrf.mxu0
      %530 = vmatprep.mubr.bf16.mxu0 0
      %531 = vmatmul.mubr.bf16.gmra.mxu0 %v477
      %v532 = vpop.f32.mrf.mxu0
      %v533 = vadd.f32 %v444, %v532
      %v534 = vpop.f32.mrf.mxu0
      %v535 = vpop.f32.mrf.mxu0
      %v536 = vadd.f32 %v444, %v535
      %v537 = vpop.f32.mrf.mxu0
      %538 = vmatprep.mubr.bf16.mxu0 0
      %539 = vmatmul.mubr.bf16.gmra.mxu0 %v480
      %v540 = vpop.f32.mrf.mxu0
      %v541 = vadd.f32 %v444, %v540
      %v542 = vpop.f32.mrf.mxu0
      %v543 = vpop.f32.mrf.mxu0
      %v544 = vadd.f32 %v444, %v543
      %v545 = vpop.f32.mrf.mxu0
      %546 = vdwg.mxu0
      %v547 = vmul.f32 %v517, 0.5
      %v548 = vmul.f32 %v520, 0.5
      %v549 = vmul.f32 %v525, 0.5
      %v550 = vmul.f32 %v528, 0.5
      %v551 = vmul.f32 %v533, 0.5
      %v552 = vmul.f32 %v536, 0.5
      %v553 = vmul.f32 %v541, 0.5
      %v554 = vmul.f32 %v544, 0.5
      %v555 = vmul.f32 %v517, 0.044715
      %v556 = vmul.f32 %v520, 0.044715
      %v557 = vmul.f32 %v525, 0.044715
      %v558 = vmul.f32 %v528, 0.044715
      %v559 = vmul.f32 %v533, 0.044715
      %v560 = vmul.f32 %v536, 0.044715
      %v561 = vmul.f32 %v541, 0.044715
      %v562 = vmul.f32 %v544, 0.044715
      %v563 = vmul.f32 %v555, %v517
      %v564 = vmul.f32 %v556, %v520
      %v565 = vmul.f32 %v557, %v525
      %v566 = vmul.f32 %v558, %v528
      %v567 = vmul.f32 %v559, %v533
      %v568 = vmul.f32 %v560, %v536
      %v569 = vmul.f32 %v561, %v541
      %v570 = vmul.f32 %v562, %v544
      %v571 = vmul.f32 %v563, %v517
      %v572 = vmul.f32 %v564, %v520
      %v573 = vmul.f32 %v565, %v525
      %v574 = vmul.f32 %v566, %v528
      %v575 = vmul.f32 %v567, %v533
      %v576 = vmul.f32 %v568, %v536
      %v577 = vmul.f32 %v569, %v541
      %v578 = vmul.f32 %v570, %v544
      %v579 = vadd.f32 %v517, %v571
      %v580 = vadd.f32 %v520, %v572
      %v581 = vadd.f32 %v525, %v573
      %v582 = vadd.f32 %v528, %v574
      %v583 = vadd.f32 %v533, %v575
      %v584 = vadd.f32 %v536, %v576
      %v585 = vadd.f32 %v541, %v577
      %v586 = vadd.f32 %v544, %v578
      %v587 = vmul.f32 %v579, 0.7978846
      %v588 = vmul.f32 %v580, 0.7978846
      %v589 = vmul.f32 %v581, 0.7978846
      %v590 = vmul.f32 %v582, 0.7978846
      %v591 = vmul.f32 %v583, 0.7978846
      %v592 = vmul.f32 %v584, 0.7978846
      %v593 = vmul.f32 %v585, 0.7978846
      %v594 = vmul.f32 %v586, 0.7978846
      %v595 = vtanh.pop %v587
      %v596 = vtanh.pop %v588
      %v597 = vtanh.pop %v589
      %v598 = vtanh.pop %v590
      %v599 = vtanh.pop %v591
      %v600 = vtanh.pop %v592
      %v601 = vtanh.pop %v593
      %v602 = vtanh.pop %v594
      %v603 = vadd.f32 %v595, 1.0
      %v604 = vadd.f32 %v596, 1.0
      %v605 = vadd.f32 %v597, 1.0
      %v606 = vadd.f32 %v598, 1.0
      %v607 = vadd.f32 %v599, 1.0
      %v608 = vadd.f32 %v600, 1.0
      %v609 = vadd.f32 %v601, 1.0
      %v610 = vadd.f32 %v602, 1.0
      %v611 = vmul.f32 %v547, %v603
      %v612 = vmul.f32 %v548, %v604
      %v613 = vmul.f32 %v549, %v605
      %v614 = vmul.f32 %v550, %v606
      %v615 = vmul.f32 %v551, %v607
      %v616 = vmul.f32 %v552, %v608
      %v617 = vmul.f32 %v553, %v609
      %v618 = vmul.f32 %v554, %v610
      %v619 = vpack.c.bf16 %v612, %v611
      %v620 = vpack.c.bf16 %v614, %v613
      %v621 = vpack.c.bf16 %v616, %v615
      %v622 = vpack.c.bf16 %v618, %v617
      %v623 = vld [vmem:[%s5] sm:$0xf]
      %v624 = vld [vmem:[%s5 + $0x4] sm:$0xf]
      %v625 = vld [vmem:[%s5 + $0x8] sm:$0xf]
      %v626 = vld [vmem:[%s5 + $0xc] sm:$0xf]
      %v627 = vld [vmem:[%s5 + $0x10] sm:$0xf]
      %v628 = vld [vmem:[%s5 + $0x14] sm:$0xf]
      %v629 = vld [vmem:[%s5 + $0x18] sm:$0xf]
      %v630 = vld [vmem:[%s5 + $0x1c] sm:$0xf]
      %v631 = vld [vmem:[%s5 + $0x20] sm:$0xf]
      %v632 = vld [vmem:[%s5 + $0x24] sm:$0xf]
      %v633 = vld [vmem:[%s5 + $0x28] sm:$0xf]
      %v634 = vld [vmem:[%s5 + $0x2c] sm:$0xf]
      %v635 = vld [vmem:[%s5 + $0x30] sm:$0xf]
      %v636 = vld [vmem:[%s5 + $0x34] sm:$0xf]
      %v637 = vld [vmem:[%s5 + $0x38] sm:$0xf]
      %v638 = vld [vmem:[%s5 + $0x3c] sm:$0xf]
      %v639 = vld [vmem:[%s6] sm:$0x1]
      %v641 = vlaneseq
      %v642 = vshrl.u32 %v641, 7
      %v643 = vsub.s32 0, %v642
      %v644 = vrot.slane %v639, %v643
      %v662 = vunpack.c.l.b16 %v623
      %v663 = vunpack.c.l.b16 %v624
      %v664 = vunpack.c.l.b16 %v625
      %v665 = vunpack.c.l.b16 %v626
      %v666 = vunpack.c.l.b16 %v627
      %v667 = vunpack.c.l.b16 %v628
      %v668 = vunpack.c.l.b16 %v629
      %v669 = vunpack.c.l.b16 %v630
      %v670 = vunpack.c.l.b16 %v631
      %v671 = vunpack.c.l.b16 %v632
      %v672 = vunpack.c.l.b16 %v633
      %v673 = vunpack.c.l.b16 %v634
      %v674 = vunpack.c.l.b16 %v635
      %v675 = vunpack.c.l.b16 %v636
      %v676 = vunpack.c.l.b16 %v637
      %v677 = vunpack.c.l.b16 %v638
      %v678 = vpack.c.b16 %v663, %v662
      %v679 = vpack.c.b16 %v665, %v664
      %v680 = vpack.c.b16 %v667, %v666
      %v681 = vpack.c.b16 %v669, %v668
      %v682 = vpack.c.b16 %v671, %v670
      %v683 = vpack.c.b16 %v673, %v672
      %v684 = vpack.c.b16 %v675, %v674
      %v685 = vpack.c.b16 %v677, %v676
      %694 = vmatprep.subr.bf16.mxu0 0
      %695 = vmatpush1.bf16.msra.mxu0 %v685
      %696 = vmatprep.subr.bf16.mxu0 0
      %697 = vmatpush1.bf16.msra.mxu0 %v684
      %698 = vmatprep.subr.bf16.mxu0 0
      %699 = vmatpush1.bf16.msra.mxu0 %v683
      %700 = vmatprep.subr.bf16.mxu0 0
      %701 = vmatpush1.bf16.msra.mxu0 %v682
      %702 = vmatprep.subr.bf16.mxu0 0
      %703 = vmatpush1.bf16.msra.mxu0 %v681
      %704 = vmatprep.subr.bf16.mxu0 0
      %705 = vmatpush1.bf16.msra.mxu0 %v680
      %706 = vmatprep.subr.bf16.mxu0 0
      %707 = vmatpush1.bf16.msra.mxu0 %v679
      %708 = vmatprep.subr.bf16.mxu0 0
      %709 = vmatpush1.bf16.msra.mxu0 %v678
      %710 = vmatprep.subr.bf16.mxu0 0
      %711 = vmatpush2.bf16.msra.mxu0 0
      %712 = vmatprep.subr.bf16.mxu0 0
      %713 = vmatpush2.bf16.msra.mxu0 0
      %714 = vmatprep.subr.bf16.mxu0 0
      %715 = vmatpush2.bf16.msra.mxu0 0
      %716 = vmatprep.subr.bf16.mxu0 0
      %717 = vmatpush2.bf16.msra.mxu0 0
      %718 = vmatprep.subr.bf16.mxu0 0
      %719 = vmatpush2.bf16.msra.mxu0 0
      %720 = vmatprep.subr.bf16.mxu0 0
      %721 = vmatpush2.bf16.msra.mxu0 0
      %722 = vmatprep.subr.bf16.mxu0 0
      %723 = vmatpush2.bf16.msra.mxu0 0
      %724 = vmatprep.subr.bf16.mxu0 0
      %725 = vmatpush2.bf16.msra.mxu0 0
      %726 = vmatprep.mubr.bf16.mxu0 0
      %727 = vmatmul.mubr.bf16.gmra.mxu0 %v619
      %v728 = vpop.f32.mrf.mxu0
      %v729 = vadd.f32 %v644, %v728
      %v730 = vpop.f32.mrf.mxu0
      %v731 = vpop.f32.mrf.mxu0
      %v732 = vadd.f32 %v644, %v731
      %v733 = vpop.f32.mrf.mxu0
      %734 = vmatprep.mubr.bf16.mxu0 0
      %735 = vmatmul.mubr.bf16.gmra.mxu0 %v620
      %v736 = vpop.f32.mrf.mxu0
      %v737 = vadd.f32 %v644, %v736
      %v738 = vpop.f32.mrf.mxu0
      %v739 = vpop.f32.mrf.mxu0
      %v740 = vadd.f32 %v644, %v739
      %v741 = vpop.f32.mrf.mxu0
      %742 = vmatprep.mubr.bf16.mxu0 0
      %743 = vmatmul.mubr.bf16.gmra.mxu0 %v621
      %v744 = vpop.f32.mrf.mxu0
      %v745 = vadd.f32 %v644, %v744
      %v746 = vpop.f32.mrf.mxu0
      %v747 = vpop.f32.mrf.mxu0
      %v748 = vadd.f32 %v644, %v747
      %v749 = vpop.f32.mrf.mxu0
      %750 = vmatprep.mubr.bf16.mxu0 0
      %751 = vmatmul.mubr.bf16.gmra.mxu0 %v622
      %v752 = vpop.f32.mrf.mxu0
      %v753 = vadd.f32 %v644, %v752
      %v754 = vpop.f32.mrf.mxu0
      %v755 = vpop.f32.mrf.mxu0
      %v756 = vadd.f32 %v644, %v755
      %v757 = vpop.f32.mrf.mxu0
      %758 = vdwg.mxu0
      %v759 = vadd.f32 %v729, %v283
      %v760 = vadd.f32 %v732, %v284
      %v761 = vadd.f32 %v737, %v285
      %v762 = vadd.f32 %v740, %v286
      %v763 = vadd.f32 %v745, %v287
      %v764 = vadd.f32 %v748, %v288
      %v765 = vadd.f32 %v753, %v289
      %v766 = vadd.f32 %v756, %v290
      %767 = vst.msk [vmem:[%s280] sm:$0xff] %vm291, %v759
      %768 = vst.msk [vmem:[%s280 + $0x8] sm:$0xff] %vm291, %v760
      %769 = vst.msk [vmem:[%s280 + $0x10] sm:$0xff] %vm291, %v761
      %770 = vst.msk [vmem:[%s280 + $0x18] sm:$0xff] %vm291, %v762
      %771 = vst.msk [vmem:[%s280 + $0x20] sm:$0xff] %vm291, %v763
      %772 = vst.msk [vmem:[%s280 + $0x28] sm:$0xff] %vm291, %v764
      %773 = vst.msk [vmem:[%s280 + $0x30] sm:$0xff] %vm291, %v765
      %774 = vst.msk [vmem:[%s280 + $0x38] sm:$0xff] %vm291, %v766
      %s775 = smul.u32 8, %s18
      %p776 = scmp.lt.s32.totalorder %s775, 15
      %s777 = scalar_select %p776, %s775, 15
      %s778 = smul.addr %s777, 8
      %s779 = scalar_lea.vmem %s7, %s778
      // Predicated region
      $region49: #{forward.10} parent=47 // pred_check
        %p780 = pneg %p188
      $region50: #{forward.10} parent=47 // pred_check_branch
        %782 = sbr.rel (%p780) target = $region52
      $region51: #{forward.10} parent=47 // pred_region
        %s783 = smul.u32 8, %s18
      $region52: #{forward.10} parent=47 // pred_fallthru
        _
    $region48: #{forward.10} parent=5 // pred_fallthru
      _
    %p784 = scmp.le.s32.totalorder 2, %s13
    // Predicated region
    $region53: #{forward.10} parent=5 // pred_check
      %p785 = pneg %p784
    $region54: #{forward.10} parent=5 // pred_check_branch
      %787 = sbr.rel (%p785) target = $region56
    $region55: #{forward.10} parent=5 // pred_region
      %s788 = ssub.s32 %s13, 2
      // Predicated region
      $region57: #{forward.10} parent=55 // pred_check
        %p789 = pneg %p194
      $region58: #{forward.10} parent=55 // pred_check_branch
        %791 = sbr.rel (%p789) target = $region60
      $region59: #{forward.10} parent=55 // pred_region
        %s792 = smul.u32 8, %s19
        %p793 = scmp.lt.s32.totalorder %s792, 15
        %s794 = scalar_select %p793, %s792, 15
        %s795 = smul.addr %s794, 8
        %s796 = scalar_lea.vmem %s7, %s795
      $region60: #{forward.10} parent=55 // pred_fallthru
        _
    $region56: #{forward.10} parent=5 // pred_fallthru
      _
  $region6: #{forward.10} parent=0 // loop_footer
    %s17 = sadd.s32 1, %s13
  $region7: #{forward.10} parent=0 // loop_footer_branch
    %12 = sbr.rel target = $region3
  $region8: #{forward.10} parent=0 // loop_exit
    _

// kernel: forward.13
$region0: #{forward.13}
  #allocation0 [shape = 'u32[]', space=smem, size = 0x4, offset = 0x4, fixed_abs, tag = 'smem constant byte address 0x4 - core index']
  #allocation1 [shape = 'u32[144,128]{1,0:T(1,128)}', space=vmem, size = 0x12000, scoped, tag = 'internal scratch']
  %s0 = inlined_call_operand.vmem [shape: f32[128,64], index: 0, kind: input, shape index: {}]
  %s1 = inlined_call_operand.vmem [shape: f32[1,64], index: 1, kind: input, shape index: {}]
  %s2 = inlined_call_operand.vmem [shape: f32[1,64], index: 2, kind: input, shape index: {}]
  %s3 = inlined_call_operand.vmem [shape: bf16[64,256], index: 3, kind: input, shape index: {}]
  %s4 = inlined_call_operand.vmem [shape: f32[1,256], index: 4, kind: input, shape index: {}]
  %s5 = inlined_call_operand.vmem [shape: bf16[256,64], index: 5, kind: input, shape index: {}]
  %s6 = inlined_call_operand.vmem [shape: f32[1,64], index: 6, kind: input, shape index: {}]
  %s7 = inlined_call_operand.hbm [shape: f32[128,64], index: 7, kind: output, shape index: {}]
  %s8 = sld [smem:[#allocation0]]
  $region61: #{forward.13} parent=0
    _
  %s10 = ssub.s32 1, %s8
  %s11 = scalar_select 0, %s10, %s8
  $region1: #{forward.13} parent=0
    #allocation2 [shape = 'u8[65536]{0}', space=vmem, size = 0x10000, scoped, tag = 'output window, operand 0']
    #allocation3 [shape = 's32[2]{0}', space=sflag, size = 0x8, scoped, tag = 'scoped memory for forward.13']
    %12 = vsyncpa [#allocation3], 0
    %s13 = scalar_lea.sflag [#allocation3], 1
    %14 = vsyncpa %s13, 0
    loop: start=0, step=1, limit=4
    $region2: #{forward.13} parent=1 // loop_pre_header
      _
    $region3: #{forward.13} parent=1 // loop_header
      %s16 = sphi 0, %s20
      %p17 = scmp.ge.s32.totalorder %s16, 4
      %s26 = sphi 0, %s28
      %s29 = sphi 0, %s26
      %s30 = sphi 0, %s29
      %s46 = sphi 0, %s30
      %s50 = sphi 0, %s50
      %s52 = sphi 0, %s50
      %s53 = sphi 0, %s52
      %s67 = sphi 0, %s53
      %s71 = sphi 0, %s71
      %s73 = sphi 0, %s71
      %s74 = sphi 0, %s73
      %s88 = sphi 0, %s74
      %s92 = sphi 0, %s92
      %s94 = sphi 0, %s92
      %s95 = sphi 0, %s94
      %s109 = sphi 0, %s95
      %s113 = sphi 0, %s113
      %s115 = sphi 0, %s113
      %s116 = sphi 0, %s115
      %s130 = sphi 0, %s116
      %s134 = sphi 0, %s134
      %s136 = sphi 0, %s134
      %s137 = sphi 0, %s136
      %s151 = sphi 0, %s137
      %s155 = sphi 0, %s155
      %s157 = sphi 0, %s155
      %s158 = sphi 0, %s157
      %s172 = sphi 0, %s158
      %s178 = sphi 0, %s180
      %s181 = sphi 0, %s178
      %s182 = sphi 0, %s181
      %s198 = sphi 0, %s182
    $region4: #{forward.13} parent=1 // loop_header_branch
      %19 = sbr.rel (%p17) target = $region8
    $region5: #{forward.13} parent=1 // loop_body
      %s21 = ssub.s32 %s16, 1
      %s22 = ssub.s32 %s16, 2
      %s23 = sadd.s32 %s16, 1
      %s24 = ssub.s32 %s16, %s23
      %p25 = scmp.eq.s32.totalorder %s24, 0
      %s27 = sadd.s32 %s26, 1
      %s28 = scalar_select %p25, %s26, %s27
      %p31 = pneg %p25
      %p32 = scmp.eq.s32.totalorder %s16, 1
      %p33 = por %p31, %p32
      %p34 = scmp.ne.s32.totalorder %s26, %s29
      %p35 = scmp.eq.s32.totalorder %s16, 0
      %p36 = por %p34, %p35
      %p37 = scmp.ne.s32.totalorder %s26, %s29
      %p38 = scmp.eq.s32.totalorder %s21, 1
      %p39 = por %p37, %p38
      %p40 = scmp.ne.s32.totalorder %s29, %s30
      %p41 = scmp.eq.s32.totalorder %s21, 0
      %p42 = por %p40, %p41
      %p43 = scmp.ne.s32.totalorder %s29, %s30
      %p44 = scmp.eq.s32.totalorder %s22, 1
      %p45 = por %p43, %p44
      %p47 = scmp.ne.s32.totalorder %s30, %s46
      %p48 = scmp.eq.s32.totalorder %s22, 0
      %p49 = por %p47, %p48
      %s51 = sadd.s32 %s50, 1
      %p54 = scmp.eq.s32.totalorder %s16, 1
      %p55 = scmp.ne.s32.totalorder %s50, %s52
      %p56 = scmp.eq.s32.totalorder %s16, 0
      %p57 = por %p55, %p56
      %p58 = scmp.ne.s32.totalorder %s50, %s52
      %p59 = scmp.eq.s32.totalorder %s21, 1
      %p60 = por %p58, %p59
      %p61 = scmp.ne.s32.totalorder %s52, %s53
      %p62 = scmp.eq.s32.totalorder %s21, 0
      %p63 = por %p61, %p62
      %p64 = scmp.ne.s32.totalorder %s52, %s53
      %p65 = scmp.eq.s32.totalorder %s22, 1
      %p66 = por %p64, %p65
      %p68 = scmp.ne.s32.totalorder %s53, %s67
      %p69 = scmp.eq.s32.totalorder %s22, 0
      %p70 = por %p68, %p69
      %s72 = sadd.s32 %s71, 1
      %p75 = scmp.eq.s32.totalorder %s16, 1
      %p76 = scmp.ne.s32.totalorder %s71, %s73
      %p77 = scmp.eq.s32.totalorder %s16, 0
      %p78 = por %p76, %p77
      %p79 = scmp.ne.s32.totalorder %s71, %s73
      %p80 = scmp.eq.s32.totalorder %s21, 1
      %p81 = por %p79, %p80
      %p82 = scmp.ne.s32.totalorder %s73, %s74
      %p83 = scmp.eq.s32.totalorder %s21, 0
      %p84 = por %p82, %p83
      %p85 = scmp.ne.s32.totalorder %s73, %s74
      %p86 = scmp.eq.s32.totalorder %s22, 1
      %p87 = por %p85, %p86
      %p89 = scmp.ne.s32.totalorder %s74, %s88
      %p90 = scmp.eq.s32.totalorder %s22, 0
      %p91 = por %p89, %p90
      %s93 = sadd.s32 %s92, 1
      %p96 = scmp.eq.s32.totalorder %s16, 1
      %p97 = scmp.ne.s32.totalorder %s92, %s94
      %p98 = scmp.eq.s32.totalorder %s16, 0
      %p99 = por %p97, %p98
      %p100 = scmp.ne.s32.totalorder %s92, %s94
      %p101 = scmp.eq.s32.totalorder %s21, 1
      %p102 = por %p100, %p101
      %p103 = scmp.ne.s32.totalorder %s94, %s95
      %p104 = scmp.eq.s32.totalorder %s21, 0
      %p105 = por %p103, %p104
      %p106 = scmp.ne.s32.totalorder %s94, %s95
      %p107 = scmp.eq.s32.totalorder %s22, 1
      %p108 = por %p106, %p107
      %p110 = scmp.ne.s32.totalorder %s95, %s109
      %p111 = scmp.eq.s32.totalorder %s22, 0
      %p112 = por %p110, %p111
      %s114 = sadd.s32 %s113, 1
      %p117 = scmp.eq.s32.totalorder %s16, 1
      %p118 = scmp.ne.s32.totalorder %s113, %s115
      %p119 = scmp.eq.s32.totalorder %s16, 0
      %p120 = por %p118, %p119
      %p121 = scmp.ne.s32.totalorder %s113, %s115
      %p122 = scmp.eq.s32.totalorder %s21, 1
      %p123 = por %p121, %p122
      %p124 = scmp.ne.s32.totalorder %s115, %s116
      %p125 = scmp.eq.s32.totalorder %s21, 0
      %p126 = por %p124, %p125
      %p127 = scmp.ne.s32.totalorder %s115, %s116
      %p128 = scmp.eq.s32.totalorder %s22, 1
      %p129 = por %p127, %p128
      %p131 = scmp.ne.s32.totalorder %s116, %s130
      %p132 = scmp.eq.s32.totalorder %s22, 0
      %p133 = por %p131, %p132
      %s135 = sadd.s32 %s134, 1
      %p138 = scmp.eq.s32.totalorder %s16, 1
      %p139 = scmp.ne.s32.totalorder %s134, %s136
      %p140 = scmp.eq.s32.totalorder %s16, 0
      %p141 = por %p139, %p140
      %p142 = scmp.ne.s32.totalorder %s134, %s136
      %p143 = scmp.eq.s32.totalorder %s21, 1
      %p144 = por %p142, %p143
      %p145 = scmp.ne.s32.totalorder %s136, %s137
      %p146 = scmp.eq.s32.totalorder %s21, 0
      %p147 = por %p145, %p146
      %p148 = scmp.ne.s32.totalorder %s136, %s137
      %p149 = scmp.eq.s32.totalorder %s22, 1
      %p150 = por %p148, %p149
      %p152 = scmp.ne.s32.totalorder %s137, %s151
      %p153 = scmp.eq.s32.totalorder %s22, 0
      %p154 = por %p152, %p153
      %s156 = sadd.s32 %s155, 1
      %p159 = scmp.eq.s32.totalorder %s16, 1
      %p160 = scmp.ne.s32.totalorder %s155, %s157
      %p161 = scmp.eq.s32.totalorder %s16, 0
      %p162 = por %p160, %p161
      %p163 = scmp.ne.s32.totalorder %s155, %s157
      %p164 = scmp.eq.s32.totalorder %s21, 1
      %p165 = por %p163, %p164
      %p166 = scmp.ne.s32.totalorder %s157, %s158
      %p167 = scmp.eq.s32.totalorder %s21, 0
      %p168 = por %p166, %p167
      %p169 = scmp.ne.s32.totalorder %s157, %s158
      %p170 = scmp.eq.s32.totalorder %s22, 1
      %p171 = por %p169, %p170
      %p173 = scmp.ne.s32.totalorder %s158, %s172
      %p174 = scmp.eq.s32.totalorder %s22, 0
      %p175 = por %p173, %p174
      %s176 = ssub.s32 %s16, %s23
      %p177 = scmp.eq.s32.totalorder %s176, 0
      %s179 = sadd.s32 %s178, 1
      %s180 = scalar_select %p177, %s178, %s179
      %p183 = pneg %p177
      %p184 = scmp.eq.s32.totalorder %s16, 1
      %p185 = por %p183, %p184
      %p186 = scmp.ne.s32.totalorder %s178, %s181
      %p187 = scmp.eq.s32.totalorder %s16, 0
      %p188 = por %p186, %p187
      %p189 = scmp.ne.s32.totalorder %s178, %s181
      %p190 = scmp.eq.s32.totalorder %s21, 1
      %p191 = por %p189, %p190
      %p192 = scmp.ne.s32.totalorder %s181, %s182
      %p193 = scmp.eq.s32.totalorder %s21, 0
      %p194 = por %p192, %p193
      %p195 = scmp.ne.s32.totalorder %s181, %s182
      %p196 = scmp.eq.s32.totalorder %s22, 1
      %p197 = por %p195, %p196
      %p199 = scmp.ne.s32.totalorder %s182, %s198
      %p200 = scmp.eq.s32.totalorder %s22, 0
      %p201 = por %p199, %p200
      %p202 = scmp.le.s32.totalorder 1, %s16
      %p203 = scmp.lt.s32.totalorder %s16, 3
      %p204 = pnand %p202, %p203
      %p205 = pneg %p204
      // Predicated region
      $region9: #{forward.13} parent=5 // pred_check
        _
      $region10: #{forward.13} parent=5 // pred_check_branch
        %207 = sbr.rel (%p204) target = $region12
      $region11: #{forward.13} parent=5 // pred_region
        %s208 = ssub.s32 %s16, 1
        // Predicated region
        $region13: #{forward.13} parent=11 // pred_check
          %p209 = pneg %p63
        $region14: #{forward.13} parent=11 // pred_check_branch
          %211 = sbr.rel (%p209) target = $region16
        $region15: #{forward.13} parent=11 // pred_region
          _
        $region16: #{forward.13} parent=11 // pred_fallthru
          _
        // Predicated region
        $region17: #{forward.13} parent=11 // pred_check
          %p212 = pneg %p84
        $region18: #{forward.13} parent=11 // pred_check_branch
          %214 = sbr.rel (%p212) target = $region20
        $region19: #{forward.13} parent=11 // pred_region
          _
        $region20: #{forward.13} parent=11 // pred_fallthru
          _
        // Predicated region
        $region21: #{forward.13} parent=11 // pred_check
          %p215 = pneg %p105
        $region22: #{forward.13} parent=11 // pred_check_branch
          %217 = sbr.rel (%p215) target = $region24
        $region23: #{forward.13} parent=11 // pred_region
          _
        $region24: #{forward.13} parent=11 // pred_fallthru
          _
        // Predicated region
        $region25: #{forward.13} parent=11 // pred_check
          %p218 = pneg %p126
        $region26: #{forward.13} parent=11 // pred_check_branch
          %220 = sbr.rel (%p218) target = $region28
        $region27: #{forward.13} parent=11 // pred_region
          _
        $region28: #{forward.13} parent=11 // pred_fallthru
          _
        // Predicated region
        $region29: #{forward.13} parent=11 // pred_check
          %p221 = pneg %p147
        $region30: #{forward.13} parent=11 // pred_check_branch
          %223 = sbr.rel (%p221) target = $region32
        $region31: #{forward.13} parent=11 // pred_region
          _
        $region32: #{forward.13} parent=11 // pred_fallthru
          _
        // Predicated region
        $region33: #{forward.13} parent=11 // pred_check
          %p224 = pneg %p168
        $region34: #{forward.13} parent=11 // pred_check_branch
          %226 = sbr.rel (%p224) target = $region36
        $region35: #{forward.13} parent=11 // pred_region
          _
        $region36: #{forward.13} parent=11 // pred_fallthru
          _
      $region12: #{forward.13} parent=5 // pred_fallthru
        _
      %p227 = scmp.lt.s32.totalorder %s16, 2
      // Predicated region
      $region37: #{forward.13} parent=5 // pred_check
        %p228 = pneg %p227
      $region38: #{forward.13} parent=5 // pred_check_branch
        %230 = sbr.rel (%p228) target = $region40
      $region39: #{forward.13} parent=5 // pred_region
        // Predicated region
        $region41: #{forward.13} parent=39 // pred_check
          %p231 = pneg %p36
        $region42: #{forward.13} parent=39 // pred_check_branch
          %233 = sbr.rel (%p231) target = $region44
        $region43: #{forward.13} parent=39 // pred_region
          %s234 = smul.u32 8, %s16
          %p235 = scmp.lt.s32.totalorder %s234, 15
          %s236 = scalar_select %p235, %s234, 15
          %s237 = smul.addr %s236, 8
          %s238 = scalar_lea.vmem %s0, %s237
          %s239 = smul.u32 8, %s16
        $region44: #{forward.13} parent=39 // pred_fallthru
          _
      $region40: #{forward.13} parent=5 // pred_fallthru
        _
      %p240 = scmp.le.s32.totalorder 1, %s16
      %p241 = scmp.lt.s32.totalorder %s16, 3
      %p242 = pnand %p240, %p241
      %p243 = pneg %p242
      // Predicated region
      $region45: #{forward.13} parent=5 // pred_check
        _
      $region46: #{forward.13} parent=5 // pred_check_branch
        %245 = sbr.rel (%p242) target = $region48
      $region47: #{forward.13} parent=5 // pred_region
        %s246 = ssub.s32 %s16, 1
        %s247 = smul.u32 8, %s21
        %p248 = scmp.lt.s32.totalorder %s247, 15
        %s249 = scalar_select %p248, %s247, 15
        %s250 = smul.addr %s249, 8
        %s251 = scalar_lea.vmem %s0, %s250
        %p252 = pneg %p42
        %p253 = pneg %p39
        %p254 = pneg %p63
        %p255 = pneg %p60
        %p256 = pneg %p84
        %p257 = pneg %p81
        %p258 = pneg %p105
        %p259 = pneg %p102
        %p260 = pneg %p126
        %p261 = pneg %p123
        %p262 = pneg %p147
        %p263 = pneg %p144
        %p264 = pneg %p168
        %p265 = pneg %p165
        %p266 = pneg %p194
        %p267 = pneg %p191
        %s268 = sand.u32 %s181, 1
        %s269 = scalar_lea.sflag [#allocation3], %s268
        %s270 = sand.u32 %s181, 1
        %s271 = smul.addr %s270, 64
        %s272 = scalar_lea.vmem [#allocation2], %s271
        %s273 = smul.u32 8, %s21
        %p274 = scmp.lt.s32.totalorder %s273, 15
        %s275 = scalar_select %p274, %s273, 15
        %s276 = smul.addr %s275, 8
        %s277 = scalar_lea.vmem %s0, %s276
        %s278 = smul.u32 8, %s21
        %s279 = smul.u32 8, %s21
        %v281 = vld [vmem:[%s277] sm:$0xff]
        %v282 = vld [vmem:[%s277 + $0x8] sm:$0xff]
        %v283 = vld [vmem:[%s277 + $0x10] sm:$0xff]
        %v284 = vld [vmem:[%s277 + $0x18] sm:$0xff]
        %v285 = vld [vmem:[%s277 + $0x20] sm:$0xff]
        %v286 = vld [vmem:[%s277 + $0x28] sm:$0xff]
        %v287 = vld [vmem:[%s277 + $0x30] sm:$0xff]
        %v288 = vld [vmem:[%s277 + $0x38] sm:$0xff]
        %vm289 = vcmask 523264
        %v290 = vsel %vm289, %v281, 0.0
        %291 = vadd.xlane.f32.xlu0 %v290
        %v292 = vpop.xlane.xlu0 %291
        %v293 = vsel %vm289, %v282, 0.0
        %294 = vadd.xlane.f32.xlu0 %v293
        %v295 = vpop.xlane.xlu0 %294
        %v296 = vsel %vm289, %v283, 0.0
        %297 = vadd.xlane.f32.xlu0 %v296
        %v298 = vpop.xlane.xlu0 %297
        %v299 = vsel %vm289, %v284, 0.0
        %300 = vadd.xlane.f32.xlu0 %v299
        %v301 = vpop.xlane.xlu0 %300
        %v302 = vsel %vm289, %v285, 0.0
        %303 = vadd.xlane.f32.xlu0 %v302
        %v304 = vpop.xlane.xlu0 %303
        %v305 = vsel %vm289, %v286, 0.0
        %306 = vadd.xlane.f32.xlu0 %v305
        %v307 = vpop.xlane.xlu0 %306
        %v308 = vsel %vm289, %v287, 0.0
        %309 = vadd.xlane.f32.xlu0 %v308
        %v310 = vpop.xlane.xlu0 %309
        %v311 = vsel %vm289, %v288, 0.0
        %312 = vadd.xlane.f32.xlu0 %v311
        %v313 = vpop.xlane.xlu0 %312
        %v314 = vrcp.pop 64.0
        %v315 = vmul.f32 %v292, %v314
        %v316 = vmul.f32 %v295, %v314
        %v317 = vmul.f32 %v298, %v314
        %v318 = vmul.f32 %v301, %v314
        %v319 = vmul.f32 %v304, %v314
        %v320 = vmul.f32 %v307, %v314
        %v321 = vmul.f32 %v310, %v314
        %v322 = vmul.f32 %v313, %v314
        %v323 = vsub.f32 %v281, %v315
        %v324 = vsub.f32 %v282, %v316
        %v325 = vsub.f32 %v283, %v317
        %v326 = vsub.f32 %v284, %v318
        %v327 = vsub.f32 %v285, %v319
        %v328 = vsub.f32 %v286, %v320
        %v329 = vsub.f32 %v287, %v321
        %v330 = vsub.f32 %v288, %v322
        %v331 = vmul.f32 %v323, %v323
        %v332 = vmul.f32 %v324, %v324
        %v333 = vmul.f32 %v325, %v325
        %v334 = vmul.f32 %v326, %v326
        %v335 = vmul.f32 %v327, %v327
        %v336 = vmul.f32 %v328, %v328
        %v337 = vmul.f32 %v329, %v329
        %v338 = vmul.f32 %v330, %v330
        %v339 = vsel %vm289, %v331, 0.0
        %340 = vadd.xlane.f32.xlu0 %v339
        %v341 = vpop.xlane.xlu0 %340
        %v342 = vsel %vm289, %v332, 0.0
        %343 = vadd.xlane.f32.xlu0 %v342
        %v344 = vpop.xlane.xlu0 %343
        %v345 = vsel %vm289, %v333, 0.0
        %346 = vadd.xlane.f32.xlu0 %v345
        %v347 = vpop.xlane.xlu0 %346
        %v348 = vsel %vm289, %v334, 0.0
        %349 = vadd.xlane.f32.xlu0 %v348
        %v350 = vpop.xlane.xlu0 %349
        %v351 = vsel %vm289, %v335, 0.0
        %352 = vadd.xlane.f32.xlu0 %v351
        %v353 = vpop.xlane.xlu0 %352
        %v354 = vsel %vm289, %v336, 0.0
        %355 = vadd.xlane.f32.xlu0 %v354
        %v356 = vpop.xlane.xlu0 %355
        %v357 = vsel %vm289, %v337, 0.0
        %358 = vadd.xlane.f32.xlu0 %v357
        %v359 = vpop.xlane.xlu0 %358
        %v360 = vsel %vm289, %v338, 0.0
        %361 = vadd.xlane.f32.xlu0 %v360
        %v362 = vpop.xlane.xlu0 %361
        %v363 = vmul.f32 %v341, %v314
        %v364 = vmul.f32 %v344, %v314
        %v365 = vmul.f32 %v347, %v314
        %v366 = vmul.f32 %v350, %v314
        %v367 = vmul.f32 %v353, %v314
        %v368 = vmul.f32 %v356, %v314
        %v369 = vmul.f32 %v359, %v314
        %v370 = vmul.f32 %v362, %v314
        %v371 = vadd.f32 %v363, 1e-05
        %v372 = vadd.f32 %v364, 1e-05
        %v373 = vadd.f32 %v365, 1e-05
        %v374 = vadd.f32 %v366, 1e-05
        %v375 = vadd.f32 %v367, 1e-05
        %v376 = vadd.f32 %v368, 1e-05
        %v377 = vadd.f32 %v369, 1e-05
        %v378 = vadd.f32 %v370, 1e-05
        %v379 = vrsqrt.pop %v371
        %v380 = vrsqrt.pop %v372
        %v381 = vrsqrt.pop %v373
        %v382 = vrsqrt.pop %v374
        %v383 = vrsqrt.pop %v375
        %v384 = vrsqrt.pop %v376
        %v385 = vrsqrt.pop %v377
        %v386 = vrsqrt.pop %v378
        %v387 = vmul.f32 %v323, %v379
        %v388 = vmul.f32 %v324, %v380
        %v389 = vmul.f32 %v325, %v381
        %v390 = vmul.f32 %v326, %v382
        %v391 = vmul.f32 %v327, %v383
        %v392 = vmul.f32 %v328, %v384
        %v393 = vmul.f32 %v329, %v385
        %v394 = vmul.f32 %v330, %v386
        %v395 = vld [vmem:[%s1] sm:$0x1]
        %v397 = vlaneseq
        %v398 = vshrl.u32 %v397, 7
        %v399 = vsub.s32 0, %v398
        %v400 = vrot.slane %v395, %v399
        %v402 = vmul.f32 %v387, %v400
        %v403 = vmul.f32 %v388, %v400
        %v404 = vmul.f32 %v389, %v400
        %v405 = vmul.f32 %v390, %v400
        %v406 = vmul.f32 %v391, %v400
        %v407 = vmul.f32 %v392, %v400
        %v408 = vmul.f32 %v393, %v400
        %v409 = vmul.f32 %v394, %v400
        %v410 = vld [vmem:[%s2] sm:$0x1]
        %v412 = vlaneseq
        %v413 = vshrl.u32 %v412, 7
        %v414 = vsub.s32 0, %v413
        %v415 = vrot.slane %v410, %v414
        %v417 = vadd.f32 %v402, %v415
        %v418 = vadd.f32 %v403, %v415
        %v419 = vadd.f32 %v404, %v415
        %v420 = vadd.f32 %v405, %v415
        %v421 = vadd.f32 %v406, %v415
        %v422 = vadd.f32 %v407, %v415
        %v423 = vadd.f32 %v408, %v415
        %v424 = vadd.f32 %v409, %v415
        %v425 = vpack.c.bf16 %v418, %v417
        %v426 = vpack.c.bf16 %v420, %v419
        %v427 = vpack.c.bf16 %v422, %v421
        %v428 = vpack.c.bf16 %v424, %v423
        %v429 = vld [vmem:[%s3] sm:$0xff]
        %v430 = vld [vmem:[%s3 + $0x8] sm:$0xff]
        %v431 = vld [vmem:[%s3 + $0x10] sm:$0xff]
        %v432 = vld [vmem:[%s3 + $0x18] sm:$0xff]
        %v433 = vld [vmem:[%s3 + $0x20] sm:$0xff]
        %v434 = vld [vmem:[%s3 + $0x28] sm:$0xff]
        %v435 = vld [vmem:[%s3 + $0x30] sm:$0xff]
        %v436 = vld [vmem:[%s3 + $0x38] sm:$0xff]
        %v437 = vld [vmem:[%s4] sm:$0x3]
        %v439 = vlaneseq
        %v440 = vshrl.u32 %v439, 7
        %v441 = vsub.s32 0, %v440
        %v442 = vrot.slane %v437, %v441
        %v443 = vlaneseq
        %v444 = vshrl.u32 %v443, 7
        %v445 = vsub.s32 1, %v444
        %v446 = vrot.slane %v437, %v445
        %v457 = vunpack.c.l.b16 %v429
        %v458 = vunpack.c.h.b16 %v429
        %v459 = vunpack.c.l.b16 %v430
        %v460 = vunpack.c.h.b16 %v430
        %v461 = vunpack.c.l.b16 %v431
        %v462 = vunpack.c.h.b16 %v431
        %v463 = vunpack.c.l.b16 %v432
        %v464 = vunpack.c.h.b16 %v432
        %v465 = vunpack.c.l.b16 %v433
        %v466 = vunpack.c.h.b16 %v433
        %v467 = vunpack.c.l.b16 %v434
        %v468 = vunpack.c.h.b16 %v434
        %v469 = vunpack.c.l.b16 %v435
        %v470 = vunpack.c.h.b16 %v435
        %v471 = vunpack.c.l.b16 %v436
        %v472 = vunpack.c.h.b16 %v436
        %v473 = vpack.c.b16 %v459, %v457
        %v474 = vpack.c.b16 %v460, %v458
        %v475 = vpack.c.b16 %v463, %v461
        %v476 = vpack.c.b16 %v464, %v462
        %v477 = vpack.c.b16 %v467, %v465
        %v478 = vpack.c.b16 %v468, %v466
        %v479 = vpack.c.b16 %v471, %v469
        %v480 = vpack.c.b16 %v472, %v470
        %v490 = vsel %vm289, %v425, 0
        %v493 = vsel %vm289, %v426, 0
        %v496 = vsel %vm289, %v427, 0
        %v499 = vsel %vm289, %v428, 0
        %501 = vmatprep.subr.bf16.mxu0 0
        %502 = vmatpush1.bf16.msra.mxu0 0
        %503 = vmatprep.subr.bf16.mxu0 0
        %504 = vmatpush1.bf16.msra.mxu0 0
        %505 = vmatprep.subr.bf16.mxu0 0
        %506 = vmatpush1.bf16.msra.mxu0 0
        %507 = vmatprep.subr.bf16.mxu0 0
        %508 = vmatpush1.bf16.msra.mxu0 0
        %509 = vmatprep.subr.bf16.mxu0 %v480
        %510 = vmatpush1.bf16.msra.mxu0 %v479
        %511 = vmatprep.subr.bf16.mxu0 %v478
        %512 = vmatpush1.bf16.msra.mxu0 %v477
        %513 = vmatprep.subr.bf16.mxu0 %v476
        %514 = vmatpush1.bf16.msra.mxu0 %v475
        %515 = vmatprep.subr.bf16.mxu0 %v474
        %516 = vmatpush1.bf16.msra.mxu0 %v473
        %517 = vmatprep.subr.bf16.mxu0 0
        %518 = vmatpush2.bf16.msra.mxu0 0
        %519 = vmatprep.subr.bf16.mxu0 0
        %520 = vmatpush2.bf16.msra.mxu0 0
        %521 = vmatprep.subr.bf16.mxu0 0
        %522 = vmatpush2.bf16.msra.mxu0 0
        %523 = vmatprep.subr.bf16.mxu0 0
        %524 = vmatpush2.bf16.msra.mxu0 0
        %525 = vmatprep.subr.bf16.mxu0 0
        %526 = vmatpush2.bf16.msra.mxu0 0
        %527 = vmatprep.subr.bf16.mxu0 0
        %528 = vmatpush2.bf16.msra.mxu0 0
        %529 = vmatprep.subr.bf16.mxu0 0
        %530 = vmatpush2.bf16.msra.mxu0 0
        %531 = vmatprep.subr.bf16.mxu0 0
        %532 = vmatpush2.bf16.msra.mxu0 0
        %533 = vmatprep.mubr.bf16.mxu0 0
        %534 = vmatmul.mubr.bf16.gmra.mxu0 %v490
        %v535 = vpop.f32.mrf.mxu0
        %v536 = vadd.f32 %v442, %v535
        %v537 = vpop.f32.mrf.mxu0
        %v538 = vadd.f32 %v446, %v537
        %v539 = vpop.f32.mrf.mxu0
        %v540 = vadd.f32 %v442, %v539
        %v541 = vpop.f32.mrf.mxu0
        %v542 = vadd.f32 %v446, %v541
        %543 = vmatprep.mubr.bf16.mxu0 0
        %544 = vmatmul.mubr.bf16.gmra.mxu0 %v493
        %v545 = vpop.f32.mrf.mxu0
        %v546 = vadd.f32 %v442, %v545
        %v547 = vpop.f32.mrf.mxu0
        %v548 = vadd.f32 %v446, %v547
        %v549 = vpop.f32.mrf.mxu0
        %v550 = vadd.f32 %v442, %v549
        %v551 = vpop.f32.mrf.mxu0
        %v552 = vadd.f32 %v446, %v551
        %553 = vmatprep.mubr.bf16.mxu0 0
        %554 = vmatmul.mubr.bf16.gmra.mxu0 %v496
        %v555 = vpop.f32.mrf.mxu0
        %v556 = vadd.f32 %v442, %v555
        %v557 = vpop.f32.mrf.mxu0
        %v558 = vadd.f32 %v446, %v557
        %v559 = vpop.f32.mrf.mxu0
        %v560 = vadd.f32 %v442, %v559
        %v561 = vpop.f32.mrf.mxu0
        %v562 = vadd.f32 %v446, %v561
        %563 = vmatprep.mubr.bf16.mxu0 0
        %564 = vmatmul.mubr.bf16.gmra.mxu0 %v499
        %v565 = vpop.f32.mrf.mxu0
        %v566 = vadd.f32 %v442, %v565
        %v567 = vpop.f32.mrf.mxu0
        %v568 = vadd.f32 %v446, %v567
        %v569 = vpop.f32.mrf.mxu0
        %v570 = vadd.f32 %v442, %v569
        %v571 = vpop.f32.mrf.mxu0
        %v572 = vadd.f32 %v446, %v571
        %573 = vdwg.mxu0
        %v574 = vmul.f32 %v536, 0.5
        %v575 = vmul.f32 %v538, 0.5
        %v576 = vmul.f32 %v540, 0.5
        %v577 = vmul.f32 %v542, 0.5
        %v578 = vmul.f32 %v546, 0.5
        %v579 = vmul.f32 %v548, 0.5
        %v580 = vmul.f32 %v550, 0.5
        %v581 = vmul.f32 %v552, 0.5
        %v582 = vmul.f32 %v556, 0.5
        %v583 = vmul.f32 %v558, 0.5
        %v584 = vmul.f32 %v560, 0.5
        %v585 = vmul.f32 %v562, 0.5
        %v586 = vmul.f32 %v566, 0.5
        %v587 = vmul.f32 %v568, 0.5
        %v588 = vmul.f32 %v570, 0.5
        %v589 = vmul.f32 %v572, 0.5
        %v590 = vmul.f32 %v536, 0.044715
        %v591 = vmul.f32 %v538, 0.044715
        %v592 = vmul.f32 %v540, 0.044715
        %v593 = vmul.f32 %v542, 0.044715
        %v594 = vmul.f32 %v546, 0.044715
        %v595 = vmul.f32 %v548, 0.044715
        %v596 = vmul.f32 %v550, 0.044715
        %v597 = vmul.f32 %v552, 0.044715
        %v598 = vmul.f32 %v556, 0.044715
        %v599 = vmul.f32 %v558, 0.044715
        %v600 = vmul.f32 %v560, 0.044715
        %v601 = vmul.f32 %v562, 0.044715
        %v602 = vmul.f32 %v566, 0.044715
        %v603 = vmul.f32 %v568, 0.044715
        %v604 = vmul.f32 %v570, 0.044715
        %v605 = vmul.f32 %v572, 0.044715
        %v606 = vmul.f32 %v590, %v536
        %v607 = vmul.f32 %v591, %v538
        %v608 = vmul.f32 %v592, %v540
        %v609 = vmul.f32 %v593, %v542
        %v610 = vmul.f32 %v594, %v546
        %v611 = vmul.f32 %v595, %v548
        %v612 = vmul.f32 %v596, %v550
        %v613 = vmul.f32 %v597, %v552
        %v614 = vmul.f32 %v598, %v556
        %v615 = vmul.f32 %v599, %v558
        %v616 = vmul.f32 %v600, %v560
        %v617 = vmul.f32 %v601, %v562
        %v618 = vmul.f32 %v602, %v566
        %v619 = vmul.f32 %v603, %v568
        %v620 = vmul.f32 %v604, %v570
        %v621 = vmul.f32 %v605, %v572
        %v622 = vmul.f32 %v606, %v536
        %v623 = vmul.f32 %v607, %v538
        %v624 = vmul.f32 %v608, %v540
        %v625 = vmul.f32 %v609, %v542
        %v626 = vmul.f32 %v610, %v546
        %v627 = vmul.f32 %v611, %v548
        %v628 = vmul.f32 %v612, %v550
        %v629 = vmul.f32 %v613, %v552
        %v630 = vmul.f32 %v614, %v556
        %v631 = vmul.f32 %v615, %v558
        %v632 = vmul.f32 %v616, %v560
        %v633 = vmul.f32 %v617, %v562
        %v634 = vmul.f32 %v618, %v566
        %v635 = vmul.f32 %v619, %v568
        %v636 = vmul.f32 %v620, %v570
        %v637 = vmul.f32 %v621, %v572
        %v638 = vadd.f32 %v536, %v622
        %v639 = vadd.f32 %v538, %v623
        %v640 = vadd.f32 %v540, %v624
        %v641 = vadd.f32 %v542, %v625
        %v642 = vadd.f32 %v546, %v626
        %v643 = vadd.f32 %v548, %v627
        %v644 = vadd.f32 %v550, %v628
        %v645 = vadd.f32 %v552, %v629
        %v646 = vadd.f32 %v556, %v630
        %v647 = vadd.f32 %v558, %v631
        %v648 = vadd.f32 %v560, %v632
        %v649 = vadd.f32 %v562, %v633
        %v650 = vadd.f32 %v566, %v634
        %v651 = vadd.f32 %v568, %v635
        %v652 = vadd.f32 %v570, %v636
        %v653 = vadd.f32 %v572, %v637
        %v654 = vmul.f32 %v638, 0.7978846
        %v655 = vmul.f32 %v639, 0.7978846
        %v656 = vmul.f32 %v640, 0.7978846
        %v657 = vmul.f32 %v641, 0.7978846
        %v658 = vmul.f32 %v642, 0.7978846
        %v659 = vmul.f32 %v643, 0.7978846
        %v660 = vmul.f32 %v644, 0.7978846
        %v661 = vmul.f32 %v645, 0.7978846
        %v662 = vmul.f32 %v646, 0.7978846
        %v663 = vmul.f32 %v647, 0.7978846
        %v664 = vmul.f32 %v648, 0.7978846
        %v665 = vmul.f32 %v649, 0.7978846
        %v666 = vmul.f32 %v650, 0.7978846
        %v667 = vmul.f32 %v651, 0.7978846
        %v668 = vmul.f32 %v652, 0.7978846
        %v669 = vmul.f32 %v653, 0.7978846
        %v670 = vtanh.pop %v654
        %v671 = vtanh.pop %v655
        %v672 = vtanh.pop %v656
        %v673 = vtanh.pop %v657
        %v674 = vtanh.pop %v658
        %v675 = vtanh.pop %v659
        %v676 = vtanh.pop %v660
        %v677 = vtanh.pop %v661
        %v678 = vtanh.pop %v662
        %v679 = vtanh.pop %v663
        %v680 = vtanh.pop %v664
        %v681 = vtanh.pop %v665
        %v682 = vtanh.pop %v666
        %v683 = vtanh.pop %v667
        %v684 = vtanh.pop %v668
        %v685 = vtanh.pop %v669
        %v686 = vadd.f32 %v670, 1.0
        %v687 = vadd.f32 %v671, 1.0
        %v688 = vadd.f32 %v672, 1.0
        %v689 = vadd.f32 %v673, 1.0
        %v690 = vadd.f32 %v674, 1.0
        %v691 = vadd.f32 %v675, 1.0
        %v692 = vadd.f32 %v676, 1.0
        %v693 = vadd.f32 %v677, 1.0
        %v694 = vadd.f32 %v678, 1.0
        %v695 = vadd.f32 %v679, 1.0
        %v696 = vadd.f32 %v680, 1.0
        %v697 = vadd.f32 %v681, 1.0
        %v698 = vadd.f32 %v682, 1.0
        %v699 = vadd.f32 %v683, 1.0
        %v700 = vadd.f32 %v684, 1.0
        %v701 = vadd.f32 %v685, 1.0
        %v702 = vmul.f32 %v574, %v686
        %v703 = vmul.f32 %v575, %v687
        %v704 = vmul.f32 %v576, %v688
        %v705 = vmul.f32 %v577, %v689
        %v706 = vmul.f32 %v578, %v690
        %v707 = vmul.f32 %v579, %v691
        %v708 = vmul.f32 %v580, %v692
        %v709 = vmul.f32 %v581, %v693
        %v710 = vmul.f32 %v582, %v694
        %v711 = vmul.f32 %v583, %v695
        %v712 = vmul.f32 %v584, %v696
        %v713 = vmul.f32 %v585, %v697
        %v714 = vmul.f32 %v586, %v698
        %v715 = vmul.f32 %v587, %v699
        %v716 = vmul.f32 %v588, %v700
        %v717 = vmul.f32 %v589, %v701
        %v718 = vpack.c.bf16 %v704, %v702
        %v719 = vpack.c.bf16 %v705, %v703
        %v720 = vpack.c.bf16 %v708, %v706
        %v721 = vpack.c.bf16 %v709, %v707
        %v722 = vpack.c.bf16 %v712, %v710
        %v723 = vpack.c.bf16 %v713, %v711
        %v724 = vpack.c.bf16 %v716, %v714
        %v725 = vpack.c.bf16 %v717, %v715
        %v726 = vld [vmem:[%s5] sm:$0xf]
        %v727 = vld [vmem:[%s5 + $0x4] sm:$0xf]
        %v728 = vld [vmem:[%s5 + $0x8] sm:$0xf]
        %v729 = vld [vmem:[%s5 + $0xc] sm:$0xf]
        %v730 = vld [vmem:[%s5 + $0x10] sm:$0xf]
        %v731 = vld [vmem:[%s5 + $0x14] sm:$0xf]
        %v732 = vld [vmem:[%s5 + $0x18] sm:$0xf]
        %v733 = vld [vmem:[%s5 + $0x1c] sm:$0xf]
        %v734 = vld [vmem:[%s5 + $0x20] sm:$0xf]
        %v735 = vld [vmem:[%s5 + $0x24] sm:$0xf]
        %v736 = vld [vmem:[%s5 + $0x28] sm:$0xf]
        %v737 = vld [vmem:[%s5 + $0x2c] sm:$0xf]
        %v738 = vld [vmem:[%s5 + $0x30] sm:$0xf]
        %v739 = vld [vmem:[%s5 + $0x34] sm:$0xf]
        %v740 = vld [vmem:[%s5 + $0x38] sm:$0xf]
        %v741 = vld [vmem:[%s5 + $0x3c] sm:$0xf]
        %v742 = vld [vmem:[%s5 + $0x40] sm:$0xf]
        %v743 = vld [vmem:[%s5 + $0x44] sm:$0xf]
        %v744 = vld [vmem:[%s5 + $0x48] sm:$0xf]
        %v745 = vld [vmem:[%s5 + $0x4c] sm:$0xf]
        %v746 = vld [vmem:[%s5 + $0x50] sm:$0xf]
        %v747 = vld [vmem:[%s5 + $0x54] sm:$0xf]
        %v748 = vld [vmem:[%s5 + $0x58] sm:$0xf]
        %v749 = vld [vmem:[%s5 + $0x5c] sm:$0xf]
        %v750 = vld [vmem:[%s5 + $0x60] sm:$0xf]
        %v751 = vld [vmem:[%s5 + $0x64] sm:$0xf]
        %v752 = vld [vmem:[%s5 + $0x68] sm:$0xf]
        %v753 = vld [vmem:[%s5 + $0x6c] sm:$0xf]
        %v754 = vld [vmem:[%s5 + $0x70] sm:$0xf]
        %v755 = vld [vmem:[%s5 + $0x74] sm:$0xf]
        %v756 = vld [vmem:[%s5 + $0x78] sm:$0xf]
        %v757 = vld [vmem:[%s5 + $0x7c] sm:$0xf]
        %v758 = vld [vmem:[%s6] sm:$0x1]
        %v760 = vlaneseq
        %v761 = vshrl.u32 %v760, 7
        %v762 = vsub.s32 0, %v761
        %v763 = vrot.slane %v758, %v762
        %v797 = vunpack.c.l.b16 %v726
        %v798 = vunpack.c.l.b16 %v727
        %v799 = vunpack.c.l.b16 %v728
        %v800 = vunpack.c.l.b16 %v729
        %v801 = vunpack.c.l.b16 %v730
        %v802 = vunpack.c.l.b16 %v731
        %v803 = vunpack.c.l.b16 %v732
        %v804 = vunpack.c.l.b16 %v733
        %v805 = vunpack.c.l.b16 %v734
        %v806 = vunpack.c.l.b16 %v735
        %v807 = vunpack.c.l.b16 %v736
        %v808 = vunpack.c.l.b16 %v737
        %v809 = vunpack.c.l.b16 %v738
        %v810 = vunpack.c.l.b16 %v739
        %v811 = vunpack.c.l.b16 %v740
        %v812 = vunpack.c.l.b16 %v741
        %v813 = vunpack.c.l.b16 %v742
        %v814 = vunpack.c.l.b16 %v743
        %v815 = vunpack.c.l.b16 %v744
        %v816 = vunpack.c.l.b16 %v745
        %v817 = vunpack.c.l.b16 %v746
        %v818 = vunpack.c.l.b16 %v747
        %v819 = vunpack.c.l.b16 %v748
        %v820 = vunpack.c.l.b16 %v749
        %v821 = vunpack.c.l.b16 %v750
        %v822 = vunpack.c.l.b16 %v751
        %v823 = vunpack.c.l.b16 %v752
        %v824 = vunpack.c.l.b16 %v753
        %v825 = vunpack.c.l.b16 %v754
        %v826 = vunpack.c.l.b16 %v755
        %v827 = vunpack.c.l.b16 %v756
        %v828 = vunpack.c.l.b16 %v757
        %v829 = vpack.c.b16 %v798, %v797
        %v830 = vpack.c.b16 %v800, %v799
        %v831 = vpack.c.b16 %v802, %v801
        %v832 = vpack.c.b16 %v804, %v803
        %v833 = vpack.c.b16 %v806, %v805
        %v834 = vpack.c.b16 %v808, %v807
        %v835 = vpack.c.b16 %v810, %v809
        %v836 = vpack.c.b16 %v812, %v811
        %v837 = vpack.c.b16 %v814, %v813
        %v838 = vpack.c.b16 %v816, %v815
        %v839 = vpack.c.b16 %v818, %v817
        %v840 = vpack.c.b16 %v820, %v819
        %v841 = vpack.c.b16 %v822, %v821
        %v842 = vpack.c.b16 %v824, %v823
        %v843 = vpack.c.b16 %v826, %v825
        %v844 = vpack.c.b16 %v828, %v827
        %861 = vmatprep.subr.bf16.mxu0 0
        %862 = vmatpush1.bf16.msra.mxu0 %v836
        %863 = vmatprep.subr.bf16.mxu0 0
        %864 = vmatpush1.bf16.msra.mxu0 %v835
        %865 = vmatprep.subr.bf16.mxu0 0
        %866 = vmatpush1.bf16.msra.mxu0 %v834
        %867 = vmatprep.subr.bf16.mxu0 0
        %868 = vmatpush1.bf16.msra.mxu0 %v833
        %869 = vmatprep.subr.bf16.mxu0 0
        %870 = vmatpush1.bf16.msra.mxu0 %v832
        %871 = vmatprep.subr.bf16.mxu0 0
        %872 = vmatpush1.bf16.msra.mxu0 %v831
        %873 = vmatprep.subr.bf16.mxu0 0
        %874 = vmatpush1.bf16.msra.mxu0 %v830
        %875 = vmatprep.subr.bf16.mxu0 0
        %876 = vmatpush1.bf16.msra.mxu0 %v829
        %877 = vmatprep.subr.bf16.mxu0 0
        %878 = vmatpush2.bf16.msra.mxu0 %v844
        %879 = vmatprep.subr.bf16.mxu0 0
        %880 = vmatpush2.bf16.msra.mxu0 %v843
        %881 = vmatprep.subr.bf16.mxu0 0
        %882 = vmatpush2.bf16.msra.mxu0 %v842
        %883 = vmatprep.subr.bf16.mxu0 0
        %884 = vmatpush2.bf16.msra.mxu0 %v841
        %885 = vmatprep.subr.bf16.mxu0 0
        %886 = vmatpush2.bf16.msra.mxu0 %v840
        %887 = vmatprep.subr.bf16.mxu0 0
        %888 = vmatpush2.bf16.msra.mxu0 %v839
        %889 = vmatprep.subr.bf16.mxu0 0
        %890 = vmatpush2.bf16.msra.mxu0 %v838
        %891 = vmatprep.subr.bf16.mxu0 0
        %892 = vmatpush2.bf16.msra.mxu0 %v837
        %893 = vmatprep.mubr.bf16.mxu0 %v719
        %894 = vmatmul.mubr.bf16.gmra.mxu0 %v718
        %v895 = vpop.f32.mrf.mxu0
        %v896 = vadd.f32 %v763, %v895
        %v897 = vpop.f32.mrf.mxu0
        %v898 = vpop.f32.mrf.mxu0
        %v899 = vadd.f32 %v763, %v898
        %v900 = vpop.f32.mrf.mxu0
        %901 = vmatprep.mubr.bf16.mxu0 %v721
        %902 = vmatmul.mubr.bf16.gmra.mxu0 %v720
        %v903 = vpop.f32.mrf.mxu0
        %v904 = vadd.f32 %v763, %v903
        %v905 = vpop.f32.mrf.mxu0
        %v906 = vpop.f32.mrf.mxu0
        %v907 = vadd.f32 %v763, %v906
        %v908 = vpop.f32.mrf.mxu0
        %909 = vmatprep.mubr.bf16.mxu0 %v723
        %910 = vmatmul.mubr.bf16.gmra.mxu0 %v722
        %v911 = vpop.f32.mrf.mxu0
        %v912 = vadd.f32 %v763, %v911
        %v913 = vpop.f32.mrf.mxu0
        %v914 = vpop.f32.mrf.mxu0
        %v915 = vadd.f32 %v763, %v914
        %v916 = vpop.f32.mrf.mxu0
        %917 = vmatprep.mubr.bf16.mxu0 %v725
        %918 = vmatmul.mubr.bf16.gmra.mxu0 %v724
        %v919 = vpop.f32.mrf.mxu0
        %v920 = vadd.f32 %v763, %v919
        %v921 = vpop.f32.mrf.mxu0
        %v922 = vpop.f32.mrf.mxu0
        %v923 = vadd.f32 %v763, %v922
        %v924 = vpop.f32.mrf.mxu0
        %925 = vdwg.mxu0
        %v926 = vadd.f32 %v896, %v281
        %v927 = vadd.f32 %v899, %v282
        %v928 = vadd.f32 %v904, %v283
        %v929 = vadd.f32 %v907, %v284
        %v930 = vadd.f32 %v912, %v285
        %v931 = vadd.f32 %v915, %v286
        %v932 = vadd.f32 %v920, %v287
        %v933 = vadd.f32 %v923, %v288
        %934 = vst.msk [vmem:[%s272] sm:$0xff] %vm289, %v926
        %935 = vst.msk [vmem:[%s272 + $0x8] sm:$0xff] %vm289, %v927
        %936 = vst.msk [vmem:[%s272 + $0x10] sm:$0xff] %vm289, %v928
        %937 = vst.msk [vmem:[%s272 + $0x18] sm:$0xff] %vm289, %v929
        %938 = vst.msk [vmem:[%s272 + $0x20] sm:$0xff] %vm289, %v930
        %939 = vst.msk [vmem:[%s272 + $0x28] sm:$0xff] %vm289, %v931
        %940 = vst.msk [vmem:[%s272 + $0x30] sm:$0xff] %vm289, %v932
        %941 = vst.msk [vmem:[%s272 + $0x38] sm:$0xff] %vm289, %v933
        %s942 = sand.u32 %s181, 1
        %s943 = scalar_lea.sflag [#allocation3], %s942
        %s944 = sand.u32 %s181, 1
        %s945 = smul.addr %s944, 64
        %s946 = scalar_lea.vmem [#allocation2], %s945
        // Predicated region
        $region49: #{forward.13} parent=47 // pred_check
          %p947 = pneg %p191
        $region50: #{forward.13} parent=47 // pred_check_branch
          %949 = sbr.rel (%p947) target = $region52
        $region51: #{forward.13} parent=47 // pred_region
          %s950 = smul.u32 8, %s21
          %s952 = ssub.s32 1024, 1024
          %953 = vsyncadd %s943, %s952
          %s954 = smul.addr %s950, 128
          %s955 = scalar_lea.hbm %s7, %s954
          %s956 = sshll.u32 %s946, 4
          %s957 = int_to_ptr.vmem [resolvable:$true] %s956
          %962 = dma.vmem_to_hbm [thread:$0]  %s957, 1024, %s955, %s943, 128, 128, 8
        $region52: #{forward.13} parent=47 // pred_fallthru
          _
      $region48: #{forward.13} parent=5 // pred_fallthru
        _
      %p963 = scmp.le.s32.totalorder 2, %s16
      // Predicated region
      $region53: #{forward.13} parent=5 // pred_check
        %p964 = pneg %p963
      $region54: #{forward.13} parent=5 // pred_check_branch
        %966 = sbr.rel (%p964) target = $region56
      $region55: #{forward.13} parent=5 // pred_region
        %s967 = ssub.s32 %s16, 2
        // Predicated region
        $region57: #{forward.13} parent=55 // pred_check
          %p968 = pneg %p197
        $region58: #{forward.13} parent=55 // pred_check_branch
          %970 = sbr.rel (%p968) target = $region60
        $region59: #{forward.13} parent=55 // pred_region
          %s971 = sand.u32 %s182, 1
          %s972 = scalar_lea.sflag [#allocation3], %s971
          %s973 = sand.u32 %s182, 1
          %s974 = smul.addr %s973, 64
          %s975 = scalar_lea.vmem [#allocation2], %s974
          %976 = dma.done %s972, 1024
        $region60: #{forward.13} parent=55 // pred_fallthru
          _
      $region56: #{forward.13} parent=5 // pred_fallthru
        _
    $region6: #{forward.13} parent=1 // loop_footer
      %s20 = sadd.s32 1, %s16
    $region7: #{forward.13} parent=1 // loop_footer_branch
      %15 = sbr.rel target = $region3
    $region8: #{forward.13} parent=1 // loop_exit
      _
    %977 = vsyncpa [#allocation3], 1
    %s978 = scalar_lea.sflag [#allocation3], 1
    %979 = vsyncpa %s978, 1

// kernel: forward.9
$region0: #{forward.9}
  #allocation0 [shape = 'u32[]', space=smem, size = 0x4, offset = 0x4, fixed_abs, tag = 'smem constant byte address 0x4 - core index']
  #allocation1 [shape = 'u32[144,128]{1,0:T(1,128)}', space=vmem, size = 0x12000, scoped, tag = 'internal scratch']
  %s0 = inlined_call_operand.vmem [shape: bf16[2,64,768], index: 0, kind: input, shape index: {}]
  %s1 = inlined_call_operand.vmem [shape: f32[8,64,64], index: 1, kind: input, shape index: {}]
  %s2 = inlined_call_operand.vmem [shape: bf16[256,64], index: 2, kind: input, shape index: {}]
  %s3 = inlined_call_operand.vmem [shape: f32[1,64], index: 3, kind: input, shape index: {}]
  %s4 = inlined_call_operand.vmem [shape: f32[2,64,64], index: 4, kind: input, shape index: {}]
  %s5 = inlined_call_operand.vmem [shape: f32[2,64,64], index: 5, kind: output, shape index: {}]
  %s6 = sld [smem:[#allocation0]]
  $region53: #{forward.9} parent=0
    _
  %s8 = ssub.s32 1, %s6
  %s9 = scalar_select 0, %s8, %s6
  loop: start=0, step=1, limit=4
  $region2: #{forward.9} parent=0 // loop_pre_header
    _
  $region3: #{forward.9} parent=0 // loop_header
    %s11 = sphi 0, %s15
    %p12 = scmp.ge.s32.totalorder %s11, 4
    %s21 = sphi 0, %s23
    %s24 = sphi 0, %s21
    %s25 = sphi 0, %s24
    %s41 = sphi 0, %s25
    %s45 = sphi 0, %s45
    %s47 = sphi 0, %s45
    %s48 = sphi 0, %s47
    %s62 = sphi 0, %s48
    %s66 = sphi 0, %s66
    %s68 = sphi 0, %s66
    %s69 = sphi 0, %s68
    %s83 = sphi 0, %s69
    %s87 = sphi 0, %s87
    %s89 = sphi 0, %s87
    %s90 = sphi 0, %s89
    %s104 = sphi 0, %s90
    %s110 = sphi 0, %s112
    %s113 = sphi 0, %s110
    %s114 = sphi 0, %s113
    %s130 = sphi 0, %s114
    %s136 = sphi 0, %s138
    %s139 = sphi 0, %s136
    %s140 = sphi 0, %s139
    %s156 = sphi 0, %s140
  $region4: #{forward.9} parent=0 // loop_header_branch
    %14 = sbr.rel (%p12) target = $region8
  $region5: #{forward.9} parent=0 // loop_body
    %s16 = ssub.s32 %s11, 1
    %s17 = ssub.s32 %s11, 2
    %s18 = sadd.s32 %s11, 1
    %s19 = ssub.s32 %s11, %s18
    %p20 = scmp.eq.s32.totalorder %s19, 0
    %s22 = sadd.s32 %s21, 1
    %s23 = scalar_select %p20, %s21, %s22
    %p26 = pneg %p20
    %p27 = scmp.eq.s32.totalorder %s11, 1
    %p28 = por %p26, %p27
    %p29 = scmp.ne.s32.totalorder %s21, %s24
    %p30 = scmp.eq.s32.totalorder %s11, 0
    %p31 = por %p29, %p30
    %p32 = scmp.ne.s32.totalorder %s21, %s24
    %p33 = scmp.eq.s32.totalorder %s16, 1
    %p34 = por %p32, %p33
    %p35 = scmp.ne.s32.totalorder %s24, %s25
    %p36 = scmp.eq.s32.totalorder %s16, 0
    %p37 = por %p35, %p36
    %p38 = scmp.ne.s32.totalorder %s24, %s25
    %p39 = scmp.eq.s32.totalorder %s17, 1
    %p40 = por %p38, %p39
    %p42 = scmp.ne.s32.totalorder %s25, %s41
    %p43 = scmp.eq.s32.totalorder %s17, 0
    %p44 = por %p42, %p43
    %s46 = sadd.s32 %s45, 1
    %p49 = scmp.eq.s32.totalorder %s11, 1
    %p50 = scmp.ne.s32.totalorder %s45, %s47
    %p51 = scmp.eq.s32.totalorder %s11, 0
    %p52 = por %p50, %p51
    %p53 = scmp.ne.s32.totalorder %s45, %s47
    %p54 = scmp.eq.s32.totalorder %s16, 1
    %p55 = por %p53, %p54
    %p56 = scmp.ne.s32.totalorder %s47, %s48
    %p57 = scmp.eq.s32.totalorder %s16, 0
    %p58 = por %p56, %p57
    %p59 = scmp.ne.s32.totalorder %s47, %s48
    %p60 = scmp.eq.s32.totalorder %s17, 1
    %p61 = por %p59, %p60
    %p63 = scmp.ne.s32.totalorder %s48, %s62
    %p64 = scmp.eq.s32.totalorder %s17, 0
    %p65 = por %p63, %p64
    %s67 = sadd.s32 %s66, 1
    %p70 = scmp.eq.s32.totalorder %s11, 1
    %p71 = scmp.ne.s32.totalorder %s66, %s68
    %p72 = scmp.eq.s32.totalorder %s11, 0
    %p73 = por %p71, %p72
    %p74 = scmp.ne.s32.totalorder %s66, %s68
    %p75 = scmp.eq.s32.totalorder %s16, 1
    %p76 = por %p74, %p75
    %p77 = scmp.ne.s32.totalorder %s68, %s69
    %p78 = scmp.eq.s32.totalorder %s16, 0
    %p79 = por %p77, %p78
    %p80 = scmp.ne.s32.totalorder %s68, %s69
    %p81 = scmp.eq.s32.totalorder %s17, 1
    %p82 = por %p80, %p81
    %p84 = scmp.ne.s32.totalorder %s69, %s83
    %p85 = scmp.eq.s32.totalorder %s17, 0
    %p86 = por %p84, %p85
    %s88 = sadd.s32 %s87, 1
    %p91 = scmp.eq.s32.totalorder %s11, 1
    %p92 = scmp.ne.s32.totalorder %s87, %s89
    %p93 = scmp.eq.s32.totalorder %s11, 0
    %p94 = por %p92, %p93
    %p95 = scmp.ne.s32.totalorder %s87, %s89
    %p96 = scmp.eq.s32.totalorder %s16, 1
    %p97 = por %p95, %p96
    %p98 = scmp.ne.s32.totalorder %s89, %s90
    %p99 = scmp.eq.s32.totalorder %s16, 0
    %p100 = por %p98, %p99
    %p101 = scmp.ne.s32.totalorder %s89, %s90
    %p102 = scmp.eq.s32.totalorder %s17, 1
    %p103 = por %p101, %p102
    %p105 = scmp.ne.s32.totalorder %s90, %s104
    %p106 = scmp.eq.s32.totalorder %s17, 0
    %p107 = por %p105, %p106
    %s108 = ssub.s32 %s11, %s18
    %p109 = scmp.eq.s32.totalorder %s108, 0
    %s111 = sadd.s32 %s110, 1
    %s112 = scalar_select %p109, %s110, %s111
    %p115 = pneg %p109
    %p116 = scmp.eq.s32.totalorder %s11, 1
    %p117 = por %p115, %p116
    %p118 = scmp.ne.s32.totalorder %s110, %s113
    %p119 = scmp.eq.s32.totalorder %s11, 0
    %p120 = por %p118, %p119
    %p121 = scmp.ne.s32.totalorder %s110, %s113
    %p122 = scmp.eq.s32.totalorder %s16, 1
    %p123 = por %p121, %p122
    %p124 = scmp.ne.s32.totalorder %s113, %s114
    %p125 = scmp.eq.s32.totalorder %s16, 0
    %p126 = por %p124, %p125
    %p127 = scmp.ne.s32.totalorder %s113, %s114
    %p128 = scmp.eq.s32.totalorder %s17, 1
    %p129 = por %p127, %p128
    %p131 = scmp.ne.s32.totalorder %s114, %s130
    %p132 = scmp.eq.s32.totalorder %s17, 0
    %p133 = por %p131, %p132
    %s134 = ssub.s32 %s11, %s18
    %p135 = scmp.eq.s32.totalorder %s134, 0
    %s137 = sadd.s32 %s136, 1
    %s138 = scalar_select %p135, %s136, %s137
    %p141 = pneg %p135
    %p142 = scmp.eq.s32.totalorder %s11, 1
    %p143 = por %p141, %p142
    %p144 = scmp.ne.s32.totalorder %s136, %s139
    %p145 = scmp.eq.s32.totalorder %s11, 0
    %p146 = por %p144, %p145
    %p147 = scmp.ne.s32.totalorder %s136, %s139
    %p148 = scmp.eq.s32.totalorder %s16, 1
    %p149 = por %p147, %p148
    %p150 = scmp.ne.s32.totalorder %s139, %s140
    %p151 = scmp.eq.s32.totalorder %s16, 0
    %p152 = por %p150, %p151
    %p153 = scmp.ne.s32.totalorder %s139, %s140
    %p154 = scmp.eq.s32.totalorder %s17, 1
    %p155 = por %p153, %p154
    %p157 = scmp.ne.s32.totalorder %s140, %s156
    %p158 = scmp.eq.s32.totalorder %s17, 0
    %p159 = por %p157, %p158
    %p160 = scmp.le.s32.totalorder 1, %s11
    %p161 = scmp.lt.s32.totalorder %s11, 3
    %p162 = pnand %p160, %p161
    %p163 = pneg %p162
    // Predicated region
    $region9: #{forward.9} parent=5 // pred_check
      _
    $region10: #{forward.9} parent=5 // pred_check_branch
      %165 = sbr.rel (%p162) target = $region12
    $region11: #{forward.9} parent=5 // pred_region
      %s166 = ssub.s32 %s11, 1
      // Predicated region
      $region13: #{forward.9} parent=11 // pred_check
        %p167 = pneg %p58
      $region14: #{forward.9} parent=11 // pred_check_branch
        %169 = sbr.rel (%p167) target = $region16
      $region15: #{forward.9} parent=11 // pred_region
        _
      $region16: #{forward.9} parent=11 // pred_fallthru
        _
      // Predicated region
      $region17: #{forward.9} parent=11 // pred_check
        %p170 = pneg %p79
      $region18: #{forward.9} parent=11 // pred_check_branch
        %172 = sbr.rel (%p170) target = $region20
      $region19: #{forward.9} parent=11 // pred_region
        _
      $region20: #{forward.9} parent=11 // pred_fallthru
        _
      // Predicated region
      $region21: #{forward.9} parent=11 // pred_check
        %p173 = pneg %p100
      $region22: #{forward.9} parent=11 // pred_check_branch
        %175 = sbr.rel (%p173) target = $region24
      $region23: #{forward.9} parent=11 // pred_region
        _
      $region24: #{forward.9} parent=11 // pred_fallthru
        _
    $region12: #{forward.9} parent=5 // pred_fallthru
      _
    %p176 = scmp.lt.s32.totalorder %s11, 2
    // Predicated region
    $region25: #{forward.9} parent=5 // pred_check
      %p177 = pneg %p176
    $region26: #{forward.9} parent=5 // pred_check_branch
      %179 = sbr.rel (%p177) target = $region28
    $region27: #{forward.9} parent=5 // pred_region
      // Predicated region
      $region29: #{forward.9} parent=27 // pred_check
        %p180 = pneg %p31
      $region30: #{forward.9} parent=27 // pred_check_branch
        %182 = sbr.rel (%p180) target = $region32
      $region31: #{forward.9} parent=27 // pred_region
        %p183 = scmp.lt.s32.totalorder %s11, 1
        %s184 = scalar_select %p183, %s11, 1
        %s185 = smul.addr %s184, 48
        %s186 = smul.addr %s185, 4
        %s187 = scalar_lea.vmem %s0, %s186
      $region32: #{forward.9} parent=27 // pred_fallthru
        _
      // Predicated region
      $region33: #{forward.9} parent=27 // pred_check
        %p188 = pneg %p120
      $region34: #{forward.9} parent=27 // pred_check_branch
        %190 = sbr.rel (%p188) target = $region36
      $region35: #{forward.9} parent=27 // pred_region
        %p191 = scmp.lt.s32.totalorder %s11, 1
        %s192 = scalar_select %p191, %s11, 1
        %s193 = smul.addr %s192, 8
        %s194 = smul.addr %s193, 8
        %s195 = scalar_lea.vmem %s4, %s194
      $region36: #{forward.9} parent=27 // pred_fallthru
        _
    $region28: #{forward.9} parent=5 // pred_fallthru
      _
    %p196 = scmp.le.s32.totalorder 1, %s11
    %p197 = scmp.lt.s32.totalorder %s11, 3
    %p198 = pnand %p196, %p197
    %p199 = pneg %p198
    // Predicated region
    $region37: #{forward.9} parent=5 // pred_check
      _
    $region38: #{forward.9} parent=5 // pred_check_branch
      %201 = sbr.rel (%p198) target = $region40
    $region39: #{forward.9} parent=5 // pred_region
      %s202 = ssub.s32 %s11, 1
      %p203 = scmp.lt.s32.totalorder %s16, 1
      %s204 = scalar_select %p203, %s16, 1
      %s205 = smul.addr %s204, 48
      %s206 = smul.addr %s205, 4
      %s207 = scalar_lea.vmem %s0, %s206
      %p208 = pneg %p37
      %p209 = pneg %p34
      %p210 = pneg %p58
      %p211 = pneg %p55
      %p212 = pneg %p79
      %p213 = pneg %p76
      %p214 = pneg %p100
      %p215 = pneg %p97
      %p216 = scmp.lt.s32.totalorder %s16, 1
      %s217 = scalar_select %p216, %s16, 1
      %s218 = smul.addr %s217, 8
      %s219 = smul.addr %s218, 8
      %s220 = scalar_lea.vmem %s4, %s219
      %p221 = pneg %p126
      %p222 = pneg %p123
      %p223 = pneg %p152
      %p224 = pneg %p149
      %p225 = scmp.lt.s32.totalorder %s16, 1
      %s226 = scalar_select %p225, %s16, 1
      %s227 = smul.addr %s226, 8
      %s228 = smul.addr %s227, 8
      %s229 = scalar_lea.vmem %s5, %s228
      %p230 = scmp.lt.s32.totalorder %s16, 1
      %s231 = scalar_select %p230, %s16, 1
      %s232 = smul.addr %s231, 48
      %s233 = smul.addr %s232, 4
      %s234 = scalar_lea.vmem %s0, %s233
      %p235 = scmp.lt.s32.totalorder %s16, 1
      %s236 = scalar_select %p235, %s16, 1
      %s237 = smul.addr %s236, 8
      %s238 = smul.addr %s237, 8
      %s239 = scalar_lea.vmem %s4, %s238
      %p240 = scmp.lt.s32.totalorder %s16, 1
      %s241 = scalar_select %p240, %s16, 1
      %s242 = smul.addr %s241, 8
      %s243 = smul.addr %s242, 8
      %s244 = scalar_lea.vmem %s5, %s243
      %v247 = vld [vmem:[%s234] sm:$0xf]
      %v248 = vld [vmem:[%s234 + $0x18] sm:$0xf]
      %v249 = vld [vmem:[%s234 + $0x30] sm:$0xf]
      %v250 = vld [vmem:[%s234 + $0x48] sm:$0xf]
      %v251 = vld [vmem:[%s234 + $0x60] sm:$0xf]
      %v252 = vld [vmem:[%s234 + $0x78] sm:$0xf]
      %v253 = vld [vmem:[%s234 + $0x90] sm:$0xf]
      %v254 = vld [vmem:[%s234 + $0xa8] sm:$0xf]
      %v255 = vmul.bf16 %v247, 1043676725
      %v256 = vmul.bf16 %v248, 1043676725
      %v257 = vmul.bf16 %v249, 1043676725
      %v258 = vmul.bf16 %v250, 1043676725
      %v259 = vmul.bf16 %v251, 1043676725
      %v260 = vmul.bf16 %v252, 1043676725
      %v261 = vmul.bf16 %v253, 1043676725
      %v262 = vmul.bf16 %v254, 1043676725
      %v263 = vld [vmem:[%s234 + $0x8] sm:$0xf]
      %v264 = vld [vmem:[%s234 + $0x20] sm:$0xf]
      %v265 = vld [vmem:[%s234 + $0x38] sm:$0xf]
      %v266 = vld [vmem:[%s234 + $0x50] sm:$0xf]
      %v267 = vld [vmem:[%s234 + $0x68] sm:$0xf]
      %v268 = vld [vmem:[%s234 + $0x80] sm:$0xf]
      %v269 = vld [vmem:[%s234 + $0x98] sm:$0xf]
      %v270 = vld [vmem:[%s234 + $0xb0] sm:$0xf]
      %v271 = vld [vmem:[%s234 + $0x10] sm:$0xf]
      %v272 = vld [vmem:[%s234 + $0x28] sm:$0xf]
      %v273 = vld [vmem:[%s234 + $0x40] sm:$0xf]
      %v274 = vld [vmem:[%s234 + $0x58] sm:$0xf]
      %v275 = vld [vmem:[%s234 + $0x70] sm:$0xf]
      %v276 = vld [vmem:[%s234 + $0x88] sm:$0xf]
      %v277 = vld [vmem:[%s234 + $0xa0] sm:$0xf]
      %v278 = vld [vmem:[%s234 + $0xb8] sm:$0xf]
      %v279 = vld [vmem:[%s1] sm:$0xff]
      %v280 = vld [vmem:[%s1 + $0x8] sm:$0xff]
      %v281 = vld [vmem:[%s1 + $0x10] sm:$0xff]
      %v282 = vld [vmem:[%s1 + $0x18] sm:$0xff]
      %v283 = vld [vmem:[%s1 + $0x20] sm:$0xff]
      %v284 = vld [vmem:[%s1 + $0x28] sm:$0xff]
      %v285 = vld [vmem:[%s1 + $0x30] sm:$0xff]
      %v286 = vld [vmem:[%s1 + $0x38] sm:$0xff]
      %v295 = vunpack.c.l.b16 %v255
      %v296 = vunpack.c.l.b16 %v256
      %v297 = vunpack.c.l.b16 %v257
      %v298 = vunpack.c.l.b16 %v258
      %v299 = vunpack.c.l.b16 %v259
      %v300 = vunpack.c.l.b16 %v260
      %v301 = vunpack.c.l.b16 %v261
      %v302 = vunpack.c.l.b16 %v262
      %v303 = vpack.c.b16 %v296, %v295
      %v304 = vpack.c.b16 %v298, %v297
      %v305 = vpack.c.b16 %v300, %v299
      %v306 = vpack.c.b16 %v302, %v301
      %v315 = vunpack.c.l.b16 %v263
      %v316 = vunpack.c.l.b16 %v264
      %v317 = vunpack.c.l.b16 %v265
      %v318 = vunpack.c.l.b16 %v266
      %v319 = vunpack.c.l.b16 %v267
      %v320 = vunpack.c.l.b16 %v268
      %v321 = vunpack.c.l.b16 %v269
      %v322 = vunpack.c.l.b16 %v270
      %v323 = vpack.c.b16 %v316, %v315
      %v324 = vpack.c.b16 %v318, %v317
      %v325 = vpack.c.b16 %v320, %v319
      %v326 = vpack.c.b16 %v322, %v321
      %vm327 = vcmask 261120
      %v329 = vsel %vm327, %v303, 0
      %v332 = vsel %vm327, %v304, 0
      %v335 = vsel %vm327, %v305, 0
      %v338 = vsel %vm327, %v306, 0
      %v341 = vsel %vm327, %v323, 0
      %v344 = vsel %vm327, %v324, 0
      %v347 = vsel %vm327, %v325, 0
      %v350 = vsel %vm327, %v326, 0
      %352 = vmatprep.subr.bf16.mxu0 0
      %353 = vmatpush1.bf16.xpose.msra.mxu0 0
      %354 = vmatprep.subr.bf16.mxu0 0
      %355 = vmatpush1.bf16.xpose.msra.mxu0 0
      %356 = vmatprep.subr.bf16.mxu0 0
      %357 = vmatpush1.bf16.xpose.msra.mxu0 0
      %358 = vmatprep.subr.bf16.mxu0 0
      %359 = vmatpush1.bf16.xpose.msra.mxu0 0
      %360 = vmatprep.subr.bf16.mxu0 0
      %361 = vmatpush1.bf16.xpose.msra.mxu0 %v350
      %362 = vmatprep.subr.bf16.mxu0 0
      %363 = vmatpush1.bf16.xpose.msra.mxu0 %v347
      %364 = vmatprep.subr.bf16.mxu0 0
      %365 = vmatpush1.bf16.xpose.msra.mxu0 %v344
      %366 = vmatprep.subr.bf16.mxu0 0
      %367 = vmatpush1.bf16.xpose.msra.mxu0 %v341
      %368 = vmatprep.subr.bf16.mxu0 0
      %369 = vmatpush2.bf16.xpose.msra.mxu0 0
      %370 = vmatprep.subr.bf16.mxu0 0
      %371 = vmatpush2.bf16.xpose.msra.mxu0 0
      %372 = vmatprep.subr.bf16.mxu0 0
      %373 = vmatpush2.bf16.xpose.msra.mxu0 0
      %374 = vmatprep.subr.bf16.mxu0 0
      %375 = vmatpush2.bf16.xpose.msra.mxu0 0
      %376 = vmatprep.subr.bf16.mxu0 0
      %377 = vmatpush2.bf16.xpose.msra.mxu0 0
      %378 = vmatprep.subr.bf16.mxu0 0
      %379 = vmatpush2.bf16.xpose.msra.mxu0 0
      %380 = vmatprep.subr.bf16.mxu0 0
      %381 = vmatpush2.bf16.xpose.msra.mxu0 0
      %382 = vmatprep.subr.bf16.mxu0 0
      %383 = vmatpush2.bf16.xpose.msra.mxu0 0
      %384 = vmatprep.mubr.bf16.mxu0 0
      %385 = vmatmul.mubr.bf16.gmra.mxu0 %v329
      %v386 = vpop.f32.mrf.mxu0
      %v387 = vadd.f32 %v279, %v386
      %v388 = vpop.f32.mrf.mxu0
      %v389 = vpop.f32.mrf.mxu0
      %v390 = vadd.f32 %v280, %v389
      %v391 = vpop.f32.mrf.mxu0
      %392 = vmatprep.mubr.bf16.mxu0 0
      %393 = vmatmul.mubr.bf16.gmra.mxu0 %v332
      %v394 = vpop.f32.mrf.mxu0
      %v395 = vadd.f32 %v281, %v394
      %v396 = vpop.f32.mrf.mxu0
      %v397 = vpop.f32.mrf.mxu0
      %v398 = vadd.f32 %v282, %v397
      %v399 = vpop.f32.mrf.mxu0
      %400 = vmatprep.mubr.bf16.mxu0 0
      %401 = vmatmul.mubr.bf16.gmra.mxu0 %v335
      %v402 = vpop.f32.mrf.mxu0
      %v403 = vadd.f32 %v283, %v402
      %v404 = vpop.f32.mrf.mxu0
      %v405 = vpop.f32.mrf.mxu0
      %v406 = vadd.f32 %v284, %v405
      %v407 = vpop.f32.mrf.mxu0
      %408 = vmatprep.mubr.bf16.mxu0 0
      %409 = vmatmul.mubr.bf16.gmra.mxu0 %v338
      %v410 = vpop.f32.mrf.mxu0
      %v411 = vadd.f32 %v285, %v410
      %v412 = vpop.f32.mrf.mxu0
      %v413 = vpop.f32.mrf.mxu0
      %v414 = vadd.f32 %v286, %v413
      %v415 = vpop.f32.mrf.mxu0
      %416 = vdwg.mxu0
      %vm417 = vcmask 523264
      %v418 = vsel %vm417, %v387, -inf
      %419 = vmax.xlane.f32.xlu0 %v418
      %v420 = vpop.xlane.xlu0 %419
      %v421 = vsel %vm417, %v390, -inf
      %422 = vmax.xlane.f32.xlu0 %v421
      %v423 = vpop.xlane.xlu0 %422
      %v424 = vsel %vm417, %v395, -inf
      %425 = vmax.xlane.f32.xlu0 %v424
      %v426 = vpop.xlane.xlu0 %425
      %v427 = vsel %vm417, %v398, -inf
      %428 = vmax.xlane.f32.xlu0 %v427
      %v429 = vpop.xlane.xlu0 %428
      %v430 = vsel %vm417, %v403, -inf
      %431 = vmax.xlane.f32.xlu0 %v430
      %v432 = vpop.xlane.xlu0 %431
      %v433 = vsel %vm417, %v406, -inf
      %434 = vmax.xlane.f32.xlu0 %v433
      %v435 = vpop.xlane.xlu0 %434
      %v436 = vsel %vm417, %v411, -inf
      %437 = vmax.xlane.f32.xlu0 %v436
      %v438 = vpop.xlane.xlu0 %437
      %v439 = vsel %vm417, %v414, -inf
      %440 = vmax.xlane.f32.xlu0 %v439
      %v441 = vpop.xlane.xlu0 %440
      %v442 = vsub.f32 %v387, %v420
      %v443 = vsub.f32 %v390, %v423
      %v444 = vsub.f32 %v395, %v426
      %v445 = vsub.f32 %v398, %v429
      %v446 = vsub.f32 %v403, %v432
      %v447 = vsub.f32 %v406, %v435
      %v448 = vsub.f32 %v411, %v438
      %v449 = vsub.f32 %v414, %v441
      %v450 = vmul.f32 %v442, 1.442695
      %v451 = vpow.pop %v450
      %v452 = vmul.f32 %v443, 1.442695
      %v453 = vpow.pop %v452
      %v454 = vmul.f32 %v444, 1.442695
      %v455 = vpow.pop %v454
      %v456 = vmul.f32 %v445, 1.442695
      %v457 = vpow.pop %v456
      %v458 = vmul.f32 %v446, 1.442695
      %v459 = vpow.pop %v458
      %v460 = vmul.f32 %v447, 1.442695
      %v461 = vpow.pop %v460
      %v462 = vmul.f32 %v448, 1.442695
      %v463 = vpow.pop %v462
      %v464 = vmul.f32 %v449, 1.442695
      %v465 = vpow.pop %v464
      %v466 = vsel %vm417, %v451, 0.0
      %467 = vadd.xlane.f32.xlu0 %v466
      %v468 = vpop.xlane.xlu0 %467
      %v469 = vsel %vm417, %v453, 0.0
      %470 = vadd.xlane.f32.xlu0 %v469
      %v471 = vpop.xlane.xlu0 %470
      %v472 = vsel %vm417, %v455, 0.0
      %473 = vadd.xlane.f32.xlu0 %v472
      %v474 = vpop.xlane.xlu0 %473
      %v475 = vsel %vm417, %v457, 0.0
      %476 = vadd.xlane.f32.xlu0 %v475
      %v477 = vpop.xlane.xlu0 %476
      %v478 = vsel %vm417, %v459, 0.0
      %479 = vadd.xlane.f32.xlu0 %v478
      %v480 = vpop.xlane.xlu0 %479
      %v481 = vsel %vm417, %v461, 0.0
      %482 = vadd.xlane.f32.xlu0 %v481
      %v483 = vpop.xlane.xlu0 %482
      %v484 = vsel %vm417, %v463, 0.0
      %485 = vadd.xlane.f32.xlu0 %v484
      %v486 = vpop.xlane.xlu0 %485
      %v487 = vsel %vm417, %v465, 0.0
      %488 = vadd.xlane.f32.xlu0 %v487
      %v489 = vpop.xlane.xlu0 %488
      %v490 = vpack.c.bf16 %v453, %v451
      %v491 = vpack.c.bf16 %v457, %v455
      %v492 = vpack.c.bf16 %v461, %v459
      %v493 = vpack.c.bf16 %v465, %v463
      %v502 = vunpack.c.l.b16 %v271
      %v503 = vunpack.c.l.b16 %v272
      %v504 = vunpack.c.l.b16 %v273
      %v505 = vunpack.c.l.b16 %v274
      %v506 = vunpack.c.l.b16 %v275
      %v507 = vunpack.c.l.b16 %v276
      %v508 = vunpack.c.l.b16 %v277
      %v509 = vunpack.c.l.b16 %v278
      %v510 = vpack.c.b16 %v503, %v502
      %v511 = vpack.c.b16 %v505, %v504
      %v512 = vpack.c.b16 %v507, %v506
      %v513 = vpack.c.b16 %v509, %v508
      %v519 = vsel %vm417, %v490, 0
      %v522 = vsel %vm417, %v491, 0
      %v525 = vsel %vm417, %v492, 0
      %v528 = vsel %vm417, %v493, 0
      %530 = vmatprep.subr.bf16.mxu0 0
      %531 = vmatpush1.bf16.msra.mxu0 0
      %532 = vmatprep.subr.bf16.mxu0 0
      %533 = vmatpush1.bf16.msra.mxu0 0
      %534 = vmatprep.subr.bf16.mxu0 0
      %535 = vmatpush1.bf16.msra.mxu0 0
      %536 = vmatprep.subr.bf16.mxu0 0
      %537 = vmatpush1.bf16.msra.mxu0 0
      %538 = vmatprep.subr.bf16.mxu0 0
      %539 = vmatpush1.bf16.msra.mxu0 %v513
      %540 = vmatprep.subr.bf16.mxu0 0
      %541 = vmatpush1.bf16.msra.mxu0 %v512
      %542 = vmatprep.subr.bf16.mxu0 0
      %543 = vmatpush1.bf16.msra.mxu0 %v511
      %544 = vmatprep.subr.bf16.mxu0 0
      %545 = vmatpush1.bf16.msra.mxu0 %v510
      %546 = vmatprep.subr.bf16.mxu0 0
      %547 = vmatpush2.bf16.msra.mxu0 0
      %548 = vmatprep.subr.bf16.mxu0 0
      %549 = vmatpush2.bf16.msra.mxu0 0
      %550 = vmatprep.subr.bf16.mxu0 0
      %551 = vmatpush2.bf16.msra.mxu0 0
      %552 = vmatprep.subr.bf16.mxu0 0
      %553 = vmatpush2.bf16.msra.mxu0 0
      %554 = vmatprep.subr.bf16.mxu0 0
      %555 = vmatpush2.bf16.msra.mxu0 0
      %556 = vmatprep.subr.bf16.mxu0 0
      %557 = vmatpush2.bf16.msra.mxu0 0
      %558 = vmatprep.subr.bf16.mxu0 0
      %559 = vmatpush2.bf16.msra.mxu0 0
      %560 = vmatprep.subr.bf16.mxu0 0
      %561 = vmatpush2.bf16.msra.mxu0 0
      %562 = vmatprep.mubr.bf16.mxu0 0
      %563 = vmatmul.mubr.bf16.gmra.mxu0 %v519
      %v564 = vpop.f32.mrf.mxu0
      %v565 = vadd.f32 0.0, %v564
      %v566 = vpop.f32.mrf.mxu0
      %v567 = vpop.f32.mrf.mxu0
      %v568 = vadd.f32 0.0, %v567
      %v569 = vpop.f32.mrf.mxu0
      %570 = vmatprep.mubr.bf16.mxu0 0
      %571 = vmatmul.mubr.bf16.gmra.mxu0 %v522
      %v572 = vpop.f32.mrf.mxu0
      %v573 = vadd.f32 0.0, %v572
      %v574 = vpop.f32.mrf.mxu0
      %v575 = vpop.f32.mrf.mxu0
      %v576 = vadd.f32 0.0, %v575
      %v577 = vpop.f32.mrf.mxu0
      %578 = vmatprep.mubr.bf16.mxu0 0
      %579 = vmatmul.mubr.bf16.gmra.mxu0 %v525
      %v580 = vpop.f32.mrf.mxu0
      %v581 = vadd.f32 0.0, %v580
      %v582 = vpop.f32.mrf.mxu0
      %v583 = vpop.f32.mrf.mxu0
      %v584 = vadd.f32 0.0, %v583
      %v585 = vpop.f32.mrf.mxu0
      %586 = vmatprep.mubr.bf16.mxu0 0
      %587 = vmatmul.mubr.bf16.gmra.mxu0 %v528
      %v588 = vpop.f32.mrf.mxu0
      %v589 = vadd.f32 0.0, %v588
      %v590 = vpop.f32.mrf.mxu0
      %v591 = vpop.f32.mrf.mxu0
      %v592 = vadd.f32 0.0, %v591
      %v593 = vpop.f32.mrf.mxu0
      %594 = vdwg.mxu0
      %v595 = vrcp.pop %v468
      %v596 = vrcp.pop %v471
      %v597 = vrcp.pop %v474
      %v598 = vrcp.pop %v477
      %v599 = vrcp.pop %v480
      %v600 = vrcp.pop %v483
      %v601 = vrcp.pop %v486
      %v602 = vrcp.pop %v489
      %v603 = vmul.f32 %v565, %v595
      %v604 = vmul.f32 %v568, %v596
      %v605 = vmul.f32 %v573, %v597
      %v606 = vmul.f32 %v576, %v598
      %v607 = vmul.f32 %v581, %v599
      %v608 = vmul.f32 %v584, %v600
      %v609 = vmul.f32 %v589, %v601
      %v610 = vmul.f32 %v592, %v602
      %s611 = scalar_lea.vmem %s1, 64
      %v612 = vld [vmem:[%s611] sm:$0xff]
      %v613 = vld [vmem:[%s611 + $0x8] sm:$0xff]
      %v614 = vld [vmem:[%s611 + $0x10] sm:$0xff]
      %v615 = vld [vmem:[%s611 + $0x18] sm:$0xff]
      %v616 = vld [vmem:[%s611 + $0x20] sm:$0xff]
      %v617 = vld [vmem:[%s611 + $0x28] sm:$0xff]
      %v618 = vld [vmem:[%s611 + $0x30] sm:$0xff]
      %v619 = vld [vmem:[%s611 + $0x38] sm:$0xff]
      %620 = vrot.lane.b32.xlu0 %v303, 96
      %v621 = vpop.permute.xlu0 %620
      %622 = vrot.lane.b32.xlu0 %v304, 96
      %v623 = vpop.permute.xlu0 %622
      %624 = vrot.lane.b32.xlu0 %v305, 96
      %v625 = vpop.permute.xlu0 %624
      %626 = vrot.lane.b32.xlu0 %v306, 96
      %v627 = vpop.permute.xlu0 %626
      %628 = vrot.lane.b32.xlu0 %v323, 96
      %v629 = vpop.permute.xlu0 %628
      %630 = vrot.lane.b32.xlu0 %v324, 96
      %v631 = vpop.permute.xlu0 %630
      %632 = vrot.lane.b32.xlu0 %v325, 96
      %v633 = vpop.permute.xlu0 %632
      %634 = vrot.lane.b32.xlu0 %v326, 96
      %v635 = vpop.permute.xlu0 %634
      %v637 = vsel %vm327, %v621, 0
      %v640 = vsel %vm327, %v623, 0
      %v643 = vsel %vm327, %v625, 0
      %v646 = vsel %vm327, %v627, 0
      %v649 = vsel %vm327, %v629, 0
      %v652 = vsel %vm327, %v631, 0
      %v655 = vsel %vm327, %v633, 0
      %v658 = vsel %vm327, %v635, 0
      %660 = vmatprep.subr.bf16.mxu0 0
      %661 = vmatpush1.bf16.xpose.msra.mxu0 0
      %662 = vmatprep.subr.bf16.mxu0 0
      %663 = vmatpush1.bf16.xpose.msra.mxu0 0
      %664 = vmatprep.subr.bf16.mxu0 0
      %665 = vmatpush1.bf16.xpose.msra.mxu0 0
      %666 = vmatprep.subr.bf16.mxu0 0
      %667 = vmatpush1.bf16.xpose.msra.mxu0 0
      %668 = vmatprep.subr.bf16.mxu0 0
      %669 = vmatpush1.bf16.xpose.msra.mxu0 %v658
      %670 = vmatprep.subr.bf16.mxu0 0
      %671 = vmatpush1.bf16.xpose.msra.mxu0 %v655
      %672 = vmatprep.subr.bf16.mxu0 0
      %673 = vmatpush1.bf16.xpose.msra.mxu0 %v652
      %674 = vmatprep.subr.bf16.mxu0 0
      %675 = vmatpush1.bf16.xpose.msra.mxu0 %v649
      %676 = vmatprep.subr.bf16.mxu0 0
      %677 = vmatpush2.bf16.xpose.msra.mxu0 0
      %678 = vmatprep.subr.bf16.mxu0 0
      %679 = vmatpush2.bf16.xpose.msra.mxu0 0
      %680 = vmatprep.subr.bf16.mxu0 0
      %681 = vmatpush2.bf16.xpose.msra.mxu0 0
      %682 = vmatprep.subr.bf16.mxu0 0
      %683 = vmatpush2.bf16.xpose.msra.mxu0 0
      %684 = vmatprep.subr.bf16.mxu0 0
      %685 = vmatpush2.bf16.xpose.msra.mxu0 0
      %686 = vmatprep.subr.bf16.mxu0 0
      %687 = vmatpush2.bf16.xpose.msra.mxu0 0
      %688 = vmatprep.subr.bf16.mxu0 0
      %689 = vmatpush2.bf16.xpose.msra.mxu0 0
      %690 = vmatprep.subr.bf16.mxu0 0
      %691 = vmatpush2.bf16.xpose.msra.mxu0 0
      %692 = vmatprep.mubr.bf16.mxu0 0
      %693 = vmatmul.mubr.bf16.gmra.mxu0 %v637
      %v694 = vpop.f32.mrf.mxu0
      %v695 = vadd.f32 %v612, %v694
      %v696 = vpop.f32.mrf.mxu0
      %v697 = vpop.f32.mrf.mxu0
      %v698 = vadd.f32 %v613, %v697
      %v699 = vpop.f32.mrf.mxu0
      %700 = vmatprep.mubr.bf16.mxu0 0
      %701 = vmatmul.mubr.bf16.gmra.mxu0 %v640
      %v702 = vpop.f32.mrf.mxu0
      %v703 = vadd.f32 %v614, %v702
      %v704 = vpop.f32.mrf.mxu0
      %v705 = vpop.f32.mrf.mxu0
      %v706 = vadd.f32 %v615, %v705
      %v707 = vpop.f32.mrf.mxu0
      %708 = vmatprep.mubr.bf16.mxu0 0
      %709 = vmatmul.mubr.bf16.gmra.mxu0 %v643
      %v710 = vpop.f32.mrf.mxu0
      %v711 = vadd.f32 %v616, %v710
      %v712 = vpop.f32.mrf.mxu0
      %v713 = vpop.f32.mrf.mxu0
      %v714 = vadd.f32 %v617, %v713
      %v715 = vpop.f32.mrf.mxu0
      %716 = vmatprep.mubr.bf16.mxu0 0
      %717 = vmatmul.mubr.bf16.gmra.mxu0 %v646
      %v718 = vpop.f32.mrf.mxu0
      %v719 = vadd.f32 %v618, %v718
      %v720 = vpop.f32.mrf.mxu0
      %v721 = vpop.f32.mrf.mxu0
      %v722 = vadd.f32 %v619, %v721
      %v723 = vpop.f32.mrf.mxu0
      %724 = vdwg.mxu0
      %v725 = vsel %vm417, %v695, -inf
      %726 = vmax.xlane.f32.xlu0 %v725
      %v727 = vpop.xlane.xlu0 %726
      %v728 = vsel %vm417, %v698, -inf
      %729 = vmax.xlane.f32.xlu0 %v728
      %v730 = vpop.xlane.xlu0 %729
      %v731 = vsel %vm417, %v703, -inf
      %732 = vmax.xlane.f32.xlu0 %v731
      %v733 = vpop.xlane.xlu0 %732
      %v734 = vsel %vm417, %v706, -inf
      %735 = vmax.xlane.f32.xlu0 %v734
      %v736 = vpop.xlane.xlu0 %735
      %v737 = vsel %vm417, %v711, -inf
      %738 = vmax.xlane.f32.xlu0 %v737
      %v739 = vpop.xlane.xlu0 %738
      %v740 = vsel %vm417, %v714, -inf
      %741 = vmax.xlane.f32.xlu0 %v740
      %v742 = vpop.xlane.xlu0 %741
      %v743 = vsel %vm417, %v719, -inf
      %744 = vmax.xlane.f32.xlu0 %v743
      %v745 = vpop.xlane.xlu0 %744
      %v746 = vsel %vm417, %v722, -inf
      %747 = vmax.xlane.f32.xlu0 %v746
      %v748 = vpop.xlane.xlu0 %747
      %v749 = vsub.f32 %v695, %v727
      %v750 = vsub.f32 %v698, %v730
      %v751 = vsub.f32 %v703, %v733
      %v752 = vsub.f32 %v706, %v736
      %v753 = vsub.f32 %v711, %v739
      %v754 = vsub.f32 %v714, %v742
      %v755 = vsub.f32 %v719, %v745
      %v756 = vsub.f32 %v722, %v748
      %v757 = vmul.f32 %v749, 1.442695
      %v758 = vpow.pop %v757
      %v759 = vmul.f32 %v750, 1.442695
      %v760 = vpow.pop %v759
      %v761 = vmul.f32 %v751, 1.442695
      %v762 = vpow.pop %v761
      %v763 = vmul.f32 %v752, 1.442695
      %v764 = vpow.pop %v763
      %v765 = vmul.f32 %v753, 1.442695
      %v766 = vpow.pop %v765
      %v767 = vmul.f32 %v754, 1.442695
      %v768 = vpow.pop %v767
      %v769 = vmul.f32 %v755, 1.442695
      %v770 = vpow.pop %v769
      %v771 = vmul.f32 %v756, 1.442695
      %v772 = vpow.pop %v771
      %v773 = vsel %vm417, %v758, 0.0
      %774 = vadd.xlane.f32.xlu0 %v773
      %v775 = vpop.xlane.xlu0 %774
      %v776 = vsel %vm417, %v760, 0.0
      %777 = vadd.xlane.f32.xlu0 %v776
      %v778 = vpop.xlane.xlu0 %777
      %v779 = vsel %vm417, %v762, 0.0
      %780 = vadd.xlane.f32.xlu0 %v779
      %v781 = vpop.xlane.xlu0 %780
      %v782 = vsel %vm417, %v764, 0.0
      %783 = vadd.xlane.f32.xlu0 %v782
      %v784 = vpop.xlane.xlu0 %783
      %v785 = vsel %vm417, %v766, 0.0
      %786 = vadd.xlane.f32.xlu0 %v785
      %v787 = vpop.xlane.xlu0 %786
      %v788 = vsel %vm417, %v768, 0.0
      %789 = vadd.xlane.f32.xlu0 %v788
      %v790 = vpop.xlane.xlu0 %789
      %v791 = vsel %vm417, %v770, 0.0
      %792 = vadd.xlane.f32.xlu0 %v791
      %v793 = vpop.xlane.xlu0 %792
      %v794 = vsel %vm417, %v772, 0.0
      %795 = vadd.xlane.f32.xlu0 %v794
      %v796 = vpop.xlane.xlu0 %795
      %v797 = vpack.c.bf16 %v760, %v758
      %v798 = vpack.c.bf16 %v764, %v762
      %v799 = vpack.c.bf16 %v768, %v766
      %v800 = vpack.c.bf16 %v772, %v770
      %801 = vrot.lane.b32.xlu0 %v510, 96
      %v802 = vpop.permute.xlu0 %801
      %803 = vrot.lane.b32.xlu0 %v511, 96
      %v804 = vpop.permute.xlu0 %803
      %805 = vrot.lane.b32.xlu0 %v512, 96
      %v806 = vpop.permute.xlu0 %805
      %807 = vrot.lane.b32.xlu0 %v513, 96
      %v808 = vpop.permute.xlu0 %807
      %v814 = vsel %vm417, %v797, 0
      %v817 = vsel %vm417, %v798, 0
      %v820 = vsel %vm417, %v799, 0
      %v823 = vsel %vm417, %v800, 0
      %825 = vmatprep.subr.bf16.mxu0 0
      %826 = vmatpush1.bf16.msra.mxu0 0
      %827 = vmatprep.subr.bf16.mxu0 0
      %828 = vmatpush1.bf16.msra.mxu0 0
      %829 = vmatprep.subr.bf16.mxu0 0
      %830 = vmatpush1.bf16.msra.mxu0 0
      %831 = vmatprep.subr.bf16.mxu0 0
      %832 = vmatpush1.bf16.msra.mxu0 0
      %833 = vmatprep.subr.bf16.mxu0 0
      %834 = vmatpush1.bf16.msra.mxu0 %v808
      %835 = vmatprep.subr.bf16.mxu0 0
      %836 = vmatpush1.bf16.msra.mxu0 %v806
      %837 = vmatprep.subr.bf16.mxu0 0
      %838 = vmatpush1.bf16.msra.mxu0 %v804
      %839 = vmatprep.subr.bf16.mxu0 0
      %840 = vmatpush1.bf16.msra.mxu0 %v802
      %841 = vmatprep.subr.bf16.mxu0 0
      %842 = vmatpush2.bf16.msra.mxu0 0
      %843 = vmatprep.subr.bf16.mxu0 0
      %844 = vmatpush2.bf16.msra.mxu0 0
      %845 = vmatprep.subr.bf16.mxu0 0
      %846 = vmatpush2.bf16.msra.mxu0 0
      %847 = vmatprep.subr.bf16.mxu0 0
      %848 = vmatpush2.bf16.msra.mxu0 0
      %849 = vmatprep.subr.bf16.mxu0 0
      %850 = vmatpush2.bf16.msra.mxu0 0
      %851 = vmatprep.subr.bf16.mxu0 0
      %852 = vmatpush2.bf16.msra.mxu0 0
      %853 = vmatprep.subr.bf16.mxu0 0
      %854 = vmatpush2.bf16.msra.mxu0 0
      %855 = vmatprep.subr.bf16.mxu0 0
      %856 = vmatpush2.bf16.msra.mxu0 0
      %857 = vmatprep.mubr.bf16.mxu0 0
      %858 = vmatmul.mubr.bf16.gmra.mxu0 %v814
      %v859 = vpop.f32.mrf.mxu0
      %v860 = vadd.f32 0.0, %v859
      %v861 = vpop.f32.mrf.mxu0
      %v862 = vpop.f32.mrf.mxu0
      %v863 = vadd.f32 0.0, %v862
      %v864 = vpop.f32.mrf.mxu0
      %865 = vmatprep.mubr.bf16.mxu0 0
      %866 = vmatmul.mubr.bf16.gmra.mxu0 %v817
      %v867 = vpop.f32.mrf.mxu0
      %v868 = vadd.f32 0.0, %v867
      %v869 = vpop.f32.mrf.mxu0
      %v870 = vpop.f32.mrf.mxu0
      %v871 = vadd.f32 0.0, %v870
      %v872 = vpop.f32.mrf.mxu0
      %873 = vmatprep.mubr.bf16.mxu0 0
      %874 = vmatmul.mubr.bf16.gmra.mxu0 %v820
      %v875 = vpop.f32.mrf.mxu0
      %v876 = vadd.f32 0.0, %v875
      %v877 = vpop.f32.mrf.mxu0
      %v878 = vpop.f32.mrf.mxu0
      %v879 = vadd.f32 0.0, %v878
      %v880 = vpop.f32.mrf.mxu0
      %881 = vmatprep.mubr.bf16.mxu0 0
      %882 = vmatmul.mubr.bf16.gmra.mxu0 %v823
      %v883 = vpop.f32.mrf.mxu0
      %v884 = vadd.f32 0.0, %v883
      %v885 = vpop.f32.mrf.mxu0
      %v886 = vpop.f32.mrf.mxu0
      %v887 = vadd.f32 0.0, %v886
      %v888 = vpop.f32.mrf.mxu0
      %889 = vdwg.mxu0
      %v890 = vrcp.pop %v775
      %v891 = vrcp.pop %v778
      %v892 = vrcp.pop %v781
      %v893 = vrcp.pop %v784
      %v894 = vrcp.pop %v787
      %v895 = vrcp.pop %v790
      %v896 = vrcp.pop %v793
      %v897 = vrcp.pop %v796
      %v898 = vmul.f32 %v860, %v890
      %v899 = vmul.f32 %v863, %v891
      %v900 = vmul.f32 %v868, %v892
      %v901 = vmul.f32 %v871, %v893
      %v902 = vmul.f32 %v876, %v894
      %v903 = vmul.f32 %v879, %v895
      %v904 = vmul.f32 %v884, %v896
      %v905 = vmul.f32 %v887, %v897
      %s906 = scalar_lea.vmem %s1, 128
      %v907 = vld [vmem:[%s906] sm:$0xff]
      %v908 = vld [vmem:[%s906 + $0x8] sm:$0xff]
      %v909 = vld [vmem:[%s906 + $0x10] sm:$0xff]
      %v910 = vld [vmem:[%s906 + $0x18] sm:$0xff]
      %v911 = vld [vmem:[%s906 + $0x20] sm:$0xff]
      %v912 = vld [vmem:[%s906 + $0x28] sm:$0xff]
      %v913 = vld [vmem:[%s906 + $0x30] sm:$0xff]
      %v914 = vld [vmem:[%s906 + $0x38] sm:$0xff]
      %915 = vrot.lane.b32.xlu0 %v303, 64
      %v916 = vpop.permute.xlu0 %915
      %917 = vrot.lane.b32.xlu0 %v304, 64
      %v918 = vpop.permute.xlu0 %917
      %919 = vrot.lane.b32.xlu0 %v305, 64
      %v920 = vpop.permute.xlu0 %919
      %921 = vrot.lane.b32.xlu0 %v306, 64
      %v922 = vpop.permute.xlu0 %921
      %923 = vrot.lane.b32.xlu0 %v323, 64
      %v924 = vpop.permute.xlu0 %923
      %925 = vrot.lane.b32.xlu0 %v324, 64
      %v926 = vpop.permute.xlu0 %925
      %927 = vrot.lane.b32.xlu0 %v325, 64
      %v928 = vpop.permute.xlu0 %927
      %929 = vrot.lane.b32.xlu0 %v326, 64
      %v930 = vpop.permute.xlu0 %929
      %v932 = vsel %vm327, %v916, 0
      %v935 = vsel %vm327, %v918, 0
      %v938 = vsel %vm327, %v920, 0
      %v941 = vsel %vm327, %v922, 0
      %v944 = vsel %vm327, %v924, 0
      %v947 = vsel %vm327, %v926, 0
      %v950 = vsel %vm327, %v928, 0
      %v953 = vsel %vm327, %v930, 0
      %955 = vmatprep.subr.bf16.mxu0 0
      %956 = vmatpush1.bf16.xpose.msra.mxu0 0
      %957 = vmatprep.subr.bf16.mxu0 0
      %958 = vmatpush1.bf16.xpose.msra.mxu0 0
      %959 = vmatprep.subr.bf16.mxu0 0
      %960 = vmatpush1.bf16.xpose.msra.mxu0 0
      %961 = vmatprep.subr.bf16.mxu0 0
      %962 = vmatpush1.bf16.xpose.msra.mxu0 0
      %963 = vmatprep.subr.bf16.mxu0 0
      %964 = vmatpush1.bf16.xpose.msra.mxu0 %v953
      %965 = vmatprep.subr.bf16.mxu0 0
      %966 = vmatpush1.bf16.xpose.msra.mxu0 %v950
      %967 = vmatprep.subr.bf16.mxu0 0
      %968 = vmatpush1.bf16.xpose.msra.mxu0 %v947
      %969 = vmatprep.subr.bf16.mxu0 0
      %970 = vmatpush1.bf16.xpose.msra.mxu0 %v944
      %971 = vmatprep.subr.bf16.mxu0 0
      %972 = vmatpush2.bf16.xpose.msra.mxu0 0
      %973 = vmatprep.subr.bf16.mxu0 0
      %974 = vmatpush2.bf16.xpose.msra.mxu0 0
      %975 = vmatprep.subr.bf16.mxu0 0
      %976 = vmatpush2.bf16.xpose.msra.mxu0 0
      %977 = vmatprep.subr.bf16.mxu0 0
      %978 = vmatpush2.bf16.xpose.msra.mxu0 0
      %979 = vmatprep.subr.bf16.mxu0 0
      %980 = vmatpush2.bf16.xpose.msra.mxu0 0
      %981 = vmatprep.subr.bf16.mxu0 0
      %982 = vmatpush2.bf16.xpose.msra.mxu0 0
      %983 = vmatprep.subr.bf16.mxu0 0
      %984 = vmatpush2.bf16.xpose.msra.mxu0 0
      %985 = vmatprep.subr.bf16.mxu0 0
      %986 = vmatpush2.bf16.xpose.msra.mxu0 0
      %987 = vmatprep.mubr.bf16.mxu0 0
      %988 = vmatmul.mubr.bf16.gmra.mxu0 %v932
      %v989 = vpop.f32.mrf.mxu0
      %v990 = vadd.f32 %v907, %v989
      %v991 = vpop.f32.mrf.mxu0
      %v992 = vpop.f32.mrf.mxu0
      %v993 = vadd.f32 %v908, %v992
      %v994 = vpop.f32.mrf.mxu0
      %995 = vmatprep.mubr.bf16.mxu0 0
      %996 = vmatmul.mubr.bf16.gmra.mxu0 %v935
      %v997 = vpop.f32.mrf.mxu0
      %v998 = vadd.f32 %v909, %v997
      %v999 = vpop.f32.mrf.mxu0
      %v1000 = vpop.f32.mrf.mxu0
      %v1001 = vadd.f32 %v910, %v1000
      %v1002 = vpop.f32.mrf.mxu0
      %1003 = vmatprep.mubr.bf16.mxu0 0
      %1004 = vmatmul.mubr.bf16.gmra.mxu0 %v938
      %v1005 = vpop.f32.mrf.mxu0
      %v1006 = vadd.f32 %v911, %v1005
      %v1007 = vpop.f32.mrf.mxu0
      %v1008 = vpop.f32.mrf.mxu0
      %v1009 = vadd.f32 %v912, %v1008
      %v1010 = vpop.f32.mrf.mxu0
      %1011 = vmatprep.mubr.bf16.mxu0 0
      %1012 = vmatmul.mubr.bf16.gmra.mxu0 %v941
      %v1013 = vpop.f32.mrf.mxu0
      %v1014 = vadd.f32 %v913, %v1013
      %v1015 = vpop.f32.mrf.mxu0
      %v1016 = vpop.f32.mrf.mxu0
      %v1017 = vadd.f32 %v914, %v1016
      %v1018 = vpop.f32.mrf.mxu0
      %1019 = vdwg.mxu0
      %v1020 = vsel %vm417, %v990, -inf
      %1021 = vmax.xlane.f32.xlu0 %v1020
      %v1022 = vpop.xlane.xlu0 %1021
      %v1023 = vsel %vm417, %v993, -inf
      %1024 = vmax.xlane.f32.xlu0 %v1023
      %v1025 = vpop.xlane.xlu0 %1024
      %v1026 = vsel %vm417, %v998, -inf
      %1027 = vmax.xlane.f32.xlu0 %v1026
      %v1028 = vpop.xlane.xlu0 %1027
      %v1029 = vsel %vm417, %v1001, -inf
      %1030 = vmax.xlane.f32.xlu0 %v1029
      %v1031 = vpop.xlane.xlu0 %1030
      %v1032 = vsel %vm417, %v1006, -inf
      %1033 = vmax.xlane.f32.xlu0 %v1032
      %v1034 = vpop.xlane.xlu0 %1033
      %v1035 = vsel %vm417, %v1009, -inf
      %1036 = vmax.xlane.f32.xlu0 %v1035
      %v1037 = vpop.xlane.xlu0 %1036
      %v1038 = vsel %vm417, %v1014, -inf
      %1039 = vmax.xlane.f32.xlu0 %v1038
      %v1040 = vpop.xlane.xlu0 %1039
      %v1041 = vsel %vm417, %v1017, -inf
      %1042 = vmax.xlane.f32.xlu0 %v1041
      %v1043 = vpop.xlane.xlu0 %1042
      %v1044 = vsub.f32 %v990, %v1022
      %v1045 = vsub.f32 %v993, %v1025
      %v1046 = vsub.f32 %v998, %v1028
      %v1047 = vsub.f32 %v1001, %v1031
      %v1048 = vsub.f32 %v1006, %v1034
      %v1049 = vsub.f32 %v1009, %v1037
      %v1050 = vsub.f32 %v1014, %v1040
      %v1051 = vsub.f32 %v1017, %v1043
      %v1052 = vmul.f32 %v1044, 1.442695
      %v1053 = vpow.pop %v1052
      %v1054 = vmul.f32 %v1045, 1.442695
      %v1055 = vpow.pop %v1054
      %v1056 = vmul.f32 %v1046, 1.442695
      %v1057 = vpow.pop %v1056
      %v1058 = vmul.f32 %v1047, 1.442695
      %v1059 = vpow.pop %v1058
      %v1060 = vmul.f32 %v1048, 1.442695
      %v1061 = vpow.pop %v1060
      %v1062 = vmul.f32 %v1049, 1.442695
      %v1063 = vpow.pop %v1062
      %v1064 = vmul.f32 %v1050, 1.442695
      %v1065 = vpow.pop %v1064
      %v1066 = vmul.f32 %v1051, 1.442695
      %v1067 = vpow.pop %v1066
      %v1068 = vsel %vm417, %v1053, 0.0
      %1069 = vadd.xlane.f32.xlu0 %v1068
      %v1070 = vpop.xlane.xlu0 %1069
      %v1071 = vsel %vm417, %v1055, 0.0
      %1072 = vadd.xlane.f32.xlu0 %v1071
      %v1073 = vpop.xlane.xlu0 %1072
      %v1074 = vsel %vm417, %v1057, 0.0
      %1075 = vadd.xlane.f32.xlu0 %v1074
      %v1076 = vpop.xlane.xlu0 %1075
      %v1077 = vsel %vm417, %v1059, 0.0
      %1078 = vadd.xlane.f32.xlu0 %v1077
      %v1079 = vpop.xlane.xlu0 %1078
      %v1080 = vsel %vm417, %v1061, 0.0
      %1081 = vadd.xlane.f32.xlu0 %v1080
      %v1082 = vpop.xlane.xlu0 %1081
      %v1083 = vsel %vm417, %v1063, 0.0
      %1084 = vadd.xlane.f32.xlu0 %v1083
      %v1085 = vpop.xlane.xlu0 %1084
      %v1086 = vsel %vm417, %v1065, 0.0
      %1087 = vadd.xlane.f32.xlu0 %v1086
      %v1088 = vpop.xlane.xlu0 %1087
      %v1089 = vsel %vm417, %v1067, 0.0
      %1090 = vadd.xlane.f32.xlu0 %v1089
      %v1091 = vpop.xlane.xlu0 %1090
      %v1092 = vpack.c.bf16 %v1055, %v1053
      %v1093 = vpack.c.bf16 %v1059, %v1057
      %v1094 = vpack.c.bf16 %v1063, %v1061
      %v1095 = vpack.c.bf16 %v1067, %v1065
      %1096 = vrot.lane.b32.xlu0 %v510, 64
      %v1097 = vpop.permute.xlu0 %1096
      %1098 = vrot.lane.b32.xlu0 %v511, 64
      %v1099 = vpop.permute.xlu0 %1098
      %1100 = vrot.lane.b32.xlu0 %v512, 64
      %v1101 = vpop.permute.xlu0 %1100
      %1102 = vrot.lane.b32.xlu0 %v513, 64
      %v1103 = vpop.permute.xlu0 %1102
      %v1109 = vsel %vm417, %v1092, 0
      %v1112 = vsel %vm417, %v1093, 0
      %v1115 = vsel %vm417, %v1094, 0
      %v1118 = vsel %vm417, %v1095, 0
      %1120 = vmatprep.subr.bf16.mxu0 0
      %1121 = vmatpush1.bf16.msra.mxu0 0
      %1122 = vmatprep.subr.bf16.mxu0 0
      %1123 = vmatpush1.bf16.msra.mxu0 0
      %1124 = vmatprep.subr.bf16.mxu0 0
      %1125 = vmatpush1.bf16.msra.mxu0 0
      %1126 = vmatprep.subr.bf16.mxu0 0
      %1127 = vmatpush1.bf16.msra.mxu0 0
      %1128 = vmatprep.subr.bf16.mxu0 0
      %1129 = vmatpush1.bf16.msra.mxu0 %v1103
      %1130 = vmatprep.subr.bf16.mxu0 0
      %1131 = vmatpush1.bf16.msra.mxu0 %v1101
      %1132 = vmatprep.subr.bf16.mxu0 0
      %1133 = vmatpush1.bf16.msra.mxu0 %v1099
      %1134 = vmatprep.subr.bf16.mxu0 0
      %1135 = vmatpush1.bf16.msra.mxu0 %v1097
      %1136 = vmatprep.subr.bf16.mxu0 0
      %1137 = vmatpush2.bf16.msra.mxu0 0
      %1138 = vmatprep.subr.bf16.mxu0 0
      %1139 = vmatpush2.bf16.msra.mxu0 0
      %1140 = vmatprep.subr.bf16.mxu0 0
      %1141 = vmatpush2.bf16.msra.mxu0 0
      %1142 = vmatprep.subr.bf16.mxu0 0
      %1143 = vmatpush2.bf16.msra.mxu0 0
      %1144 = vmatprep.subr.bf16.mxu0 0
      %1145 = vmatpush2.bf16.msra.mxu0 0
      %1146 = vmatprep.subr.bf16.mxu0 0
      %1147 = vmatpush2.bf16.msra.mxu0 0
      %1148 = vmatprep.subr.bf16.mxu0 0
      %1149 = vmatpush2.bf16.msra.mxu0 0
      %1150 = vmatprep.subr.bf16.mxu0 0
      %1151 = vmatpush2.bf16.msra.mxu0 0
      %1152 = vmatprep.mubr.bf16.mxu0 0
      %1153 = vmatmul.mubr.bf16.gmra.mxu0 %v1109
      %v1154 = vpop.f32.mrf.mxu0
      %v1155 = vadd.f32 0.0, %v1154
      %v1156 = vpop.f32.mrf.mxu0
      %v1157 = vpop.f32.mrf.mxu0
      %v1158 = vadd.f32 0.0, %v1157
      %v1159 = vpop.f32.mrf.mxu0
      %1160 = vmatprep.mubr.bf16.mxu0 0
      %1161 = vmatmul.mubr.bf16.gmra.mxu0 %v1112
      %v1162 = vpop.f32.mrf.mxu0
      %v1163 = vadd.f32 0.0, %v1162
      %v1164 = vpop.f32.mrf.mxu0
      %v1165 = vpop.f32.mrf.mxu0
      %v1166 = vadd.f32 0.0, %v1165
      %v1167 = vpop.f32.mrf.mxu0
      %1168 = vmatprep.mubr.bf16.mxu0 0
      %1169 = vmatmul.mubr.bf16.gmra.mxu0 %v1115
      %v1170 = vpop.f32.mrf.mxu0
      %v1171 = vadd.f32 0.0, %v1170
      %v1172 = vpop.f32.mrf.mxu0
      %v1173 = vpop.f32.mrf.mxu0
      %v1174 = vadd.f32 0.0, %v1173
      %v1175 = vpop.f32.mrf.mxu0
      %1176 = vmatprep.mubr.bf16.mxu0 0
      %1177 = vmatmul.mubr.bf16.gmra.mxu0 %v1118
      %v1178 = vpop.f32.mrf.mxu0
      %v1179 = vadd.f32 0.0, %v1178
      %v1180 = vpop.f32.mrf.mxu0
      %v1181 = vpop.f32.mrf.mxu0
      %v1182 = vadd.f32 0.0, %v1181
      %v1183 = vpop.f32.mrf.mxu0
      %1184 = vdwg.mxu0
      %v1185 = vrcp.pop %v1070
      %v1186 = vrcp.pop %v1073
      %v1187 = vrcp.pop %v1076
      %v1188 = vrcp.pop %v1079
      %v1189 = vrcp.pop %v1082
      %v1190 = vrcp.pop %v1085
      %v1191 = vrcp.pop %v1088
      %v1192 = vrcp.pop %v1091
      %v1193 = vmul.f32 %v1155, %v1185
      %v1194 = vmul.f32 %v1158, %v1186
      %v1195 = vmul.f32 %v1163, %v1187
      %v1196 = vmul.f32 %v1166, %v1188
      %v1197 = vmul.f32 %v1171, %v1189
      %v1198 = vmul.f32 %v1174, %v1190
      %v1199 = vmul.f32 %v1179, %v1191
      %v1200 = vmul.f32 %v1182, %v1192
      %s1201 = scalar_lea.vmem %s1, 192
      %v1202 = vld [vmem:[%s1201] sm:$0xff]
      %v1203 = vld [vmem:[%s1201 + $0x8] sm:$0xff]
      %v1204 = vld [vmem:[%s1201 + $0x10] sm:$0xff]
      %v1205 = vld [vmem:[%s1201 + $0x18] sm:$0xff]
      %v1206 = vld [vmem:[%s1201 + $0x20] sm:$0xff]
      %v1207 = vld [vmem:[%s1201 + $0x28] sm:$0xff]
      %v1208 = vld [vmem:[%s1201 + $0x30] sm:$0xff]
      %v1209 = vld [vmem:[%s1201 + $0x38] sm:$0xff]
      %1210 = vrot.lane.b32.xlu0 %v303, 32
      %v1211 = vpop.permute.xlu0 %1210
      %1212 = vrot.lane.b32.xlu0 %v304, 32
      %v1213 = vpop.permute.xlu0 %1212
      %1214 = vrot.lane.b32.xlu0 %v305, 32
      %v1215 = vpop.permute.xlu0 %1214
      %1216 = vrot.lane.b32.xlu0 %v306, 32
      %v1217 = vpop.permute.xlu0 %1216
      %1218 = vrot.lane.b32.xlu0 %v323, 32
      %v1219 = vpop.permute.xlu0 %1218
      %1220 = vrot.lane.b32.xlu0 %v324, 32
      %v1221 = vpop.permute.xlu0 %1220
      %1222 = vrot.lane.b32.xlu0 %v325, 32
      %v1223 = vpop.permute.xlu0 %1222
      %1224 = vrot.lane.b32.xlu0 %v326, 32
      %v1225 = vpop.permute.xlu0 %1224
      %v1227 = vsel %vm327, %v1211, 0
      %v1230 = vsel %vm327, %v1213, 0
      %v1233 = vsel %vm327, %v1215, 0
      %v1236 = vsel %vm327, %v1217, 0
      %v1239 = vsel %vm327, %v1219, 0
      %v1242 = vsel %vm327, %v1221, 0
      %v1245 = vsel %vm327, %v1223, 0
      %v1248 = vsel %vm327, %v1225, 0
      %1250 = vmatprep.subr.bf16.mxu0 0
      %1251 = vmatpush1.bf16.xpose.msra.mxu0 0
      %1252 = vmatprep.subr.bf16.mxu0 0
      %1253 = vmatpush1.bf16.xpose.msra.mxu0 0
      %1254 = vmatprep.subr.bf16.mxu0 0
      %1255 = vmatpush1.bf16.xpose.msra.mxu0 0
      %1256 = vmatprep.subr.bf16.mxu0 0
      %1257 = vmatpush1.bf16.xpose.msra.mxu0 0
      %1258 = vmatprep.subr.bf16.mxu0 0
      %1259 = vmatpush1.bf16.xpose.msra.mxu0 %v1248
      %1260 = vmatprep.subr.bf16.mxu0 0
      %1261 = vmatpush1.bf16.xpose.msra.mxu0 %v1245
      %1262 = vmatprep.subr.bf16.mxu0 0
      %1263 = vmatpush1.bf16.xpose.msra.mxu0 %v1242
      %1264 = vmatprep.subr.bf16.mxu0 0
      %1265 = vmatpush1.bf16.xpose.msra.mxu0 %v1239
      %1266 = vmatprep.subr.bf16.mxu0 0
      %1267 = vmatpush2.bf16.xpose.msra.mxu0 0
      %1268 = vmatprep.subr.bf16.mxu0 0
      %1269 = vmatpush2.bf16.xpose.msra.mxu0 0
      %1270 = vmatprep.subr.bf16.mxu0 0
      %1271 = vmatpush2.bf16.xpose.msra.mxu0 0
      %1272 = vmatprep.subr.bf16.mxu0 0
      %1273 = vmatpush2.bf16.xpose.msra.mxu0 0
      %1274 = vmatprep.subr.bf16.mxu0 0
      %1275 = vmatpush2.bf16.xpose.msra.mxu0 0
      %1276 = vmatprep.subr.bf16.mxu0 0
      %1277 = vmatpush2.bf16.xpose.msra.mxu0 0
      %1278 = vmatprep.subr.bf16.mxu0 0
      %1279 = vmatpush2.bf16.xpose.msra.mxu0 0
      %1280 = vmatprep.subr.bf16.mxu0 0
      %1281 = vmatpush2.bf16.xpose.msra.mxu0 0
      %1282 = vmatprep.mubr.bf16.mxu0 0
      %1283 = vmatmul.mubr.bf16.gmra.mxu0 %v1227
      %v1284 = vpop.f32.mrf.mxu0
      %v1285 = vadd.f32 %v1202, %v1284
      %v1286 = vpop.f32.mrf.mxu0
      %v1287 = vpop.f32.mrf.mxu0
      %v1288 = vadd.f32 %v1203, %v1287
      %v1289 = vpop.f32.mrf.mxu0
      %1290 = vmatprep.mubr.bf16.mxu0 0
      %1291 = vmatmul.mubr.bf16.gmra.mxu0 %v1230
      %v1292 = vpop.f32.mrf.mxu0
      %v1293 = vadd.f32 %v1204, %v1292
      %v1294 = vpop.f32.mrf.mxu0
      %v1295 = vpop.f32.mrf.mxu0
      %v1296 = vadd.f32 %v1205, %v1295
      %v1297 = vpop.f32.mrf.mxu0
      %1298 = vmatprep.mubr.bf16.mxu0 0
      %1299 = vmatmul.mubr.bf16.gmra.mxu0 %v1233
      %v1300 = vpop.f32.mrf.mxu0
      %v1301 = vadd.f32 %v1206, %v1300
      %v1302 = vpop.f32.mrf.mxu0
      %v1303 = vpop.f32.mrf.mxu0
      %v1304 = vadd.f32 %v1207, %v1303
      %v1305 = vpop.f32.mrf.mxu0
      %1306 = vmatprep.mubr.bf16.mxu0 0
      %1307 = vmatmul.mubr.bf16.gmra.mxu0 %v1236
      %v1308 = vpop.f32.mrf.mxu0
      %v1309 = vadd.f32 %v1208, %v1308
      %v1310 = vpop.f32.mrf.mxu0
      %v1311 = vpop.f32.mrf.mxu0
      %v1312 = vadd.f32 %v1209, %v1311
      %v1313 = vpop.f32.mrf.mxu0
      %1314 = vdwg.mxu0
      %v1315 = vsel %vm417, %v1285, -inf
      %1316 = vmax.xlane.f32.xlu0 %v1315
      %v1317 = vpop.xlane.xlu0 %1316
      %v1318 = vsel %vm417, %v1288, -inf
      %1319 = vmax.xlane.f32.xlu0 %v1318
      %v1320 = vpop.xlane.xlu0 %1319
      %v1321 = vsel %vm417, %v1293, -inf
      %1322 = vmax.xlane.f32.xlu0 %v1321
      %v1323 = vpop.xlane.xlu0 %1322
      %v1324 = vsel %vm417, %v1296, -inf
      %1325 = vmax.xlane.f32.xlu0 %v1324
      %v1326 = vpop.xlane.xlu0 %1325
      %v1327 = vsel %vm417, %v1301, -inf
      %1328 = vmax.xlane.f32.xlu0 %v1327
      %v1329 = vpop.xlane.xlu0 %1328
      %v1330 = vsel %vm417, %v1304, -inf
      %1331 = vmax.xlane.f32.xlu0 %v1330
      %v1332 = vpop.xlane.xlu0 %1331
      %v1333 = vsel %vm417, %v1309, -inf
      %1334 = vmax.xlane.f32.xlu0 %v1333
      %v1335 = vpop.xlane.xlu0 %1334
      %v1336 = vsel %vm417, %v1312, -inf
      %1337 = vmax.xlane.f32.xlu0 %v1336
      %v1338 = vpop.xlane.xlu0 %1337
      %v1339 = vsub.f32 %v1285, %v1317
      %v1340 = vsub.f32 %v1288, %v1320
      %v1341 = vsub.f32 %v1293, %v1323
      %v1342 = vsub.f32 %v1296, %v1326
      %v1343 = vsub.f32 %v1301, %v1329
      %v1344 = vsub.f32 %v1304, %v1332
      %v1345 = vsub.f32 %v1309, %v1335
      %v1346 = vsub.f32 %v1312, %v1338
      %v1347 = vmul.f32 %v1339, 1.442695
      %v1348 = vpow.pop %v1347
      %v1349 = vmul.f32 %v1340, 1.442695
      %v1350 = vpow.pop %v1349
      %v1351 = vmul.f32 %v1341, 1.442695
      %v1352 = vpow.pop %v1351
      %v1353 = vmul.f32 %v1342, 1.442695
      %v1354 = vpow.pop %v1353
      %v1355 = vmul.f32 %v1343, 1.442695
      %v1356 = vpow.pop %v1355
      %v1357 = vmul.f32 %v1344, 1.442695
      %v1358 = vpow.pop %v1357
      %v1359 = vmul.f32 %v1345, 1.442695
      %v1360 = vpow.pop %v1359
      %v1361 = vmul.f32 %v1346, 1.442695
      %v1362 = vpow.pop %v1361
      %v1363 = vsel %vm417, %v1348, 0.0
      %1364 = vadd.xlane.f32.xlu0 %v1363
      %v1365 = vpop.xlane.xlu0 %1364
      %v1366 = vsel %vm417, %v1350, 0.0
      %1367 = vadd.xlane.f32.xlu0 %v1366
      %v1368 = vpop.xlane.xlu0 %1367
      %v1369 = vsel %vm417, %v1352, 0.0
      %1370 = vadd.xlane.f32.xlu0 %v1369
      %v1371 = vpop.xlane.xlu0 %1370
      %v1372 = vsel %vm417, %v1354, 0.0
      %1373 = vadd.xlane.f32.xlu0 %v1372
      %v1374 = vpop.xlane.xlu0 %1373
      %v1375 = vsel %vm417, %v1356, 0.0
      %1376 = vadd.xlane.f32.xlu0 %v1375
      %v1377 = vpop.xlane.xlu0 %1376
      %v1378 = vsel %vm417, %v1358, 0.0
      %1379 = vadd.xlane.f32.xlu0 %v1378
      %v1380 = vpop.xlane.xlu0 %1379
      %v1381 = vsel %vm417, %v1360, 0.0
      %1382 = vadd.xlane.f32.xlu0 %v1381
      %v1383 = vpop.xlane.xlu0 %1382
      %v1384 = vsel %vm417, %v1362, 0.0
      %1385 = vadd.xlane.f32.xlu0 %v1384
      %v1386 = vpop.xlane.xlu0 %1385
      %v1387 = vpack.c.bf16 %v1350, %v1348
      %v1388 = vpack.c.bf16 %v1354, %v1352
      %v1389 = vpack.c.bf16 %v1358, %v1356
      %v1390 = vpack.c.bf16 %v1362, %v1360
      %1391 = vrot.lane.b32.xlu0 %v510, 32
      %v1392 = vpop.permute.xlu0 %1391
      %1393 = vrot.lane.b32.xlu0 %v511, 32
      %v1394 = vpop.permute.xlu0 %1393
      %1395 = vrot.lane.b32.xlu0 %v512, 32
      %v1396 = vpop.permute.xlu0 %1395
      %1397 = vrot.lane.b32.xlu0 %v513, 32
      %v1398 = vpop.permute.xlu0 %1397
      %v1404 = vsel %vm417, %v1387, 0
      %v1407 = vsel %vm417, %v1388, 0
      %v1410 = vsel %vm417, %v1389, 0
      %v1413 = vsel %vm417, %v1390, 0
      %1415 = vmatprep.subr.bf16.mxu0 0
      %1416 = vmatpush1.bf16.msra.mxu0 0
      %1417 = vmatprep.subr.bf16.mxu0 0
      %1418 = vmatpush1.bf16.msra.mxu0 0
      %1419 = vmatprep.subr.bf16.mxu0 0
      %1420 = vmatpush1.bf16.msra.mxu0 0
      %1421 = vmatprep.subr.bf16.mxu0 0
      %1422 = vmatpush1.bf16.msra.mxu0 0
      %1423 = vmatprep.subr.bf16.mxu0 0
      %1424 = vmatpush1.bf16.msra.mxu0 %v1398
      %1425 = vmatprep.subr.bf16.mxu0 0
      %1426 = vmatpush1.bf16.msra.mxu0 %v1396
      %1427 = vmatprep.subr.bf16.mxu0 0
      %1428 = vmatpush1.bf16.msra.mxu0 %v1394
      %1429 = vmatprep.subr.bf16.mxu0 0
      %1430 = vmatpush1.bf16.msra.mxu0 %v1392
      %1431 = vmatprep.subr.bf16.mxu0 0
      %1432 = vmatpush2.bf16.msra.mxu0 0
      %1433 = vmatprep.subr.bf16.mxu0 0
      %1434 = vmatpush2.bf16.msra.mxu0 0
      %1435 = vmatprep.subr.bf16.mxu0 0
      %1436 = vmatpush2.bf16.msra.mxu0 0
      %1437 = vmatprep.subr.bf16.mxu0 0
      %1438 = vmatpush2.bf16.msra.mxu0 0
      %1439 = vmatprep.subr.bf16.mxu0 0
      %1440 = vmatpush2.bf16.msra.mxu0 0
      %1441 = vmatprep.subr.bf16.mxu0 0
      %1442 = vmatpush2.bf16.msra.mxu0 0
      %1443 = vmatprep.subr.bf16.mxu0 0
      %1444 = vmatpush2.bf16.msra.mxu0 0
      %1445 = vmatprep.subr.bf16.mxu0 0
      %1446 = vmatpush2.bf16.msra.mxu0 0
      %1447 = vmatprep.mubr.bf16.mxu0 0
      %1448 = vmatmul.mubr.bf16.gmra.mxu0 %v1404
      %v1449 = vpop.f32.mrf.mxu0
      %v1450 = vadd.f32 0.0, %v1449
      %v1451 = vpop.f32.mrf.mxu0
      %v1452 = vpop.f32.mrf.mxu0
      %v1453 = vadd.f32 0.0, %v1452
      %v1454 = vpop.f32.mrf.mxu0
      %1455 = vmatprep.mubr.bf16.mxu0 0
      %1456 = vmatmul.mubr.bf16.gmra.mxu0 %v1407
      %v1457 = vpop.f32.mrf.mxu0
      %v1458 = vadd.f32 0.0, %v1457
      %v1459 = vpop.f32.mrf.mxu0
      %v1460 = vpop.f32.mrf.mxu0
      %v1461 = vadd.f32 0.0, %v1460
      %v1462 = vpop.f32.mrf.mxu0
      %1463 = vmatprep.mubr.bf16.mxu0 0
      %1464 = vmatmul.mubr.bf16.gmra.mxu0 %v1410
      %v1465 = vpop.f32.mrf.mxu0
      %v1466 = vadd.f32 0.0, %v1465
      %v1467 = vpop.f32.mrf.mxu0
      %v1468 = vpop.f32.mrf.mxu0
      %v1469 = vadd.f32 0.0, %v1468
      %v1470 = vpop.f32.mrf.mxu0
      %1471 = vmatprep.mubr.bf16.mxu0 0
      %1472 = vmatmul.mubr.bf16.gmra.mxu0 %v1413
      %v1473 = vpop.f32.mrf.mxu0
      %v1474 = vadd.f32 0.0, %v1473
      %v1475 = vpop.f32.mrf.mxu0
      %v1476 = vpop.f32.mrf.mxu0
      %v1477 = vadd.f32 0.0, %v1476
      %v1478 = vpop.f32.mrf.mxu0
      %1479 = vdwg.mxu0
      %v1480 = vrcp.pop %v1365
      %v1481 = vrcp.pop %v1368
      %v1482 = vrcp.pop %v1371
      %v1483 = vrcp.pop %v1374
      %v1484 = vrcp.pop %v1377
      %v1485 = vrcp.pop %v1380
      %v1486 = vrcp.pop %v1383
      %v1487 = vrcp.pop %v1386
      %v1488 = vmul.f32 %v1450, %v1480
      %v1489 = vmul.f32 %v1453, %v1481
      %v1490 = vmul.f32 %v1458, %v1482
      %v1491 = vmul.f32 %v1461, %v1483
      %v1492 = vmul.f32 %v1466, %v1484
      %v1493 = vmul.f32 %v1469, %v1485
      %v1494 = vmul.f32 %v1474, %v1486
      %v1495 = vmul.f32 %v1477, %v1487
      %v1496 = vld [vmem:[%s234 + $0x4] sm:$0xf]
      %v1497 = vld [vmem:[%s234 + $0x1c] sm:$0xf]
      %v1498 = vld [vmem:[%s234 + $0x34] sm:$0xf]
      %v1499 = vld [vmem:[%s234 + $0x4c] sm:$0xf]
      %v1500 = vld [vmem:[%s234 + $0x64] sm:$0xf]
      %v1501 = vld [vmem:[%s234 + $0x7c] sm:$0xf]
      %v1502 = vld [vmem:[%s234 + $0x94] sm:$0xf]
      %v1503 = vld [vmem:[%s234 + $0xac] sm:$0xf]
      %v1504 = vmul.bf16 %v1496, 1043676725
      %v1505 = vmul.bf16 %v1497, 1043676725
      %v1506 = vmul.bf16 %v1498, 1043676725
      %v1507 = vmul.bf16 %v1499, 1043676725
      %v1508 = vmul.bf16 %v1500, 1043676725
      %v1509 = vmul.bf16 %v1501, 1043676725
      %v1510 = vmul.bf16 %v1502, 1043676725
      %v1511 = vmul.bf16 %v1503, 1043676725
      %v1512 = vld [vmem:[%s234 + $0xc] sm:$0xf]
      %v1513 = vld [vmem:[%s234 + $0x24] sm:$0xf]
      %v1514 = vld [vmem:[%s234 + $0x3c] sm:$0xf]
      %v1515 = vld [vmem:[%s234 + $0x54] sm:$0xf]
      %v1516 = vld [vmem:[%s234 + $0x6c] sm:$0xf]
      %v1517 = vld [vmem:[%s234 + $0x84] sm:$0xf]
      %v1518 = vld [vmem:[%s234 + $0x9c] sm:$0xf]
      %v1519 = vld [vmem:[%s234 + $0xb4] sm:$0xf]
      %v1520 = vld [vmem:[%s234 + $0x14] sm:$0xf]
      %v1521 = vld [vmem:[%s234 + $0x2c] sm:$0xf]
      %v1522 = vld [vmem:[%s234 + $0x44] sm:$0xf]
      %v1523 = vld [vmem:[%s234 + $0x5c] sm:$0xf]
      %v1524 = vld [vmem:[%s234 + $0x74] sm:$0xf]
      %v1525 = vld [vmem:[%s234 + $0x8c] sm:$0xf]
      %v1526 = vld [vmem:[%s234 + $0xa4] sm:$0xf]
      %v1527 = vld [vmem:[%s234 + $0xbc] sm:$0xf]
      %s1528 = scalar_lea.vmem %s1, 256
      %v1529 = vld [vmem:[%s1528] sm:$0xff]
      %v1530 = vld [vmem:[%s1528 + $0x8] sm:$0xff]
      %v1531 = vld [vmem:[%s1528 + $0x10] sm:$0xff]
      %v1532 = vld [vmem:[%s1528 + $0x18] sm:$0xff]
      %v1533 = vld [vmem:[%s1528 + $0x20] sm:$0xff]
      %v1534 = vld [vmem:[%s1528 + $0x28] sm:$0xff]
      %v1535 = vld [vmem:[%s1528 + $0x30] sm:$0xff]
      %v1536 = vld [vmem:[%s1528 + $0x38] sm:$0xff]
      %v1545 = vunpack.c.l.b16 %v1504
      %v1546 = vunpack.c.l.b16 %v1505
      %v1547 = vunpack.c.l.b16 %v1506
      %v1548 = vunpack.c.l.b16 %v1507
      %v1549 = vunpack.c.l.b16 %v1508
      %v1550 = vunpack.c.l.b16 %v1509
      %v1551 = vunpack.c.l.b16 %v1510
      %v1552 = vunpack.c.l.b16 %v1511
      %v1553 = vpack.c.b16 %v1546, %v1545
      %v1554 = vpack.c.b16 %v1548, %v1547
      %v1555 = vpack.c.b16 %v1550, %v1549
      %v1556 = vpack.c.b16 %v1552, %v1551
      %v1565 = vunpack.c.l.b16 %v1512
      %v1566 = vunpack.c.l.b16 %v1513
      %v1567 = vunpack.c.l.b16 %v1514
      %v1568 = vunpack.c.l.b16 %v1515
      %v1569 = vunpack.c.l.b16 %v1516
      %v1570 = vunpack.c.l.b16 %v1517
      %v1571 = vunpack.c.l.b16 %v1518
      %v1572 = vunpack.c.l.b16 %v1519
      %v1573 = vpack.c.b16 %v1566, %v1565
      %v1574 = vpack.c.b16 %v1568, %v1567
      %v1575 = vpack.c.b16 %v1570, %v1569
      %v1576 = vpack.c.b16 %v1572, %v1571
      %v1578 = vsel %vm327, %v1553, 0
      %v1581 = vsel %vm327, %v1554, 0
      %v1584 = vsel %vm327, %v1555, 0
      %v1587 = vsel %vm327, %v1556, 0
      %v1590 = vsel %vm327, %v1573, 0
      %v1593 = vsel %vm327, %v1574, 0
      %v1596 = vsel %vm327, %v1575, 0
      %v1599 = vsel %vm327, %v1576, 0
      %1601 = vmatprep.subr.bf16.mxu0 0
      %1602 = vmatpush1.bf16.xpose.msra.mxu0 0
      %1603 = vmatprep.subr.bf16.mxu0 0
      %1604 = vmatpush1.bf16.xpose.msra.mxu0 0
      %1605 = vmatprep.subr.bf16.mxu0 0
      %1606 = vmatpush1.bf16.xpose.msra.mxu0 0
      %1607 = vmatprep.subr.bf16.mxu0 0
      %1608 = vmatpush1.bf16.xpose.msra.mxu0 0
      %1609 = vmatprep.subr.bf16.mxu0 0
      %1610 = vmatpush1.bf16.xpose.msra.mxu0 %v1599
      %1611 = vmatprep.subr.bf16.mxu0 0
      %1612 = vmatpush1.bf16.xpose.msra.mxu0 %v1596
      %1613 = vmatprep.subr.bf16.mxu0 0
      %1614 = vmatpush1.bf16.xpose.msra.mxu0 %v1593
      %1615 = vmatprep.subr.bf16.mxu0 0
      %1616 = vmatpush1.bf16.xpose.msra.mxu0 %v1590
      %1617 = vmatprep.subr.bf16.mxu0 0
      %1618 = vmatpush2.bf16.xpose.msra.mxu0 0
      %1619 = vmatprep.subr.bf16.mxu0 0
      %1620 = vmatpush2.bf16.xpose.msra.mxu0 0
      %1621 = vmatprep.subr.bf16.mxu0 0
      %1622 = vmatpush2.bf16.xpose.msra.mxu0 0
      %1623 = vmatprep.subr.bf16.mxu0 0
      %1624 = vmatpush2.bf16.xpose.msra.mxu0 0
      %1625 = vmatprep.subr.bf16.mxu0 0
      %1626 = vmatpush2.bf16.xpose.msra.mxu0 0
      %1627 = vmatprep.subr.bf16.mxu0 0
      %1628 = vmatpush2.bf16.xpose.msra.mxu0 0
      %1629 = vmatprep.subr.bf16.mxu0 0
      %1630 = vmatpush2.bf16.xpose.msra.mxu0 0
      %1631 = vmatprep.subr.bf16.mxu0 0
      %1632 = vmatpush2.bf16.xpose.msra.mxu0 0
      %1633 = vmatprep.mubr.bf16.mxu0 0
      %1634 = vmatmul.mubr.bf16.gmra.mxu0 %v1578
      %v1635 = vpop.f32.mrf.mxu0
      %v1636 = vadd.f32 %v1529, %v1635
      %v1637 = vpop.f32.mrf.mxu0
      %v1638 = vpop.f32.mrf.mxu0
      %v1639 = vadd.f32 %v1530, %v1638
      %v1640 = vpop.f32.mrf.mxu0
      %1641 = vmatprep.mubr.bf16.mxu0 0
      %1642 = vmatmul.mubr.bf16.gmra.mxu0 %v1581
      %v1643 = vpop.f32.mrf.mxu0
      %v1644 = vadd.f32 %v1531, %v1643
      %v1645 = vpop.f32.mrf.mxu0
      %v1646 = vpop.f32.mrf.mxu0
      %v1647 = vadd.f32 %v1532, %v1646
      %v1648 = vpop.f32.mrf.mxu0
      %1649 = vmatprep.mubr.bf16.mxu0 0
      %1650 = vmatmul.mubr.bf16.gmra.mxu0 %v1584
      %v1651 = vpop.f32.mrf.mxu0
      %v1652 = vadd.f32 %v1533, %v1651
      %v1653 = vpop.f32.mrf.mxu0
      %v1654 = vpop.f32.mrf.mxu0
      %v1655 = vadd.f32 %v1534, %v1654
      %v1656 = vpop.f32.mrf.mxu0
      %1657 = vmatprep.mubr.bf16.mxu0 0
      %1658 = vmatmul.mubr.bf16.gmra.mxu0 %v1587
      %v1659 = vpop.f32.mrf.mxu0
      %v1660 = vadd.f32 %v1535, %v1659
      %v1661 = vpop.f32.mrf.mxu0
      %v1662 = vpop.f32.mrf.mxu0
      %v1663 = vadd.f32 %v1536, %v1662
      %v1664 = vpop.f32.mrf.mxu0
      %1665 = vdwg.mxu0
      %v1666 = vsel %vm417, %v1636, -inf
      %1667 = vmax.xlane.f32.xlu0 %v1666
      %v1668 = vpop.xlane.xlu0 %1667
      %v1669 = vsel %vm417, %v1639, -inf
      %1670 = vmax.xlane.f32.xlu0 %v1669
      %v1671 = vpop.xlane.xlu0 %1670
      %v1672 = vsel %vm417, %v1644, -inf
      %1673 = vmax.xlane.f32.xlu0 %v1672
      %v1674 = vpop.xlane.xlu0 %1673
      %v1675 = vsel %vm417, %v1647, -inf
      %1676 = vmax.xlane.f32.xlu0 %v1675
      %v1677 = vpop.xlane.xlu0 %1676
      %v1678 = vsel %vm417, %v1652, -inf
      %1679 = vmax.xlane.f32.xlu0 %v1678
      %v1680 = vpop.xlane.xlu0 %1679
      %v1681 = vsel %vm417, %v1655, -inf
      %1682 = vmax.xlane.f32.xlu0 %v1681
      %v1683 = vpop.xlane.xlu0 %1682
      %v1684 = vsel %vm417, %v1660, -inf
      %1685 = vmax.xlane.f32.xlu0 %v1684
      %v1686 = vpop.xlane.xlu0 %1685
      %v1687 = vsel %vm417, %v1663, -inf
      %1688 = vmax.xlane.f32.xlu0 %v1687
      %v1689 = vpop.xlane.xlu0 %1688
      %v1690 = vsub.f32 %v1636, %v1668
      %v1691 = vsub.f32 %v1639, %v1671
      %v1692 = vsub.f32 %v1644, %v1674
      %v1693 = vsub.f32 %v1647, %v1677
      %v1694 = vsub.f32 %v1652, %v1680
      %v1695 = vsub.f32 %v1655, %v1683
      %v1696 = vsub.f32 %v1660, %v1686
      %v1697 = vsub.f32 %v1663, %v1689
      %v1698 = vmul.f32 %v1690, 1.442695
      %v1699 = vpow.pop %v1698
      %v1700 = vmul.f32 %v1691, 1.442695
      %v1701 = vpow.pop %v1700
      %v1702 = vmul.f32 %v1692, 1.442695
      %v1703 = vpow.pop %v1702
      %v1704 = vmul.f32 %v1693, 1.442695
      %v1705 = vpow.pop %v1704
      %v1706 = vmul.f32 %v1694, 1.442695
      %v1707 = vpow.pop %v1706
      %v1708 = vmul.f32 %v1695, 1.442695
      %v1709 = vpow.pop %v1708
      %v1710 = vmul.f32 %v1696, 1.442695
      %v1711 = vpow.pop %v1710
      %v1712 = vmul.f32 %v1697, 1.442695
      %v1713 = vpow.pop %v1712
      %v1714 = vsel %vm417, %v1699, 0.0
      %1715 = vadd.xlane.f32.xlu0 %v1714
      %v1716 = vpop.xlane.xlu0 %1715
      %v1717 = vsel %vm417, %v1701, 0.0
      %1718 = vadd.xlane.f32.xlu0 %v1717
      %v1719 = vpop.xlane.xlu0 %1718
      %v1720 = vsel %vm417, %v1703, 0.0
      %1721 = vadd.xlane.f32.xlu0 %v1720
      %v1722 = vpop.xlane.xlu0 %1721
      %v1723 = vsel %vm417, %v1705, 0.0
      %1724 = vadd.xlane.f32.xlu0 %v1723
      %v1725 = vpop.xlane.xlu0 %1724
      %v1726 = vsel %vm417, %v1707, 0.0
      %1727 = vadd.xlane.f32.xlu0 %v1726
      %v1728 = vpop.xlane.xlu0 %1727
      %v1729 = vsel %vm417, %v1709, 0.0
      %1730 = vadd.xlane.f32.xlu0 %v1729
      %v1731 = vpop.xlane.xlu0 %1730
      %v1732 = vsel %vm417, %v1711, 0.0
      %1733 = vadd.xlane.f32.xlu0 %v1732
      %v1734 = vpop.xlane.xlu0 %1733
      %v1735 = vsel %vm417, %v1713, 0.0
      %1736 = vadd.xlane.f32.xlu0 %v1735
      %v1737 = vpop.xlane.xlu0 %1736
      %v1738 = vpack.c.bf16 %v1701, %v1699
      %v1739 = vpack.c.bf16 %v1705, %v1703
      %v1740 = vpack.c.bf16 %v1709, %v1707
      %v1741 = vpack.c.bf16 %v1713, %v1711
      %v1750 = vunpack.c.l.b16 %v1520
      %v1751 = vunpack.c.l.b16 %v1521
      %v1752 = vunpack.c.l.b16 %v1522
      %v1753 = vunpack.c.l.b16 %v1523
      %v1754 = vunpack.c.l.b16 %v1524
      %v1755 = vunpack.c.l.b16 %v1525
      %v1756 = vunpack.c.l.b16 %v1526
      %v1757 = vunpack.c.l.b16 %v1527
      %v1758 = vpack.c.b16 %v1751, %v1750
      %v1759 = vpack.c.b16 %v1753, %v1752
      %v1760 = vpack.c.b16 %v1755, %v1754
      %v1761 = vpack.c.b16 %v1757, %v1756
      %v1767 = vsel %vm417, %v1738, 0
      %v1770 = vsel %vm417, %v1739, 0
      %v1773 = vsel %vm417, %v1740, 0
      %v1776 = vsel %vm417, %v1741, 0
      %1778 = vmatprep.subr.bf16.mxu0 0
      %1779 = vmatpush1.bf16.msra.mxu0 0
      %1780 = vmatprep.subr.bf16.mxu0 0
      %1781 = vmatpush1.bf16.msra.mxu0 0
      %1782 = vmatprep.subr.bf16.mxu0 0
      %1783 = vmatpush1.bf16.msra.mxu0 0
      %1784 = vmatprep.subr.bf16.mxu0 0
      %1785 = vmatpush1.bf16.msra.mxu0 0
      %1786 = vmatprep.subr.bf16.mxu0 0
      %1787 = vmatpush1.bf16.msra.mxu0 %v1761
      %1788 = vmatprep.subr.bf16.mxu0 0
      %1789 = vmatpush1.bf16.msra.mxu0 %v1760
      %1790 = vmatprep.subr.bf16.mxu0 0
      %1791 = vmatpush1.bf16.msra.mxu0 %v1759
      %1792 = vmatprep.subr.bf16.mxu0 0
      %1793 = vmatpush1.bf16.msra.mxu0 %v1758
      %1794 = vmatprep.subr.bf16.mxu0 0
      %1795 = vmatpush2.bf16.msra.mxu0 0
      %1796 = vmatprep.subr.bf16.mxu0 0
      %1797 = vmatpush2.bf16.msra.mxu0 0
      %1798 = vmatprep.subr.bf16.mxu0 0
      %1799 = vmatpush2.bf16.msra.mxu0 0
      %1800 = vmatprep.subr.bf16.mxu0 0
      %1801 = vmatpush2.bf16.msra.mxu0 0
      %1802 = vmatprep.subr.bf16.mxu0 0
      %1803 = vmatpush2.bf16.msra.mxu0 0
      %1804 = vmatprep.subr.bf16.mxu0 0
      %1805 = vmatpush2.bf16.msra.mxu0 0
      %1806 = vmatprep.subr.bf16.mxu0 0
      %1807 = vmatpush2.bf16.msra.mxu0 0
      %1808 = vmatprep.subr.bf16.mxu0 0
      %1809 = vmatpush2.bf16.msra.mxu0 0
      %1810 = vmatprep.mubr.bf16.mxu0 0
      %1811 = vmatmul.mubr.bf16.gmra.mxu0 %v1767
      %v1812 = vpop.f32.mrf.mxu0
      %v1813 = vadd.f32 0.0, %v1812
      %v1814 = vpop.f32.mrf.mxu0
      %v1815 = vpop.f32.mrf.mxu0
      %v1816 = vadd.f32 0.0, %v1815
      %v1817 = vpop.f32.mrf.mxu0
      %1818 = vmatprep.mubr.bf16.mxu0 0
      %1819 = vmatmul.mubr.bf16.gmra.mxu0 %v1770
      %v1820 = vpop.f32.mrf.mxu0
      %v1821 = vadd.f32 0.0, %v1820
      %v1822 = vpop.f32.mrf.mxu0
      %v1823 = vpop.f32.mrf.mxu0
      %v1824 = vadd.f32 0.0, %v1823
      %v1825 = vpop.f32.mrf.mxu0
      %1826 = vmatprep.mubr.bf16.mxu0 0
      %1827 = vmatmul.mubr.bf16.gmra.mxu0 %v1773
      %v1828 = vpop.f32.mrf.mxu0
      %v1829 = vadd.f32 0.0, %v1828
      %v1830 = vpop.f32.mrf.mxu0
      %v1831 = vpop.f32.mrf.mxu0
      %v1832 = vadd.f32 0.0, %v1831
      %v1833 = vpop.f32.mrf.mxu0
      %1834 = vmatprep.mubr.bf16.mxu0 0
      %1835 = vmatmul.mubr.bf16.gmra.mxu0 %v1776
      %v1836 = vpop.f32.mrf.mxu0
      %v1837 = vadd.f32 0.0, %v1836
      %v1838 = vpop.f32.mrf.mxu0
      %v1839 = vpop.f32.mrf.mxu0
      %v1840 = vadd.f32 0.0, %v1839
      %v1841 = vpop.f32.mrf.mxu0
      %1842 = vdwg.mxu0
      %v1843 = vrcp.pop %v1716
      %v1844 = vrcp.pop %v1719
      %v1845 = vrcp.pop %v1722
      %v1846 = vrcp.pop %v1725
      %v1847 = vrcp.pop %v1728
      %v1848 = vrcp.pop %v1731
      %v1849 = vrcp.pop %v1734
      %v1850 = vrcp.pop %v1737
      %v1851 = vmul.f32 %v1813, %v1843
      %v1852 = vmul.f32 %v1816, %v1844
      %v1853 = vmul.f32 %v1821, %v1845
      %v1854 = vmul.f32 %v1824, %v1846
      %v1855 = vmul.f32 %v1829, %v1847
      %v1856 = vmul.f32 %v1832, %v1848
      %v1857 = vmul.f32 %v1837, %v1849
      %v1858 = vmul.f32 %v1840, %v1850
      %s1859 = scalar_lea.vmem %s1, 320
      %v1860 = vld [vmem:[%s1859] sm:$0xff]
      %v1861 = vld [vmem:[%s1859 + $0x8] sm:$0xff]
      %v1862 = vld [vmem:[%s1859 + $0x10] sm:$0xff]
      %v1863 = vld [vmem:[%s1859 + $0x18] sm:$0xff]
      %v1864 = vld [vmem:[%s1859 + $0x20] sm:$0xff]
      %v1865 = vld [vmem:[%s1859 + $0x28] sm:$0xff]
      %v1866 = vld [vmem:[%s1859 + $0x30] sm:$0xff]
      %v1867 = vld [vmem:[%s1859 + $0x38] sm:$0xff]
      %1868 = vrot.lane.b32.xlu0 %v1553, 96
      %v1869 = vpop.permute.xlu0 %1868
      %1870 = vrot.lane.b32.xlu0 %v1554, 96
      %v1871 = vpop.permute.xlu0 %1870
      %1872 = vrot.lane.b32.xlu0 %v1555, 96
      %v1873 = vpop.permute.xlu0 %1872
      %1874 = vrot.lane.b32.xlu0 %v1556, 96
      %v1875 = vpop.permute.xlu0 %1874
      %1876 = vrot.lane.b32.xlu0 %v1573, 96
      %v1877 = vpop.permute.xlu0 %1876
      %1878 = vrot.lane.b32.xlu0 %v1574, 96
      %v1879 = vpop.permute.xlu0 %1878
      %1880 = vrot.lane.b32.xlu0 %v1575, 96
      %v1881 = vpop.permute.xlu0 %1880
      %1882 = vrot.lane.b32.xlu0 %v1576, 96
      %v1883 = vpop.permute.xlu0 %1882
      %v1885 = vsel %vm327, %v1869, 0
      %v1888 = vsel %vm327, %v1871, 0
      %v1891 = vsel %vm327, %v1873, 0
      %v1894 = vsel %vm327, %v1875, 0
      %v1897 = vsel %vm327, %v1877, 0
      %v1900 = vsel %vm327, %v1879, 0
      %v1903 = vsel %vm327, %v1881, 0
      %v1906 = vsel %vm327, %v1883, 0
      %1908 = vmatprep.subr.bf16.mxu0 0
      %1909 = vmatpush1.bf16.xpose.msra.mxu0 0
      %1910 = vmatprep.subr.bf16.mxu0 0
      %1911 = vmatpush1.bf16.xpose.msra.mxu0 0
      %1912 = vmatprep.subr.bf16.mxu0 0
      %1913 = vmatpush1.bf16.xpose.msra.mxu0 0
      %1914 = vmatprep.subr.bf16.mxu0 0
      %1915 = vmatpush1.bf16.xpose.msra.mxu0 0
      %1916 = vmatprep.subr.bf16.mxu0 0
      %1917 = vmatpush1.bf16.xpose.msra.mxu0 %v1906
      %1918 = vmatprep.subr.bf16.mxu0 0
      %1919 = vmatpush1.bf16.xpose.msra.mxu0 %v1903
      %1920 = vmatprep.subr.bf16.mxu0 0
      %1921 = vmatpush1.bf16.xpose.msra.mxu0 %v1900
      %1922 = vmatprep.subr.bf16.mxu0 0
      %1923 = vmatpush1.bf16.xpose.msra.mxu0 %v1897
      %1924 = vmatprep.subr.bf16.mxu0 0
      %1925 = vmatpush2.bf16.xpose.msra.mxu0 0
      %1926 = vmatprep.subr.bf16.mxu0 0
      %1927 = vmatpush2.bf16.xpose.msra.mxu0 0
      %1928 = vmatprep.subr.bf16.mxu0 0
      %1929 = vmatpush2.bf16.xpose.msra.mxu0 0
      %1930 = vmatprep.subr.bf16.mxu0 0
      %1931 = vmatpush2.bf16.xpose.msra.mxu0 0
      %1932 = vmatprep.subr.bf16.mxu0 0
      %1933 = vmatpush2.bf16.xpose.msra.mxu0 0
      %1934 = vmatprep.subr.bf16.mxu0 0
      %1935 = vmatpush2.bf16.xpose.msra.mxu0 0
      %1936 = vmatprep.subr.bf16.mxu0 0
      %1937 = vmatpush2.bf16.xpose.msra.mxu0 0
      %1938 = vmatprep.subr.bf16.mxu0 0
      %1939 = vmatpush2.bf16.xpose.msra.mxu0 0
      %1940 = vmatprep.mubr.bf16.mxu0 0
      %1941 = vmatmul.mubr.bf16.gmra.mxu0 %v1885
      %v1942 = vpop.f32.mrf.mxu0
      %v1943 = vadd.f32 %v1860, %v1942
      %v1944 = vpop.f32.mrf.mxu0
      %v1945 = vpop.f32.mrf.mxu0
      %v1946 = vadd.f32 %v1861, %v1945
      %v1947 = vpop.f32.mrf.mxu0
      %1948 = vmatprep.mubr.bf16.mxu0 0
      %1949 = vmatmul.mubr.bf16.gmra.mxu0 %v1888
      %v1950 = vpop.f32.mrf.mxu0
      %v1951 = vadd.f32 %v1862, %v1950
      %v1952 = vpop.f32.mrf.mxu0
      %v1953 = vpop.f32.mrf.mxu0
      %v1954 = vadd.f32 %v1863, %v1953
      %v1955 = vpop.f32.mrf.mxu0
      %1956 = vmatprep.mubr.bf16.mxu0 0
      %1957 = vmatmul.mubr.bf16.gmra.mxu0 %v1891
      %v1958 = vpop.f32.mrf.mxu0
      %v1959 = vadd.f32 %v1864, %v1958
      %v1960 = vpop.f32.mrf.mxu0
      %v1961 = vpop.f32.mrf.mxu0
      %v1962 = vadd.f32 %v1865, %v1961
      %v1963 = vpop.f32.mrf.mxu0
      %1964 = vmatprep.mubr.bf16.mxu0 0
      %1965 = vmatmul.mubr.bf16.gmra.mxu0 %v1894
      %v1966 = vpop.f32.mrf.mxu0
      %v1967 = vadd.f32 %v1866, %v1966
      %v1968 = vpop.f32.mrf.mxu0
      %v1969 = vpop.f32.mrf.mxu0
      %v1970 = vadd.f32 %v1867, %v1969
      %v1971 = vpop.f32.mrf.mxu0
      %1972 = vdwg.mxu0
      %v1973 = vsel %vm417, %v1943, -inf
      %1974 = vmax.xlane.f32.xlu0 %v1973
      %v1975 = vpop.xlane.xlu0 %1974
      %v1976 = vsel %vm417, %v1946, -inf
      %1977 = vmax.xlane.f32.xlu0 %v1976
      %v1978 = vpop.xlane.xlu0 %1977
      %v1979 = vsel %vm417, %v1951, -inf
      %1980 = vmax.xlane.f32.xlu0 %v1979
      %v1981 = vpop.xlane.xlu0 %1980
      %v1982 = vsel %vm417, %v1954, -inf
      %1983 = vmax.xlane.f32.xlu0 %v1982
      %v1984 = vpop.xlane.xlu0 %1983
      %v1985 = vsel %vm417, %v1959, -inf
      %1986 = vmax.xlane.f32.xlu0 %v1985
      %v1987 = vpop.xlane.xlu0 %1986
      %v1988 = vsel %vm417, %v1962, -inf
      %1989 = vmax.xlane.f32.xlu0 %v1988
      %v1990 = vpop.xlane.xlu0 %1989
      %v1991 = vsel %vm417, %v1967, -inf
      %1992 = vmax.xlane.f32.xlu0 %v1991
      %v1993 = vpop.xlane.xlu0 %1992
      %v1994 = vsel %vm417, %v1970, -inf
      %1995 = vmax.xlane.f32.xlu0 %v1994
      %v1996 = vpop.xlane.xlu0 %1995
      %v1997 = vsub.f32 %v1943, %v1975
      %v1998 = vsub.f32 %v1946, %v1978
      %v1999 = vsub.f32 %v1951, %v1981
      %v2000 = vsub.f32 %v1954, %v1984
      %v2001 = vsub.f32 %v1959, %v1987
      %v2002 = vsub.f32 %v1962, %v1990
      %v2003 = vsub.f32 %v1967, %v1993
      %v2004 = vsub.f32 %v1970, %v1996
      %v2005 = vmul.f32 %v1997, 1.442695
      %v2006 = vpow.pop %v2005
      %v2007 = vmul.f32 %v1998, 1.442695
      %v2008 = vpow.pop %v2007
      %v2009 = vmul.f32 %v1999, 1.442695
      %v2010 = vpow.pop %v2009
      %v2011 = vmul.f32 %v2000, 1.442695
      %v2012 = vpow.pop %v2011
      %v2013 = vmul.f32 %v2001, 1.442695
      %v2014 = vpow.pop %v2013
      %v2015 = vmul.f32 %v2002, 1.442695
      %v2016 = vpow.pop %v2015
      %v2017 = vmul.f32 %v2003, 1.442695
      %v2018 = vpow.pop %v2017
      %v2019 = vmul.f32 %v2004, 1.442695
      %v2020 = vpow.pop %v2019
      %v2021 = vsel %vm417, %v2006, 0.0
      %2022 = vadd.xlane.f32.xlu0 %v2021
      %v2023 = vpop.xlane.xlu0 %2022
      %v2024 = vsel %vm417, %v2008, 0.0
      %2025 = vadd.xlane.f32.xlu0 %v2024
      %v2026 = vpop.xlane.xlu0 %2025
      %v2027 = vsel %vm417, %v2010, 0.0
      %2028 = vadd.xlane.f32.xlu0 %v2027
      %v2029 = vpop.xlane.xlu0 %2028
      %v2030 = vsel %vm417, %v2012, 0.0
      %2031 = vadd.xlane.f32.xlu0 %v2030
      %v2032 = vpop.xlane.xlu0 %2031
      %v2033 = vsel %vm417, %v2014, 0.0
      %2034 = vadd.xlane.f32.xlu0 %v2033
      %v2035 = vpop.xlane.xlu0 %2034
      %v2036 = vsel %vm417, %v2016, 0.0
      %2037 = vadd.xlane.f32.xlu0 %v2036
      %v2038 = vpop.xlane.xlu0 %2037
      %v2039 = vsel %vm417, %v2018, 0.0
      %2040 = vadd.xlane.f32.xlu0 %v2039
      %v2041 = vpop.xlane.xlu0 %2040
      %v2042 = vsel %vm417, %v2020, 0.0
      %2043 = vadd.xlane.f32.xlu0 %v2042
      %v2044 = vpop.xlane.xlu0 %2043
      %v2045 = vpack.c.bf16 %v2008, %v2006
      %v2046 = vpack.c.bf16 %v2012, %v2010
      %v2047 = vpack.c.bf16 %v2016, %v2014
      %v2048 = vpack.c.bf16 %v2020, %v2018
      %2049 = vrot.lane.b32.xlu0 %v1758, 96
      %v2050 = vpop.permute.xlu0 %2049
      %2051 = vrot.lane.b32.xlu0 %v1759, 96
      %v2052 = vpop.permute.xlu0 %2051
      %2053 = vrot.lane.b32.xlu0 %v1760, 96
      %v2054 = vpop.permute.xlu0 %2053
      %2055 = vrot.lane.b32.xlu0 %v1761, 96
      %v2056 = vpop.permute.xlu0 %2055
      %v2062 = vsel %vm417, %v2045, 0
      %v2065 = vsel %vm417, %v2046, 0
      %v2068 = vsel %vm417, %v2047, 0
      %v2071 = vsel %vm417, %v2048, 0
      %2073 = vmatprep.subr.bf16.mxu0 0
      %2074 = vmatpush1.bf16.msra.mxu0 0
      %2075 = vmatprep.subr.bf16.mxu0 0
      %2076 = vmatpush1.bf16.msra.mxu0 0
      %2077 = vmatprep.subr.bf16.mxu0 0
      %2078 = vmatpush1.bf16.msra.mxu0 0
      %2079 = vmatprep.subr.bf16.mxu0 0
      %2080 = vmatpush1.bf16.msra.mxu0 0
      %2081 = vmatprep.subr.bf16.mxu0 0
      %2082 = vmatpush1.bf16.msra.mxu0 %v2056
      %2083 = vmatprep.subr.bf16.mxu0 0
      %2084 = vmatpush1.bf16.msra.mxu0 %v2054
      %2085 = vmatprep.subr.bf16.mxu0 0
      %2086 = vmatpush1.bf16.msra.mxu0 %v2052
      %2087 = vmatprep.subr.bf16.mxu0 0
      %2088 = vmatpush1.bf16.msra.mxu0 %v2050
      %2089 = vmatprep.subr.bf16.mxu0 0
      %2090 = vmatpush2.bf16.msra.mxu0 0
      %2091 = vmatprep.subr.bf16.mxu0 0
      %2092 = vmatpush2.bf16.msra.mxu0 0
      %2093 = vmatprep.subr.bf16.mxu0 0
      %2094 = vmatpush2.bf16.msra.mxu0 0
      %2095 = vmatprep.subr.bf16.mxu0 0
      %2096 = vmatpush2.bf16.msra.mxu0 0
      %2097 = vmatprep.subr.bf16.mxu0 0
      %2098 = vmatpush2.bf16.msra.mxu0 0
      %2099 = vmatprep.subr.bf16.mxu0 0
      %2100 = vmatpush2.bf16.msra.mxu0 0
      %2101 = vmatprep.subr.bf16.mxu0 0
      %2102 = vmatpush2.bf16.msra.mxu0 0
      %2103 = vmatprep.subr.bf16.mxu0 0
      %2104 = vmatpush2.bf16.msra.mxu0 0
      %2105 = vmatprep.mubr.bf16.mxu0 0
      %2106 = vmatmul.mubr.bf16.gmra.mxu0 %v2062
      %v2107 = vpop.f32.mrf.mxu0
      %v2108 = vadd.f32 0.0, %v2107
      %v2109 = vpop.f32.mrf.mxu0
      %v2110 = vpop.f32.mrf.mxu0
      %v2111 = vadd.f32 0.0, %v2110
      %v2112 = vpop.f32.mrf.mxu0
      %2113 = vmatprep.mubr.bf16.mxu0 0
      %2114 = vmatmul.mubr.bf16.gmra.mxu0 %v2065
      %v2115 = vpop.f32.mrf.mxu0
      %v2116 = vadd.f32 0.0, %v2115
      %v2117 = vpop.f32.mrf.mxu0
      %v2118 = vpop.f32.mrf.mxu0
      %v2119 = vadd.f32 0.0, %v2118
      %v2120 = vpop.f32.mrf.mxu0
      %2121 = vmatprep.mubr.bf16.mxu0 0
      %2122 = vmatmul.mubr.bf16.gmra.mxu0 %v2068
      %v2123 = vpop.f32.mrf.mxu0
      %v2124 = vadd.f32 0.0, %v2123
      %v2125 = vpop.f32.mrf.mxu0
      %v2126 = vpop.f32.mrf.mxu0
      %v2127 = vadd.f32 0.0, %v2126
      %v2128 = vpop.f32.mrf.mxu0
      %2129 = vmatprep.mubr.bf16.mxu0 0
      %2130 = vmatmul.mubr.bf16.gmra.mxu0 %v2071
      %v2131 = vpop.f32.mrf.mxu0
      %v2132 = vadd.f32 0.0, %v2131
      %v2133 = vpop.f32.mrf.mxu0
      %v2134 = vpop.f32.mrf.mxu0
      %v2135 = vadd.f32 0.0, %v2134
      %v2136 = vpop.f32.mrf.mxu0
      %2137 = vdwg.mxu0
      %v2138 = vrcp.pop %v2023
      %v2139 = vrcp.pop %v2026
      %v2140 = vrcp.pop %v2029
      %v2141 = vrcp.pop %v2032
      %v2142 = vrcp.pop %v2035
      %v2143 = vrcp.pop %v2038
      %v2144 = vrcp.pop %v2041
      %v2145 = vrcp.pop %v2044
      %v2146 = vmul.f32 %v2108, %v2138
      %v2147 = vmul.f32 %v2111, %v2139
      %v2148 = vmul.f32 %v2116, %v2140
      %v2149 = vmul.f32 %v2119, %v2141
      %v2150 = vmul.f32 %v2124, %v2142
      %v2151 = vmul.f32 %v2127, %v2143
      %v2152 = vmul.f32 %v2132, %v2144
      %v2153 = vmul.f32 %v2135, %v2145
      %s2154 = scalar_lea.vmem %s1, 384
      %v2155 = vld [vmem:[%s2154] sm:$0xff]
      %v2156 = vld [vmem:[%s2154 + $0x8] sm:$0xff]
      %v2157 = vld [vmem:[%s2154 + $0x10] sm:$0xff]
      %v2158 = vld [vmem:[%s2154 + $0x18] sm:$0xff]
      %v2159 = vld [vmem:[%s2154 + $0x20] sm:$0xff]
      %v2160 = vld [vmem:[%s2154 + $0x28] sm:$0xff]
      %v2161 = vld [vmem:[%s2154 + $0x30] sm:$0xff]
      %v2162 = vld [vmem:[%s2154 + $0x38] sm:$0xff]
      %2163 = vrot.lane.b32.xlu0 %v1553, 64
      %v2164 = vpop.permute.xlu0 %2163
      %2165 = vrot.lane.b32.xlu0 %v1554, 64
      %v2166 = vpop.permute.xlu0 %2165
      %2167 = vrot.lane.b32.xlu0 %v1555, 64
      %v2168 = vpop.permute.xlu0 %2167
      %2169 = vrot.lane.b32.xlu0 %v1556, 64
      %v2170 = vpop.permute.xlu0 %2169
      %2171 = vrot.lane.b32.xlu0 %v1573, 64
      %v2172 = vpop.permute.xlu0 %2171
      %2173 = vrot.lane.b32.xlu0 %v1574, 64
      %v2174 = vpop.permute.xlu0 %2173
      %2175 = vrot.lane.b32.xlu0 %v1575, 64
      %v2176 = vpop.permute.xlu0 %2175
      %2177 = vrot.lane.b32.xlu0 %v1576, 64
      %v2178 = vpop.permute.xlu0 %2177
      %v2180 = vsel %vm327, %v2164, 0
      %v2183 = vsel %vm327, %v2166, 0
      %v2186 = vsel %vm327, %v2168, 0
      %v2189 = vsel %vm327, %v2170, 0
      %v2192 = vsel %vm327, %v2172, 0
      %v2195 = vsel %vm327, %v2174, 0
      %v2198 = vsel %vm327, %v2176, 0
      %v2201 = vsel %vm327, %v2178, 0
      %2203 = vmatprep.subr.bf16.mxu0 0
      %2204 = vmatpush1.bf16.xpose.msra.mxu0 0
      %2205 = vmatprep.subr.bf16.mxu0 0
      %2206 = vmatpush1.bf16.xpose.msra.mxu0 0
      %2207 = vmatprep.subr.bf16.mxu0 0
      %2208 = vmatpush1.bf16.xpose.msra.mxu0 0
      %2209 = vmatprep.subr.bf16.mxu0 0
      %2210 = vmatpush1.bf16.xpose.msra.mxu0 0
      %2211 = vmatprep.subr.bf16.mxu0 0
      %2212 = vmatpush1.bf16.xpose.msra.mxu0 %v2201
      %2213 = vmatprep.subr.bf16.mxu0 0
      %2214 = vmatpush1.bf16.xpose.msra.mxu0 %v2198
      %2215 = vmatprep.subr.bf16.mxu0 0
      %2216 = vmatpush1.bf16.xpose.msra.mxu0 %v2195
      %2217 = vmatprep.subr.bf16.mxu0 0
      %2218 = vmatpush1.bf16.xpose.msra.mxu0 %v2192
      %2219 = vmatprep.subr.bf16.mxu0 0
      %2220 = vmatpush2.bf16.xpose.msra.mxu0 0
      %2221 = vmatprep.subr.bf16.mxu0 0
      %2222 = vmatpush2.bf16.xpose.msra.mxu0 0
      %2223 = vmatprep.subr.bf16.mxu0 0
      %2224 = vmatpush2.bf16.xpose.msra.mxu0 0
      %2225 = vmatprep.subr.bf16.mxu0 0
      %2226 = vmatpush2.bf16.xpose.msra.mxu0 0
      %2227 = vmatprep.subr.bf16.mxu0 0
      %2228 = vmatpush2.bf16.xpose.msra.mxu0 0
      %2229 = vmatprep.subr.bf16.mxu0 0
      %2230 = vmatpush2.bf16.xpose.msra.mxu0 0
      %2231 = vmatprep.subr.bf16.mxu0 0
      %2232 = vmatpush2.bf16.xpose.msra.mxu0 0
      %2233 = vmatprep.subr.bf16.mxu0 0
      %2234 = vmatpush2.bf16.xpose.msra.mxu0 0
      %2235 = vmatprep.mubr.bf16.mxu0 0
      %2236 = vmatmul.mubr.bf16.gmra.mxu0 %v2180
      %v2237 = vpop.f32.mrf.mxu0
      %v2238 = vadd.f32 %v2155, %v2237
      %v2239 = vpop.f32.mrf.mxu0
      %v2240 = vpop.f32.mrf.mxu0
      %v2241 = vadd.f32 %v2156, %v2240
      %v2242 = vpop.f32.mrf.mxu0
      %2243 = vmatprep.mubr.bf16.mxu0 0
      %2244 = vmatmul.mubr.bf16.gmra.mxu0 %v2183
      %v2245 = vpop.f32.mrf.mxu0
      %v2246 = vadd.f32 %v2157, %v2245
      %v2247 = vpop.f32.mrf.mxu0
      %v2248 = vpop.f32.mrf.mxu0
      %v2249 = vadd.f32 %v2158, %v2248
      %v2250 = vpop.f32.mrf.mxu0
      %2251 = vmatprep.mubr.bf16.mxu0 0
      %2252 = vmatmul.mubr.bf16.gmra.mxu0 %v2186
      %v2253 = vpop.f32.mrf.mxu0
      %v2254 = vadd.f32 %v2159, %v2253
      %v2255 = vpop.f32.mrf.mxu0
      %v2256 = vpop.f32.mrf.mxu0
      %v2257 = vadd.f32 %v2160, %v2256
      %v2258 = vpop.f32.mrf.mxu0
      %2259 = vmatprep.mubr.bf16.mxu0 0
      %2260 = vmatmul.mubr.bf16.gmra.mxu0 %v2189
      %v2261 = vpop.f32.mrf.mxu0
      %v2262 = vadd.f32 %v2161, %v2261
      %v2263 = vpop.f32.mrf.mxu0
      %v2264 = vpop.f32.mrf.mxu0
      %v2265 = vadd.f32 %v2162, %v2264
      %v2266 = vpop.f32.mrf.mxu0
      %2267 = vdwg.mxu0
      %v2268 = vsel %vm417, %v2238, -inf
      %2269 = vmax.xlane.f32.xlu0 %v2268
      %v2270 = vpop.xlane.xlu0 %2269
      %v2271 = vsel %vm417, %v2241, -inf
      %2272 = vmax.xlane.f32.xlu0 %v2271
      %v2273 = vpop.xlane.xlu0 %2272
      %v2274 = vsel %vm417, %v2246, -inf
      %2275 = vmax.xlane.f32.xlu0 %v2274
      %v2276 = vpop.xlane.xlu0 %2275
      %v2277 = vsel %vm417, %v2249, -inf
      %2278 = vmax.xlane.f32.xlu0 %v2277
      %v2279 = vpop.xlane.xlu0 %2278
      %v2280 = vsel %vm417, %v2254, -inf
      %2281 = vmax.xlane.f32.xlu0 %v2280
      %v2282 = vpop.xlane.xlu0 %2281
      %v2283 = vsel %vm417, %v2257, -inf
      %2284 = vmax.xlane.f32.xlu0 %v2283
      %v2285 = vpop.xlane.xlu0 %2284
      %v2286 = vsel %vm417, %v2262, -inf
      %2287 = vmax.xlane.f32.xlu0 %v2286
      %v2288 = vpop.xlane.xlu0 %2287
      %v2289 = vsel %vm417, %v2265, -inf
      %2290 = vmax.xlane.f32.xlu0 %v2289
      %v2291 = vpop.xlane.xlu0 %2290
      %v2292 = vsub.f32 %v2238, %v2270
      %v2293 = vsub.f32 %v2241, %v2273
      %v2294 = vsub.f32 %v2246, %v2276
      %v2295 = vsub.f32 %v2249, %v2279
      %v2296 = vsub.f32 %v2254, %v2282
      %v2297 = vsub.f32 %v2257, %v2285
      %v2298 = vsub.f32 %v2262, %v2288
      %v2299 = vsub.f32 %v2265, %v2291
      %v2300 = vmul.f32 %v2292, 1.442695
      %v2301 = vpow.pop %v2300
      %v2302 = vmul.f32 %v2293, 1.442695
      %v2303 = vpow.pop %v2302
      %v2304 = vmul.f32 %v2294, 1.442695
      %v2305 = vpow.pop %v2304
      %v2306 = vmul.f32 %v2295, 1.442695
      %v2307 = vpow.pop %v2306
      %v2308 = vmul.f32 %v2296, 1.442695
      %v2309 = vpow.pop %v2308
      %v2310 = vmul.f32 %v2297, 1.442695
      %v2311 = vpow.pop %v2310
      %v2312 = vmul.f32 %v2298, 1.442695
      %v2313 = vpow.pop %v2312
      %v2314 = vmul.f32 %v2299, 1.442695
      %v2315 = vpow.pop %v2314
      %v2316 = vsel %vm417, %v2301, 0.0
      %2317 = vadd.xlane.f32.xlu0 %v2316
      %v2318 = vpop.xlane.xlu0 %2317
      %v2319 = vsel %vm417, %v2303, 0.0
      %2320 = vadd.xlane.f32.xlu0 %v2319
      %v2321 = vpop.xlane.xlu0 %2320
      %v2322 = vsel %vm417, %v2305, 0.0
      %2323 = vadd.xlane.f32.xlu0 %v2322
      %v2324 = vpop.xlane.xlu0 %2323
      %v2325 = vsel %vm417, %v2307, 0.0
      %2326 = vadd.xlane.f32.xlu0 %v2325
      %v2327 = vpop.xlane.xlu0 %2326
      %v2328 = vsel %vm417, %v2309, 0.0
      %2329 = vadd.xlane.f32.xlu0 %v2328
      %v2330 = vpop.xlane.xlu0 %2329
      %v2331 = vsel %vm417, %v2311, 0.0
      %2332 = vadd.xlane.f32.xlu0 %v2331
      %v2333 = vpop.xlane.xlu0 %2332
      %v2334 = vsel %vm417, %v2313, 0.0
      %2335 = vadd.xlane.f32.xlu0 %v2334
      %v2336 = vpop.xlane.xlu0 %2335
      %v2337 = vsel %vm417, %v2315, 0.0
      %2338 = vadd.xlane.f32.xlu0 %v2337
      %v2339 = vpop.xlane.xlu0 %2338
      %v2340 = vpack.c.bf16 %v2303, %v2301
      %v2341 = vpack.c.bf16 %v2307, %v2305
      %v2342 = vpack.c.bf16 %v2311, %v2309
      %v2343 = vpack.c.bf16 %v2315, %v2313
      %2344 = vrot.lane.b32.xlu0 %v1758, 64
      %v2345 = vpop.permute.xlu0 %2344
      %2346 = vrot.lane.b32.xlu0 %v1759, 64
      %v2347 = vpop.permute.xlu0 %2346
      %2348 = vrot.lane.b32.xlu0 %v1760, 64
      %v2349 = vpop.permute.xlu0 %2348
      %2350 = vrot.lane.b32.xlu0 %v1761, 64
      %v2351 = vpop.permute.xlu0 %2350
      %v2357 = vsel %vm417, %v2340, 0
      %v2360 = vsel %vm417, %v2341, 0
      %v2363 = vsel %vm417, %v2342, 0
      %v2366 = vsel %vm417, %v2343, 0
      %2368 = vmatprep.subr.bf16.mxu0 0
      %2369 = vmatpush1.bf16.msra.mxu0 0
      %2370 = vmatprep.subr.bf16.mxu0 0
      %2371 = vmatpush1.bf16.msra.mxu0 0
      %2372 = vmatprep.subr.bf16.mxu0 0
      %2373 = vmatpush1.bf16.msra.mxu0 0
      %2374 = vmatprep.subr.bf16.mxu0 0
      %2375 = vmatpush1.bf16.msra.mxu0 0
      %2376 = vmatprep.subr.bf16.mxu0 0
      %2377 = vmatpush1.bf16.msra.mxu0 %v2351
      %2378 = vmatprep.subr.bf16.mxu0 0
      %2379 = vmatpush1.bf16.msra.mxu0 %v2349
      %2380 = vmatprep.subr.bf16.mxu0 0
      %2381 = vmatpush1.bf16.msra.mxu0 %v2347
      %2382 = vmatprep.subr.bf16.mxu0 0
      %2383 = vmatpush1.bf16.msra.mxu0 %v2345
      %2384 = vmatprep.subr.bf16.mxu0 0
      %2385 = vmatpush2.bf16.msra.mxu0 0
      %2386 = vmatprep.subr.bf16.mxu0 0
      %2387 = vmatpush2.bf16.msra.mxu0 0
      %2388 = vmatprep.subr.bf16.mxu0 0
      %2389 = vmatpush2.bf16.msra.mxu0 0
      %2390 = vmatprep.subr.bf16.mxu0 0
      %2391 = vmatpush2.bf16.msra.mxu0 0
      %2392 = vmatprep.subr.bf16.mxu0 0
      %2393 = vmatpush2.bf16.msra.mxu0 0
      %2394 = vmatprep.subr.bf16.mxu0 0
      %2395 = vmatpush2.bf16.msra.mxu0 0
      %2396 = vmatprep.subr.bf16.mxu0 0
      %2397 = vmatpush2.bf16.msra.mxu0 0
      %2398 = vmatprep.subr.bf16.mxu0 0
      %2399 = vmatpush2.bf16.msra.mxu0 0
      %2400 = vmatprep.mubr.bf16.mxu0 0
      %2401 = vmatmul.mubr.bf16.gmra.mxu0 %v2357
      %v2402 = vpop.f32.mrf.mxu0
      %v2403 = vadd.f32 0.0, %v2402
      %v2404 = vpop.f32.mrf.mxu0
      %v2405 = vpop.f32.mrf.mxu0
      %v2406 = vadd.f32 0.0, %v2405
      %v2407 = vpop.f32.mrf.mxu0
      %2408 = vmatprep.mubr.bf16.mxu0 0
      %2409 = vmatmul.mubr.bf16.gmra.mxu0 %v2360
      %v2410 = vpop.f32.mrf.mxu0
      %v2411 = vadd.f32 0.0, %v2410
      %v2412 = vpop.f32.mrf.mxu0
      %v2413 = vpop.f32.mrf.mxu0
      %v2414 = vadd.f32 0.0, %v2413
      %v2415 = vpop.f32.mrf.mxu0
      %2416 = vmatprep.mubr.bf16.mxu0 0
      %2417 = vmatmul.mubr.bf16.gmra.mxu0 %v2363
      %v2418 = vpop.f32.mrf.mxu0
      %v2419 = vadd.f32 0.0, %v2418
      %v2420 = vpop.f32.mrf.mxu0
      %v2421 = vpop.f32.mrf.mxu0
      %v2422 = vadd.f32 0.0, %v2421
      %v2423 = vpop.f32.mrf.mxu0
      %2424 = vmatprep.mubr.bf16.mxu0 0
      %2425 = vmatmul.mubr.bf16.gmra.mxu0 %v2366
      %v2426 = vpop.f32.mrf.mxu0
      %v2427 = vadd.f32 0.0, %v2426
      %v2428 = vpop.f32.mrf.mxu0
      %v2429 = vpop.f32.mrf.mxu0
      %v2430 = vadd.f32 0.0, %v2429
      %v2431 = vpop.f32.mrf.mxu0
      %2432 = vdwg.mxu0
      %v2433 = vrcp.pop %v2318
      %v2434 = vrcp.pop %v2321
      %v2435 = vrcp.pop %v2324
      %v2436 = vrcp.pop %v2327
      %v2437 = vrcp.pop %v2330
      %v2438 = vrcp.pop %v2333
      %v2439 = vrcp.pop %v2336
      %v2440 = vrcp.pop %v2339
      %v2441 = vmul.f32 %v2403, %v2433
      %v2442 = vmul.f32 %v2406, %v2434
      %v2443 = vmul.f32 %v2411, %v2435
      %v2444 = vmul.f32 %v2414, %v2436
      %v2445 = vmul.f32 %v2419, %v2437
      %v2446 = vmul.f32 %v2422, %v2438
      %v2447 = vmul.f32 %v2427, %v2439
      %v2448 = vmul.f32 %v2430, %v2440
      %s2449 = scalar_lea.vmem %s1, 448
      %v2450 = vld [vmem:[%s2449] sm:$0xff]
      %v2451 = vld [vmem:[%s2449 + $0x8] sm:$0xff]
      %v2452 = vld [vmem:[%s2449 + $0x10] sm:$0xff]
      %v2453 = vld [vmem:[%s2449 + $0x18] sm:$0xff]
      %v2454 = vld [vmem:[%s2449 + $0x20] sm:$0xff]
      %v2455 = vld [vmem:[%s2449 + $0x28] sm:$0xff]
      %v2456 = vld [vmem:[%s2449 + $0x30] sm:$0xff]
      %v2457 = vld [vmem:[%s2449 + $0x38] sm:$0xff]
      %2458 = vrot.lane.b32.xlu0 %v1553, 32
      %v2459 = vpop.permute.xlu0 %2458
      %2460 = vrot.lane.b32.xlu0 %v1554, 32
      %v2461 = vpop.permute.xlu0 %2460
      %2462 = vrot.lane.b32.xlu0 %v1555, 32
      %v2463 = vpop.permute.xlu0 %2462
      %2464 = vrot.lane.b32.xlu0 %v1556, 32
      %v2465 = vpop.permute.xlu0 %2464
      %2466 = vrot.lane.b32.xlu0 %v1573, 32
      %v2467 = vpop.permute.xlu0 %2466
      %2468 = vrot.lane.b32.xlu0 %v1574, 32
      %v2469 = vpop.permute.xlu0 %2468
      %2470 = vrot.lane.b32.xlu0 %v1575, 32
      %v2471 = vpop.permute.xlu0 %2470
      %2472 = vrot.lane.b32.xlu0 %v1576, 32
      %v2473 = vpop.permute.xlu0 %2472
      %v2475 = vsel %vm327, %v2459, 0
      %v2478 = vsel %vm327, %v2461, 0
      %v2481 = vsel %vm327, %v2463, 0
      %v2484 = vsel %vm327, %v2465, 0
      %v2487 = vsel %vm327, %v2467, 0
      %v2490 = vsel %vm327, %v2469, 0
      %v2493 = vsel %vm327, %v2471, 0
      %v2496 = vsel %vm327, %v2473, 0
      %2498 = vmatprep.subr.bf16.mxu0 0
      %2499 = vmatpush1.bf16.xpose.msra.mxu0 0
      %2500 = vmatprep.subr.bf16.mxu0 0
      %2501 = vmatpush1.bf16.xpose.msra.mxu0 0
      %2502 = vmatprep.subr.bf16.mxu0 0
      %2503 = vmatpush1.bf16.xpose.msra.mxu0 0
      %2504 = vmatprep.subr.bf16.mxu0 0
      %2505 = vmatpush1.bf16.xpose.msra.mxu0 0
      %2506 = vmatprep.subr.bf16.mxu0 0
      %2507 = vmatpush1.bf16.xpose.msra.mxu0 %v2496
      %2508 = vmatprep.subr.bf16.mxu0 0
      %2509 = vmatpush1.bf16.xpose.msra.mxu0 %v2493
      %2510 = vmatprep.subr.bf16.mxu0 0
      %2511 = vmatpush1.bf16.xpose.msra.mxu0 %v2490
      %2512 = vmatprep.subr.bf16.mxu0 0
      %2513 = vmatpush1.bf16.xpose.msra.mxu0 %v2487
      %2514 = vmatprep.subr.bf16.mxu0 0
      %2515 = vmatpush2.bf16.xpose.msra.mxu0 0
      %2516 = vmatprep.subr.bf16.mxu0 0
      %2517 = vmatpush2.bf16.xpose.msra.mxu0 0
      %2518 = vmatprep.subr.bf16.mxu0 0
      %2519 = vmatpush2.bf16.xpose.msra.mxu0 0
      %2520 = vmatprep.subr.bf16.mxu0 0
      %2521 = vmatpush2.bf16.xpose.msra.mxu0 0
      %2522 = vmatprep.subr.bf16.mxu0 0
      %2523 = vmatpush2.bf16.xpose.msra.mxu0 0
      %2524 = vmatprep.subr.bf16.mxu0 0
      %2525 = vmatpush2.bf16.xpose.msra.mxu0 0
      %2526 = vmatprep.subr.bf16.mxu0 0
      %2527 = vmatpush2.bf16.xpose.msra.mxu0 0
      %2528 = vmatprep.subr.bf16.mxu0 0
      %2529 = vmatpush2.bf16.xpose.msra.mxu0 0
      %2530 = vmatprep.mubr.bf16.mxu0 0
      %2531 = vmatmul.mubr.bf16.gmra.mxu0 %v2475
      %v2532 = vpop.f32.mrf.mxu0
      %v2533 = vadd.f32 %v2450, %v2532
      %v2534 = vpop.f32.mrf.mxu0
      %v2535 = vpop.f32.mrf.mxu0
      %v2536 = vadd.f32 %v2451, %v2535
      %v2537 = vpop.f32.mrf.mxu0
      %2538 = vmatprep.mubr.bf16.mxu0 0
      %2539 = vmatmul.mubr.bf16.gmra.mxu0 %v2478
      %v2540 = vpop.f32.mrf.mxu0
      %v2541 = vadd.f32 %v2452, %v2540
      %v2542 = vpop.f32.mrf.mxu0
      %v2543 = vpop.f32.mrf.mxu0
      %v2544 = vadd.f32 %v2453, %v2543
      %v2545 = vpop.f32.mrf.mxu0
      %2546 = vmatprep.mubr.bf16.mxu0 0
      %2547 = vmatmul.mubr.bf16.gmra.mxu0 %v2481
      %v2548 = vpop.f32.mrf.mxu0
      %v2549 = vadd.f32 %v2454, %v2548
      %v2550 = vpop.f32.mrf.mxu0
      %v2551 = vpop.f32.mrf.mxu0
      %v2552 = vadd.f32 %v2455, %v2551
      %v2553 = vpop.f32.mrf.mxu0
      %2554 = vmatprep.mubr.bf16.mxu0 0
      %2555 = vmatmul.mubr.bf16.gmra.mxu0 %v2484
      %v2556 = vpop.f32.mrf.mxu0
      %v2557 = vadd.f32 %v2456, %v2556
      %v2558 = vpop.f32.mrf.mxu0
      %v2559 = vpop.f32.mrf.mxu0
      %v2560 = vadd.f32 %v2457, %v2559
      %v2561 = vpop.f32.mrf.mxu0
      %2562 = vdwg.mxu0
      %v2563 = vsel %vm417, %v2533, -inf
      %2564 = vmax.xlane.f32.xlu0 %v2563
      %v2565 = vpop.xlane.xlu0 %2564
      %v2566 = vsel %vm417, %v2536, -inf
      %2567 = vmax.xlane.f32.xlu0 %v2566
      %v2568 = vpop.xlane.xlu0 %2567
      %v2569 = vsel %vm417, %v2541, -inf
      %2570 = vmax.xlane.f32.xlu0 %v2569
      %v2571 = vpop.xlane.xlu0 %2570
      %v2572 = vsel %vm417, %v2544, -inf
      %2573 = vmax.xlane.f32.xlu0 %v2572
      %v2574 = vpop.xlane.xlu0 %2573
      %v2575 = vsel %vm417, %v2549, -inf
      %2576 = vmax.xlane.f32.xlu0 %v2575
      %v2577 = vpop.xlane.xlu0 %2576
      %v2578 = vsel %vm417, %v2552, -inf
      %2579 = vmax.xlane.f32.xlu0 %v2578
      %v2580 = vpop.xlane.xlu0 %2579
      %v2581 = vsel %vm417, %v2557, -inf
      %2582 = vmax.xlane.f32.xlu0 %v2581
      %v2583 = vpop.xlane.xlu0 %2582
      %v2584 = vsel %vm417, %v2560, -inf
      %2585 = vmax.xlane.f32.xlu0 %v2584
      %v2586 = vpop.xlane.xlu0 %2585
      %v2587 = vsub.f32 %v2533, %v2565
      %v2588 = vsub.f32 %v2536, %v2568
      %v2589 = vsub.f32 %v2541, %v2571
      %v2590 = vsub.f32 %v2544, %v2574
      %v2591 = vsub.f32 %v2549, %v2577
      %v2592 = vsub.f32 %v2552, %v2580
      %v2593 = vsub.f32 %v2557, %v2583
      %v2594 = vsub.f32 %v2560, %v2586
      %v2595 = vmul.f32 %v2587, 1.442695
      %v2596 = vpow.pop %v2595
      %v2597 = vmul.f32 %v2588, 1.442695
      %v2598 = vpow.pop %v2597
      %v2599 = vmul.f32 %v2589, 1.442695
      %v2600 = vpow.pop %v2599
      %v2601 = vmul.f32 %v2590, 1.442695
      %v2602 = vpow.pop %v2601
      %v2603 = vmul.f32 %v2591, 1.442695
      %v2604 = vpow.pop %v2603
      %v2605 = vmul.f32 %v2592, 1.442695
      %v2606 = vpow.pop %v2605
      %v2607 = vmul.f32 %v2593, 1.442695
      %v2608 = vpow.pop %v2607
      %v2609 = vmul.f32 %v2594, 1.442695
      %v2610 = vpow.pop %v2609
      %v2611 = vsel %vm417, %v2596, 0.0
      %2612 = vadd.xlane.f32.xlu0 %v2611
      %v2613 = vpop.xlane.xlu0 %2612
      %v2614 = vsel %vm417, %v2598, 0.0
      %2615 = vadd.xlane.f32.xlu0 %v2614
      %v2616 = vpop.xlane.xlu0 %2615
      %v2617 = vsel %vm417, %v2600, 0.0
      %2618 = vadd.xlane.f32.xlu0 %v2617
      %v2619 = vpop.xlane.xlu0 %2618
      %v2620 = vsel %vm417, %v2602, 0.0
      %2621 = vadd.xlane.f32.xlu0 %v2620
      %v2622 = vpop.xlane.xlu0 %2621
      %v2623 = vsel %vm417, %v2604, 0.0
      %2624 = vadd.xlane.f32.xlu0 %v2623
      %v2625 = vpop.xlane.xlu0 %2624
      %v2626 = vsel %vm417, %v2606, 0.0
      %2627 = vadd.xlane.f32.xlu0 %v2626
      %v2628 = vpop.xlane.xlu0 %2627
      %v2629 = vsel %vm417, %v2608, 0.0
      %2630 = vadd.xlane.f32.xlu0 %v2629
      %v2631 = vpop.xlane.xlu0 %2630
      %v2632 = vsel %vm417, %v2610, 0.0
      %2633 = vadd.xlane.f32.xlu0 %v2632
      %v2634 = vpop.xlane.xlu0 %2633
      %v2635 = vpack.c.bf16 %v2598, %v2596
      %v2636 = vpack.c.bf16 %v2602, %v2600
      %v2637 = vpack.c.bf16 %v2606, %v2604
      %v2638 = vpack.c.bf16 %v2610, %v2608
      %2639 = vrot.lane.b32.xlu0 %v1758, 32
      %v2640 = vpop.permute.xlu0 %2639
      %2641 = vrot.lane.b32.xlu0 %v1759, 32
      %v2642 = vpop.permute.xlu0 %2641
      %2643 = vrot.lane.b32.xlu0 %v1760, 32
      %v2644 = vpop.permute.xlu0 %2643
      %2645 = vrot.lane.b32.xlu0 %v1761, 32
      %v2646 = vpop.permute.xlu0 %2645
      %v2652 = vsel %vm417, %v2635, 0
      %v2655 = vsel %vm417, %v2636, 0
      %v2658 = vsel %vm417, %v2637, 0
      %v2661 = vsel %vm417, %v2638, 0
      %2663 = vmatprep.subr.bf16.mxu0 0
      %2664 = vmatpush1.bf16.msra.mxu0 0
      %2665 = vmatprep.subr.bf16.mxu0 0
      %2666 = vmatpush1.bf16.msra.mxu0 0
      %2667 = vmatprep.subr.bf16.mxu0 0
      %2668 = vmatpush1.bf16.msra.mxu0 0
      %2669 = vmatprep.subr.bf16.mxu0 0
      %2670 = vmatpush1.bf16.msra.mxu0 0
      %2671 = vmatprep.subr.bf16.mxu0 0
      %2672 = vmatpush1.bf16.msra.mxu0 %v2646
      %2673 = vmatprep.subr.bf16.mxu0 0
      %2674 = vmatpush1.bf16.msra.mxu0 %v2644
      %2675 = vmatprep.subr.bf16.mxu0 0
      %2676 = vmatpush1.bf16.msra.mxu0 %v2642
      %2677 = vmatprep.subr.bf16.mxu0 0
      %2678 = vmatpush1.bf16.msra.mxu0 %v2640
      %2679 = vmatprep.subr.bf16.mxu0 0
      %2680 = vmatpush2.bf16.msra.mxu0 0
      %2681 = vmatprep.subr.bf16.mxu0 0
      %2682 = vmatpush2.bf16.msra.mxu0 0
      %2683 = vmatprep.subr.bf16.mxu0 0
      %2684 = vmatpush2.bf16.msra.mxu0 0
      %2685 = vmatprep.subr.bf16.mxu0 0
      %2686 = vmatpush2.bf16.msra.mxu0 0
      %2687 = vmatprep.subr.bf16.mxu0 0
      %2688 = vmatpush2.bf16.msra.mxu0 0
      %2689 = vmatprep.subr.bf16.mxu0 0
      %2690 = vmatpush2.bf16.msra.mxu0 0
      %2691 = vmatprep.subr.bf16.mxu0 0
      %2692 = vmatpush2.bf16.msra.mxu0 0
      %2693 = vmatprep.subr.bf16.mxu0 0
      %2694 = vmatpush2.bf16.msra.mxu0 0
      %2695 = vmatprep.mubr.bf16.mxu0 0
      %2696 = vmatmul.mubr.bf16.gmra.mxu0 %v2652
      %v2697 = vpop.f32.mrf.mxu0
      %v2698 = vadd.f32 0.0, %v2697
      %v2699 = vpop.f32.mrf.mxu0
      %v2700 = vpop.f32.mrf.mxu0
      %v2701 = vadd.f32 0.0, %v2700
      %v2702 = vpop.f32.mrf.mxu0
      %2703 = vmatprep.mubr.bf16.mxu0 0
      %2704 = vmatmul.mubr.bf16.gmra.mxu0 %v2655
      %v2705 = vpop.f32.mrf.mxu0
      %v2706 = vadd.f32 0.0, %v2705
      %v2707 = vpop.f32.mrf.mxu0
      %v2708 = vpop.f32.mrf.mxu0
      %v2709 = vadd.f32 0.0, %v2708
      %v2710 = vpop.f32.mrf.mxu0
      %2711 = vmatprep.mubr.bf16.mxu0 0
      %2712 = vmatmul.mubr.bf16.gmra.mxu0 %v2658
      %v2713 = vpop.f32.mrf.mxu0
      %v2714 = vadd.f32 0.0, %v2713
      %v2715 = vpop.f32.mrf.mxu0
      %v2716 = vpop.f32.mrf.mxu0
      %v2717 = vadd.f32 0.0, %v2716
      %v2718 = vpop.f32.mrf.mxu0
      %2719 = vmatprep.mubr.bf16.mxu0 0
      %2720 = vmatmul.mubr.bf16.gmra.mxu0 %v2661
      %v2721 = vpop.f32.mrf.mxu0
      %v2722 = vadd.f32 0.0, %v2721
      %v2723 = vpop.f32.mrf.mxu0
      %v2724 = vpop.f32.mrf.mxu0
      %v2725 = vadd.f32 0.0, %v2724
      %v2726 = vpop.f32.mrf.mxu0
      %2727 = vdwg.mxu0
      %v2728 = vrcp.pop %v2613
      %v2729 = vrcp.pop %v2616
      %v2730 = vrcp.pop %v2619
      %v2731 = vrcp.pop %v2622
      %v2732 = vrcp.pop %v2625
      %v2733 = vrcp.pop %v2628
      %v2734 = vrcp.pop %v2631
      %v2735 = vrcp.pop %v2634
      %v2736 = vmul.f32 %v2698, %v2728
      %v2737 = vmul.f32 %v2701, %v2729
      %v2738 = vmul.f32 %v2706, %v2730
      %v2739 = vmul.f32 %v2709, %v2731
      %v2740 = vmul.f32 %v2714, %v2732
      %v2741 = vmul.f32 %v2717, %v2733
      %v2742 = vmul.f32 %v2722, %v2734
      %v2743 = vmul.f32 %v2725, %v2735
      %2752 = vrot.lane.b32.xlu0 %v898, 32
      %v2753 = vpop.permute.xlu0 %2752
      %2754 = vrot.lane.b32.xlu0 %v899, 32
      %v2755 = vpop.permute.xlu0 %2754
      %2756 = vrot.lane.b32.xlu0 %v900, 32
      %v2757 = vpop.permute.xlu0 %2756
      %2758 = vrot.lane.b32.xlu0 %v901, 32
      %v2759 = vpop.permute.xlu0 %2758
      %2760 = vrot.lane.b32.xlu0 %v902, 32
      %v2761 = vpop.permute.xlu0 %2760
      %2762 = vrot.lane.b32.xlu0 %v903, 32
      %v2763 = vpop.permute.xlu0 %2762
      %2764 = vrot.lane.b32.xlu0 %v904, 32
      %v2765 = vpop.permute.xlu0 %2764
      %2766 = vrot.lane.b32.xlu0 %v905, 32
      %v2767 = vpop.permute.xlu0 %2766
      %2784 = vrot.lane.b32.xlu0 %v1193, 64
      %v2785 = vpop.permute.xlu0 %2784
      %2786 = vrot.lane.b32.xlu0 %v1194, 64
      %v2787 = vpop.permute.xlu0 %2786
      %2788 = vrot.lane.b32.xlu0 %v1195, 64
      %v2789 = vpop.permute.xlu0 %2788
      %2790 = vrot.lane.b32.xlu0 %v1196, 64
      %v2791 = vpop.permute.xlu0 %2790
      %2792 = vrot.lane.b32.xlu0 %v1197, 64
      %v2793 = vpop.permute.xlu0 %2792
      %2794 = vrot.lane.b32.xlu0 %v1198, 64
      %v2795 = vpop.permute.xlu0 %2794
      %2796 = vrot.lane.b32.xlu0 %v1199, 64
      %v2797 = vpop.permute.xlu0 %2796
      %2798 = vrot.lane.b32.xlu0 %v1200, 64
      %v2799 = vpop.permute.xlu0 %2798
      %2816 = vrot.lane.b32.xlu0 %v1488, 96
      %v2817 = vpop.permute.xlu0 %2816
      %2818 = vrot.lane.b32.xlu0 %v1489, 96
      %v2819 = vpop.permute.xlu0 %2818
      %2820 = vrot.lane.b32.xlu0 %v1490, 96
      %v2821 = vpop.permute.xlu0 %2820
      %2822 = vrot.lane.b32.xlu0 %v1491, 96
      %v2823 = vpop.permute.xlu0 %2822
      %2824 = vrot.lane.b32.xlu0 %v1492, 96
      %v2825 = vpop.permute.xlu0 %2824
      %2826 = vrot.lane.b32.xlu0 %v1493, 96
      %v2827 = vpop.permute.xlu0 %2826
      %2828 = vrot.lane.b32.xlu0 %v1494, 96
      %v2829 = vpop.permute.xlu0 %2828
      %2830 = vrot.lane.b32.xlu0 %v1495, 96
      %v2831 = vpop.permute.xlu0 %2830
      %2848 = vrot.lane.b32.xlu0 %v2146, 32
      %v2849 = vpop.permute.xlu0 %2848
      %2850 = vrot.lane.b32.xlu0 %v2147, 32
      %v2851 = vpop.permute.xlu0 %2850
      %2852 = vrot.lane.b32.xlu0 %v2148, 32
      %v2853 = vpop.permute.xlu0 %2852
      %2854 = vrot.lane.b32.xlu0 %v2149, 32
      %v2855 = vpop.permute.xlu0 %2854
      %2856 = vrot.lane.b32.xlu0 %v2150, 32
      %v2857 = vpop.permute.xlu0 %2856
      %2858 = vrot.lane.b32.xlu0 %v2151, 32
      %v2859 = vpop.permute.xlu0 %2858
      %2860 = vrot.lane.b32.xlu0 %v2152, 32
      %v2861 = vpop.permute.xlu0 %2860
      %2862 = vrot.lane.b32.xlu0 %v2153, 32
      %v2863 = vpop.permute.xlu0 %2862
      %2880 = vrot.lane.b32.xlu0 %v2441, 64
      %v2881 = vpop.permute.xlu0 %2880
      %2882 = vrot.lane.b32.xlu0 %v2442, 64
      %v2883 = vpop.permute.xlu0 %2882
      %2884 = vrot.lane.b32.xlu0 %v2443, 64
      %v2885 = vpop.permute.xlu0 %2884
      %2886 = vrot.lane.b32.xlu0 %v2444, 64
      %v2887 = vpop.permute.xlu0 %2886
      %2888 = vrot.lane.b32.xlu0 %v2445, 64
      %v2889 = vpop.permute.xlu0 %2888
      %2890 = vrot.lane.b32.xlu0 %v2446, 64
      %v2891 = vpop.permute.xlu0 %2890
      %2892 = vrot.lane.b32.xlu0 %v2447, 64
      %v2893 = vpop.permute.xlu0 %2892
      %2894 = vrot.lane.b32.xlu0 %v2448, 64
      %v2895 = vpop.permute.xlu0 %2894
      %2912 = vrot.lane.b32.xlu0 %v2736, 96
      %v2913 = vpop.permute.xlu0 %2912
      %2914 = vrot.lane.b32.xlu0 %v2737, 96
      %v2915 = vpop.permute.xlu0 %2914
      %2916 = vrot.lane.b32.xlu0 %v2738, 96
      %v2917 = vpop.permute.xlu0 %2916
      %2918 = vrot.lane.b32.xlu0 %v2739, 96
      %v2919 = vpop.permute.xlu0 %2918
      %2920 = vrot.lane.b32.xlu0 %v2740, 96
      %v2921 = vpop.permute.xlu0 %2920
      %2922 = vrot.lane.b32.xlu0 %v2741, 96
      %v2923 = vpop.permute.xlu0 %2922
      %2924 = vrot.lane.b32.xlu0 %v2742, 96
      %v2925 = vpop.permute.xlu0 %2924
      %2926 = vrot.lane.b32.xlu0 %v2743, 96
      %v2927 = vpop.permute.xlu0 %2926
      %v2936 = vsel %vm327, %v603, %v2753
      %v2937 = vsel %vm327, %v604, %v2755
      %v2938 = vsel %vm327, %v605, %v2757
      %v2939 = vsel %vm327, %v606, %v2759
      %v2940 = vsel %vm327, %v607, %v2761
      %v2941 = vsel %vm327, %v608, %v2763
      %v2942 = vsel %vm327, %v609, %v2765
      %v2943 = vsel %vm327, %v610, %v2767
      %v2944 = vsel %vm417, %v2936, %v2785
      %v2945 = vsel %vm417, %v2937, %v2787
      %v2946 = vsel %vm417, %v2938, %v2789
      %v2947 = vsel %vm417, %v2939, %v2791
      %v2948 = vsel %vm417, %v2940, %v2793
      %v2949 = vsel %vm417, %v2941, %v2795
      %v2950 = vsel %vm417, %v2942, %v2797
      %v2951 = vsel %vm417, %v2943, %v2799
      %vm2952 = vcmask 785408
      %v2953 = vsel %vm2952, %v2944, %v2817
      %v2954 = vsel %vm2952, %v2945, %v2819
      %v2955 = vsel %vm2952, %v2946, %v2821
      %v2956 = vsel %vm2952, %v2947, %v2823
      %v2957 = vsel %vm2952, %v2948, %v2825
      %v2958 = vsel %vm2952, %v2949, %v2827
      %v2959 = vsel %vm2952, %v2950, %v2829
      %v2960 = vsel %vm2952, %v2951, %v2831
      %v2961 = vsel %vm327, %v1851, %v2849
      %v2962 = vsel %vm327, %v1852, %v2851
      %v2963 = vsel %vm327, %v1853, %v2853
      %v2964 = vsel %vm327, %v1854, %v2855
      %v2965 = vsel %vm327, %v1855, %v2857
      %v2966 = vsel %vm327, %v1856, %v2859
      %v2967 = vsel %vm327, %v1857, %v2861
      %v2968 = vsel %vm327, %v1858, %v2863
      %v2969 = vsel %vm417, %v2961, %v2881
      %v2970 = vsel %vm417, %v2962, %v2883
      %v2971 = vsel %vm417, %v2963, %v2885
      %v2972 = vsel %vm417, %v2964, %v2887
      %v2973 = vsel %vm417, %v2965, %v2889
      %v2974 = vsel %vm417, %v2966, %v2891
      %v2975 = vsel %vm417, %v2967, %v2893
      %v2976 = vsel %vm417, %v2968, %v2895
      %v2977 = vsel %vm2952, %v2969, %v2913
      %v2978 = vsel %vm2952, %v2970, %v2915
      %v2979 = vsel %vm2952, %v2971, %v2917
      %v2980 = vsel %vm2952, %v2972, %v2919
      %v2981 = vsel %vm2952, %v2973, %v2921
      %v2982 = vsel %vm2952, %v2974, %v2923
      %v2983 = vsel %vm2952, %v2975, %v2925
      %v2984 = vsel %vm2952, %v2976, %v2927
      %v2985 = vpack.c.bf16 %v2954, %v2953
      %v2986 = vpack.c.bf16 %v2978, %v2977
      %v2987 = vpack.c.bf16 %v2956, %v2955
      %v2988 = vpack.c.bf16 %v2980, %v2979
      %v2989 = vpack.c.bf16 %v2958, %v2957
      %v2990 = vpack.c.bf16 %v2982, %v2981
      %v2991 = vpack.c.bf16 %v2960, %v2959
      %v2992 = vpack.c.bf16 %v2984, %v2983
      %v2993 = vld [vmem:[%s2] sm:$0xf]
      %v2994 = vld [vmem:[%s2 + $0x4] sm:$0xf]
      %v2995 = vld [vmem:[%s2 + $0x8] sm:$0xf]
      %v2996 = vld [vmem:[%s2 + $0xc] sm:$0xf]
      %v2997 = vld [vmem:[%s2 + $0x10] sm:$0xf]
      %v2998 = vld [vmem:[%s2 + $0x14] sm:$0xf]
      %v2999 = vld [vmem:[%s2 + $0x18] sm:$0xf]
      %v3000 = vld [vmem:[%s2 + $0x1c] sm:$0xf]
      %v3001 = vld [vmem:[%s2 + $0x20] sm:$0xf]
      %v3002 = vld [vmem:[%s2 + $0x24] sm:$0xf]
      %v3003 = vld [vmem:[%s2 + $0x28] sm:$0xf]
      %v3004 = vld [vmem:[%s2 + $0x2c] sm:$0xf]
      %v3005 = vld [vmem:[%s2 + $0x30] sm:$0xf]
      %v3006 = vld [vmem:[%s2 + $0x34] sm:$0xf]
      %v3007 = vld [vmem:[%s2 + $0x38] sm:$0xf]
      %v3008 = vld [vmem:[%s2 + $0x3c] sm:$0xf]
      %v3009 = vld [vmem:[%s2 + $0x40] sm:$0xf]
      %v3010 = vld [vmem:[%s2 + $0x44] sm:$0xf]
      %v3011 = vld [vmem:[%s2 + $0x48] sm:$0xf]
      %v3012 = vld [vmem:[%s2 + $0x4c] sm:$0xf]
      %v3013 = vld [vmem:[%s2 + $0x50] sm:$0xf]
      %v3014 = vld [vmem:[%s2 + $0x54] sm:$0xf]
      %v3015 = vld [vmem:[%s2 + $0x58] sm:$0xf]
      %v3016 = vld [vmem:[%s2 + $0x5c] sm:$0xf]
      %v3017 = vld [vmem:[%s2 + $0x60] sm:$0xf]
      %v3018 = vld [vmem:[%s2 + $0x64] sm:$0xf]
      %v3019 = vld [vmem:[%s2 + $0x68] sm:$0xf]
      %v3020 = vld [vmem:[%s2 + $0x6c] sm:$0xf]
      %v3021 = vld [vmem:[%s2 + $0x70] sm:$0xf]
      %v3022 = vld [vmem:[%s2 + $0x74] sm:$0xf]
      %v3023 = vld [vmem:[%s2 + $0x78] sm:$0xf]
      %v3024 = vld [vmem:[%s2 + $0x7c] sm:$0xf]
      %v3025 = vld [vmem:[%s3] sm:$0x1]
      %v3027 = vlaneseq
      %v3028 = vshrl.u32 %v3027, 7
      %v3029 = vsub.s32 0, %v3028
      %v3030 = vrot.slane %v3025, %v3029
      %v3064 = vunpack.c.l.b16 %v2993
      %v3065 = vunpack.c.l.b16 %v2994
      %v3066 = vunpack.c.l.b16 %v2995
      %v3067 = vunpack.c.l.b16 %v2996
      %v3068 = vunpack.c.l.b16 %v2997
      %v3069 = vunpack.c.l.b16 %v2998
      %v3070 = vunpack.c.l.b16 %v2999
      %v3071 = vunpack.c.l.b16 %v3000
      %v3072 = vunpack.c.l.b16 %v3001
      %v3073 = vunpack.c.l.b16 %v3002
      %v3074 = vunpack.c.l.b16 %v3003
      %v3075 = vunpack.c.l.b16 %v3004
      %v3076 = vunpack.c.l.b16 %v3005
      %v3077 = vunpack.c.l.b16 %v3006
      %v3078 = vunpack.c.l.b16 %v3007
      %v3079 = vunpack.c.l.b16 %v3008
      %v3080 = vunpack.c.l.b16 %v3009
      %v3081 = vunpack.c.l.b16 %v3010
      %v3082 = vunpack.c.l.b16 %v3011
      %v3083 = vunpack.c.l.b16 %v3012
      %v3084 = vunpack.c.l.b16 %v3013
      %v3085 = vunpack.c.l.b16 %v3014
      %v3086 = vunpack.c.l.b16 %v3015
      %v3087 = vunpack.c.l.b16 %v3016
      %v3088 = vunpack.c.l.b16 %v3017
      %v3089 = vunpack.c.l.b16 %v3018
      %v3090 = vunpack.c.l.b16 %v3019
      %v3091 = vunpack.c.l.b16 %v3020
      %v3092 = vunpack.c.l.b16 %v3021
      %v3093 = vunpack.c.l.b16 %v3022
      %v3094 = vunpack.c.l.b16 %v3023
      %v3095 = vunpack.c.l.b16 %v3024
      %v3096 = vpack.c.b16 %v3065, %v3064
      %v3097 = vpack.c.b16 %v3067, %v3066
      %v3098 = vpack.c.b16 %v3069, %v3068
      %v3099 = vpack.c.b16 %v3071, %v3070
      %v3100 = vpack.c.b16 %v3073, %v3072
      %v3101 = vpack.c.b16 %v3075, %v3074
      %v3102 = vpack.c.b16 %v3077, %v3076
      %v3103 = vpack.c.b16 %v3079, %v3078
      %v3104 = vpack.c.b16 %v3081, %v3080
      %v3105 = vpack.c.b16 %v3083, %v3082
      %v3106 = vpack.c.b16 %v3085, %v3084
      %v3107 = vpack.c.b16 %v3087, %v3086
      %v3108 = vpack.c.b16 %v3089, %v3088
      %v3109 = vpack.c.b16 %v3091, %v3090
      %v3110 = vpack.c.b16 %v3093, %v3092
      %v3111 = vpack.c.b16 %v3095, %v3094
      %3128 = vmatprep.subr.bf16.mxu0 0
      %3129 = vmatpush1.bf16.msra.mxu0 %v3103
      %3130 = vmatprep.subr.bf16.mxu0 0
      %3131 = vmatpush1.bf16.msra.mxu0 %v3102
      %3132 = vmatprep.subr.bf16.mxu0 0
      %3133 = vmatpush1.bf16.msra.mxu0 %v3101
      %3134 = vmatprep.subr.bf16.mxu0 0
      %3135 = vmatpush1.bf16.msra.mxu0 %v3100
      %3136 = vmatprep.subr.bf16.mxu0 0
      %3137 = vmatpush1.bf16.msra.mxu0 %v3099
      %3138 = vmatprep.subr.bf16.mxu0 0
      %3139 = vmatpush1.bf16.msra.mxu0 %v3098
      %3140 = vmatprep.subr.bf16.mxu0 0
      %3141 = vmatpush1.bf16.msra.mxu0 %v3097
      %3142 = vmatprep.subr.bf16.mxu0 0
      %3143 = vmatpush1.bf16.msra.mxu0 %v3096
      %3144 = vmatprep.subr.bf16.mxu0 0
      %3145 = vmatpush2.bf16.msra.mxu0 %v3111
      %3146 = vmatprep.subr.bf16.mxu0 0
      %3147 = vmatpush2.bf16.msra.mxu0 %v3110
      %3148 = vmatprep.subr.bf16.mxu0 0
      %3149 = vmatpush2.bf16.msra.mxu0 %v3109
      %3150 = vmatprep.subr.bf16.mxu0 0
      %3151 = vmatpush2.bf16.msra.mxu0 %v3108
      %3152 = vmatprep.subr.bf16.mxu0 0
      %3153 = vmatpush2.bf16.msra.mxu0 %v3107
      %3154 = vmatprep.subr.bf16.mxu0 0
      %3155 = vmatpush2.bf16.msra.mxu0 %v3106
      %3156 = vmatprep.subr.bf16.mxu0 0
      %3157 = vmatpush2.bf16.msra.mxu0 %v3105
      %3158 = vmatprep.subr.bf16.mxu0 0
      %3159 = vmatpush2.bf16.msra.mxu0 %v3104
      %3160 = vmatprep.mubr.bf16.mxu0 %v2986
      %3161 = vmatmul.mubr.bf16.gmra.mxu0 %v2985
      %v3162 = vpop.f32.mrf.mxu0
      %v3163 = vadd.f32 %v3030, %v3162
      %v3164 = vpop.f32.mrf.mxu0
      %v3165 = vpop.f32.mrf.mxu0
      %v3166 = vadd.f32 %v3030, %v3165
      %v3167 = vpop.f32.mrf.mxu0
      %3168 = vmatprep.mubr.bf16.mxu0 %v2988
      %3169 = vmatmul.mubr.bf16.gmra.mxu0 %v2987
      %v3170 = vpop.f32.mrf.mxu0
      %v3171 = vadd.f32 %v3030, %v3170
      %v3172 = vpop.f32.mrf.mxu0
      %v3173 = vpop.f32.mrf.mxu0
      %v3174 = vadd.f32 %v3030, %v3173
      %v3175 = vpop.f32.mrf.mxu0
      %3176 = vmatprep.mubr.bf16.mxu0 %v2990
      %3177 = vmatmul.mubr.bf16.gmra.mxu0 %v2989
      %v3178 = vpop.f32.mrf.mxu0
      %v3179 = vadd.f32 %v3030, %v3178
      %v3180 = vpop.f32.mrf.mxu0
      %v3181 = vpop.f32.mrf.mxu0
      %v3182 = vadd.f32 %v3030, %v3181
      %v3183 = vpop.f32.mrf.mxu0
      %3184 = vmatprep.mubr.bf16.mxu0 %v2992
      %3185 = vmatmul.mubr.bf16.gmra.mxu0 %v2991
      %v3186 = vpop.f32.mrf.mxu0
      %v3187 = vadd.f32 %v3030, %v3186
      %v3188 = vpop.f32.mrf.mxu0
      %v3189 = vpop.f32.mrf.mxu0
      %v3190 = vadd.f32 %v3030, %v3189
      %v3191 = vpop.f32.mrf.mxu0
      %3192 = vdwg.mxu0
      %v3193 = vld [vmem:[%s239] sm:$0xff]
      %v3194 = vld [vmem:[%s239 + $0x8] sm:$0xff]
      %v3195 = vld [vmem:[%s239 + $0x10] sm:$0xff]
      %v3196 = vld [vmem:[%s239 + $0x18] sm:$0xff]
      %v3197 = vld [vmem:[%s239 + $0x20] sm:$0xff]
      %v3198 = vld [vmem:[%s239 + $0x28] sm:$0xff]
      %v3199 = vld [vmem:[%s239 + $0x30] sm:$0xff]
      %v3200 = vld [vmem:[%s239 + $0x38] sm:$0xff]
      %v3201 = vadd.f32 %v3163, %v3193
      %v3202 = vadd.f32 %v3166, %v3194
      %v3203 = vadd.f32 %v3171, %v3195
      %v3204 = vadd.f32 %v3174, %v3196
      %v3205 = vadd.f32 %v3179, %v3197
      %v3206 = vadd.f32 %v3182, %v3198
      %v3207 = vadd.f32 %v3187, %v3199
      %v3208 = vadd.f32 %v3190, %v3200
      %3209 = vst.msk [vmem:[%s244] sm:$0xff] %vm417, %v3201
      %3210 = vst.msk [vmem:[%s244 + $0x8] sm:$0xff] %vm417, %v3202
      %3211 = vst.msk [vmem:[%s244 + $0x10] sm:$0xff] %vm417, %v3203
      %3212 = vst.msk [vmem:[%s244 + $0x18] sm:$0xff] %vm417, %v3204
      %3213 = vst.msk [vmem:[%s244 + $0x20] sm:$0xff] %vm417, %v3205
      %3214 = vst.msk [vmem:[%s244 + $0x28] sm:$0xff] %vm417, %v3206
      %3215 = vst.msk [vmem:[%s244 + $0x30] sm:$0xff] %vm417, %v3207
      %3216 = vst.msk [vmem:[%s244 + $0x38] sm:$0xff] %vm417, %v3208
      %p3217 = scmp.lt.s32.totalorder %s16, 1
      %s3218 = scalar_select %p3217, %s16, 1
      %s3219 = smul.addr %s3218, 8
      %s3220 = smul.addr %s3219, 8
      %s3221 = scalar_lea.vmem %s5, %s3220
      // Predicated region
      $region41: #{forward.9} parent=39 // pred_check
        %p3222 = pneg %p149
      $region42: #{forward.9} parent=39 // pred_check_branch
        %3224 = sbr.rel (%p3222) target = $region44
      $region43: #{forward.9} parent=39 // pred_region
        _
      $region44: #{forward.9} parent=39 // pred_fallthru
        _
    $region40: #{forward.9} parent=5 // pred_fallthru
      _
    %p3225 = scmp.le.s32.totalorder 2, %s11
    // Predicated region
    $region45: #{forward.9} parent=5 // pred_check
      %p3226 = pneg %p3225
    $region46: #{forward.9} parent=5 // pred_check_branch
      %3228 = sbr.rel (%p3226) target = $region48
    $region47: #{forward.9} parent=5 // pred_region
      %s3229 = ssub.s32 %s11, 2
      // Predicated region
      $region49: #{forward.9} parent=47 // pred_check
        %p3230 = pneg %p155
      $region50: #{forward.9} parent=47 // pred_check_branch
        %3232 = sbr.rel (%p3230) target = $region52
      $region51: #{forward.9} parent=47 // pred_region
        %p3233 = scmp.lt.s32.totalorder %s17, 1
        %s3234 = scalar_select %p3233, %s17, 1
        %s3235 = smul.addr %s3234, 8
        %s3236 = smul.addr %s3235, 8
        %s3237 = scalar_lea.vmem %s5, %s3236
      $region52: #{forward.9} parent=47 // pred_fallthru
        _
    $region48: #{forward.9} parent=5 // pred_fallthru
      _
  $region6: #{forward.9} parent=0 // loop_footer
    %s15 = sadd.s32 1, %s11
  $region7: #{forward.9} parent=0 // loop_footer_branch
    %10 = sbr.rel target = $region3
  $region8: #{forward.9} parent=0 // loop_exit
    _

</llo_original>
